<compile_context>
chip_gen: v7x
topology: tpu7x:2x2x1
jax: 0.10.0
libtpu: 0.0.40
codegen_flags: <defaults>
</compile_context>

<pallas_src>
import functools
import math

import jax
import jax.numpy as jnp
from jax.experimental import pallas as pl
from jax.experimental.pallas import tpu as pltpu

D_MODEL = 32
HEADS = 4
D_FF = 64
EPS = 1e-6
NEG_INF = -1e18


def _layernorm_torchstd(y, gain, bias):
    # gain * (x - mean) / (std + eps) + bias, std = torch.std (unbiased, N-1).
    d = y.shape[-1]
    mean = jnp.mean(y, axis=-1, keepdims=True)
    centered = y - mean
    var = jnp.sum(centered * centered, axis=-1, keepdims=True) * (1.0 / (d - 1))
    std = jnp.sqrt(var)
    # exact reciprocal (approx=False) keeps LN numerics identical to a divide
    return gain * centered * pl.reciprocal(std + EPS, approx=False) + bias


def _mha(xb, kvb, addmask, wq, bq, wk, bk, wv, bv, wo, bo, *, heads, scale):
    """Multi-head attention for one batch element.

    Heads live on the leading (batched) axis of every tensor, so there is no
    lane-dimension slicing or concatenation.
      xb:      (Sq, D)   kvb: (Sk, D)   addmask: (Sq, Sk) additive f32
      wq/wk/wv:(H, D, dh) bq/bk/bv:(H, 1, dh)  wo:(H, dh, D)  bo:(1, D)
    """
    xh = jnp.broadcast_to(xb, (heads,) + xb.shape)       # (H, Sq, D)
    kvh = jnp.broadcast_to(kvb, (heads,) + kvb.shape)    # (H, Sk, D)

    q = jnp.einsum('hqe,hed->hqd', xh, wq, preferred_element_type=jnp.float32) + bq
    k = jnp.einsum('hke,hed->hkd', kvh, wk, preferred_element_type=jnp.float32) + bk
    v = jnp.einsum('hke,hed->hkd', kvh, wv, preferred_element_type=jnp.float32) + bv

    s = jnp.einsum('hqd,hkd->hqk', q, k, preferred_element_type=jnp.float32) * scale
    s = s + addmask[None, :, :]                           # additive mask (0 / -1e18)
    s = s - jnp.max(s, axis=-1, keepdims=True)
    p = jnp.exp(s)
    p = p * pl.reciprocal(jnp.sum(p, axis=-1, keepdims=True), approx=True)

    ctx = jnp.einsum('hqk,hkd->hqd', p, v, preferred_element_type=jnp.float32)
    out = jnp.einsum('hqd,hde->hqe', ctx, wo, preferred_element_type=jnp.float32)
    return jnp.sum(out, axis=0) + bo                      # (Sq, D)


def decoder_layer_kernel(x_ref, mem_ref, self_mask_ref, mem_mask_ref,
                         sa_wq, sa_bq, sa_wk, sa_bk, sa_wv, sa_bv, sa_wo, sa_bo, sa_g, sa_b,
                         ma_wq, ma_bq, ma_wk, ma_bk, ma_wv, ma_bv, ma_wo, ma_bo, ma_g, ma_b,
                         ff_w1, ff_b1, ff_w2, ff_b2, ff_g, ff_b,
                         out_ref, *, batch, heads, d_head):
    scale = 1.0 / math.sqrt(d_head)

    # Hoist every weight load out of the (unrolled) batch loop: each operand is read
    # from VMEM exactly once and held in vregs across batch elements.
    sa_w = tuple(r[...] for r in (sa_wq, sa_bq, sa_wk, sa_bk, sa_wv, sa_bv, sa_wo, sa_bo))
    sa_gain, sa_bias = sa_g[...], sa_b[...]
    ma_w = tuple(r[...] for r in (ma_wq, ma_bq, ma_wk, ma_bk, ma_wv, ma_bv, ma_wo, ma_bo))
    ma_gain, ma_bias = ma_g[...], ma_b[...]
    w1, b1, w2, b2 = ff_w1[...], ff_b1[...], ff_w2[...], ff_b2[...]
    ff_gain, ff_bias = ff_g[...], ff_b[...]

    for b in range(batch):                  # static -> fully unrolled, no grid overhead
        xb = x_ref[b]                       # (Sq, D)
        memb = mem_ref[b]                   # (Smem, D)
        smask = self_mask_ref[b]            # (Sq, Sq)   additive f32
        mmask = mem_mask_ref[b]             # (Sq, Smem) additive f32

        # --- self-attention sublayer (residual + layernorm) ---
        a = _mha(xb, xb, smask, *sa_w, heads=heads, scale=scale)
        x1 = _layernorm_torchstd(a + xb, sa_gain, sa_bias)

        # --- memory-attention sublayer ---
        a2 = _mha(x1, memb, mmask, *ma_w, heads=heads, scale=scale)
        x2 = _layernorm_torchstd(a2 + x1, ma_gain, ma_bias)

        # --- pointwise feed-forward sublayer ---
        h = jnp.maximum(jnp.dot(x2, w1, preferred_element_type=jnp.float32) + b1, 0.0)
        f = jnp.dot(h, w2, preferred_element_type=jnp.float32) + b2
        out_ref[b] = _layernorm_torchstd(f + x2, ff_gain, ff_bias)


def _split_heads_params(params, heads):
    """Pre-split attention weights per head (done once, in plain JAX, outside the kernel)."""
    wq, bq, wk, bk, wv, bv, wo, bo, gain, bias = params
    d_model = wq.shape[0]
    d_head = d_model // heads

    def split_in(w):      # (D, D) -> (H, D, dh): head h <- output cols [h*dh:(h+1)*dh]
        return w.reshape(d_model, heads, d_head).transpose(1, 0, 2)

    def split_bias(b):    # (1, D) -> (H, 1, dh)
        return b.reshape(heads, 1, d_head)

    wo_h = wo.reshape(heads, d_head, d_model)   # head h <- rows [h*dh:(h+1)*dh]
    return (split_in(wq), split_bias(bq), split_in(wk), split_bias(bk),
            split_in(wv), split_bias(bv), wo_h, bo, gain, bias)


def _additive_mask(mask):
    # nonzero == masked  ->  -1e18 additive term (matches masked_fill(mask, -1e18))
    return jnp.where(mask != 0, jnp.float32(NEG_INF), jnp.float32(0.0))


def transformer_decoder_layer(inputs, memory, memory_mask, inputs_mask, params,
                              heads=HEADS):
    # TODO(synk): layer_cache (incremental decoding KV cache) path not implemented;
    #             dropout is identity (eval mode).
    B, Sq, D = inputs.shape
    d_head = D // heads

    sa = _split_heads_params(params["self_attn"], heads)
    ma = _split_heads_params(params["mem_attn"], heads)
    ff = params["ffn"]

    self_mask = _additive_mask(inputs_mask)
    mem_mask = _additive_mask(memory_mask)

    kernel = functools.partial(decoder_layer_kernel, batch=B, heads=heads, d_head=d_head)
    n_in = 4 + len(sa) + len(ma) + len(ff)

    # Single fused kernel, no grid: every operand is one whole-array VMEM block.
    return pl.pallas_call(
        kernel,
        out_shape=jax.ShapeDtypeStruct((B, Sq, D), jnp.float32),
        in_specs=[pl.BlockSpec(memory_space=pltpu.MemorySpace.VMEM)] * n_in,
        out_specs=pl.BlockSpec(memory_space=pltpu.MemorySpace.VMEM),
    )(inputs, memory, self_mask, mem_mask, *sa, *ma, *ff)


def _init_linear(key, d_in, d_out, scale=0.05):
    kw, _ = jax.random.split(key)
    w = scale * jax.random.normal(kw, (d_in, d_out), jnp.float32)
    b = jnp.zeros((1, d_out), jnp.float32)
    return w, b


def init_params(key, d_model, d_ff):
    keys = jax.random.split(key, 10)

    def attn_params(ks):
        wq, bq = _init_linear(ks[0], d_model, d_model)
        wk, bk = _init_linear(ks[1], d_model, d_model)
        wv, bv = _init_linear(ks[2], d_model, d_model)
        wo, bo = _init_linear(ks[3], d_model, d_model)
        gain = jnp.ones((1, d_model), jnp.float32)
        bias = jnp.zeros((1, d_model), jnp.float32)
        return (wq, bq, wk, bk, wv, bv, wo, bo, gain, bias)

    self_attn = attn_params(keys[0:4])
    mem_attn = attn_params(keys[4:8])
    w1, b1 = _init_linear(keys[8], d_model, d_ff)
    w2, b2 = _init_linear(keys[9], d_ff, d_model)
    ffn = (w1, b1, w2, b2,
           jnp.ones((1, d_model), jnp.float32),
           jnp.zeros((1, d_model), jnp.float32))
    return {"self_attn": self_attn, "mem_attn": mem_attn, "ffn": ffn}


if __name__ == "__main__":
    key = jax.random.PRNGKey(0)
    k_in, k_mem, k_par = jax.random.split(key, 3)

    B, Sq, Smem = 2, 8, 8
    inputs = jax.random.normal(k_in, (B, Sq, D_MODEL), jnp.float32)
    memory = jax.random.normal(k_mem, (B, Smem, D_MODEL), jnp.float32)

    # inputs_mask: causal (mask future positions); memory_mask: no masking.
    causal = (jnp.arange(Sq)[:, None] < jnp.arange(Sq)[None, :]).astype(jnp.int32)
    inputs_mask = jnp.broadcast_to(causal, (B, Sq, Sq))
    memory_mask = jnp.zeros((B, Sq, Smem), jnp.int32)

    params = init_params(k_par, D_MODEL, D_FF)

    out = transformer_decoder_layer(inputs, memory, memory_mask, inputs_mask, params)
    out = jax.block_until_ready(out)
    assert out.shape == (B, Sq, D_MODEL) and out.dtype == jnp.float32
    print("KERNEL_OK")
</pallas_src>

<mosaic_0001>
module attributes {stable_mosaic.version = 11 : i64} {
  func.func @decoder_layer_kernel(%arg0: memref<2x8x32xf32, #tpu.memory_space<vmem>>, %arg1: memref<2x8x32xf32, #tpu.memory_space<vmem>>, %arg2: memref<2x8x8xf32, #tpu.memory_space<vmem>>, %arg3: memref<2x8x8xf32, #tpu.memory_space<vmem>>, %arg4: memref<4x32x8xf32, #tpu.memory_space<vmem>>, %arg5: memref<4x1x8xf32, #tpu.memory_space<vmem>>, %arg6: memref<4x32x8xf32, #tpu.memory_space<vmem>>, %arg7: memref<4x1x8xf32, #tpu.memory_space<vmem>>, %arg8: memref<4x32x8xf32, #tpu.memory_space<vmem>>, %arg9: memref<4x1x8xf32, #tpu.memory_space<vmem>>, %arg10: memref<4x8x32xf32, #tpu.memory_space<vmem>>, %arg11: memref<1x32xf32, #tpu.memory_space<vmem>>, %arg12: memref<1x32xf32, #tpu.memory_space<vmem>>, %arg13: memref<1x32xf32, #tpu.memory_space<vmem>>, %arg14: memref<4x32x8xf32, #tpu.memory_space<vmem>>, %arg15: memref<4x1x8xf32, #tpu.memory_space<vmem>>, %arg16: memref<4x32x8xf32, #tpu.memory_space<vmem>>, %arg17: memref<4x1x8xf32, #tpu.memory_space<vmem>>, %arg18: memref<4x32x8xf32, #tpu.memory_space<vmem>>, %arg19: memref<4x1x8xf32, #tpu.memory_space<vmem>>, %arg20: memref<4x8x32xf32, #tpu.memory_space<vmem>>, %arg21: memref<1x32xf32, #tpu.memory_space<vmem>>, %arg22: memref<1x32xf32, #tpu.memory_space<vmem>>, %arg23: memref<1x32xf32, #tpu.memory_space<vmem>>, %arg24: memref<32x64xf32, #tpu.memory_space<vmem>>, %arg25: memref<1x64xf32, #tpu.memory_space<vmem>>, %arg26: memref<64x32xf32, #tpu.memory_space<vmem>>, %arg27: memref<1x32xf32, #tpu.memory_space<vmem>>, %arg28: memref<1x32xf32, #tpu.memory_space<vmem>>, %arg29: memref<1x32xf32, #tpu.memory_space<vmem>>, %arg30: memref<2x8x32xf32, #tpu.memory_space<vmem>>) attributes {dimension_semantics = [], scalar_prefetch = 0 : i64, scratch_operands = 0 : i64, tpu.core_type = #tpu.core_type<tc>} {
    %c0 = arith.constant 0 : index
    %c0_0 = arith.constant 0 : index
    %c0_1 = arith.constant 0 : index
    %0 = vector.load %arg4[%c0, %c0_0, %c0_1] : memref<4x32x8xf32, #tpu.memory_space<vmem>>, vector<4x32x8xf32>
    %c0_2 = arith.constant 0 : index
    %c0_3 = arith.constant 0 : index
    %c0_4 = arith.constant 0 : index
    %1 = vector.load %arg5[%c0_2, %c0_3, %c0_4] : memref<4x1x8xf32, #tpu.memory_space<vmem>>, vector<4x1x8xf32>
    %c0_5 = arith.constant 0 : index
    %c0_6 = arith.constant 0 : index
    %c0_7 = arith.constant 0 : index
    %2 = vector.load %arg6[%c0_5, %c0_6, %c0_7] : memref<4x32x8xf32, #tpu.memory_space<vmem>>, vector<4x32x8xf32>
    %c0_8 = arith.constant 0 : index
    %c0_9 = arith.constant 0 : index
    %c0_10 = arith.constant 0 : index
    %3 = vector.load %arg7[%c0_8, %c0_9, %c0_10] : memref<4x1x8xf32, #tpu.memory_space<vmem>>, vector<4x1x8xf32>
    %c0_11 = arith.constant 0 : index
    %c0_12 = arith.constant 0 : index
    %c0_13 = arith.constant 0 : index
    %4 = vector.load %arg8[%c0_11, %c0_12, %c0_13] : memref<4x32x8xf32, #tpu.memory_space<vmem>>, vector<4x32x8xf32>
    %c0_14 = arith.constant 0 : index
    %c0_15 = arith.constant 0 : index
    %c0_16 = arith.constant 0 : index
    %5 = vector.load %arg9[%c0_14, %c0_15, %c0_16] : memref<4x1x8xf32, #tpu.memory_space<vmem>>, vector<4x1x8xf32>
    %c0_17 = arith.constant 0 : index
    %c0_18 = arith.constant 0 : index
    %c0_19 = arith.constant 0 : index
    %6 = vector.load %arg10[%c0_17, %c0_18, %c0_19] : memref<4x8x32xf32, #tpu.memory_space<vmem>>, vector<4x8x32xf32>
    %c0_20 = arith.constant 0 : index
    %c0_21 = arith.constant 0 : index
    %7 = vector.load %arg11[%c0_20, %c0_21] : memref<1x32xf32, #tpu.memory_space<vmem>>, vector<1x32xf32>
    %c0_22 = arith.constant 0 : index
    %c0_23 = arith.constant 0 : index
    %8 = vector.load %arg12[%c0_22, %c0_23] : memref<1x32xf32, #tpu.memory_space<vmem>>, vector<1x32xf32>
    %c0_24 = arith.constant 0 : index
    %c0_25 = arith.constant 0 : index
    %9 = vector.load %arg13[%c0_24, %c0_25] : memref<1x32xf32, #tpu.memory_space<vmem>>, vector<1x32xf32>
    %c0_26 = arith.constant 0 : index
    %c0_27 = arith.constant 0 : index
    %c0_28 = arith.constant 0 : index
    %10 = vector.load %arg14[%c0_26, %c0_27, %c0_28] : memref<4x32x8xf32, #tpu.memory_space<vmem>>, vector<4x32x8xf32>
    %c0_29 = arith.constant 0 : index
    %c0_30 = arith.constant 0 : index
    %c0_31 = arith.constant 0 : index
    %11 = vector.load %arg15[%c0_29, %c0_30, %c0_31] : memref<4x1x8xf32, #tpu.memory_space<vmem>>, vector<4x1x8xf32>
    %c0_32 = arith.constant 0 : index
    %c0_33 = arith.constant 0 : index
    %c0_34 = arith.constant 0 : index
    %12 = vector.load %arg16[%c0_32, %c0_33, %c0_34] : memref<4x32x8xf32, #tpu.memory_space<vmem>>, vector<4x32x8xf32>
    %c0_35 = arith.constant 0 : index
    %c0_36 = arith.constant 0 : index
    %c0_37 = arith.constant 0 : index
    %13 = vector.load %arg17[%c0_35, %c0_36, %c0_37] : memref<4x1x8xf32, #tpu.memory_space<vmem>>, vector<4x1x8xf32>
    %c0_38 = arith.constant 0 : index
    %c0_39 = arith.constant 0 : index
    %c0_40 = arith.constant 0 : index
    %14 = vector.load %arg18[%c0_38, %c0_39, %c0_40] : memref<4x32x8xf32, #tpu.memory_space<vmem>>, vector<4x32x8xf32>
    %c0_41 = arith.constant 0 : index
    %c0_42 = arith.constant 0 : index
    %c0_43 = arith.constant 0 : index
    %15 = vector.load %arg19[%c0_41, %c0_42, %c0_43] : memref<4x1x8xf32, #tpu.memory_space<vmem>>, vector<4x1x8xf32>
    %c0_44 = arith.constant 0 : index
    %c0_45 = arith.constant 0 : index
    %c0_46 = arith.constant 0 : index
    %16 = vector.load %arg20[%c0_44, %c0_45, %c0_46] : memref<4x8x32xf32, #tpu.memory_space<vmem>>, vector<4x8x32xf32>
    %c0_47 = arith.constant 0 : index
    %c0_48 = arith.constant 0 : index
    %17 = vector.load %arg21[%c0_47, %c0_48] : memref<1x32xf32, #tpu.memory_space<vmem>>, vector<1x32xf32>
    %c0_49 = arith.constant 0 : index
    %c0_50 = arith.constant 0 : index
    %18 = vector.load %arg22[%c0_49, %c0_50] : memref<1x32xf32, #tpu.memory_space<vmem>>, vector<1x32xf32>
    %c0_51 = arith.constant 0 : index
    %c0_52 = arith.constant 0 : index
    %19 = vector.load %arg23[%c0_51, %c0_52] : memref<1x32xf32, #tpu.memory_space<vmem>>, vector<1x32xf32>
    %c0_53 = arith.constant 0 : index
    %c0_54 = arith.constant 0 : index
    %20 = vector.load %arg24[%c0_53, %c0_54] : memref<32x64xf32, #tpu.memory_space<vmem>>, vector<32x64xf32>
    %c0_55 = arith.constant 0 : index
    %c0_56 = arith.constant 0 : index
    %21 = vector.load %arg25[%c0_55, %c0_56] : memref<1x64xf32, #tpu.memory_space<vmem>>, vector<1x64xf32>
    %c0_57 = arith.constant 0 : index
    %c0_58 = arith.constant 0 : index
    %22 = vector.load %arg26[%c0_57, %c0_58] : memref<64x32xf32, #tpu.memory_space<vmem>>, vector<64x32xf32>
    %c0_59 = arith.constant 0 : index
    %c0_60 = arith.constant 0 : index
    %23 = vector.load %arg27[%c0_59, %c0_60] : memref<1x32xf32, #tpu.memory_space<vmem>>, vector<1x32xf32>
    %c0_61 = arith.constant 0 : index
    %c0_62 = arith.constant 0 : index
    %24 = vector.load %arg28[%c0_61, %c0_62] : memref<1x32xf32, #tpu.memory_space<vmem>>, vector<1x32xf32>
    %c0_63 = arith.constant 0 : index
    %c0_64 = arith.constant 0 : index
    %25 = vector.load %arg29[%c0_63, %c0_64] : memref<1x32xf32, #tpu.memory_space<vmem>>, vector<1x32xf32>
    %c0_65 = arith.constant 0 : index
    %c0_66 = arith.constant 0 : index
    %c0_67 = arith.constant 0 : index
    %26 = vector.load %arg0[%c0_65, %c0_66, %c0_67] : memref<2x8x32xf32, #tpu.memory_space<vmem>>, vector<1x8x32xf32>
    %27 = vector.shape_cast %26 : vector<1x8x32xf32> to vector<8x32xf32>
    %c0_68 = arith.constant 0 : index
    %c0_69 = arith.constant 0 : index
    %c0_70 = arith.constant 0 : index
    %28 = vector.load %arg1[%c0_68, %c0_69, %c0_70] : memref<2x8x32xf32, #tpu.memory_space<vmem>>, vector<1x8x32xf32>
    %29 = vector.shape_cast %28 : vector<1x8x32xf32> to vector<8x32xf32>
    %c0_71 = arith.constant 0 : index
    %c0_72 = arith.constant 0 : index
    %c0_73 = arith.constant 0 : index
    %30 = vector.load %arg2[%c0_71, %c0_72, %c0_73] : memref<2x8x8xf32, #tpu.memory_space<vmem>>, vector<1x8x8xf32>
    %31 = vector.shape_cast %30 : vector<1x8x8xf32> to vector<8x8xf32>
    %c0_74 = arith.constant 0 : index
    %c0_75 = arith.constant 0 : index
    %c0_76 = arith.constant 0 : index
    %32 = vector.load %arg3[%c0_74, %c0_75, %c0_76] : memref<2x8x8xf32, #tpu.memory_space<vmem>>, vector<1x8x8xf32>
    %33 = vector.shape_cast %32 : vector<1x8x8xf32> to vector<8x8xf32>
    %34 = vector.shape_cast %27 : vector<8x32xf32> to vector<1x8x32xf32>
    %35 = vector.broadcast %34 : vector<1x8x32xf32> to vector<4x8x32xf32>
    %36 = vector.shape_cast %27 : vector<8x32xf32> to vector<1x8x32xf32>
    %37 = vector.broadcast %36 : vector<1x8x32xf32> to vector<4x8x32xf32>
    "tpu.trace_start"() <{level = 10 : i32, message = "hqe,hed->hqd"}> : () -> ()
    %cst = arith.constant dense<0.000000e+00> : vector<4x8x8xf32>
    %38 = tpu.matmul %35, %0, %cst {dimension_numbers = #tpu.dot_dimension_numbers<[2], [1], [1], [2], [0, 0, 0, 1, 1, 2], [0], [0]>} : vector<4x8x32xf32>, vector<4x32x8xf32>, vector<4x8x8xf32> -> vector<4x8x8xf32>
    "tpu.trace_stop"() : () -> ()
    %39 = vector.broadcast %1 : vector<4x1x8xf32> to vector<4x8x8xf32>
    %40 = arith.addf %38, %39 : vector<4x8x8xf32>
    "tpu.trace_start"() <{level = 10 : i32, message = "hke,hed->hkd"}> : () -> ()
    %cst_77 = arith.constant dense<0.000000e+00> : vector<4x8x8xf32>
    %41 = tpu.matmul %37, %2, %cst_77 {dimension_numbers = #tpu.dot_dimension_numbers<[2], [1], [1], [2], [0, 0, 0, 1, 1, 2], [0], [0]>} : vector<4x8x32xf32>, vector<4x32x8xf32>, vector<4x8x8xf32> -> vector<4x8x8xf32>
    "tpu.trace_stop"() : () -> ()
    %42 = vector.broadcast %3 : vector<4x1x8xf32> to vector<4x8x8xf32>
    %43 = arith.addf %41, %42 : vector<4x8x8xf32>
    "tpu.trace_start"() <{level = 10 : i32, message = "hke,hed->hkd"}> : () -> ()
    %cst_78 = arith.constant dense<0.000000e+00> : vector<4x8x8xf32>
    %44 = tpu.matmul %37, %4, %cst_78 {dimension_numbers = #tpu.dot_dimension_numbers<[2], [1], [1], [2], [0, 0, 0, 1, 1, 2], [0], [0]>} : vector<4x8x32xf32>, vector<4x32x8xf32>, vector<4x8x8xf32> -> vector<4x8x8xf32>
    "tpu.trace_stop"() : () -> ()
    %45 = vector.broadcast %5 : vector<4x1x8xf32> to vector<4x8x8xf32>
    %46 = arith.addf %44, %45 : vector<4x8x8xf32>
    "tpu.trace_start"() <{level = 10 : i32, message = "hqd,hkd->hqk"}> : () -> ()
    %cst_79 = arith.constant dense<0.000000e+00> : vector<4x8x8xf32>
    %47 = tpu.matmul %40, %43, %cst_79 {dimension_numbers = #tpu.dot_dimension_numbers<[2], [2], [1], [1], [0, 0, 0, 1, 1, 1], [0], [0]>} : vector<4x8x8xf32>, vector<4x8x8xf32>, vector<4x8x8xf32> -> vector<4x8x8xf32>
    "tpu.trace_stop"() : () -> ()
    %cst_80 = arith.constant 0.353553385 : f32
    %48 = vector.broadcast %cst_80 : f32 to vector<4x8x8xf32>
    %49 = arith.mulf %47, %48 : vector<4x8x8xf32>
    %50 = vector.shape_cast %31 : vector<8x8xf32> to vector<1x8x8xf32>
    %51 = vector.broadcast %50 : vector<1x8x8xf32> to vector<4x8x8xf32>
    %52 = arith.addf %49, %51 : vector<4x8x8xf32>
    %cst_81 = arith.constant dense<0xFF800000> : vector<4x8xf32>
    %53 = vector.multi_reduction <maximumf>, %52, %cst_81 [2] : vector<4x8x8xf32> to vector<4x8xf32>
    %54 = vector.shape_cast %53 : vector<4x8xf32> to vector<4x8x1xf32>
    %55 = vector.broadcast %54 : vector<4x8x1xf32> to vector<4x8x8xf32>
    %56 = arith.subf %52, %55 : vector<4x8x8xf32>
    %57 = math.exp %56 : vector<4x8x8xf32>
    %cst_82 = arith.constant dense<0.000000e+00> : vector<4x8xf32>
    %58 = vector.multi_reduction <add>, %57, %cst_82 [2] : vector<4x8x8xf32> to vector<4x8xf32>
    %59 = vector.shape_cast %58 : vector<4x8xf32> to vector<4x8x1xf32>
    %60 = tpu.reciprocal %59 {approx = true} : vector<4x8x1xf32> -> vector<4x8x1xf32>
    %61 = vector.broadcast %60 : vector<4x8x1xf32> to vector<4x8x8xf32>
    %62 = arith.mulf %57, %61 : vector<4x8x8xf32>
    "tpu.trace_start"() <{level = 10 : i32, message = "hqk,hkd->hqd"}> : () -> ()
    %cst_83 = arith.constant dense<0.000000e+00> : vector<4x8x8xf32>
    %63 = tpu.matmul %62, %46, %cst_83 {dimension_numbers = #tpu.dot_dimension_numbers<[2], [1], [1], [2], [0, 0, 0, 1, 1, 2], [0], [0]>} : vector<4x8x8xf32>, vector<4x8x8xf32>, vector<4x8x8xf32> -> vector<4x8x8xf32>
    "tpu.trace_stop"() : () -> ()
    "tpu.trace_start"() <{level = 10 : i32, message = "hqd,hde->hqe"}> : () -> ()
    %cst_84 = arith.constant dense<0.000000e+00> : vector<4x8x32xf32>
    %64 = tpu.matmul %63, %6, %cst_84 {dimension_numbers = #tpu.dot_dimension_numbers<[2], [1], [1], [2], [0, 0, 0, 1, 1, 2], [0], [0]>} : vector<4x8x8xf32>, vector<4x8x32xf32>, vector<4x8x32xf32> -> vector<4x8x32xf32>
    "tpu.trace_stop"() : () -> ()
    %cst_85 = arith.constant dense<0.000000e+00> : vector<8x32xf32>
    %65 = vector.multi_reduction <add>, %64, %cst_85 [0] : vector<4x8x32xf32> to vector<8x32xf32>
    %66 = vector.broadcast %7 : vector<1x32xf32> to vector<8x32xf32>
    %67 = arith.addf %65, %66 : vector<8x32xf32>
    %68 = arith.addf %67, %27 : vector<8x32xf32>
    %cst_86 = arith.constant dense<0.000000e+00> : vector<8xf32>
    %69 = vector.multi_reduction <add>, %68, %cst_86 [1] : vector<8x32xf32> to vector<8xf32>
    %70 = vector.shape_cast %69 : vector<8xf32> to vector<8x1xf32>
    %cst_87 = arith.constant 3.200000e+01 : f32
    %71 = vector.broadcast %cst_87 : f32 to vector<8x1xf32>
    %72 = arith.divf %70, %71 : vector<8x1xf32>
    %73 = vector.broadcast %72 : vector<8x1xf32> to vector<8x32xf32>
    %74 = arith.subf %68, %73 : vector<8x32xf32>
    %75 = arith.mulf %74, %74 : vector<8x32xf32>
    %cst_88 = arith.constant dense<0.000000e+00> : vector<8xf32>
    %76 = vector.multi_reduction <add>, %75, %cst_88 [1] : vector<8x32xf32> to vector<8xf32>
    %77 = vector.shape_cast %76 : vector<8xf32> to vector<8x1xf32>
    %cst_89 = arith.constant 0.0322580636 : f32
    %78 = vector.broadcast %cst_89 : f32 to vector<8x1xf32>
    %79 = arith.mulf %77, %78 : vector<8x1xf32>
    %80 = math.sqrt %79 : vector<8x1xf32>
    %81 = vector.broadcast %8 : vector<1x32xf32> to vector<8x32xf32>
    %82 = arith.mulf %81, %74 : vector<8x32xf32>
    %cst_90 = arith.constant 9.99999997E-7 : f32
    %83 = vector.broadcast %cst_90 : f32 to vector<8x1xf32>
    %84 = arith.addf %80, %83 : vector<8x1xf32>
    %85 = tpu.reciprocal %84 : vector<8x1xf32> -> vector<8x1xf32>
    %86 = vector.broadcast %85 : vector<8x1xf32> to vector<8x32xf32>
    %87 = arith.mulf %82, %86 : vector<8x32xf32>
    %88 = vector.broadcast %9 : vector<1x32xf32> to vector<8x32xf32>
    %89 = arith.addf %87, %88 : vector<8x32xf32>
    %90 = vector.shape_cast %89 : vector<8x32xf32> to vector<1x8x32xf32>
    %91 = vector.broadcast %90 : vector<1x8x32xf32> to vector<4x8x32xf32>
    %92 = vector.shape_cast %29 : vector<8x32xf32> to vector<1x8x32xf32>
    %93 = vector.broadcast %92 : vector<1x8x32xf32> to vector<4x8x32xf32>
    "tpu.trace_start"() <{level = 10 : i32, message = "hqe,hed->hqd"}> : () -> ()
    %cst_91 = arith.constant dense<0.000000e+00> : vector<4x8x8xf32>
    %94 = tpu.matmul %91, %10, %cst_91 {dimension_numbers = #tpu.dot_dimension_numbers<[2], [1], [1], [2], [0, 0, 0, 1, 1, 2], [0], [0]>} : vector<4x8x32xf32>, vector<4x32x8xf32>, vector<4x8x8xf32> -> vector<4x8x8xf32>
    "tpu.trace_stop"() : () -> ()
    %95 = vector.broadcast %11 : vector<4x1x8xf32> to vector<4x8x8xf32>
    %96 = arith.addf %94, %95 : vector<4x8x8xf32>
    "tpu.trace_start"() <{level = 10 : i32, message = "hke,hed->hkd"}> : () -> ()
    %cst_92 = arith.constant dense<0.000000e+00> : vector<4x8x8xf32>
    %97 = tpu.matmul %93, %12, %cst_92 {dimension_numbers = #tpu.dot_dimension_numbers<[2], [1], [1], [2], [0, 0, 0, 1, 1, 2], [0], [0]>} : vector<4x8x32xf32>, vector<4x32x8xf32>, vector<4x8x8xf32> -> vector<4x8x8xf32>
    "tpu.trace_stop"() : () -> ()
    %98 = vector.broadcast %13 : vector<4x1x8xf32> to vector<4x8x8xf32>
    %99 = arith.addf %97, %98 : vector<4x8x8xf32>
    "tpu.trace_start"() <{level = 10 : i32, message = "hke,hed->hkd"}> : () -> ()
    %cst_93 = arith.constant dense<0.000000e+00> : vector<4x8x8xf32>
    %100 = tpu.matmul %93, %14, %cst_93 {dimension_numbers = #tpu.dot_dimension_numbers<[2], [1], [1], [2], [0, 0, 0, 1, 1, 2], [0], [0]>} : vector<4x8x32xf32>, vector<4x32x8xf32>, vector<4x8x8xf32> -> vector<4x8x8xf32>
    "tpu.trace_stop"() : () -> ()
    %101 = vector.broadcast %15 : vector<4x1x8xf32> to vector<4x8x8xf32>
    %102 = arith.addf %100, %101 : vector<4x8x8xf32>
    "tpu.trace_start"() <{level = 10 : i32, message = "hqd,hkd->hqk"}> : () -> ()
    %cst_94 = arith.constant dense<0.000000e+00> : vector<4x8x8xf32>
    %103 = tpu.matmul %96, %99, %cst_94 {dimension_numbers = #tpu.dot_dimension_numbers<[2], [2], [1], [1], [0, 0, 0, 1, 1, 1], [0], [0]>} : vector<4x8x8xf32>, vector<4x8x8xf32>, vector<4x8x8xf32> -> vector<4x8x8xf32>
    "tpu.trace_stop"() : () -> ()
    %cst_95 = arith.constant 0.353553385 : f32
    %104 = vector.broadcast %cst_95 : f32 to vector<4x8x8xf32>
    %105 = arith.mulf %103, %104 : vector<4x8x8xf32>
    %106 = vector.shape_cast %33 : vector<8x8xf32> to vector<1x8x8xf32>
    %107 = vector.broadcast %106 : vector<1x8x8xf32> to vector<4x8x8xf32>
    %108 = arith.addf %105, %107 : vector<4x8x8xf32>
    %cst_96 = arith.constant dense<0xFF800000> : vector<4x8xf32>
    %109 = vector.multi_reduction <maximumf>, %108, %cst_96 [2] : vector<4x8x8xf32> to vector<4x8xf32>
    %110 = vector.shape_cast %109 : vector<4x8xf32> to vector<4x8x1xf32>
    %111 = vector.broadcast %110 : vector<4x8x1xf32> to vector<4x8x8xf32>
    %112 = arith.subf %108, %111 : vector<4x8x8xf32>
    %113 = math.exp %112 : vector<4x8x8xf32>
    %cst_97 = arith.constant dense<0.000000e+00> : vector<4x8xf32>
    %114 = vector.multi_reduction <add>, %113, %cst_97 [2] : vector<4x8x8xf32> to vector<4x8xf32>
    %115 = vector.shape_cast %114 : vector<4x8xf32> to vector<4x8x1xf32>
    %116 = tpu.reciprocal %115 {approx = true} : vector<4x8x1xf32> -> vector<4x8x1xf32>
    %117 = vector.broadcast %116 : vector<4x8x1xf32> to vector<4x8x8xf32>
    %118 = arith.mulf %113, %117 : vector<4x8x8xf32>
    "tpu.trace_start"() <{level = 10 : i32, message = "hqk,hkd->hqd"}> : () -> ()
    %cst_98 = arith.constant dense<0.000000e+00> : vector<4x8x8xf32>
    %119 = tpu.matmul %118, %102, %cst_98 {dimension_numbers = #tpu.dot_dimension_numbers<[2], [1], [1], [2], [0, 0, 0, 1, 1, 2], [0], [0]>} : vector<4x8x8xf32>, vector<4x8x8xf32>, vector<4x8x8xf32> -> vector<4x8x8xf32>
    "tpu.trace_stop"() : () -> ()
    "tpu.trace_start"() <{level = 10 : i32, message = "hqd,hde->hqe"}> : () -> ()
    %cst_99 = arith.constant dense<0.000000e+00> : vector<4x8x32xf32>
    %120 = tpu.matmul %119, %16, %cst_99 {dimension_numbers = #tpu.dot_dimension_numbers<[2], [1], [1], [2], [0, 0, 0, 1, 1, 2], [0], [0]>} : vector<4x8x8xf32>, vector<4x8x32xf32>, vector<4x8x32xf32> -> vector<4x8x32xf32>
    "tpu.trace_stop"() : () -> ()
    %cst_100 = arith.constant dense<0.000000e+00> : vector<8x32xf32>
    %121 = vector.multi_reduction <add>, %120, %cst_100 [0] : vector<4x8x32xf32> to vector<8x32xf32>
    %122 = vector.broadcast %17 : vector<1x32xf32> to vector<8x32xf32>
    %123 = arith.addf %121, %122 : vector<8x32xf32>
    %124 = arith.addf %123, %89 : vector<8x32xf32>
    %cst_101 = arith.constant dense<0.000000e+00> : vector<8xf32>
    %125 = vector.multi_reduction <add>, %124, %cst_101 [1] : vector<8x32xf32> to vector<8xf32>
    %126 = vector.shape_cast %125 : vector<8xf32> to vector<8x1xf32>
    %cst_102 = arith.constant 3.200000e+01 : f32
    %127 = vector.broadcast %cst_102 : f32 to vector<8x1xf32>
    %128 = arith.divf %126, %127 : vector<8x1xf32>
    %129 = vector.broadcast %128 : vector<8x1xf32> to vector<8x32xf32>
    %130 = arith.subf %124, %129 : vector<8x32xf32>
    %131 = arith.mulf %130, %130 : vector<8x32xf32>
    %cst_103 = arith.constant dense<0.000000e+00> : vector<8xf32>
    %132 = vector.multi_reduction <add>, %131, %cst_103 [1] : vector<8x32xf32> to vector<8xf32>
    %133 = vector.shape_cast %132 : vector<8xf32> to vector<8x1xf32>
    %cst_104 = arith.constant 0.0322580636 : f32
    %134 = vector.broadcast %cst_104 : f32 to vector<8x1xf32>
    %135 = arith.mulf %133, %134 : vector<8x1xf32>
    %136 = math.sqrt %135 : vector<8x1xf32>
    %137 = vector.broadcast %18 : vector<1x32xf32> to vector<8x32xf32>
    %138 = arith.mulf %137, %130 : vector<8x32xf32>
    %cst_105 = arith.constant 9.99999997E-7 : f32
    %139 = vector.broadcast %cst_105 : f32 to vector<8x1xf32>
    %140 = arith.addf %136, %139 : vector<8x1xf32>
    %141 = tpu.reciprocal %140 : vector<8x1xf32> -> vector<8x1xf32>
    %142 = vector.broadcast %141 : vector<8x1xf32> to vector<8x32xf32>
    %143 = arith.mulf %138, %142 : vector<8x32xf32>
    %144 = vector.broadcast %19 : vector<1x32xf32> to vector<8x32xf32>
    %145 = arith.addf %143, %144 : vector<8x32xf32>
    %cst_106 = arith.constant dense<0.000000e+00> : vector<8x64xf32>
    %146 = tpu.matmul %145, %20, %cst_106 {dimension_numbers = #tpu.dot_dimension_numbers<[1], [0], [0], [1], [0, 0, 1, 1], [], []>} : vector<8x32xf32>, vector<32x64xf32>, vector<8x64xf32> -> vector<8x64xf32>
    %147 = vector.broadcast %21 : vector<1x64xf32> to vector<8x64xf32>
    %148 = arith.addf %146, %147 : vector<8x64xf32>
    %cst_107 = arith.constant 0.000000e+00 : f32
    %149 = vector.broadcast %cst_107 : f32 to vector<8x64xf32>
    %150 = arith.maximumf %148, %149 : vector<8x64xf32>
    %cst_108 = arith.constant dense<0.000000e+00> : vector<8x32xf32>
    %151 = tpu.matmul %150, %22, %cst_108 {dimension_numbers = #tpu.dot_dimension_numbers<[1], [0], [0], [1], [0, 0, 1, 1], [], []>} : vector<8x64xf32>, vector<64x32xf32>, vector<8x32xf32> -> vector<8x32xf32>
    %152 = vector.broadcast %23 : vector<1x32xf32> to vector<8x32xf32>
    %153 = arith.addf %151, %152 : vector<8x32xf32>
    %154 = arith.addf %153, %145 : vector<8x32xf32>
    %cst_109 = arith.constant dense<0.000000e+00> : vector<8xf32>
    %155 = vector.multi_reduction <add>, %154, %cst_109 [1] : vector<8x32xf32> to vector<8xf32>
    %156 = vector.shape_cast %155 : vector<8xf32> to vector<8x1xf32>
    %cst_110 = arith.constant 3.200000e+01 : f32
    %157 = vector.broadcast %cst_110 : f32 to vector<8x1xf32>
    %158 = arith.divf %156, %157 : vector<8x1xf32>
    %159 = vector.broadcast %158 : vector<8x1xf32> to vector<8x32xf32>
    %160 = arith.subf %154, %159 : vector<8x32xf32>
    %161 = arith.mulf %160, %160 : vector<8x32xf32>
    %cst_111 = arith.constant dense<0.000000e+00> : vector<8xf32>
    %162 = vector.multi_reduction <add>, %161, %cst_111 [1] : vector<8x32xf32> to vector<8xf32>
    %163 = vector.shape_cast %162 : vector<8xf32> to vector<8x1xf32>
    %cst_112 = arith.constant 0.0322580636 : f32
    %164 = vector.broadcast %cst_112 : f32 to vector<8x1xf32>
    %165 = arith.mulf %163, %164 : vector<8x1xf32>
    %166 = math.sqrt %165 : vector<8x1xf32>
    %167 = vector.broadcast %24 : vector<1x32xf32> to vector<8x32xf32>
    %168 = arith.mulf %167, %160 : vector<8x32xf32>
    %cst_113 = arith.constant 9.99999997E-7 : f32
    %169 = vector.broadcast %cst_113 : f32 to vector<8x1xf32>
    %170 = arith.addf %166, %169 : vector<8x1xf32>
    %171 = tpu.reciprocal %170 : vector<8x1xf32> -> vector<8x1xf32>
    %172 = vector.broadcast %171 : vector<8x1xf32> to vector<8x32xf32>
    %173 = arith.mulf %168, %172 : vector<8x32xf32>
    %174 = vector.broadcast %25 : vector<1x32xf32> to vector<8x32xf32>
    %175 = arith.addf %173, %174 : vector<8x32xf32>
    %c0_114 = arith.constant 0 : index
    %c0_115 = arith.constant 0 : index
    %c0_116 = arith.constant 0 : index
    %176 = vector.load %arg30[%c0_114, %c0_115, %c0_116] : memref<2x8x32xf32, #tpu.memory_space<vmem>>, vector<1x8x32xf32>
    %177 = vector.shape_cast %176 : vector<1x8x32xf32> to vector<8x32xf32>
    %178 = vector.shape_cast %175 : vector<8x32xf32> to vector<1x8x32xf32>
    tpu.vector_store %arg30[%c0_114, %c0_115, %c0_116], %178 {strides = array<i32>} : memref<2x8x32xf32, #tpu.memory_space<vmem>>, vector<1x8x32xf32>,
    %c1 = arith.constant 1 : index
    %c0_117 = arith.constant 0 : index
    %c0_118 = arith.constant 0 : index
    %179 = vector.load %arg0[%c1, %c0_117, %c0_118] : memref<2x8x32xf32, #tpu.memory_space<vmem>>, vector<1x8x32xf32>
    %180 = vector.shape_cast %179 : vector<1x8x32xf32> to vector<8x32xf32>
    %c1_119 = arith.constant 1 : index
    %c0_120 = arith.constant 0 : index
    %c0_121 = arith.constant 0 : index
    %181 = vector.load %arg1[%c1_119, %c0_120, %c0_121] : memref<2x8x32xf32, #tpu.memory_space<vmem>>, vector<1x8x32xf32>
    %182 = vector.shape_cast %181 : vector<1x8x32xf32> to vector<8x32xf32>
    %c1_122 = arith.constant 1 : index
    %c0_123 = arith.constant 0 : index
    %c0_124 = arith.constant 0 : index
    %183 = vector.load %arg2[%c1_122, %c0_123, %c0_124] : memref<2x8x8xf32, #tpu.memory_space<vmem>>, vector<1x8x8xf32>
    %184 = vector.shape_cast %183 : vector<1x8x8xf32> to vector<8x8xf32>
    %c1_125 = arith.constant 1 : index
    %c0_126 = arith.constant 0 : index
    %c0_127 = arith.constant 0 : index
    %185 = vector.load %arg3[%c1_125, %c0_126, %c0_127] : memref<2x8x8xf32, #tpu.memory_space<vmem>>, vector<1x8x8xf32>
    %186 = vector.shape_cast %185 : vector<1x8x8xf32> to vector<8x8xf32>
    %187 = vector.shape_cast %180 : vector<8x32xf32> to vector<1x8x32xf32>
    %188 = vector.broadcast %187 : vector<1x8x32xf32> to vector<4x8x32xf32>
    %189 = vector.shape_cast %180 : vector<8x32xf32> to vector<1x8x32xf32>
    %190 = vector.broadcast %189 : vector<1x8x32xf32> to vector<4x8x32xf32>
    "tpu.trace_start"() <{level = 10 : i32, message = "hqe,hed->hqd"}> : () -> ()
    %cst_128 = arith.constant dense<0.000000e+00> : vector<4x8x8xf32>
    %191 = tpu.matmul %188, %0, %cst_128 {dimension_numbers = #tpu.dot_dimension_numbers<[2], [1], [1], [2], [0, 0, 0, 1, 1, 2], [0], [0]>} : vector<4x8x32xf32>, vector<4x32x8xf32>, vector<4x8x8xf32> -> vector<4x8x8xf32>
    "tpu.trace_stop"() : () -> ()
    %192 = vector.broadcast %1 : vector<4x1x8xf32> to vector<4x8x8xf32>
    %193 = arith.addf %191, %192 : vector<4x8x8xf32>
    "tpu.trace_start"() <{level = 10 : i32, message = "hke,hed->hkd"}> : () -> ()
    %cst_129 = arith.constant dense<0.000000e+00> : vector<4x8x8xf32>
    %194 = tpu.matmul %190, %2, %cst_129 {dimension_numbers = #tpu.dot_dimension_numbers<[2], [1], [1], [2], [0, 0, 0, 1, 1, 2], [0], [0]>} : vector<4x8x32xf32>, vector<4x32x8xf32>, vector<4x8x8xf32> -> vector<4x8x8xf32>
    "tpu.trace_stop"() : () -> ()
    %195 = vector.broadcast %3 : vector<4x1x8xf32> to vector<4x8x8xf32>
    %196 = arith.addf %194, %195 : vector<4x8x8xf32>
    "tpu.trace_start"() <{level = 10 : i32, message = "hke,hed->hkd"}> : () -> ()
    %cst_130 = arith.constant dense<0.000000e+00> : vector<4x8x8xf32>
    %197 = tpu.matmul %190, %4, %cst_130 {dimension_numbers = #tpu.dot_dimension_numbers<[2], [1], [1], [2], [0, 0, 0, 1, 1, 2], [0], [0]>} : vector<4x8x32xf32>, vector<4x32x8xf32>, vector<4x8x8xf32> -> vector<4x8x8xf32>
    "tpu.trace_stop"() : () -> ()
    %198 = vector.broadcast %5 : vector<4x1x8xf32> to vector<4x8x8xf32>
    %199 = arith.addf %197, %198 : vector<4x8x8xf32>
    "tpu.trace_start"() <{level = 10 : i32, message = "hqd,hkd->hqk"}> : () -> ()
    %cst_131 = arith.constant dense<0.000000e+00> : vector<4x8x8xf32>
    %200 = tpu.matmul %193, %196, %cst_131 {dimension_numbers = #tpu.dot_dimension_numbers<[2], [2], [1], [1], [0, 0, 0, 1, 1, 1], [0], [0]>} : vector<4x8x8xf32>, vector<4x8x8xf32>, vector<4x8x8xf32> -> vector<4x8x8xf32>
    "tpu.trace_stop"() : () -> ()
    %cst_132 = arith.constant 0.353553385 : f32
    %201 = vector.broadcast %cst_132 : f32 to vector<4x8x8xf32>
    %202 = arith.mulf %200, %201 : vector<4x8x8xf32>
    %203 = vector.shape_cast %184 : vector<8x8xf32> to vector<1x8x8xf32>
    %204 = vector.broadcast %203 : vector<1x8x8xf32> to vector<4x8x8xf32>
    %205 = arith.addf %202, %204 : vector<4x8x8xf32>
    %cst_133 = arith.constant dense<0xFF800000> : vector<4x8xf32>
    %206 = vector.multi_reduction <maximumf>, %205, %cst_133 [2] : vector<4x8x8xf32> to vector<4x8xf32>
    %207 = vector.shape_cast %206 : vector<4x8xf32> to vector<4x8x1xf32>
    %208 = vector.broadcast %207 : vector<4x8x1xf32> to vector<4x8x8xf32>
    %209 = arith.subf %205, %208 : vector<4x8x8xf32>
    %210 = math.exp %209 : vector<4x8x8xf32>
    %cst_134 = arith.constant dense<0.000000e+00> : vector<4x8xf32>
    %211 = vector.multi_reduction <add>, %210, %cst_134 [2] : vector<4x8x8xf32> to vector<4x8xf32>
    %212 = vector.shape_cast %211 : vector<4x8xf32> to vector<4x8x1xf32>
    %213 = tpu.reciprocal %212 {approx = true} : vector<4x8x1xf32> -> vector<4x8x1xf32>
    %214 = vector.broadcast %213 : vector<4x8x1xf32> to vector<4x8x8xf32>
    %215 = arith.mulf %210, %214 : vector<4x8x8xf32>
    "tpu.trace_start"() <{level = 10 : i32, message = "hqk,hkd->hqd"}> : () -> ()
    %cst_135 = arith.constant dense<0.000000e+00> : vector<4x8x8xf32>
    %216 = tpu.matmul %215, %199, %cst_135 {dimension_numbers = #tpu.dot_dimension_numbers<[2], [1], [1], [2], [0, 0, 0, 1, 1, 2], [0], [0]>} : vector<4x8x8xf32>, vector<4x8x8xf32>, vector<4x8x8xf32> -> vector<4x8x8xf32>
    "tpu.trace_stop"() : () -> ()
    "tpu.trace_start"() <{level = 10 : i32, message = "hqd,hde->hqe"}> : () -> ()
    %cst_136 = arith.constant dense<0.000000e+00> : vector<4x8x32xf32>
    %217 = tpu.matmul %216, %6, %cst_136 {dimension_numbers = #tpu.dot_dimension_numbers<[2], [1], [1], [2], [0, 0, 0, 1, 1, 2], [0], [0]>} : vector<4x8x8xf32>, vector<4x8x32xf32>, vector<4x8x32xf32> -> vector<4x8x32xf32>
    "tpu.trace_stop"() : () -> ()
    %cst_137 = arith.constant dense<0.000000e+00> : vector<8x32xf32>
    %218 = vector.multi_reduction <add>, %217, %cst_137 [0] : vector<4x8x32xf32> to vector<8x32xf32>
    %219 = vector.broadcast %7 : vector<1x32xf32> to vector<8x32xf32>
    %220 = arith.addf %218, %219 : vector<8x32xf32>
    %221 = arith.addf %220, %180 : vector<8x32xf32>
    %cst_138 = arith.constant dense<0.000000e+00> : vector<8xf32>
    %222 = vector.multi_reduction <add>, %221, %cst_138 [1] : vector<8x32xf32> to vector<8xf32>
    %223 = vector.shape_cast %222 : vector<8xf32> to vector<8x1xf32>
    %cst_139 = arith.constant 3.200000e+01 : f32
    %224 = vector.broadcast %cst_139 : f32 to vector<8x1xf32>
    %225 = arith.divf %223, %224 : vector<8x1xf32>
    %226 = vector.broadcast %225 : vector<8x1xf32> to vector<8x32xf32>
    %227 = arith.subf %221, %226 : vector<8x32xf32>
    %228 = arith.mulf %227, %227 : vector<8x32xf32>
    %cst_140 = arith.constant dense<0.000000e+00> : vector<8xf32>
    %229 = vector.multi_reduction <add>, %228, %cst_140 [1] : vector<8x32xf32> to vector<8xf32>
    %230 = vector.shape_cast %229 : vector<8xf32> to vector<8x1xf32>
    %cst_141 = arith.constant 0.0322580636 : f32
    %231 = vector.broadcast %cst_141 : f32 to vector<8x1xf32>
    %232 = arith.mulf %230, %231 : vector<8x1xf32>
    %233 = math.sqrt %232 : vector<8x1xf32>
    %234 = vector.broadcast %8 : vector<1x32xf32> to vector<8x32xf32>
    %235 = arith.mulf %234, %227 : vector<8x32xf32>
    %cst_142 = arith.constant 9.99999997E-7 : f32
    %236 = vector.broadcast %cst_142 : f32 to vector<8x1xf32>
    %237 = arith.addf %233, %236 : vector<8x1xf32>
    %238 = tpu.reciprocal %237 : vector<8x1xf32> -> vector<8x1xf32>
    %239 = vector.broadcast %238 : vector<8x1xf32> to vector<8x32xf32>
    %240 = arith.mulf %235, %239 : vector<8x32xf32>
    %241 = vector.broadcast %9 : vector<1x32xf32> to vector<8x32xf32>
    %242 = arith.addf %240, %241 : vector<8x32xf32>
    %243 = vector.shape_cast %242 : vector<8x32xf32> to vector<1x8x32xf32>
    %244 = vector.broadcast %243 : vector<1x8x32xf32> to vector<4x8x32xf32>
    %245 = vector.shape_cast %182 : vector<8x32xf32> to vector<1x8x32xf32>
    %246 = vector.broadcast %245 : vector<1x8x32xf32> to vector<4x8x32xf32>
    "tpu.trace_start"() <{level = 10 : i32, message = "hqe,hed->hqd"}> : () -> ()
    %cst_143 = arith.constant dense<0.000000e+00> : vector<4x8x8xf32>
    %247 = tpu.matmul %244, %10, %cst_143 {dimension_numbers = #tpu.dot_dimension_numbers<[2], [1], [1], [2], [0, 0, 0, 1, 1, 2], [0], [0]>} : vector<4x8x32xf32>, vector<4x32x8xf32>, vector<4x8x8xf32> -> vector<4x8x8xf32>
    "tpu.trace_stop"() : () -> ()
    %248 = vector.broadcast %11 : vector<4x1x8xf32> to vector<4x8x8xf32>
    %249 = arith.addf %247, %248 : vector<4x8x8xf32>
    "tpu.trace_start"() <{level = 10 : i32, message = "hke,hed->hkd"}> : () -> ()
    %cst_144 = arith.constant dense<0.000000e+00> : vector<4x8x8xf32>
    %250 = tpu.matmul %246, %12, %cst_144 {dimension_numbers = #tpu.dot_dimension_numbers<[2], [1], [1], [2], [0, 0, 0, 1, 1, 2], [0], [0]>} : vector<4x8x32xf32>, vector<4x32x8xf32>, vector<4x8x8xf32> -> vector<4x8x8xf32>
    "tpu.trace_stop"() : () -> ()
    %251 = vector.broadcast %13 : vector<4x1x8xf32> to vector<4x8x8xf32>
    %252 = arith.addf %250, %251 : vector<4x8x8xf32>
    "tpu.trace_start"() <{level = 10 : i32, message = "hke,hed->hkd"}> : () -> ()
    %cst_145 = arith.constant dense<0.000000e+00> : vector<4x8x8xf32>
    %253 = tpu.matmul %246, %14, %cst_145 {dimension_numbers = #tpu.dot_dimension_numbers<[2], [1], [1], [2], [0, 0, 0, 1, 1, 2], [0], [0]>} : vector<4x8x32xf32>, vector<4x32x8xf32>, vector<4x8x8xf32> -> vector<4x8x8xf32>
    "tpu.trace_stop"() : () -> ()
    %254 = vector.broadcast %15 : vector<4x1x8xf32> to vector<4x8x8xf32>
    %255 = arith.addf %253, %254 : vector<4x8x8xf32>
    "tpu.trace_start"() <{level = 10 : i32, message = "hqd,hkd->hqk"}> : () -> ()
    %cst_146 = arith.constant dense<0.000000e+00> : vector<4x8x8xf32>
    %256 = tpu.matmul %249, %252, %cst_146 {dimension_numbers = #tpu.dot_dimension_numbers<[2], [2], [1], [1], [0, 0, 0, 1, 1, 1], [0], [0]>} : vector<4x8x8xf32>, vector<4x8x8xf32>, vector<4x8x8xf32> -> vector<4x8x8xf32>
    "tpu.trace_stop"() : () -> ()
    %cst_147 = arith.constant 0.353553385 : f32
    %257 = vector.broadcast %cst_147 : f32 to vector<4x8x8xf32>
    %258 = arith.mulf %256, %257 : vector<4x8x8xf32>
    %259 = vector.shape_cast %186 : vector<8x8xf32> to vector<1x8x8xf32>
    %260 = vector.broadcast %259 : vector<1x8x8xf32> to vector<4x8x8xf32>
    %261 = arith.addf %258, %260 : vector<4x8x8xf32>
    %cst_148 = arith.constant dense<0xFF800000> : vector<4x8xf32>
    %262 = vector.multi_reduction <maximumf>, %261, %cst_148 [2] : vector<4x8x8xf32> to vector<4x8xf32>
    %263 = vector.shape_cast %262 : vector<4x8xf32> to vector<4x8x1xf32>
    %264 = vector.broadcast %263 : vector<4x8x1xf32> to vector<4x8x8xf32>
    %265 = arith.subf %261, %264 : vector<4x8x8xf32>
    %266 = math.exp %265 : vector<4x8x8xf32>
    %cst_149 = arith.constant dense<0.000000e+00> : vector<4x8xf32>
    %267 = vector.multi_reduction <add>, %266, %cst_149 [2] : vector<4x8x8xf32> to vector<4x8xf32>
    %268 = vector.shape_cast %267 : vector<4x8xf32> to vector<4x8x1xf32>
    %269 = tpu.reciprocal %268 {approx = true} : vector<4x8x1xf32> -> vector<4x8x1xf32>
    %270 = vector.broadcast %269 : vector<4x8x1xf32> to vector<4x8x8xf32>
    %271 = arith.mulf %266, %270 : vector<4x8x8xf32>
    "tpu.trace_start"() <{level = 10 : i32, message = "hqk,hkd->hqd"}> : () -> ()
    %cst_150 = arith.constant dense<0.000000e+00> : vector<4x8x8xf32>
    %272 = tpu.matmul %271, %255, %cst_150 {dimension_numbers = #tpu.dot_dimension_numbers<[2], [1], [1], [2], [0, 0, 0, 1, 1, 2], [0], [0]>} : vector<4x8x8xf32>, vector<4x8x8xf32>, vector<4x8x8xf32> -> vector<4x8x8xf32>
    "tpu.trace_stop"() : () -> ()
    "tpu.trace_start"() <{level = 10 : i32, message = "hqd,hde->hqe"}> : () -> ()
    %cst_151 = arith.constant dense<0.000000e+00> : vector<4x8x32xf32>
    %273 = tpu.matmul %272, %16, %cst_151 {dimension_numbers = #tpu.dot_dimension_numbers<[2], [1], [1], [2], [0, 0, 0, 1, 1, 2], [0], [0]>} : vector<4x8x8xf32>, vector<4x8x32xf32>, vector<4x8x32xf32> -> vector<4x8x32xf32>
    "tpu.trace_stop"() : () -> ()
    %cst_152 = arith.constant dense<0.000000e+00> : vector<8x32xf32>
    %274 = vector.multi_reduction <add>, %273, %cst_152 [0] : vector<4x8x32xf32> to vector<8x32xf32>
    %275 = vector.broadcast %17 : vector<1x32xf32> to vector<8x32xf32>
    %276 = arith.addf %274, %275 : vector<8x32xf32>
    %277 = arith.addf %276, %242 : vector<8x32xf32>
    %cst_153 = arith.constant dense<0.000000e+00> : vector<8xf32>
    %278 = vector.multi_reduction <add>, %277, %cst_153 [1] : vector<8x32xf32> to vector<8xf32>
    %279 = vector.shape_cast %278 : vector<8xf32> to vector<8x1xf32>
    %cst_154 = arith.constant 3.200000e+01 : f32
    %280 = vector.broadcast %cst_154 : f32 to vector<8x1xf32>
    %281 = arith.divf %279, %280 : vector<8x1xf32>
    %282 = vector.broadcast %281 : vector<8x1xf32> to vector<8x32xf32>
    %283 = arith.subf %277, %282 : vector<8x32xf32>
    %284 = arith.mulf %283, %283 : vector<8x32xf32>
    %cst_155 = arith.constant dense<0.000000e+00> : vector<8xf32>
    %285 = vector.multi_reduction <add>, %284, %cst_155 [1] : vector<8x32xf32> to vector<8xf32>
    %286 = vector.shape_cast %285 : vector<8xf32> to vector<8x1xf32>
    %cst_156 = arith.constant 0.0322580636 : f32
    %287 = vector.broadcast %cst_156 : f32 to vector<8x1xf32>
    %288 = arith.mulf %286, %287 : vector<8x1xf32>
    %289 = math.sqrt %288 : vector<8x1xf32>
    %290 = vector.broadcast %18 : vector<1x32xf32> to vector<8x32xf32>
    %291 = arith.mulf %290, %283 : vector<8x32xf32>
    %cst_157 = arith.constant 9.99999997E-7 : f32
    %292 = vector.broadcast %cst_157 : f32 to vector<8x1xf32>
    %293 = arith.addf %289, %292 : vector<8x1xf32>
    %294 = tpu.reciprocal %293 : vector<8x1xf32> -> vector<8x1xf32>
    %295 = vector.broadcast %294 : vector<8x1xf32> to vector<8x32xf32>
    %296 = arith.mulf %291, %295 : vector<8x32xf32>
    %297 = vector.broadcast %19 : vector<1x32xf32> to vector<8x32xf32>
    %298 = arith.addf %296, %297 : vector<8x32xf32>
    %cst_158 = arith.constant dense<0.000000e+00> : vector<8x64xf32>
    %299 = tpu.matmul %298, %20, %cst_158 {dimension_numbers = #tpu.dot_dimension_numbers<[1], [0], [0], [1], [0, 0, 1, 1], [], []>} : vector<8x32xf32>, vector<32x64xf32>, vector<8x64xf32> -> vector<8x64xf32>
    %300 = vector.broadcast %21 : vector<1x64xf32> to vector<8x64xf32>
    %301 = arith.addf %299, %300 : vector<8x64xf32>
    %cst_159 = arith.constant 0.000000e+00 : f32
    %302 = vector.broadcast %cst_159 : f32 to vector<8x64xf32>
    %303 = arith.maximumf %301, %302 : vector<8x64xf32>
    %cst_160 = arith.constant dense<0.000000e+00> : vector<8x32xf32>
    %304 = tpu.matmul %303, %22, %cst_160 {dimension_numbers = #tpu.dot_dimension_numbers<[1], [0], [0], [1], [0, 0, 1, 1], [], []>} : vector<8x64xf32>, vector<64x32xf32>, vector<8x32xf32> -> vector<8x32xf32>
    %305 = vector.broadcast %23 : vector<1x32xf32> to vector<8x32xf32>
    %306 = arith.addf %304, %305 : vector<8x32xf32>
    %307 = arith.addf %306, %298 : vector<8x32xf32>
    %cst_161 = arith.constant dense<0.000000e+00> : vector<8xf32>
    %308 = vector.multi_reduction <add>, %307, %cst_161 [1] : vector<8x32xf32> to vector<8xf32>
    %309 = vector.shape_cast %308 : vector<8xf32> to vector<8x1xf32>
    %cst_162 = arith.constant 3.200000e+01 : f32
    %310 = vector.broadcast %cst_162 : f32 to vector<8x1xf32>
    %311 = arith.divf %309, %310 : vector<8x1xf32>
    %312 = vector.broadcast %311 : vector<8x1xf32> to vector<8x32xf32>
    %313 = arith.subf %307, %312 : vector<8x32xf32>
    %314 = arith.mulf %313, %313 : vector<8x32xf32>
    %cst_163 = arith.constant dense<0.000000e+00> : vector<8xf32>
    %315 = vector.multi_reduction <add>, %314, %cst_163 [1] : vector<8x32xf32> to vector<8xf32>
    %316 = vector.shape_cast %315 : vector<8xf32> to vector<8x1xf32>
    %cst_164 = arith.constant 0.0322580636 : f32
    %317 = vector.broadcast %cst_164 : f32 to vector<8x1xf32>
    %318 = arith.mulf %316, %317 : vector<8x1xf32>
    %319 = math.sqrt %318 : vector<8x1xf32>
    %320 = vector.broadcast %24 : vector<1x32xf32> to vector<8x32xf32>
    %321 = arith.mulf %320, %313 : vector<8x32xf32>
    %cst_165 = arith.constant 9.99999997E-7 : f32
    %322 = vector.broadcast %cst_165 : f32 to vector<8x1xf32>
    %323 = arith.addf %319, %322 : vector<8x1xf32>
    %324 = tpu.reciprocal %323 : vector<8x1xf32> -> vector<8x1xf32>
    %325 = vector.broadcast %324 : vector<8x1xf32> to vector<8x32xf32>
    %326 = arith.mulf %321, %325 : vector<8x32xf32>
    %327 = vector.broadcast %25 : vector<1x32xf32> to vector<8x32xf32>
    %328 = arith.addf %326, %327 : vector<8x32xf32>
    %c1_166 = arith.constant 1 : index
    %c0_167 = arith.constant 0 : index
    %c0_168 = arith.constant 0 : index
    %329 = vector.load %arg30[%c1_166, %c0_167, %c0_168] : memref<2x8x32xf32, #tpu.memory_space<vmem>>, vector<1x8x32xf32>
    %330 = vector.shape_cast %329 : vector<1x8x32xf32> to vector<8x32xf32>
    %331 = vector.shape_cast %328 : vector<8x32xf32> to vector<1x8x32xf32>
    tpu.vector_store %arg30[%c1_166, %c0_167, %c0_168], %331 {strides = array<i32>} : memref<2x8x32xf32, #tpu.memory_space<vmem>>, vector<1x8x32xf32>,
    return
  }
}

</mosaic_0001>

<llo_original>
// kernel: tpu_custom_call.1
$region0: #{tpu_custom_call.1}
  #allocation0 [shape = 'u32[]', space=smem, size = 0x4, offset = 0x4, fixed_abs, tag = 'smem constant byte address 0x4 - core index']
  #allocation1 [shape = 'u32[144,128]{1,0:T(1,128)}', space=vmem, size = 0x12000, scoped, tag = 'internal scratch']
  %s0 = inlined_call_operand.smem [shape: u32[31], index: -1, kind: input, shape index: {}]
  %s1 = sld [smem:[%s0]]
  %s2 = scalar_lea.smem %s0, 1
  %s3 = sld [smem:[%s2]]
  %s4 = scalar_lea.smem %s0, 2
  %s5 = sld [smem:[%s4]]
  %s6 = scalar_lea.smem %s0, 3
  %s7 = sld [smem:[%s6]]
  %s8 = scalar_lea.smem %s0, 4
  %s9 = sld [smem:[%s8]]
  %s10 = scalar_lea.smem %s0, 5
  %s11 = sld [smem:[%s10]]
  %s12 = scalar_lea.smem %s0, 6
  %s13 = sld [smem:[%s12]]
  %s14 = scalar_lea.smem %s0, 7
  %s15 = sld [smem:[%s14]]
  %s16 = scalar_lea.smem %s0, 8
  %s17 = sld [smem:[%s16]]
  %s18 = scalar_lea.smem %s0, 9
  %s19 = sld [smem:[%s18]]
  %s20 = scalar_lea.smem %s0, 10
  %s21 = sld [smem:[%s20]]
  %s22 = scalar_lea.smem %s0, 11
  %s23 = sld [smem:[%s22]]
  %s24 = scalar_lea.smem %s0, 12
  %s25 = sld [smem:[%s24]]
  %s26 = scalar_lea.smem %s0, 13
  %s27 = sld [smem:[%s26]]
  %s28 = scalar_lea.smem %s0, 14
  %s29 = sld [smem:[%s28]]
  %s30 = scalar_lea.smem %s0, 15
  %s31 = sld [smem:[%s30]]
  %s32 = scalar_lea.smem %s0, 16
  %s33 = sld [smem:[%s32]]
  %s34 = scalar_lea.smem %s0, 17
  %s35 = sld [smem:[%s34]]
  %s36 = scalar_lea.smem %s0, 18
  %s37 = sld [smem:[%s36]]
  %s38 = scalar_lea.smem %s0, 19
  %s39 = sld [smem:[%s38]]
  %s40 = scalar_lea.smem %s0, 20
  %s41 = sld [smem:[%s40]]
  %s42 = scalar_lea.smem %s0, 21
  %s43 = sld [smem:[%s42]]
  %s44 = scalar_lea.smem %s0, 22
  %s45 = sld [smem:[%s44]]
  %s46 = scalar_lea.smem %s0, 23
  %s47 = sld [smem:[%s46]]
  %s48 = scalar_lea.smem %s0, 24
  %s49 = sld [smem:[%s48]]
  %s50 = scalar_lea.smem %s0, 25
  %s51 = sld [smem:[%s50]]
  %s52 = scalar_lea.smem %s0, 26
  %s53 = sld [smem:[%s52]]
  %s54 = scalar_lea.smem %s0, 27
  %s55 = sld [smem:[%s54]]
  %s56 = scalar_lea.smem %s0, 28
  %s57 = sld [smem:[%s56]]
  %s58 = scalar_lea.smem %s0, 29
  %s59 = sld [smem:[%s58]]
  %s60 = scalar_lea.smem %s0, 30
  %s61 = sld [smem:[%s60]]
  %s62 = sld [smem:[#allocation0]]
  $region130: #{tpu_custom_call.1} parent=0
    _
  %s64 = ssub.s32 1, %s62
  %s65 = scalar_select 0, %s64, %s62
  $region1: #{tpu_custom_call.1} parent=0
    #allocation2 [shape = 'u8[8192]{0}', space=vmem, size = 0x2000, scoped, tag = 'output window, operand 0, single buffered']
    #allocation3 [shape = 's32[1]{0}', space=sflag, size = 0x4, scoped, tag = 'scoped memory for tpu_custom_call.1']
    %66 = vsyncpa [#allocation3], 0
    // Predicated region
    $region2: #{tpu_custom_call.1} parent=1 // pred_check
      _
    $region3: #{tpu_custom_call.1} parent=1 // pred_check_branch
      %68 = sbr.rel (0) target = $region5
    $region4: #{tpu_custom_call.1} parent=1 // pred_region
      _
    $region5: #{tpu_custom_call.1} parent=1 // pred_fallthru
      _
    // Predicated region
    $region6: #{tpu_custom_call.1} parent=1 // pred_check
      _
    $region7: #{tpu_custom_call.1} parent=1 // pred_check_branch
      %70 = sbr.rel (0) target = $region9
    $region8: #{tpu_custom_call.1} parent=1 // pred_region
      _
    $region9: #{tpu_custom_call.1} parent=1 // pred_fallthru
      _
    // Predicated region
    $region10: #{tpu_custom_call.1} parent=1 // pred_check
      _
    $region11: #{tpu_custom_call.1} parent=1 // pred_check_branch
      %72 = sbr.rel (0) target = $region13
    $region12: #{tpu_custom_call.1} parent=1 // pred_region
      _
    $region13: #{tpu_custom_call.1} parent=1 // pred_fallthru
      _
    // Predicated region
    $region14: #{tpu_custom_call.1} parent=1 // pred_check
      _
    $region15: #{tpu_custom_call.1} parent=1 // pred_check_branch
      %74 = sbr.rel (0) target = $region17
    $region16: #{tpu_custom_call.1} parent=1 // pred_region
      _
    $region17: #{tpu_custom_call.1} parent=1 // pred_fallthru
      _
    // Predicated region
    $region18: #{tpu_custom_call.1} parent=1 // pred_check
      _
    $region19: #{tpu_custom_call.1} parent=1 // pred_check_branch
      %76 = sbr.rel (0) target = $region21
    $region20: #{tpu_custom_call.1} parent=1 // pred_region
      _
    $region21: #{tpu_custom_call.1} parent=1 // pred_fallthru
      _
    // Predicated region
    $region22: #{tpu_custom_call.1} parent=1 // pred_check
      _
    $region23: #{tpu_custom_call.1} parent=1 // pred_check_branch
      %78 = sbr.rel (0) target = $region25
    $region24: #{tpu_custom_call.1} parent=1 // pred_region
      _
    $region25: #{tpu_custom_call.1} parent=1 // pred_fallthru
      _
    // Predicated region
    $region26: #{tpu_custom_call.1} parent=1 // pred_check
      _
    $region27: #{tpu_custom_call.1} parent=1 // pred_check_branch
      %80 = sbr.rel (0) target = $region29
    $region28: #{tpu_custom_call.1} parent=1 // pred_region
      _
    $region29: #{tpu_custom_call.1} parent=1 // pred_fallthru
      _
    // Predicated region
    $region30: #{tpu_custom_call.1} parent=1 // pred_check
      _
    $region31: #{tpu_custom_call.1} parent=1 // pred_check_branch
      %82 = sbr.rel (0) target = $region33
    $region32: #{tpu_custom_call.1} parent=1 // pred_region
      _
    $region33: #{tpu_custom_call.1} parent=1 // pred_fallthru
      _
    // Predicated region
    $region34: #{tpu_custom_call.1} parent=1 // pred_check
      _
    $region35: #{tpu_custom_call.1} parent=1 // pred_check_branch
      %84 = sbr.rel (0) target = $region37
    $region36: #{tpu_custom_call.1} parent=1 // pred_region
      _
    $region37: #{tpu_custom_call.1} parent=1 // pred_fallthru
      _
    // Predicated region
    $region38: #{tpu_custom_call.1} parent=1 // pred_check
      _
    $region39: #{tpu_custom_call.1} parent=1 // pred_check_branch
      %86 = sbr.rel (0) target = $region41
    $region40: #{tpu_custom_call.1} parent=1 // pred_region
      _
    $region41: #{tpu_custom_call.1} parent=1 // pred_fallthru
      _
    // Predicated region
    $region42: #{tpu_custom_call.1} parent=1 // pred_check
      _
    $region43: #{tpu_custom_call.1} parent=1 // pred_check_branch
      %88 = sbr.rel (0) target = $region45
    $region44: #{tpu_custom_call.1} parent=1 // pred_region
      _
    $region45: #{tpu_custom_call.1} parent=1 // pred_fallthru
      _
    // Predicated region
    $region46: #{tpu_custom_call.1} parent=1 // pred_check
      _
    $region47: #{tpu_custom_call.1} parent=1 // pred_check_branch
      %90 = sbr.rel (0) target = $region49
    $region48: #{tpu_custom_call.1} parent=1 // pred_region
      _
    $region49: #{tpu_custom_call.1} parent=1 // pred_fallthru
      _
    // Predicated region
    $region50: #{tpu_custom_call.1} parent=1 // pred_check
      _
    $region51: #{tpu_custom_call.1} parent=1 // pred_check_branch
      %92 = sbr.rel (0) target = $region53
    $region52: #{tpu_custom_call.1} parent=1 // pred_region
      _
    $region53: #{tpu_custom_call.1} parent=1 // pred_fallthru
      _
    // Predicated region
    $region54: #{tpu_custom_call.1} parent=1 // pred_check
      _
    $region55: #{tpu_custom_call.1} parent=1 // pred_check_branch
      %94 = sbr.rel (0) target = $region57
    $region56: #{tpu_custom_call.1} parent=1 // pred_region
      _
    $region57: #{tpu_custom_call.1} parent=1 // pred_fallthru
      _
    // Predicated region
    $region58: #{tpu_custom_call.1} parent=1 // pred_check
      _
    $region59: #{tpu_custom_call.1} parent=1 // pred_check_branch
      %96 = sbr.rel (0) target = $region61
    $region60: #{tpu_custom_call.1} parent=1 // pred_region
      _
    $region61: #{tpu_custom_call.1} parent=1 // pred_fallthru
      _
    // Predicated region
    $region62: #{tpu_custom_call.1} parent=1 // pred_check
      _
    $region63: #{tpu_custom_call.1} parent=1 // pred_check_branch
      %98 = sbr.rel (0) target = $region65
    $region64: #{tpu_custom_call.1} parent=1 // pred_region
      _
    $region65: #{tpu_custom_call.1} parent=1 // pred_fallthru
      _
    // Predicated region
    $region66: #{tpu_custom_call.1} parent=1 // pred_check
      _
    $region67: #{tpu_custom_call.1} parent=1 // pred_check_branch
      %100 = sbr.rel (0) target = $region69
    $region68: #{tpu_custom_call.1} parent=1 // pred_region
      _
    $region69: #{tpu_custom_call.1} parent=1 // pred_fallthru
      _
    // Predicated region
    $region70: #{tpu_custom_call.1} parent=1 // pred_check
      _
    $region71: #{tpu_custom_call.1} parent=1 // pred_check_branch
      %102 = sbr.rel (0) target = $region73
    $region72: #{tpu_custom_call.1} parent=1 // pred_region
      _
    $region73: #{tpu_custom_call.1} parent=1 // pred_fallthru
      _
    // Predicated region
    $region74: #{tpu_custom_call.1} parent=1 // pred_check
      _
    $region75: #{tpu_custom_call.1} parent=1 // pred_check_branch
      %104 = sbr.rel (0) target = $region77
    $region76: #{tpu_custom_call.1} parent=1 // pred_region
      _
    $region77: #{tpu_custom_call.1} parent=1 // pred_fallthru
      _
    // Predicated region
    $region78: #{tpu_custom_call.1} parent=1 // pred_check
      _
    $region79: #{tpu_custom_call.1} parent=1 // pred_check_branch
      %106 = sbr.rel (0) target = $region81
    $region80: #{tpu_custom_call.1} parent=1 // pred_region
      _
    $region81: #{tpu_custom_call.1} parent=1 // pred_fallthru
      _
    // Predicated region
    $region82: #{tpu_custom_call.1} parent=1 // pred_check
      _
    $region83: #{tpu_custom_call.1} parent=1 // pred_check_branch
      %108 = sbr.rel (0) target = $region85
    $region84: #{tpu_custom_call.1} parent=1 // pred_region
      _
    $region85: #{tpu_custom_call.1} parent=1 // pred_fallthru
      _
    // Predicated region
    $region86: #{tpu_custom_call.1} parent=1 // pred_check
      _
    $region87: #{tpu_custom_call.1} parent=1 // pred_check_branch
      %110 = sbr.rel (0) target = $region89
    $region88: #{tpu_custom_call.1} parent=1 // pred_region
      _
    $region89: #{tpu_custom_call.1} parent=1 // pred_fallthru
      _
    // Predicated region
    $region90: #{tpu_custom_call.1} parent=1 // pred_check
      _
    $region91: #{tpu_custom_call.1} parent=1 // pred_check_branch
      %112 = sbr.rel (0) target = $region93
    $region92: #{tpu_custom_call.1} parent=1 // pred_region
      _
    $region93: #{tpu_custom_call.1} parent=1 // pred_fallthru
      _
    // Predicated region
    $region94: #{tpu_custom_call.1} parent=1 // pred_check
      _
    $region95: #{tpu_custom_call.1} parent=1 // pred_check_branch
      %114 = sbr.rel (0) target = $region97
    $region96: #{tpu_custom_call.1} parent=1 // pred_region
      _
    $region97: #{tpu_custom_call.1} parent=1 // pred_fallthru
      _
    // Predicated region
    $region98: #{tpu_custom_call.1} parent=1 // pred_check
      _
    $region99: #{tpu_custom_call.1} parent=1 // pred_check_branch
      %116 = sbr.rel (0) target = $region101
    $region100: #{tpu_custom_call.1} parent=1 // pred_region
      _
    $region101: #{tpu_custom_call.1} parent=1 // pred_fallthru
      _
    // Predicated region
    $region102: #{tpu_custom_call.1} parent=1 // pred_check
      _
    $region103: #{tpu_custom_call.1} parent=1 // pred_check_branch
      %118 = sbr.rel (0) target = $region105
    $region104: #{tpu_custom_call.1} parent=1 // pred_region
      _
    $region105: #{tpu_custom_call.1} parent=1 // pred_fallthru
      _
    // Predicated region
    $region106: #{tpu_custom_call.1} parent=1 // pred_check
      _
    $region107: #{tpu_custom_call.1} parent=1 // pred_check_branch
      %120 = sbr.rel (0) target = $region109
    $region108: #{tpu_custom_call.1} parent=1 // pred_region
      _
    $region109: #{tpu_custom_call.1} parent=1 // pred_fallthru
      _
    // Predicated region
    $region110: #{tpu_custom_call.1} parent=1 // pred_check
      _
    $region111: #{tpu_custom_call.1} parent=1 // pred_check_branch
      %122 = sbr.rel (0) target = $region113
    $region112: #{tpu_custom_call.1} parent=1 // pred_region
      _
    $region113: #{tpu_custom_call.1} parent=1 // pred_fallthru
      _
    // Predicated region
    $region114: #{tpu_custom_call.1} parent=1 // pred_check
      _
    $region115: #{tpu_custom_call.1} parent=1 // pred_check_branch
      %124 = sbr.rel (0) target = $region117
    $region116: #{tpu_custom_call.1} parent=1 // pred_region
      _
    $region117: #{tpu_custom_call.1} parent=1 // pred_fallthru
      _
    // Predicated region
    $region118: #{tpu_custom_call.1} parent=1 // pred_check
      _
    $region119: #{tpu_custom_call.1} parent=1 // pred_check_branch
      %126 = sbr.rel (0) target = $region121
    $region120: #{tpu_custom_call.1} parent=1 // pred_region
      _
    $region121: #{tpu_custom_call.1} parent=1 // pred_fallthru
      _
    %v127 = vld [vmem:[%s9] sm:$0xff]
    %v128 = vld [vmem:[%s9 + $0x8] sm:$0xff]
    %v129 = vld [vmem:[%s9 + $0x10] sm:$0xff]
    %v130 = vld [vmem:[%s9 + $0x18] sm:$0xff]
    %v131 = vld [vmem:[%s9 + $0x20] sm:$0xff]
    %v132 = vld [vmem:[%s9 + $0x28] sm:$0xff]
    %v133 = vld [vmem:[%s9 + $0x30] sm:$0xff]
    %v134 = vld [vmem:[%s9 + $0x38] sm:$0xff]
    %v135 = vld [vmem:[%s9 + $0x40] sm:$0xff]
    %v136 = vld [vmem:[%s9 + $0x48] sm:$0xff]
    %v137 = vld [vmem:[%s9 + $0x50] sm:$0xff]
    %v138 = vld [vmem:[%s9 + $0x58] sm:$0xff]
    %v139 = vld [vmem:[%s9 + $0x60] sm:$0xff]
    %v140 = vld [vmem:[%s9 + $0x68] sm:$0xff]
    %v141 = vld [vmem:[%s9 + $0x70] sm:$0xff]
    %v142 = vld [vmem:[%s9 + $0x78] sm:$0xff]
    %v143 = vld [vmem:[%s11] sm:$0x1]
    %v144 = vld [vmem:[%s11 + $0x1] sm:$0x1]
    %v145 = vld [vmem:[%s11 + $0x2] sm:$0x1]
    %v146 = vld [vmem:[%s11 + $0x3] sm:$0x1]
    %v147 = vld [vmem:[%s13] sm:$0xff]
    %v148 = vld [vmem:[%s13 + $0x8] sm:$0xff]
    %v149 = vld [vmem:[%s13 + $0x10] sm:$0xff]
    %v150 = vld [vmem:[%s13 + $0x18] sm:$0xff]
    %v151 = vld [vmem:[%s13 + $0x20] sm:$0xff]
    %v152 = vld [vmem:[%s13 + $0x28] sm:$0xff]
    %v153 = vld [vmem:[%s13 + $0x30] sm:$0xff]
    %v154 = vld [vmem:[%s13 + $0x38] sm:$0xff]
    %v155 = vld [vmem:[%s13 + $0x40] sm:$0xff]
    %v156 = vld [vmem:[%s13 + $0x48] sm:$0xff]
    %v157 = vld [vmem:[%s13 + $0x50] sm:$0xff]
    %v158 = vld [vmem:[%s13 + $0x58] sm:$0xff]
    %v159 = vld [vmem:[%s13 + $0x60] sm:$0xff]
    %v160 = vld [vmem:[%s13 + $0x68] sm:$0xff]
    %v161 = vld [vmem:[%s13 + $0x70] sm:$0xff]
    %v162 = vld [vmem:[%s13 + $0x78] sm:$0xff]
    %v163 = vld [vmem:[%s15] sm:$0x1]
    %v164 = vld [vmem:[%s15 + $0x1] sm:$0x1]
    %v165 = vld [vmem:[%s15 + $0x2] sm:$0x1]
    %v166 = vld [vmem:[%s15 + $0x3] sm:$0x1]
    %v167 = vld [vmem:[%s17] sm:$0xff]
    %v168 = vld [vmem:[%s17 + $0x8] sm:$0xff]
    %v169 = vld [vmem:[%s17 + $0x10] sm:$0xff]
    %v170 = vld [vmem:[%s17 + $0x18] sm:$0xff]
    %v171 = vld [vmem:[%s17 + $0x20] sm:$0xff]
    %v172 = vld [vmem:[%s17 + $0x28] sm:$0xff]
    %v173 = vld [vmem:[%s17 + $0x30] sm:$0xff]
    %v174 = vld [vmem:[%s17 + $0x38] sm:$0xff]
    %v175 = vld [vmem:[%s17 + $0x40] sm:$0xff]
    %v176 = vld [vmem:[%s17 + $0x48] sm:$0xff]
    %v177 = vld [vmem:[%s17 + $0x50] sm:$0xff]
    %v178 = vld [vmem:[%s17 + $0x58] sm:$0xff]
    %v179 = vld [vmem:[%s17 + $0x60] sm:$0xff]
    %v180 = vld [vmem:[%s17 + $0x68] sm:$0xff]
    %v181 = vld [vmem:[%s17 + $0x70] sm:$0xff]
    %v182 = vld [vmem:[%s17 + $0x78] sm:$0xff]
    %v183 = vld [vmem:[%s19] sm:$0x1]
    %v184 = vld [vmem:[%s19 + $0x1] sm:$0x1]
    %v185 = vld [vmem:[%s19 + $0x2] sm:$0x1]
    %v186 = vld [vmem:[%s19 + $0x3] sm:$0x1]
    %v187 = vld [vmem:[%s21] sm:$0xff]
    %v188 = vld [vmem:[%s21 + $0x8] sm:$0xff]
    %v189 = vld [vmem:[%s21 + $0x10] sm:$0xff]
    %v190 = vld [vmem:[%s21 + $0x18] sm:$0xff]
    %v191 = vld [vmem:[%s23] sm:$0x1]
    %v192 = vld [vmem:[%s25] sm:$0x1]
    %v193 = vld [vmem:[%s27] sm:$0x1]
    %v194 = vld [vmem:[%s29] sm:$0xff]
    %v195 = vld [vmem:[%s29 + $0x8] sm:$0xff]
    %v196 = vld [vmem:[%s29 + $0x10] sm:$0xff]
    %v197 = vld [vmem:[%s29 + $0x18] sm:$0xff]
    %v198 = vld [vmem:[%s29 + $0x20] sm:$0xff]
    %v199 = vld [vmem:[%s29 + $0x28] sm:$0xff]
    %v200 = vld [vmem:[%s29 + $0x30] sm:$0xff]
    %v201 = vld [vmem:[%s29 + $0x38] sm:$0xff]
    %v202 = vld [vmem:[%s29 + $0x40] sm:$0xff]
    %v203 = vld [vmem:[%s29 + $0x48] sm:$0xff]
    %v204 = vld [vmem:[%s29 + $0x50] sm:$0xff]
    %v205 = vld [vmem:[%s29 + $0x58] sm:$0xff]
    %v206 = vld [vmem:[%s29 + $0x60] sm:$0xff]
    %v207 = vld [vmem:[%s29 + $0x68] sm:$0xff]
    %v208 = vld [vmem:[%s29 + $0x70] sm:$0xff]
    %v209 = vld [vmem:[%s29 + $0x78] sm:$0xff]
    %v210 = vld [vmem:[%s31] sm:$0x1]
    %v211 = vld [vmem:[%s31 + $0x1] sm:$0x1]
    %v212 = vld [vmem:[%s31 + $0x2] sm:$0x1]
    %v213 = vld [vmem:[%s31 + $0x3] sm:$0x1]
    %v214 = vld [vmem:[%s33] sm:$0xff]
    %v215 = vld [vmem:[%s33 + $0x8] sm:$0xff]
    %v216 = vld [vmem:[%s33 + $0x10] sm:$0xff]
    %v217 = vld [vmem:[%s33 + $0x18] sm:$0xff]
    %v218 = vld [vmem:[%s33 + $0x20] sm:$0xff]
    %v219 = vld [vmem:[%s33 + $0x28] sm:$0xff]
    %v220 = vld [vmem:[%s33 + $0x30] sm:$0xff]
    %v221 = vld [vmem:[%s33 + $0x38] sm:$0xff]
    %v222 = vld [vmem:[%s33 + $0x40] sm:$0xff]
    %v223 = vld [vmem:[%s33 + $0x48] sm:$0xff]
    %v224 = vld [vmem:[%s33 + $0x50] sm:$0xff]
    %v225 = vld [vmem:[%s33 + $0x58] sm:$0xff]
    %v226 = vld [vmem:[%s33 + $0x60] sm:$0xff]
    %v227 = vld [vmem:[%s33 + $0x68] sm:$0xff]
    %v228 = vld [vmem:[%s33 + $0x70] sm:$0xff]
    %v229 = vld [vmem:[%s33 + $0x78] sm:$0xff]
    %v230 = vld [vmem:[%s35] sm:$0x1]
    %v231 = vld [vmem:[%s35 + $0x1] sm:$0x1]
    %v232 = vld [vmem:[%s35 + $0x2] sm:$0x1]
    %v233 = vld [vmem:[%s35 + $0x3] sm:$0x1]
    %v234 = vld [vmem:[%s37] sm:$0xff]
    %v235 = vld [vmem:[%s37 + $0x8] sm:$0xff]
    %v236 = vld [vmem:[%s37 + $0x10] sm:$0xff]
    %v237 = vld [vmem:[%s37 + $0x18] sm:$0xff]
    %v238 = vld [vmem:[%s37 + $0x20] sm:$0xff]
    %v239 = vld [vmem:[%s37 + $0x28] sm:$0xff]
    %v240 = vld [vmem:[%s37 + $0x30] sm:$0xff]
    %v241 = vld [vmem:[%s37 + $0x38] sm:$0xff]
    %v242 = vld [vmem:[%s37 + $0x40] sm:$0xff]
    %v243 = vld [vmem:[%s37 + $0x48] sm:$0xff]
    %v244 = vld [vmem:[%s37 + $0x50] sm:$0xff]
    %v245 = vld [vmem:[%s37 + $0x58] sm:$0xff]
    %v246 = vld [vmem:[%s37 + $0x60] sm:$0xff]
    %v247 = vld [vmem:[%s37 + $0x68] sm:$0xff]
    %v248 = vld [vmem:[%s37 + $0x70] sm:$0xff]
    %v249 = vld [vmem:[%s37 + $0x78] sm:$0xff]
    %v250 = vld [vmem:[%s39] sm:$0x1]
    %v251 = vld [vmem:[%s39 + $0x1] sm:$0x1]
    %v252 = vld [vmem:[%s39 + $0x2] sm:$0x1]
    %v253 = vld [vmem:[%s39 + $0x3] sm:$0x1]
    %v254 = vld [vmem:[%s41] sm:$0xff]
    %v255 = vld [vmem:[%s41 + $0x8] sm:$0xff]
    %v256 = vld [vmem:[%s41 + $0x10] sm:$0xff]
    %v257 = vld [vmem:[%s41 + $0x18] sm:$0xff]
    %v258 = vld [vmem:[%s43] sm:$0x1]
    %v259 = vld [vmem:[%s45] sm:$0x1]
    %v260 = vld [vmem:[%s47] sm:$0x1]
    %v261 = vld [vmem:[%s49] sm:$0xff]
    %v262 = vld [vmem:[%s49 + $0x8] sm:$0xff]
    %v263 = vld [vmem:[%s49 + $0x10] sm:$0xff]
    %v264 = vld [vmem:[%s49 + $0x18] sm:$0xff]
    %v265 = vld [vmem:[%s51] sm:$0x1]
    %v266 = vld [vmem:[%s53] sm:$0xff]
    %v267 = vld [vmem:[%s53 + $0x8] sm:$0xff]
    %v268 = vld [vmem:[%s53 + $0x10] sm:$0xff]
    %v269 = vld [vmem:[%s53 + $0x18] sm:$0xff]
    %v270 = vld [vmem:[%s53 + $0x20] sm:$0xff]
    %v271 = vld [vmem:[%s53 + $0x28] sm:$0xff]
    %v272 = vld [vmem:[%s53 + $0x30] sm:$0xff]
    %v273 = vld [vmem:[%s53 + $0x38] sm:$0xff]
    %v274 = vld [vmem:[%s55] sm:$0x1]
    %v275 = vld [vmem:[%s57] sm:$0x1]
    %v276 = vld [vmem:[%s59] sm:$0x1]
    %v277 = vld [vmem:[%s1] sm:$0xff]
    %v278 = vld [vmem:[%s3] sm:$0xff]
    %v279 = vld [vmem:[%s5] sm:$0xff]
    %v280 = vld [vmem:[%s7] sm:$0xff]
    %v285 = vlaneseq
    %v286 = vshrl.u32 %v285, 7
    %v287 = vsub.s32 0, %v286
    %v288 = vrot.slane %v143, %v287
    %v289 = vlaneseq
    %v290 = vshrl.u32 %v289, 7
    %v291 = vsub.s32 0, %v290
    %v292 = vrot.slane %v144, %v291
    %v293 = vlaneseq
    %v294 = vshrl.u32 %v293, 7
    %v295 = vsub.s32 0, %v294
    %v296 = vrot.slane %v145, %v295
    %v297 = vlaneseq
    %v298 = vshrl.u32 %v297, 7
    %v299 = vsub.s32 0, %v298
    %v300 = vrot.slane %v146, %v299
    %vm305 = vcmask 261120
    %v307 = vsel %vm305, %v277, 0
    %309 = vmatprep.subr.mxu0 0.0
    %310 = vmatpush1.msra.mxu0 %v127
    %311 = vmatprep.subr.mxu0 0.0
    %312 = vmatpush1.msra.mxu0 %v128
    %313 = vmatprep.subr.mxu0 0.0
    %314 = vmatpush1.msra.mxu0 %v129
    %315 = vmatprep.subr.mxu0 0.0
    %316 = vmatpush1.msra.mxu0 %v130
    %317 = vmatprep.subr.mxu0 0.0
    %318 = vmatpush1.msra.mxu0 0.0
    %319 = vmatprep.subr.mxu0 0.0
    %320 = vmatpush1.msra.mxu0 0.0
    %321 = vmatprep.subr.mxu0 0.0
    %322 = vmatpush1.msra.mxu0 0.0
    %323 = vmatprep.subr.mxu0 0.0
    %324 = vmatpush1.msra.mxu0 0.0
    %325 = vmatprep.subr.mxu0 0.0
    %326 = vmatpush1.msra.mxu0 0.0
    %327 = vmatprep.subr.mxu0 0.0
    %328 = vmatpush1.msra.mxu0 0.0
    %329 = vmatprep.subr.mxu0 0.0
    %330 = vmatpush1.msra.mxu0 0.0
    %331 = vmatprep.subr.mxu0 0.0
    %332 = vmatpush1.msra.mxu0 0.0
    %333 = vmatprep.subr.mxu0 0.0
    %334 = vmatpush1.msra.mxu0 0.0
    %335 = vmatprep.subr.mxu0 0.0
    %336 = vmatpush1.msra.mxu0 0.0
    %337 = vmatprep.subr.mxu0 0.0
    %338 = vmatpush1.msra.mxu0 0.0
    %339 = vmatprep.subr.mxu0 0.0
    %340 = vmatpush1.msra.mxu0 0.0
    %341 = vmatprep.subr.mxu0 0.0
    %342 = vmatpush1.msra.mxu0 0.0
    %343 = vmatprep.subr.mxu0 0.0
    %344 = vmatpush1.msra.mxu0 0.0
    %345 = vmatprep.subr.mxu0 0.0
    %346 = vmatpush1.msra.mxu0 0.0
    %347 = vmatprep.subr.mxu0 0.0
    %348 = vmatpush1.msra.mxu0 0.0
    %349 = vmatprep.subr.mxu0 0.0
    %350 = vmatpush1.msra.mxu0 0.0
    %351 = vmatprep.subr.mxu0 0.0
    %352 = vmatpush1.msra.mxu0 0.0
    %353 = vmatprep.subr.mxu0 0.0
    %354 = vmatpush1.msra.mxu0 0.0
    %355 = vmatprep.subr.mxu0 0.0
    %356 = vmatpush1.msra.mxu0 0.0
    %357 = vmatprep.subr.mxu0 0.0
    %358 = vmatpush1.msra.mxu0 0.0
    %359 = vmatprep.subr.mxu0 0.0
    %360 = vmatpush1.msra.mxu0 0.0
    %361 = vmatprep.subr.mxu0 0.0
    %362 = vmatpush1.msra.mxu0 0.0
    %363 = vmatprep.subr.mxu0 0.0
    %364 = vmatpush1.msra.mxu0 0.0
    %365 = vmatprep.subr.mxu0 0.0
    %366 = vmatpush1.msra.mxu0 0.0
    %367 = vmatprep.subr.mxu0 0.0
    %368 = vmatpush1.msra.mxu0 0.0
    %369 = vmatprep.subr.mxu0 0.0
    %370 = vmatpush1.msra.mxu0 0.0
    %371 = vmatprep.subr.mxu0 0.0
    %372 = vmatpush1.msra.mxu0 0.0
    %373 = vmatprep.mubr.f32.mxu0 0.0
    %374 = vmatmul.mubr.f32.gmra.mrb[0].mxu0 %v307
    %v375 = vpop.f32.mrb[0].mxu0
    %v376 = vadd.f32 %v288, %v375
    %v377 = vpop.f32.mrb[0].mxu0
    %378 = vdwg.mxu0
    %379 = vmatprep.subr.mxu0 0.0
    %380 = vmatpush1.msra.mxu0 %v131
    %381 = vmatprep.subr.mxu0 0.0
    %382 = vmatpush1.msra.mxu0 %v132
    %383 = vmatprep.subr.mxu0 0.0
    %384 = vmatpush1.msra.mxu0 %v133
    %385 = vmatprep.subr.mxu0 0.0
    %386 = vmatpush1.msra.mxu0 %v134
    %387 = vmatprep.subr.mxu0 0.0
    %388 = vmatpush1.msra.mxu0 0.0
    %389 = vmatprep.subr.mxu0 0.0
    %390 = vmatpush1.msra.mxu0 0.0
    %391 = vmatprep.subr.mxu0 0.0
    %392 = vmatpush1.msra.mxu0 0.0
    %393 = vmatprep.subr.mxu0 0.0
    %394 = vmatpush1.msra.mxu0 0.0
    %395 = vmatprep.subr.mxu0 0.0
    %396 = vmatpush1.msra.mxu0 0.0
    %397 = vmatprep.subr.mxu0 0.0
    %398 = vmatpush1.msra.mxu0 0.0
    %399 = vmatprep.subr.mxu0 0.0
    %400 = vmatpush1.msra.mxu0 0.0
    %401 = vmatprep.subr.mxu0 0.0
    %402 = vmatpush1.msra.mxu0 0.0
    %403 = vmatprep.subr.mxu0 0.0
    %404 = vmatpush1.msra.mxu0 0.0
    %405 = vmatprep.subr.mxu0 0.0
    %406 = vmatpush1.msra.mxu0 0.0
    %407 = vmatprep.subr.mxu0 0.0
    %408 = vmatpush1.msra.mxu0 0.0
    %409 = vmatprep.subr.mxu0 0.0
    %410 = vmatpush1.msra.mxu0 0.0
    %411 = vmatprep.subr.mxu0 0.0
    %412 = vmatpush1.msra.mxu0 0.0
    %413 = vmatprep.subr.mxu0 0.0
    %414 = vmatpush1.msra.mxu0 0.0
    %415 = vmatprep.subr.mxu0 0.0
    %416 = vmatpush1.msra.mxu0 0.0
    %417 = vmatprep.subr.mxu0 0.0
    %418 = vmatpush1.msra.mxu0 0.0
    %419 = vmatprep.subr.mxu0 0.0
    %420 = vmatpush1.msra.mxu0 0.0
    %421 = vmatprep.subr.mxu0 0.0
    %422 = vmatpush1.msra.mxu0 0.0
    %423 = vmatprep.subr.mxu0 0.0
    %424 = vmatpush1.msra.mxu0 0.0
    %425 = vmatprep.subr.mxu0 0.0
    %426 = vmatpush1.msra.mxu0 0.0
    %427 = vmatprep.subr.mxu0 0.0
    %428 = vmatpush1.msra.mxu0 0.0
    %429 = vmatprep.subr.mxu0 0.0
    %430 = vmatpush1.msra.mxu0 0.0
    %431 = vmatprep.subr.mxu0 0.0
    %432 = vmatpush1.msra.mxu0 0.0
    %433 = vmatprep.subr.mxu0 0.0
    %434 = vmatpush1.msra.mxu0 0.0
    %435 = vmatprep.subr.mxu0 0.0
    %436 = vmatpush1.msra.mxu0 0.0
    %437 = vmatprep.subr.mxu0 0.0
    %438 = vmatpush1.msra.mxu0 0.0
    %439 = vmatprep.subr.mxu0 0.0
    %440 = vmatpush1.msra.mxu0 0.0
    %441 = vmatprep.subr.mxu0 0.0
    %442 = vmatpush1.msra.mxu0 0.0
    %443 = vmatprep.mubr.f32.mxu0 0.0
    %444 = vmatmul.mubr.f32.gmra.mrb[0].mxu0 %v307
    %v445 = vpop.f32.mrb[0].mxu0
    %v446 = vadd.f32 %v292, %v445
    %v447 = vpop.f32.mrb[0].mxu0
    %448 = vdwg.mxu0
    %449 = vmatprep.subr.mxu0 0.0
    %450 = vmatpush1.msra.mxu0 %v135
    %451 = vmatprep.subr.mxu0 0.0
    %452 = vmatpush1.msra.mxu0 %v136
    %453 = vmatprep.subr.mxu0 0.0
    %454 = vmatpush1.msra.mxu0 %v137
    %455 = vmatprep.subr.mxu0 0.0
    %456 = vmatpush1.msra.mxu0 %v138
    %457 = vmatprep.subr.mxu0 0.0
    %458 = vmatpush1.msra.mxu0 0.0
    %459 = vmatprep.subr.mxu0 0.0
    %460 = vmatpush1.msra.mxu0 0.0
    %461 = vmatprep.subr.mxu0 0.0
    %462 = vmatpush1.msra.mxu0 0.0
    %463 = vmatprep.subr.mxu0 0.0
    %464 = vmatpush1.msra.mxu0 0.0
    %465 = vmatprep.subr.mxu0 0.0
    %466 = vmatpush1.msra.mxu0 0.0
    %467 = vmatprep.subr.mxu0 0.0
    %468 = vmatpush1.msra.mxu0 0.0
    %469 = vmatprep.subr.mxu0 0.0
    %470 = vmatpush1.msra.mxu0 0.0
    %471 = vmatprep.subr.mxu0 0.0
    %472 = vmatpush1.msra.mxu0 0.0
    %473 = vmatprep.subr.mxu0 0.0
    %474 = vmatpush1.msra.mxu0 0.0
    %475 = vmatprep.subr.mxu0 0.0
    %476 = vmatpush1.msra.mxu0 0.0
    %477 = vmatprep.subr.mxu0 0.0
    %478 = vmatpush1.msra.mxu0 0.0
    %479 = vmatprep.subr.mxu0 0.0
    %480 = vmatpush1.msra.mxu0 0.0
    %481 = vmatprep.subr.mxu0 0.0
    %482 = vmatpush1.msra.mxu0 0.0
    %483 = vmatprep.subr.mxu0 0.0
    %484 = vmatpush1.msra.mxu0 0.0
    %485 = vmatprep.subr.mxu0 0.0
    %486 = vmatpush1.msra.mxu0 0.0
    %487 = vmatprep.subr.mxu0 0.0
    %488 = vmatpush1.msra.mxu0 0.0
    %489 = vmatprep.subr.mxu0 0.0
    %490 = vmatpush1.msra.mxu0 0.0
    %491 = vmatprep.subr.mxu0 0.0
    %492 = vmatpush1.msra.mxu0 0.0
    %493 = vmatprep.subr.mxu0 0.0
    %494 = vmatpush1.msra.mxu0 0.0
    %495 = vmatprep.subr.mxu0 0.0
    %496 = vmatpush1.msra.mxu0 0.0
    %497 = vmatprep.subr.mxu0 0.0
    %498 = vmatpush1.msra.mxu0 0.0
    %499 = vmatprep.subr.mxu0 0.0
    %500 = vmatpush1.msra.mxu0 0.0
    %501 = vmatprep.subr.mxu0 0.0
    %502 = vmatpush1.msra.mxu0 0.0
    %503 = vmatprep.subr.mxu0 0.0
    %504 = vmatpush1.msra.mxu0 0.0
    %505 = vmatprep.subr.mxu0 0.0
    %506 = vmatpush1.msra.mxu0 0.0
    %507 = vmatprep.subr.mxu0 0.0
    %508 = vmatpush1.msra.mxu0 0.0
    %509 = vmatprep.subr.mxu0 0.0
    %510 = vmatpush1.msra.mxu0 0.0
    %511 = vmatprep.subr.mxu0 0.0
    %512 = vmatpush1.msra.mxu0 0.0
    %513 = vmatprep.mubr.f32.mxu0 0.0
    %514 = vmatmul.mubr.f32.gmra.mrb[0].mxu0 %v307
    %v515 = vpop.f32.mrb[0].mxu0
    %v516 = vadd.f32 %v296, %v515
    %v517 = vpop.f32.mrb[0].mxu0
    %518 = vdwg.mxu0
    %519 = vmatprep.subr.mxu0 0.0
    %520 = vmatpush1.msra.mxu0 %v139
    %521 = vmatprep.subr.mxu0 0.0
    %522 = vmatpush1.msra.mxu0 %v140
    %523 = vmatprep.subr.mxu0 0.0
    %524 = vmatpush1.msra.mxu0 %v141
    %525 = vmatprep.subr.mxu0 0.0
    %526 = vmatpush1.msra.mxu0 %v142
    %527 = vmatprep.subr.mxu0 0.0
    %528 = vmatpush1.msra.mxu0 0.0
    %529 = vmatprep.subr.mxu0 0.0
    %530 = vmatpush1.msra.mxu0 0.0
    %531 = vmatprep.subr.mxu0 0.0
    %532 = vmatpush1.msra.mxu0 0.0
    %533 = vmatprep.subr.mxu0 0.0
    %534 = vmatpush1.msra.mxu0 0.0
    %535 = vmatprep.subr.mxu0 0.0
    %536 = vmatpush1.msra.mxu0 0.0
    %537 = vmatprep.subr.mxu0 0.0
    %538 = vmatpush1.msra.mxu0 0.0
    %539 = vmatprep.subr.mxu0 0.0
    %540 = vmatpush1.msra.mxu0 0.0
    %541 = vmatprep.subr.mxu0 0.0
    %542 = vmatpush1.msra.mxu0 0.0
    %543 = vmatprep.subr.mxu0 0.0
    %544 = vmatpush1.msra.mxu0 0.0
    %545 = vmatprep.subr.mxu0 0.0
    %546 = vmatpush1.msra.mxu0 0.0
    %547 = vmatprep.subr.mxu0 0.0
    %548 = vmatpush1.msra.mxu0 0.0
    %549 = vmatprep.subr.mxu0 0.0
    %550 = vmatpush1.msra.mxu0 0.0
    %551 = vmatprep.subr.mxu0 0.0
    %552 = vmatpush1.msra.mxu0 0.0
    %553 = vmatprep.subr.mxu0 0.0
    %554 = vmatpush1.msra.mxu0 0.0
    %555 = vmatprep.subr.mxu0 0.0
    %556 = vmatpush1.msra.mxu0 0.0
    %557 = vmatprep.subr.mxu0 0.0
    %558 = vmatpush1.msra.mxu0 0.0
    %559 = vmatprep.subr.mxu0 0.0
    %560 = vmatpush1.msra.mxu0 0.0
    %561 = vmatprep.subr.mxu0 0.0
    %562 = vmatpush1.msra.mxu0 0.0
    %563 = vmatprep.subr.mxu0 0.0
    %564 = vmatpush1.msra.mxu0 0.0
    %565 = vmatprep.subr.mxu0 0.0
    %566 = vmatpush1.msra.mxu0 0.0
    %567 = vmatprep.subr.mxu0 0.0
    %568 = vmatpush1.msra.mxu0 0.0
    %569 = vmatprep.subr.mxu0 0.0
    %570 = vmatpush1.msra.mxu0 0.0
    %571 = vmatprep.subr.mxu0 0.0
    %572 = vmatpush1.msra.mxu0 0.0
    %573 = vmatprep.subr.mxu0 0.0
    %574 = vmatpush1.msra.mxu0 0.0
    %575 = vmatprep.subr.mxu0 0.0
    %576 = vmatpush1.msra.mxu0 0.0
    %577 = vmatprep.subr.mxu0 0.0
    %578 = vmatpush1.msra.mxu0 0.0
    %579 = vmatprep.subr.mxu0 0.0
    %580 = vmatpush1.msra.mxu0 0.0
    %581 = vmatprep.subr.mxu0 0.0
    %582 = vmatpush1.msra.mxu0 0.0
    %583 = vmatprep.mubr.f32.mxu0 0.0
    %584 = vmatmul.mubr.f32.gmra.mrb[0].mxu0 %v307
    %v585 = vpop.f32.mrb[0].mxu0
    %v586 = vadd.f32 %v300, %v585
    %v587 = vpop.f32.mrb[0].mxu0
    %588 = vdwg.mxu0
    %v593 = vlaneseq
    %v594 = vshrl.u32 %v593, 7
    %v595 = vsub.s32 0, %v594
    %v596 = vrot.slane %v163, %v595
    %v597 = vlaneseq
    %v598 = vshrl.u32 %v597, 7
    %v599 = vsub.s32 0, %v598
    %v600 = vrot.slane %v164, %v599
    %v601 = vlaneseq
    %v602 = vshrl.u32 %v601, 7
    %v603 = vsub.s32 0, %v602
    %v604 = vrot.slane %v165, %v603
    %v605 = vlaneseq
    %v606 = vshrl.u32 %v605, 7
    %v607 = vsub.s32 0, %v606
    %v608 = vrot.slane %v166, %v607
    %613 = vmatprep.subr.mxu0 0.0
    %614 = vmatpush1.msra.mxu0 %v147
    %615 = vmatprep.subr.mxu0 0.0
    %616 = vmatpush1.msra.mxu0 %v148
    %617 = vmatprep.subr.mxu0 0.0
    %618 = vmatpush1.msra.mxu0 %v149
    %619 = vmatprep.subr.mxu0 0.0
    %620 = vmatpush1.msra.mxu0 %v150
    %621 = vmatprep.subr.mxu0 0.0
    %622 = vmatpush1.msra.mxu0 0.0
    %623 = vmatprep.subr.mxu0 0.0
    %624 = vmatpush1.msra.mxu0 0.0
    %625 = vmatprep.subr.mxu0 0.0
    %626 = vmatpush1.msra.mxu0 0.0
    %627 = vmatprep.subr.mxu0 0.0
    %628 = vmatpush1.msra.mxu0 0.0
    %629 = vmatprep.subr.mxu0 0.0
    %630 = vmatpush1.msra.mxu0 0.0
    %631 = vmatprep.subr.mxu0 0.0
    %632 = vmatpush1.msra.mxu0 0.0
    %633 = vmatprep.subr.mxu0 0.0
    %634 = vmatpush1.msra.mxu0 0.0
    %635 = vmatprep.subr.mxu0 0.0
    %636 = vmatpush1.msra.mxu0 0.0
    %637 = vmatprep.subr.mxu0 0.0
    %638 = vmatpush1.msra.mxu0 0.0
    %639 = vmatprep.subr.mxu0 0.0
    %640 = vmatpush1.msra.mxu0 0.0
    %641 = vmatprep.subr.mxu0 0.0
    %642 = vmatpush1.msra.mxu0 0.0
    %643 = vmatprep.subr.mxu0 0.0
    %644 = vmatpush1.msra.mxu0 0.0
    %645 = vmatprep.subr.mxu0 0.0
    %646 = vmatpush1.msra.mxu0 0.0
    %647 = vmatprep.subr.mxu0 0.0
    %648 = vmatpush1.msra.mxu0 0.0
    %649 = vmatprep.subr.mxu0 0.0
    %650 = vmatpush1.msra.mxu0 0.0
    %651 = vmatprep.subr.mxu0 0.0
    %652 = vmatpush1.msra.mxu0 0.0
    %653 = vmatprep.subr.mxu0 0.0
    %654 = vmatpush1.msra.mxu0 0.0
    %655 = vmatprep.subr.mxu0 0.0
    %656 = vmatpush1.msra.mxu0 0.0
    %657 = vmatprep.subr.mxu0 0.0
    %658 = vmatpush1.msra.mxu0 0.0
    %659 = vmatprep.subr.mxu0 0.0
    %660 = vmatpush1.msra.mxu0 0.0
    %661 = vmatprep.subr.mxu0 0.0
    %662 = vmatpush1.msra.mxu0 0.0
    %663 = vmatprep.subr.mxu0 0.0
    %664 = vmatpush1.msra.mxu0 0.0
    %665 = vmatprep.subr.mxu0 0.0
    %666 = vmatpush1.msra.mxu0 0.0
    %667 = vmatprep.subr.mxu0 0.0
    %668 = vmatpush1.msra.mxu0 0.0
    %669 = vmatprep.subr.mxu0 0.0
    %670 = vmatpush1.msra.mxu0 0.0
    %671 = vmatprep.subr.mxu0 0.0
    %672 = vmatpush1.msra.mxu0 0.0
    %673 = vmatprep.subr.mxu0 0.0
    %674 = vmatpush1.msra.mxu0 0.0
    %675 = vmatprep.subr.mxu0 0.0
    %676 = vmatpush1.msra.mxu0 0.0
    %677 = vmatprep.mubr.f32.mxu0 0.0
    %678 = vmatmul.mubr.f32.gmra.mrb[0].mxu0 %v307
    %v679 = vpop.f32.mrb[0].mxu0
    %v680 = vadd.f32 %v596, %v679
    %v681 = vpop.f32.mrb[0].mxu0
    %682 = vdwg.mxu0
    %683 = vmatprep.subr.mxu0 0.0
    %684 = vmatpush1.msra.mxu0 %v151
    %685 = vmatprep.subr.mxu0 0.0
    %686 = vmatpush1.msra.mxu0 %v152
    %687 = vmatprep.subr.mxu0 0.0
    %688 = vmatpush1.msra.mxu0 %v153
    %689 = vmatprep.subr.mxu0 0.0
    %690 = vmatpush1.msra.mxu0 %v154
    %691 = vmatprep.subr.mxu0 0.0
    %692 = vmatpush1.msra.mxu0 0.0
    %693 = vmatprep.subr.mxu0 0.0
    %694 = vmatpush1.msra.mxu0 0.0
    %695 = vmatprep.subr.mxu0 0.0
    %696 = vmatpush1.msra.mxu0 0.0
    %697 = vmatprep.subr.mxu0 0.0
    %698 = vmatpush1.msra.mxu0 0.0
    %699 = vmatprep.subr.mxu0 0.0
    %700 = vmatpush1.msra.mxu0 0.0
    %701 = vmatprep.subr.mxu0 0.0
    %702 = vmatpush1.msra.mxu0 0.0
    %703 = vmatprep.subr.mxu0 0.0
    %704 = vmatpush1.msra.mxu0 0.0
    %705 = vmatprep.subr.mxu0 0.0
    %706 = vmatpush1.msra.mxu0 0.0
    %707 = vmatprep.subr.mxu0 0.0
    %708 = vmatpush1.msra.mxu0 0.0
    %709 = vmatprep.subr.mxu0 0.0
    %710 = vmatpush1.msra.mxu0 0.0
    %711 = vmatprep.subr.mxu0 0.0
    %712 = vmatpush1.msra.mxu0 0.0
    %713 = vmatprep.subr.mxu0 0.0
    %714 = vmatpush1.msra.mxu0 0.0
    %715 = vmatprep.subr.mxu0 0.0
    %716 = vmatpush1.msra.mxu0 0.0
    %717 = vmatprep.subr.mxu0 0.0
    %718 = vmatpush1.msra.mxu0 0.0
    %719 = vmatprep.subr.mxu0 0.0
    %720 = vmatpush1.msra.mxu0 0.0
    %721 = vmatprep.subr.mxu0 0.0
    %722 = vmatpush1.msra.mxu0 0.0
    %723 = vmatprep.subr.mxu0 0.0
    %724 = vmatpush1.msra.mxu0 0.0
    %725 = vmatprep.subr.mxu0 0.0
    %726 = vmatpush1.msra.mxu0 0.0
    %727 = vmatprep.subr.mxu0 0.0
    %728 = vmatpush1.msra.mxu0 0.0
    %729 = vmatprep.subr.mxu0 0.0
    %730 = vmatpush1.msra.mxu0 0.0
    %731 = vmatprep.subr.mxu0 0.0
    %732 = vmatpush1.msra.mxu0 0.0
    %733 = vmatprep.subr.mxu0 0.0
    %734 = vmatpush1.msra.mxu0 0.0
    %735 = vmatprep.subr.mxu0 0.0
    %736 = vmatpush1.msra.mxu0 0.0
    %737 = vmatprep.subr.mxu0 0.0
    %738 = vmatpush1.msra.mxu0 0.0
    %739 = vmatprep.subr.mxu0 0.0
    %740 = vmatpush1.msra.mxu0 0.0
    %741 = vmatprep.subr.mxu0 0.0
    %742 = vmatpush1.msra.mxu0 0.0
    %743 = vmatprep.subr.mxu0 0.0
    %744 = vmatpush1.msra.mxu0 0.0
    %745 = vmatprep.subr.mxu0 0.0
    %746 = vmatpush1.msra.mxu0 0.0
    %747 = vmatprep.mubr.f32.mxu0 0.0
    %748 = vmatmul.mubr.f32.gmra.mrb[0].mxu0 %v307
    %v749 = vpop.f32.mrb[0].mxu0
    %v750 = vadd.f32 %v600, %v749
    %v751 = vpop.f32.mrb[0].mxu0
    %752 = vdwg.mxu0
    %753 = vmatprep.subr.mxu0 0.0
    %754 = vmatpush1.msra.mxu0 %v155
    %755 = vmatprep.subr.mxu0 0.0
    %756 = vmatpush1.msra.mxu0 %v156
    %757 = vmatprep.subr.mxu0 0.0
    %758 = vmatpush1.msra.mxu0 %v157
    %759 = vmatprep.subr.mxu0 0.0
    %760 = vmatpush1.msra.mxu0 %v158
    %761 = vmatprep.subr.mxu0 0.0
    %762 = vmatpush1.msra.mxu0 0.0
    %763 = vmatprep.subr.mxu0 0.0
    %764 = vmatpush1.msra.mxu0 0.0
    %765 = vmatprep.subr.mxu0 0.0
    %766 = vmatpush1.msra.mxu0 0.0
    %767 = vmatprep.subr.mxu0 0.0
    %768 = vmatpush1.msra.mxu0 0.0
    %769 = vmatprep.subr.mxu0 0.0
    %770 = vmatpush1.msra.mxu0 0.0
    %771 = vmatprep.subr.mxu0 0.0
    %772 = vmatpush1.msra.mxu0 0.0
    %773 = vmatprep.subr.mxu0 0.0
    %774 = vmatpush1.msra.mxu0 0.0
    %775 = vmatprep.subr.mxu0 0.0
    %776 = vmatpush1.msra.mxu0 0.0
    %777 = vmatprep.subr.mxu0 0.0
    %778 = vmatpush1.msra.mxu0 0.0
    %779 = vmatprep.subr.mxu0 0.0
    %780 = vmatpush1.msra.mxu0 0.0
    %781 = vmatprep.subr.mxu0 0.0
    %782 = vmatpush1.msra.mxu0 0.0
    %783 = vmatprep.subr.mxu0 0.0
    %784 = vmatpush1.msra.mxu0 0.0
    %785 = vmatprep.subr.mxu0 0.0
    %786 = vmatpush1.msra.mxu0 0.0
    %787 = vmatprep.subr.mxu0 0.0
    %788 = vmatpush1.msra.mxu0 0.0
    %789 = vmatprep.subr.mxu0 0.0
    %790 = vmatpush1.msra.mxu0 0.0
    %791 = vmatprep.subr.mxu0 0.0
    %792 = vmatpush1.msra.mxu0 0.0
    %793 = vmatprep.subr.mxu0 0.0
    %794 = vmatpush1.msra.mxu0 0.0
    %795 = vmatprep.subr.mxu0 0.0
    %796 = vmatpush1.msra.mxu0 0.0
    %797 = vmatprep.subr.mxu0 0.0
    %798 = vmatpush1.msra.mxu0 0.0
    %799 = vmatprep.subr.mxu0 0.0
    %800 = vmatpush1.msra.mxu0 0.0
    %801 = vmatprep.subr.mxu0 0.0
    %802 = vmatpush1.msra.mxu0 0.0
    %803 = vmatprep.subr.mxu0 0.0
    %804 = vmatpush1.msra.mxu0 0.0
    %805 = vmatprep.subr.mxu0 0.0
    %806 = vmatpush1.msra.mxu0 0.0
    %807 = vmatprep.subr.mxu0 0.0
    %808 = vmatpush1.msra.mxu0 0.0
    %809 = vmatprep.subr.mxu0 0.0
    %810 = vmatpush1.msra.mxu0 0.0
    %811 = vmatprep.subr.mxu0 0.0
    %812 = vmatpush1.msra.mxu0 0.0
    %813 = vmatprep.subr.mxu0 0.0
    %814 = vmatpush1.msra.mxu0 0.0
    %815 = vmatprep.subr.mxu0 0.0
    %816 = vmatpush1.msra.mxu0 0.0
    %817 = vmatprep.mubr.f32.mxu0 0.0
    %818 = vmatmul.mubr.f32.gmra.mrb[0].mxu0 %v307
    %v819 = vpop.f32.mrb[0].mxu0
    %v820 = vadd.f32 %v604, %v819
    %v821 = vpop.f32.mrb[0].mxu0
    %822 = vdwg.mxu0
    %823 = vmatprep.subr.mxu0 0.0
    %824 = vmatpush1.msra.mxu0 %v159
    %825 = vmatprep.subr.mxu0 0.0
    %826 = vmatpush1.msra.mxu0 %v160
    %827 = vmatprep.subr.mxu0 0.0
    %828 = vmatpush1.msra.mxu0 %v161
    %829 = vmatprep.subr.mxu0 0.0
    %830 = vmatpush1.msra.mxu0 %v162
    %831 = vmatprep.subr.mxu0 0.0
    %832 = vmatpush1.msra.mxu0 0.0
    %833 = vmatprep.subr.mxu0 0.0
    %834 = vmatpush1.msra.mxu0 0.0
    %835 = vmatprep.subr.mxu0 0.0
    %836 = vmatpush1.msra.mxu0 0.0
    %837 = vmatprep.subr.mxu0 0.0
    %838 = vmatpush1.msra.mxu0 0.0
    %839 = vmatprep.subr.mxu0 0.0
    %840 = vmatpush1.msra.mxu0 0.0
    %841 = vmatprep.subr.mxu0 0.0
    %842 = vmatpush1.msra.mxu0 0.0
    %843 = vmatprep.subr.mxu0 0.0
    %844 = vmatpush1.msra.mxu0 0.0
    %845 = vmatprep.subr.mxu0 0.0
    %846 = vmatpush1.msra.mxu0 0.0
    %847 = vmatprep.subr.mxu0 0.0
    %848 = vmatpush1.msra.mxu0 0.0
    %849 = vmatprep.subr.mxu0 0.0
    %850 = vmatpush1.msra.mxu0 0.0
    %851 = vmatprep.subr.mxu0 0.0
    %852 = vmatpush1.msra.mxu0 0.0
    %853 = vmatprep.subr.mxu0 0.0
    %854 = vmatpush1.msra.mxu0 0.0
    %855 = vmatprep.subr.mxu0 0.0
    %856 = vmatpush1.msra.mxu0 0.0
    %857 = vmatprep.subr.mxu0 0.0
    %858 = vmatpush1.msra.mxu0 0.0
    %859 = vmatprep.subr.mxu0 0.0
    %860 = vmatpush1.msra.mxu0 0.0
    %861 = vmatprep.subr.mxu0 0.0
    %862 = vmatpush1.msra.mxu0 0.0
    %863 = vmatprep.subr.mxu0 0.0
    %864 = vmatpush1.msra.mxu0 0.0
    %865 = vmatprep.subr.mxu0 0.0
    %866 = vmatpush1.msra.mxu0 0.0
    %867 = vmatprep.subr.mxu0 0.0
    %868 = vmatpush1.msra.mxu0 0.0
    %869 = vmatprep.subr.mxu0 0.0
    %870 = vmatpush1.msra.mxu0 0.0
    %871 = vmatprep.subr.mxu0 0.0
    %872 = vmatpush1.msra.mxu0 0.0
    %873 = vmatprep.subr.mxu0 0.0
    %874 = vmatpush1.msra.mxu0 0.0
    %875 = vmatprep.subr.mxu0 0.0
    %876 = vmatpush1.msra.mxu0 0.0
    %877 = vmatprep.subr.mxu0 0.0
    %878 = vmatpush1.msra.mxu0 0.0
    %879 = vmatprep.subr.mxu0 0.0
    %880 = vmatpush1.msra.mxu0 0.0
    %881 = vmatprep.subr.mxu0 0.0
    %882 = vmatpush1.msra.mxu0 0.0
    %883 = vmatprep.subr.mxu0 0.0
    %884 = vmatpush1.msra.mxu0 0.0
    %885 = vmatprep.subr.mxu0 0.0
    %886 = vmatpush1.msra.mxu0 0.0
    %887 = vmatprep.mubr.f32.mxu0 0.0
    %888 = vmatmul.mubr.f32.gmra.mrb[0].mxu0 %v307
    %v889 = vpop.f32.mrb[0].mxu0
    %v890 = vadd.f32 %v608, %v889
    %v891 = vpop.f32.mrb[0].mxu0
    %892 = vdwg.mxu0
    %v897 = vlaneseq
    %v898 = vshrl.u32 %v897, 7
    %v899 = vsub.s32 0, %v898
    %v900 = vrot.slane %v183, %v899
    %v901 = vlaneseq
    %v902 = vshrl.u32 %v901, 7
    %v903 = vsub.s32 0, %v902
    %v904 = vrot.slane %v184, %v903
    %v905 = vlaneseq
    %v906 = vshrl.u32 %v905, 7
    %v907 = vsub.s32 0, %v906
    %v908 = vrot.slane %v185, %v907
    %v909 = vlaneseq
    %v910 = vshrl.u32 %v909, 7
    %v911 = vsub.s32 0, %v910
    %v912 = vrot.slane %v186, %v911
    %917 = vmatprep.subr.mxu0 0.0
    %918 = vmatpush1.msra.mxu0 %v167
    %919 = vmatprep.subr.mxu0 0.0
    %920 = vmatpush1.msra.mxu0 %v168
    %921 = vmatprep.subr.mxu0 0.0
    %922 = vmatpush1.msra.mxu0 %v169
    %923 = vmatprep.subr.mxu0 0.0
    %924 = vmatpush1.msra.mxu0 %v170
    %925 = vmatprep.subr.mxu0 0.0
    %926 = vmatpush1.msra.mxu0 0.0
    %927 = vmatprep.subr.mxu0 0.0
    %928 = vmatpush1.msra.mxu0 0.0
    %929 = vmatprep.subr.mxu0 0.0
    %930 = vmatpush1.msra.mxu0 0.0
    %931 = vmatprep.subr.mxu0 0.0
    %932 = vmatpush1.msra.mxu0 0.0
    %933 = vmatprep.subr.mxu0 0.0
    %934 = vmatpush1.msra.mxu0 0.0
    %935 = vmatprep.subr.mxu0 0.0
    %936 = vmatpush1.msra.mxu0 0.0
    %937 = vmatprep.subr.mxu0 0.0
    %938 = vmatpush1.msra.mxu0 0.0
    %939 = vmatprep.subr.mxu0 0.0
    %940 = vmatpush1.msra.mxu0 0.0
    %941 = vmatprep.subr.mxu0 0.0
    %942 = vmatpush1.msra.mxu0 0.0
    %943 = vmatprep.subr.mxu0 0.0
    %944 = vmatpush1.msra.mxu0 0.0
    %945 = vmatprep.subr.mxu0 0.0
    %946 = vmatpush1.msra.mxu0 0.0
    %947 = vmatprep.subr.mxu0 0.0
    %948 = vmatpush1.msra.mxu0 0.0
    %949 = vmatprep.subr.mxu0 0.0
    %950 = vmatpush1.msra.mxu0 0.0
    %951 = vmatprep.subr.mxu0 0.0
    %952 = vmatpush1.msra.mxu0 0.0
    %953 = vmatprep.subr.mxu0 0.0
    %954 = vmatpush1.msra.mxu0 0.0
    %955 = vmatprep.subr.mxu0 0.0
    %956 = vmatpush1.msra.mxu0 0.0
    %957 = vmatprep.subr.mxu0 0.0
    %958 = vmatpush1.msra.mxu0 0.0
    %959 = vmatprep.subr.mxu0 0.0
    %960 = vmatpush1.msra.mxu0 0.0
    %961 = vmatprep.subr.mxu0 0.0
    %962 = vmatpush1.msra.mxu0 0.0
    %963 = vmatprep.subr.mxu0 0.0
    %964 = vmatpush1.msra.mxu0 0.0
    %965 = vmatprep.subr.mxu0 0.0
    %966 = vmatpush1.msra.mxu0 0.0
    %967 = vmatprep.subr.mxu0 0.0
    %968 = vmatpush1.msra.mxu0 0.0
    %969 = vmatprep.subr.mxu0 0.0
    %970 = vmatpush1.msra.mxu0 0.0
    %971 = vmatprep.subr.mxu0 0.0
    %972 = vmatpush1.msra.mxu0 0.0
    %973 = vmatprep.subr.mxu0 0.0
    %974 = vmatpush1.msra.mxu0 0.0
    %975 = vmatprep.subr.mxu0 0.0
    %976 = vmatpush1.msra.mxu0 0.0
    %977 = vmatprep.subr.mxu0 0.0
    %978 = vmatpush1.msra.mxu0 0.0
    %979 = vmatprep.subr.mxu0 0.0
    %980 = vmatpush1.msra.mxu0 0.0
    %981 = vmatprep.mubr.f32.mxu0 0.0
    %982 = vmatmul.mubr.f32.gmra.mrb[0].mxu0 %v307
    %v983 = vpop.f32.mrb[0].mxu0
    %v984 = vadd.f32 %v900, %v983
    %v985 = vpop.f32.mrb[0].mxu0
    %986 = vdwg.mxu0
    %987 = vmatprep.subr.mxu0 0.0
    %988 = vmatpush1.msra.mxu0 %v171
    %989 = vmatprep.subr.mxu0 0.0
    %990 = vmatpush1.msra.mxu0 %v172
    %991 = vmatprep.subr.mxu0 0.0
    %992 = vmatpush1.msra.mxu0 %v173
    %993 = vmatprep.subr.mxu0 0.0
    %994 = vmatpush1.msra.mxu0 %v174
    %995 = vmatprep.subr.mxu0 0.0
    %996 = vmatpush1.msra.mxu0 0.0
    %997 = vmatprep.subr.mxu0 0.0
    %998 = vmatpush1.msra.mxu0 0.0
    %999 = vmatprep.subr.mxu0 0.0
    %1000 = vmatpush1.msra.mxu0 0.0
    %1001 = vmatprep.subr.mxu0 0.0
    %1002 = vmatpush1.msra.mxu0 0.0
    %1003 = vmatprep.subr.mxu0 0.0
    %1004 = vmatpush1.msra.mxu0 0.0
    %1005 = vmatprep.subr.mxu0 0.0
    %1006 = vmatpush1.msra.mxu0 0.0
    %1007 = vmatprep.subr.mxu0 0.0
    %1008 = vmatpush1.msra.mxu0 0.0
    %1009 = vmatprep.subr.mxu0 0.0
    %1010 = vmatpush1.msra.mxu0 0.0
    %1011 = vmatprep.subr.mxu0 0.0
    %1012 = vmatpush1.msra.mxu0 0.0
    %1013 = vmatprep.subr.mxu0 0.0
    %1014 = vmatpush1.msra.mxu0 0.0
    %1015 = vmatprep.subr.mxu0 0.0
    %1016 = vmatpush1.msra.mxu0 0.0
    %1017 = vmatprep.subr.mxu0 0.0
    %1018 = vmatpush1.msra.mxu0 0.0
    %1019 = vmatprep.subr.mxu0 0.0
    %1020 = vmatpush1.msra.mxu0 0.0
    %1021 = vmatprep.subr.mxu0 0.0
    %1022 = vmatpush1.msra.mxu0 0.0
    %1023 = vmatprep.subr.mxu0 0.0
    %1024 = vmatpush1.msra.mxu0 0.0
    %1025 = vmatprep.subr.mxu0 0.0
    %1026 = vmatpush1.msra.mxu0 0.0
    %1027 = vmatprep.subr.mxu0 0.0
    %1028 = vmatpush1.msra.mxu0 0.0
    %1029 = vmatprep.subr.mxu0 0.0
    %1030 = vmatpush1.msra.mxu0 0.0
    %1031 = vmatprep.subr.mxu0 0.0
    %1032 = vmatpush1.msra.mxu0 0.0
    %1033 = vmatprep.subr.mxu0 0.0
    %1034 = vmatpush1.msra.mxu0 0.0
    %1035 = vmatprep.subr.mxu0 0.0
    %1036 = vmatpush1.msra.mxu0 0.0
    %1037 = vmatprep.subr.mxu0 0.0
    %1038 = vmatpush1.msra.mxu0 0.0
    %1039 = vmatprep.subr.mxu0 0.0
    %1040 = vmatpush1.msra.mxu0 0.0
    %1041 = vmatprep.subr.mxu0 0.0
    %1042 = vmatpush1.msra.mxu0 0.0
    %1043 = vmatprep.subr.mxu0 0.0
    %1044 = vmatpush1.msra.mxu0 0.0
    %1045 = vmatprep.subr.mxu0 0.0
    %1046 = vmatpush1.msra.mxu0 0.0
    %1047 = vmatprep.subr.mxu0 0.0
    %1048 = vmatpush1.msra.mxu0 0.0
    %1049 = vmatprep.subr.mxu0 0.0
    %1050 = vmatpush1.msra.mxu0 0.0
    %1051 = vmatprep.mubr.f32.mxu0 0.0
    %1052 = vmatmul.mubr.f32.gmra.mrb[0].mxu0 %v307
    %v1053 = vpop.f32.mrb[0].mxu0
    %v1054 = vadd.f32 %v904, %v1053
    %v1055 = vpop.f32.mrb[0].mxu0
    %1056 = vdwg.mxu0
    %1057 = vmatprep.subr.mxu0 0.0
    %1058 = vmatpush1.msra.mxu0 %v175
    %1059 = vmatprep.subr.mxu0 0.0
    %1060 = vmatpush1.msra.mxu0 %v176
    %1061 = vmatprep.subr.mxu0 0.0
    %1062 = vmatpush1.msra.mxu0 %v177
    %1063 = vmatprep.subr.mxu0 0.0
    %1064 = vmatpush1.msra.mxu0 %v178
    %1065 = vmatprep.subr.mxu0 0.0
    %1066 = vmatpush1.msra.mxu0 0.0
    %1067 = vmatprep.subr.mxu0 0.0
    %1068 = vmatpush1.msra.mxu0 0.0
    %1069 = vmatprep.subr.mxu0 0.0
    %1070 = vmatpush1.msra.mxu0 0.0
    %1071 = vmatprep.subr.mxu0 0.0
    %1072 = vmatpush1.msra.mxu0 0.0
    %1073 = vmatprep.subr.mxu0 0.0
    %1074 = vmatpush1.msra.mxu0 0.0
    %1075 = vmatprep.subr.mxu0 0.0
    %1076 = vmatpush1.msra.mxu0 0.0
    %1077 = vmatprep.subr.mxu0 0.0
    %1078 = vmatpush1.msra.mxu0 0.0
    %1079 = vmatprep.subr.mxu0 0.0
    %1080 = vmatpush1.msra.mxu0 0.0
    %1081 = vmatprep.subr.mxu0 0.0
    %1082 = vmatpush1.msra.mxu0 0.0
    %1083 = vmatprep.subr.mxu0 0.0
    %1084 = vmatpush1.msra.mxu0 0.0
    %1085 = vmatprep.subr.mxu0 0.0
    %1086 = vmatpush1.msra.mxu0 0.0
    %1087 = vmatprep.subr.mxu0 0.0
    %1088 = vmatpush1.msra.mxu0 0.0
    %1089 = vmatprep.subr.mxu0 0.0
    %1090 = vmatpush1.msra.mxu0 0.0
    %1091 = vmatprep.subr.mxu0 0.0
    %1092 = vmatpush1.msra.mxu0 0.0
    %1093 = vmatprep.subr.mxu0 0.0
    %1094 = vmatpush1.msra.mxu0 0.0
    %1095 = vmatprep.subr.mxu0 0.0
    %1096 = vmatpush1.msra.mxu0 0.0
    %1097 = vmatprep.subr.mxu0 0.0
    %1098 = vmatpush1.msra.mxu0 0.0
    %1099 = vmatprep.subr.mxu0 0.0
    %1100 = vmatpush1.msra.mxu0 0.0
    %1101 = vmatprep.subr.mxu0 0.0
    %1102 = vmatpush1.msra.mxu0 0.0
    %1103 = vmatprep.subr.mxu0 0.0
    %1104 = vmatpush1.msra.mxu0 0.0
    %1105 = vmatprep.subr.mxu0 0.0
    %1106 = vmatpush1.msra.mxu0 0.0
    %1107 = vmatprep.subr.mxu0 0.0
    %1108 = vmatpush1.msra.mxu0 0.0
    %1109 = vmatprep.subr.mxu0 0.0
    %1110 = vmatpush1.msra.mxu0 0.0
    %1111 = vmatprep.subr.mxu0 0.0
    %1112 = vmatpush1.msra.mxu0 0.0
    %1113 = vmatprep.subr.mxu0 0.0
    %1114 = vmatpush1.msra.mxu0 0.0
    %1115 = vmatprep.subr.mxu0 0.0
    %1116 = vmatpush1.msra.mxu0 0.0
    %1117 = vmatprep.subr.mxu0 0.0
    %1118 = vmatpush1.msra.mxu0 0.0
    %1119 = vmatprep.subr.mxu0 0.0
    %1120 = vmatpush1.msra.mxu0 0.0
    %1121 = vmatprep.mubr.f32.mxu0 0.0
    %1122 = vmatmul.mubr.f32.gmra.mrb[0].mxu0 %v307
    %v1123 = vpop.f32.mrb[0].mxu0
    %v1124 = vadd.f32 %v908, %v1123
    %v1125 = vpop.f32.mrb[0].mxu0
    %1126 = vdwg.mxu0
    %1127 = vmatprep.subr.mxu0 0.0
    %1128 = vmatpush1.msra.mxu0 %v179
    %1129 = vmatprep.subr.mxu0 0.0
    %1130 = vmatpush1.msra.mxu0 %v180
    %1131 = vmatprep.subr.mxu0 0.0
    %1132 = vmatpush1.msra.mxu0 %v181
    %1133 = vmatprep.subr.mxu0 0.0
    %1134 = vmatpush1.msra.mxu0 %v182
    %1135 = vmatprep.subr.mxu0 0.0
    %1136 = vmatpush1.msra.mxu0 0.0
    %1137 = vmatprep.subr.mxu0 0.0
    %1138 = vmatpush1.msra.mxu0 0.0
    %1139 = vmatprep.subr.mxu0 0.0
    %1140 = vmatpush1.msra.mxu0 0.0
    %1141 = vmatprep.subr.mxu0 0.0
    %1142 = vmatpush1.msra.mxu0 0.0
    %1143 = vmatprep.subr.mxu0 0.0
    %1144 = vmatpush1.msra.mxu0 0.0
    %1145 = vmatprep.subr.mxu0 0.0
    %1146 = vmatpush1.msra.mxu0 0.0
    %1147 = vmatprep.subr.mxu0 0.0
    %1148 = vmatpush1.msra.mxu0 0.0
    %1149 = vmatprep.subr.mxu0 0.0
    %1150 = vmatpush1.msra.mxu0 0.0
    %1151 = vmatprep.subr.mxu0 0.0
    %1152 = vmatpush1.msra.mxu0 0.0
    %1153 = vmatprep.subr.mxu0 0.0
    %1154 = vmatpush1.msra.mxu0 0.0
    %1155 = vmatprep.subr.mxu0 0.0
    %1156 = vmatpush1.msra.mxu0 0.0
    %1157 = vmatprep.subr.mxu0 0.0
    %1158 = vmatpush1.msra.mxu0 0.0
    %1159 = vmatprep.subr.mxu0 0.0
    %1160 = vmatpush1.msra.mxu0 0.0
    %1161 = vmatprep.subr.mxu0 0.0
    %1162 = vmatpush1.msra.mxu0 0.0
    %1163 = vmatprep.subr.mxu0 0.0
    %1164 = vmatpush1.msra.mxu0 0.0
    %1165 = vmatprep.subr.mxu0 0.0
    %1166 = vmatpush1.msra.mxu0 0.0
    %1167 = vmatprep.subr.mxu0 0.0
    %1168 = vmatpush1.msra.mxu0 0.0
    %1169 = vmatprep.subr.mxu0 0.0
    %1170 = vmatpush1.msra.mxu0 0.0
    %1171 = vmatprep.subr.mxu0 0.0
    %1172 = vmatpush1.msra.mxu0 0.0
    %1173 = vmatprep.subr.mxu0 0.0
    %1174 = vmatpush1.msra.mxu0 0.0
    %1175 = vmatprep.subr.mxu0 0.0
    %1176 = vmatpush1.msra.mxu0 0.0
    %1177 = vmatprep.subr.mxu0 0.0
    %1178 = vmatpush1.msra.mxu0 0.0
    %1179 = vmatprep.subr.mxu0 0.0
    %1180 = vmatpush1.msra.mxu0 0.0
    %1181 = vmatprep.subr.mxu0 0.0
    %1182 = vmatpush1.msra.mxu0 0.0
    %1183 = vmatprep.subr.mxu0 0.0
    %1184 = vmatpush1.msra.mxu0 0.0
    %1185 = vmatprep.subr.mxu0 0.0
    %1186 = vmatpush1.msra.mxu0 0.0
    %1187 = vmatprep.subr.mxu0 0.0
    %1188 = vmatpush1.msra.mxu0 0.0
    %1189 = vmatprep.subr.mxu0 0.0
    %1190 = vmatpush1.msra.mxu0 0.0
    %1191 = vmatprep.mubr.f32.mxu0 0.0
    %1192 = vmatmul.mubr.f32.gmra.mrb[0].mxu0 %v307
    %v1193 = vpop.f32.mrb[0].mxu0
    %v1194 = vadd.f32 %v912, %v1193
    %v1195 = vpop.f32.mrb[0].mxu0
    %1196 = vdwg.mxu0
    %vm1197 = vcmask 64512
    %v1199 = vsel %vm1197, %v376, 0
    %v1202 = vsel %vm1197, %v680, 0
    %1204 = vmatprep.subr.mxu0 0.0
    %1205 = vmatpush1.xpose.msra.mxu0 %v1202
    %1206 = vmatprep.subr.mxu0 0.0
    %1207 = vmatpush1.xpose.msra.mxu0 0.0
    %1208 = vmatprep.subr.mxu0 0.0
    %1209 = vmatpush1.xpose.msra.mxu0 0.0
    %1210 = vmatprep.subr.mxu0 0.0
    %1211 = vmatpush1.xpose.msra.mxu0 0.0
    %1212 = vmatprep.subr.mxu0 0.0
    %1213 = vmatpush1.xpose.msra.mxu0 0.0
    %1214 = vmatprep.subr.mxu0 0.0
    %1215 = vmatpush1.xpose.msra.mxu0 0.0
    %1216 = vmatprep.subr.mxu0 0.0
    %1217 = vmatpush1.xpose.msra.mxu0 0.0
    %1218 = vmatprep.subr.mxu0 0.0
    %1219 = vmatpush1.xpose.msra.mxu0 0.0
    %1220 = vmatprep.subr.mxu0 0.0
    %1221 = vmatpush1.xpose.msra.mxu0 0.0
    %1222 = vmatprep.subr.mxu0 0.0
    %1223 = vmatpush1.xpose.msra.mxu0 0.0
    %1224 = vmatprep.subr.mxu0 0.0
    %1225 = vmatpush1.xpose.msra.mxu0 0.0
    %1226 = vmatprep.subr.mxu0 0.0
    %1227 = vmatpush1.xpose.msra.mxu0 0.0
    %1228 = vmatprep.subr.mxu0 0.0
    %1229 = vmatpush1.xpose.msra.mxu0 0.0
    %1230 = vmatprep.subr.mxu0 0.0
    %1231 = vmatpush1.xpose.msra.mxu0 0.0
    %1232 = vmatprep.subr.mxu0 0.0
    %1233 = vmatpush1.xpose.msra.mxu0 0.0
    %1234 = vmatprep.subr.mxu0 0.0
    %1235 = vmatpush1.xpose.msra.mxu0 0.0
    %1236 = vmatprep.subr.mxu0 0.0
    %1237 = vmatpush1.xpose.msra.mxu0 0.0
    %1238 = vmatprep.subr.mxu0 0.0
    %1239 = vmatpush1.xpose.msra.mxu0 0.0
    %1240 = vmatprep.subr.mxu0 0.0
    %1241 = vmatpush1.xpose.msra.mxu0 0.0
    %1242 = vmatprep.subr.mxu0 0.0
    %1243 = vmatpush1.xpose.msra.mxu0 0.0
    %1244 = vmatprep.subr.mxu0 0.0
    %1245 = vmatpush1.xpose.msra.mxu0 0.0
    %1246 = vmatprep.subr.mxu0 0.0
    %1247 = vmatpush1.xpose.msra.mxu0 0.0
    %1248 = vmatprep.subr.mxu0 0.0
    %1249 = vmatpush1.xpose.msra.mxu0 0.0
    %1250 = vmatprep.subr.mxu0 0.0
    %1251 = vmatpush1.xpose.msra.mxu0 0.0
    %1252 = vmatprep.subr.mxu0 0.0
    %1253 = vmatpush1.xpose.msra.mxu0 0.0
    %1254 = vmatprep.subr.mxu0 0.0
    %1255 = vmatpush1.xpose.msra.mxu0 0.0
    %1256 = vmatprep.subr.mxu0 0.0
    %1257 = vmatpush1.xpose.msra.mxu0 0.0
    %1258 = vmatprep.subr.mxu0 0.0
    %1259 = vmatpush1.xpose.msra.mxu0 0.0
    %1260 = vmatprep.subr.mxu0 0.0
    %1261 = vmatpush1.xpose.msra.mxu0 0.0
    %1262 = vmatprep.subr.mxu0 0.0
    %1263 = vmatpush1.xpose.msra.mxu0 0.0
    %1264 = vmatprep.subr.mxu0 0.0
    %1265 = vmatpush1.xpose.msra.mxu0 0.0
    %1266 = vmatprep.subr.mxu0 0.0
    %1267 = vmatpush1.xpose.msra.mxu0 0.0
    %1268 = vmatprep.mubr.f32.mxu0 0.0
    %1269 = vmatmul.mubr.f32.gmra.mrb[0].mxu0 %v1199
    %v1270 = vpop.f32.mrb[0].mxu0
    %v1271 = vadd.f32 0.0, %v1270
    %v1272 = vpop.f32.mrb[0].mxu0
    %1273 = vdwg.mxu0
    %v1275 = vsel %vm1197, %v446, 0
    %v1278 = vsel %vm1197, %v750, 0
    %1280 = vmatprep.subr.mxu0 0.0
    %1281 = vmatpush1.xpose.msra.mxu0 %v1278
    %1282 = vmatprep.subr.mxu0 0.0
    %1283 = vmatpush1.xpose.msra.mxu0 0.0
    %1284 = vmatprep.subr.mxu0 0.0
    %1285 = vmatpush1.xpose.msra.mxu0 0.0
    %1286 = vmatprep.subr.mxu0 0.0
    %1287 = vmatpush1.xpose.msra.mxu0 0.0
    %1288 = vmatprep.subr.mxu0 0.0
    %1289 = vmatpush1.xpose.msra.mxu0 0.0
    %1290 = vmatprep.subr.mxu0 0.0
    %1291 = vmatpush1.xpose.msra.mxu0 0.0
    %1292 = vmatprep.subr.mxu0 0.0
    %1293 = vmatpush1.xpose.msra.mxu0 0.0
    %1294 = vmatprep.subr.mxu0 0.0
    %1295 = vmatpush1.xpose.msra.mxu0 0.0
    %1296 = vmatprep.subr.mxu0 0.0
    %1297 = vmatpush1.xpose.msra.mxu0 0.0
    %1298 = vmatprep.subr.mxu0 0.0
    %1299 = vmatpush1.xpose.msra.mxu0 0.0
    %1300 = vmatprep.subr.mxu0 0.0
    %1301 = vmatpush1.xpose.msra.mxu0 0.0
    %1302 = vmatprep.subr.mxu0 0.0
    %1303 = vmatpush1.xpose.msra.mxu0 0.0
    %1304 = vmatprep.subr.mxu0 0.0
    %1305 = vmatpush1.xpose.msra.mxu0 0.0
    %1306 = vmatprep.subr.mxu0 0.0
    %1307 = vmatpush1.xpose.msra.mxu0 0.0
    %1308 = vmatprep.subr.mxu0 0.0
    %1309 = vmatpush1.xpose.msra.mxu0 0.0
    %1310 = vmatprep.subr.mxu0 0.0
    %1311 = vmatpush1.xpose.msra.mxu0 0.0
    %1312 = vmatprep.subr.mxu0 0.0
    %1313 = vmatpush1.xpose.msra.mxu0 0.0
    %1314 = vmatprep.subr.mxu0 0.0
    %1315 = vmatpush1.xpose.msra.mxu0 0.0
    %1316 = vmatprep.subr.mxu0 0.0
    %1317 = vmatpush1.xpose.msra.mxu0 0.0
    %1318 = vmatprep.subr.mxu0 0.0
    %1319 = vmatpush1.xpose.msra.mxu0 0.0
    %1320 = vmatprep.subr.mxu0 0.0
    %1321 = vmatpush1.xpose.msra.mxu0 0.0
    %1322 = vmatprep.subr.mxu0 0.0
    %1323 = vmatpush1.xpose.msra.mxu0 0.0
    %1324 = vmatprep.subr.mxu0 0.0
    %1325 = vmatpush1.xpose.msra.mxu0 0.0
    %1326 = vmatprep.subr.mxu0 0.0
    %1327 = vmatpush1.xpose.msra.mxu0 0.0
    %1328 = vmatprep.subr.mxu0 0.0
    %1329 = vmatpush1.xpose.msra.mxu0 0.0
    %1330 = vmatprep.subr.mxu0 0.0
    %1331 = vmatpush1.xpose.msra.mxu0 0.0
    %1332 = vmatprep.subr.mxu0 0.0
    %1333 = vmatpush1.xpose.msra.mxu0 0.0
    %1334 = vmatprep.subr.mxu0 0.0
    %1335 = vmatpush1.xpose.msra.mxu0 0.0
    %1336 = vmatprep.subr.mxu0 0.0
    %1337 = vmatpush1.xpose.msra.mxu0 0.0
    %1338 = vmatprep.subr.mxu0 0.0
    %1339 = vmatpush1.xpose.msra.mxu0 0.0
    %1340 = vmatprep.subr.mxu0 0.0
    %1341 = vmatpush1.xpose.msra.mxu0 0.0
    %1342 = vmatprep.subr.mxu0 0.0
    %1343 = vmatpush1.xpose.msra.mxu0 0.0
    %1344 = vmatprep.mubr.f32.mxu0 0.0
    %1345 = vmatmul.mubr.f32.gmra.mrb[0].mxu0 %v1275
    %v1346 = vpop.f32.mrb[0].mxu0
    %v1347 = vadd.f32 0.0, %v1346
    %v1348 = vpop.f32.mrb[0].mxu0
    %1349 = vdwg.mxu0
    %v1351 = vsel %vm1197, %v516, 0
    %v1354 = vsel %vm1197, %v820, 0
    %1356 = vmatprep.subr.mxu0 0.0
    %1357 = vmatpush1.xpose.msra.mxu0 %v1354
    %1358 = vmatprep.subr.mxu0 0.0
    %1359 = vmatpush1.xpose.msra.mxu0 0.0
    %1360 = vmatprep.subr.mxu0 0.0
    %1361 = vmatpush1.xpose.msra.mxu0 0.0
    %1362 = vmatprep.subr.mxu0 0.0
    %1363 = vmatpush1.xpose.msra.mxu0 0.0
    %1364 = vmatprep.subr.mxu0 0.0
    %1365 = vmatpush1.xpose.msra.mxu0 0.0
    %1366 = vmatprep.subr.mxu0 0.0
    %1367 = vmatpush1.xpose.msra.mxu0 0.0
    %1368 = vmatprep.subr.mxu0 0.0
    %1369 = vmatpush1.xpose.msra.mxu0 0.0
    %1370 = vmatprep.subr.mxu0 0.0
    %1371 = vmatpush1.xpose.msra.mxu0 0.0
    %1372 = vmatprep.subr.mxu0 0.0
    %1373 = vmatpush1.xpose.msra.mxu0 0.0
    %1374 = vmatprep.subr.mxu0 0.0
    %1375 = vmatpush1.xpose.msra.mxu0 0.0
    %1376 = vmatprep.subr.mxu0 0.0
    %1377 = vmatpush1.xpose.msra.mxu0 0.0
    %1378 = vmatprep.subr.mxu0 0.0
    %1379 = vmatpush1.xpose.msra.mxu0 0.0
    %1380 = vmatprep.subr.mxu0 0.0
    %1381 = vmatpush1.xpose.msra.mxu0 0.0
    %1382 = vmatprep.subr.mxu0 0.0
    %1383 = vmatpush1.xpose.msra.mxu0 0.0
    %1384 = vmatprep.subr.mxu0 0.0
    %1385 = vmatpush1.xpose.msra.mxu0 0.0
    %1386 = vmatprep.subr.mxu0 0.0
    %1387 = vmatpush1.xpose.msra.mxu0 0.0
    %1388 = vmatprep.subr.mxu0 0.0
    %1389 = vmatpush1.xpose.msra.mxu0 0.0
    %1390 = vmatprep.subr.mxu0 0.0
    %1391 = vmatpush1.xpose.msra.mxu0 0.0
    %1392 = vmatprep.subr.mxu0 0.0
    %1393 = vmatpush1.xpose.msra.mxu0 0.0
    %1394 = vmatprep.subr.mxu0 0.0
    %1395 = vmatpush1.xpose.msra.mxu0 0.0
    %1396 = vmatprep.subr.mxu0 0.0
    %1397 = vmatpush1.xpose.msra.mxu0 0.0
    %1398 = vmatprep.subr.mxu0 0.0
    %1399 = vmatpush1.xpose.msra.mxu0 0.0
    %1400 = vmatprep.subr.mxu0 0.0
    %1401 = vmatpush1.xpose.msra.mxu0 0.0
    %1402 = vmatprep.subr.mxu0 0.0
    %1403 = vmatpush1.xpose.msra.mxu0 0.0
    %1404 = vmatprep.subr.mxu0 0.0
    %1405 = vmatpush1.xpose.msra.mxu0 0.0
    %1406 = vmatprep.subr.mxu0 0.0
    %1407 = vmatpush1.xpose.msra.mxu0 0.0
    %1408 = vmatprep.subr.mxu0 0.0
    %1409 = vmatpush1.xpose.msra.mxu0 0.0
    %1410 = vmatprep.subr.mxu0 0.0
    %1411 = vmatpush1.xpose.msra.mxu0 0.0
    %1412 = vmatprep.subr.mxu0 0.0
    %1413 = vmatpush1.xpose.msra.mxu0 0.0
    %1414 = vmatprep.subr.mxu0 0.0
    %1415 = vmatpush1.xpose.msra.mxu0 0.0
    %1416 = vmatprep.subr.mxu0 0.0
    %1417 = vmatpush1.xpose.msra.mxu0 0.0
    %1418 = vmatprep.subr.mxu0 0.0
    %1419 = vmatpush1.xpose.msra.mxu0 0.0
    %1420 = vmatprep.mubr.f32.mxu0 0.0
    %1421 = vmatmul.mubr.f32.gmra.mrb[0].mxu0 %v1351
    %v1422 = vpop.f32.mrb[0].mxu0
    %v1423 = vadd.f32 0.0, %v1422
    %v1424 = vpop.f32.mrb[0].mxu0
    %1425 = vdwg.mxu0
    %v1427 = vsel %vm1197, %v586, 0
    %v1430 = vsel %vm1197, %v890, 0
    %1432 = vmatprep.subr.mxu0 0.0
    %1433 = vmatpush1.xpose.msra.mxu0 %v1430
    %1434 = vmatprep.subr.mxu0 0.0
    %1435 = vmatpush1.xpose.msra.mxu0 0.0
    %1436 = vmatprep.subr.mxu0 0.0
    %1437 = vmatpush1.xpose.msra.mxu0 0.0
    %1438 = vmatprep.subr.mxu0 0.0
    %1439 = vmatpush1.xpose.msra.mxu0 0.0
    %1440 = vmatprep.subr.mxu0 0.0
    %1441 = vmatpush1.xpose.msra.mxu0 0.0
    %1442 = vmatprep.subr.mxu0 0.0
    %1443 = vmatpush1.xpose.msra.mxu0 0.0
    %1444 = vmatprep.subr.mxu0 0.0
    %1445 = vmatpush1.xpose.msra.mxu0 0.0
    %1446 = vmatprep.subr.mxu0 0.0
    %1447 = vmatpush1.xpose.msra.mxu0 0.0
    %1448 = vmatprep.subr.mxu0 0.0
    %1449 = vmatpush1.xpose.msra.mxu0 0.0
    %1450 = vmatprep.subr.mxu0 0.0
    %1451 = vmatpush1.xpose.msra.mxu0 0.0
    %1452 = vmatprep.subr.mxu0 0.0
    %1453 = vmatpush1.xpose.msra.mxu0 0.0
    %1454 = vmatprep.subr.mxu0 0.0
    %1455 = vmatpush1.xpose.msra.mxu0 0.0
    %1456 = vmatprep.subr.mxu0 0.0
    %1457 = vmatpush1.xpose.msra.mxu0 0.0
    %1458 = vmatprep.subr.mxu0 0.0
    %1459 = vmatpush1.xpose.msra.mxu0 0.0
    %1460 = vmatprep.subr.mxu0 0.0
    %1461 = vmatpush1.xpose.msra.mxu0 0.0
    %1462 = vmatprep.subr.mxu0 0.0
    %1463 = vmatpush1.xpose.msra.mxu0 0.0
    %1464 = vmatprep.subr.mxu0 0.0
    %1465 = vmatpush1.xpose.msra.mxu0 0.0
    %1466 = vmatprep.subr.mxu0 0.0
    %1467 = vmatpush1.xpose.msra.mxu0 0.0
    %1468 = vmatprep.subr.mxu0 0.0
    %1469 = vmatpush1.xpose.msra.mxu0 0.0
    %1470 = vmatprep.subr.mxu0 0.0
    %1471 = vmatpush1.xpose.msra.mxu0 0.0
    %1472 = vmatprep.subr.mxu0 0.0
    %1473 = vmatpush1.xpose.msra.mxu0 0.0
    %1474 = vmatprep.subr.mxu0 0.0
    %1475 = vmatpush1.xpose.msra.mxu0 0.0
    %1476 = vmatprep.subr.mxu0 0.0
    %1477 = vmatpush1.xpose.msra.mxu0 0.0
    %1478 = vmatprep.subr.mxu0 0.0
    %1479 = vmatpush1.xpose.msra.mxu0 0.0
    %1480 = vmatprep.subr.mxu0 0.0
    %1481 = vmatpush1.xpose.msra.mxu0 0.0
    %1482 = vmatprep.subr.mxu0 0.0
    %1483 = vmatpush1.xpose.msra.mxu0 0.0
    %1484 = vmatprep.subr.mxu0 0.0
    %1485 = vmatpush1.xpose.msra.mxu0 0.0
    %1486 = vmatprep.subr.mxu0 0.0
    %1487 = vmatpush1.xpose.msra.mxu0 0.0
    %1488 = vmatprep.subr.mxu0 0.0
    %1489 = vmatpush1.xpose.msra.mxu0 0.0
    %1490 = vmatprep.subr.mxu0 0.0
    %1491 = vmatpush1.xpose.msra.mxu0 0.0
    %1492 = vmatprep.subr.mxu0 0.0
    %1493 = vmatpush1.xpose.msra.mxu0 0.0
    %1494 = vmatprep.subr.mxu0 0.0
    %1495 = vmatpush1.xpose.msra.mxu0 0.0
    %1496 = vmatprep.mubr.f32.mxu0 0.0
    %1497 = vmatmul.mubr.f32.gmra.mrb[0].mxu0 %v1427
    %v1498 = vpop.f32.mrb[0].mxu0
    %v1499 = vadd.f32 0.0, %v1498
    %v1500 = vpop.f32.mrb[0].mxu0
    %1501 = vdwg.mxu0
    %v1502 = vmul.f32 %v1271, 0.35355338
    %v1503 = vmul.f32 %v1347, 0.35355338
    %v1504 = vmul.f32 %v1423, 0.35355338
    %v1505 = vmul.f32 %v1499, 0.35355338
    %v1506 = vadd.f32 %v1502, %v279
    %v1507 = vadd.f32 %v1503, %v279
    %v1508 = vadd.f32 %v1504, %v279
    %v1509 = vadd.f32 %v1505, %v279
    %v1510 = vsel %vm1197, %v1506, -inf
    %1511 = vmax.xlane.f32.xlu0 %v1510
    %v1512 = vpop.xlane.xlu0 %1511
    %v1513 = vsel %vm1197, %v1507, -inf
    %1514 = vmax.xlane.f32.xlu0 %v1513
    %v1515 = vpop.xlane.xlu0 %1514
    %v1516 = vsel %vm1197, %v1508, -inf
    %1517 = vmax.xlane.f32.xlu0 %v1516
    %v1518 = vpop.xlane.xlu0 %1517
    %v1519 = vsel %vm1197, %v1509, -inf
    %1520 = vmax.xlane.f32.xlu0 %v1519
    %v1521 = vpop.xlane.xlu0 %1520
    %v1522 = vsub.f32 %v1506, %v1512
    %v1523 = vsub.f32 %v1507, %v1515
    %v1524 = vsub.f32 %v1508, %v1518
    %v1525 = vsub.f32 %v1509, %v1521
    %v1526 = vmul.f32 %v1522, 1.442695
    %v1527 = vpow.pop %v1526
    %v1528 = vmul.f32 %v1523, 1.442695
    %v1529 = vpow.pop %v1528
    %v1530 = vmul.f32 %v1524, 1.442695
    %v1531 = vpow.pop %v1530
    %v1532 = vmul.f32 %v1525, 1.442695
    %v1533 = vpow.pop %v1532
    %v1534 = vsel %vm1197, %v1527, 0.0
    %1535 = vadd.xlane.f32.xlu0 %v1534
    %v1536 = vpop.xlane.xlu0 %1535
    %v1537 = vsel %vm1197, %v1529, 0.0
    %1538 = vadd.xlane.f32.xlu0 %v1537
    %v1539 = vpop.xlane.xlu0 %1538
    %v1540 = vsel %vm1197, %v1531, 0.0
    %1541 = vadd.xlane.f32.xlu0 %v1540
    %v1542 = vpop.xlane.xlu0 %1541
    %v1543 = vsel %vm1197, %v1533, 0.0
    %1544 = vadd.xlane.f32.xlu0 %v1543
    %v1545 = vpop.xlane.xlu0 %1544
    %v1546 = vrcp.pop %v1536
    %v1547 = vrcp.pop %v1539
    %v1548 = vrcp.pop %v1542
    %v1549 = vrcp.pop %v1545
    %v1550 = vmul.f32 %v1527, %v1546
    %v1551 = vmul.f32 %v1529, %v1547
    %v1552 = vmul.f32 %v1531, %v1548
    %v1553 = vmul.f32 %v1533, %v1549
    %v1555 = vsel %vm1197, %v1550, 0
    %1557 = vmatprep.subr.mxu0 0.0
    %1558 = vmatpush1.msra.mxu0 %v984
    %1559 = vmatprep.subr.mxu0 0.0
    %1560 = vmatpush1.msra.mxu0 0.0
    %1561 = vmatprep.subr.mxu0 0.0
    %1562 = vmatpush1.msra.mxu0 0.0
    %1563 = vmatprep.subr.mxu0 0.0
    %1564 = vmatpush1.msra.mxu0 0.0
    %1565 = vmatprep.subr.mxu0 0.0
    %1566 = vmatpush1.msra.mxu0 0.0
    %1567 = vmatprep.subr.mxu0 0.0
    %1568 = vmatpush1.msra.mxu0 0.0
    %1569 = vmatprep.subr.mxu0 0.0
    %1570 = vmatpush1.msra.mxu0 0.0
    %1571 = vmatprep.subr.mxu0 0.0
    %1572 = vmatpush1.msra.mxu0 0.0
    %1573 = vmatprep.subr.mxu0 0.0
    %1574 = vmatpush1.msra.mxu0 0.0
    %1575 = vmatprep.subr.mxu0 0.0
    %1576 = vmatpush1.msra.mxu0 0.0
    %1577 = vmatprep.subr.mxu0 0.0
    %1578 = vmatpush1.msra.mxu0 0.0
    %1579 = vmatprep.subr.mxu0 0.0
    %1580 = vmatpush1.msra.mxu0 0.0
    %1581 = vmatprep.subr.mxu0 0.0
    %1582 = vmatpush1.msra.mxu0 0.0
    %1583 = vmatprep.subr.mxu0 0.0
    %1584 = vmatpush1.msra.mxu0 0.0
    %1585 = vmatprep.subr.mxu0 0.0
    %1586 = vmatpush1.msra.mxu0 0.0
    %1587 = vmatprep.subr.mxu0 0.0
    %1588 = vmatpush1.msra.mxu0 0.0
    %1589 = vmatprep.subr.mxu0 0.0
    %1590 = vmatpush1.msra.mxu0 0.0
    %1591 = vmatprep.subr.mxu0 0.0
    %1592 = vmatpush1.msra.mxu0 0.0
    %1593 = vmatprep.subr.mxu0 0.0
    %1594 = vmatpush1.msra.mxu0 0.0
    %1595 = vmatprep.subr.mxu0 0.0
    %1596 = vmatpush1.msra.mxu0 0.0
    %1597 = vmatprep.subr.mxu0 0.0
    %1598 = vmatpush1.msra.mxu0 0.0
    %1599 = vmatprep.subr.mxu0 0.0
    %1600 = vmatpush1.msra.mxu0 0.0
    %1601 = vmatprep.subr.mxu0 0.0
    %1602 = vmatpush1.msra.mxu0 0.0
    %1603 = vmatprep.subr.mxu0 0.0
    %1604 = vmatpush1.msra.mxu0 0.0
    %1605 = vmatprep.subr.mxu0 0.0
    %1606 = vmatpush1.msra.mxu0 0.0
    %1607 = vmatprep.subr.mxu0 0.0
    %1608 = vmatpush1.msra.mxu0 0.0
    %1609 = vmatprep.subr.mxu0 0.0
    %1610 = vmatpush1.msra.mxu0 0.0
    %1611 = vmatprep.subr.mxu0 0.0
    %1612 = vmatpush1.msra.mxu0 0.0
    %1613 = vmatprep.subr.mxu0 0.0
    %1614 = vmatpush1.msra.mxu0 0.0
    %1615 = vmatprep.subr.mxu0 0.0
    %1616 = vmatpush1.msra.mxu0 0.0
    %1617 = vmatprep.subr.mxu0 0.0
    %1618 = vmatpush1.msra.mxu0 0.0
    %1619 = vmatprep.subr.mxu0 0.0
    %1620 = vmatpush1.msra.mxu0 0.0
    %1621 = vmatprep.mubr.f32.mxu0 0.0
    %1622 = vmatmul.mubr.f32.gmra.mrb[0].mxu0 %v1555
    %v1623 = vpop.f32.mrb[0].mxu0
    %v1624 = vadd.f32 0.0, %v1623
    %v1625 = vpop.f32.mrb[0].mxu0
    %1626 = vdwg.mxu0
    %v1628 = vsel %vm1197, %v1551, 0
    %1630 = vmatprep.subr.mxu0 0.0
    %1631 = vmatpush1.msra.mxu0 %v1054
    %1632 = vmatprep.subr.mxu0 0.0
    %1633 = vmatpush1.msra.mxu0 0.0
    %1634 = vmatprep.subr.mxu0 0.0
    %1635 = vmatpush1.msra.mxu0 0.0
    %1636 = vmatprep.subr.mxu0 0.0
    %1637 = vmatpush1.msra.mxu0 0.0
    %1638 = vmatprep.subr.mxu0 0.0
    %1639 = vmatpush1.msra.mxu0 0.0
    %1640 = vmatprep.subr.mxu0 0.0
    %1641 = vmatpush1.msra.mxu0 0.0
    %1642 = vmatprep.subr.mxu0 0.0
    %1643 = vmatpush1.msra.mxu0 0.0
    %1644 = vmatprep.subr.mxu0 0.0
    %1645 = vmatpush1.msra.mxu0 0.0
    %1646 = vmatprep.subr.mxu0 0.0
    %1647 = vmatpush1.msra.mxu0 0.0
    %1648 = vmatprep.subr.mxu0 0.0
    %1649 = vmatpush1.msra.mxu0 0.0
    %1650 = vmatprep.subr.mxu0 0.0
    %1651 = vmatpush1.msra.mxu0 0.0
    %1652 = vmatprep.subr.mxu0 0.0
    %1653 = vmatpush1.msra.mxu0 0.0
    %1654 = vmatprep.subr.mxu0 0.0
    %1655 = vmatpush1.msra.mxu0 0.0
    %1656 = vmatprep.subr.mxu0 0.0
    %1657 = vmatpush1.msra.mxu0 0.0
    %1658 = vmatprep.subr.mxu0 0.0
    %1659 = vmatpush1.msra.mxu0 0.0
    %1660 = vmatprep.subr.mxu0 0.0
    %1661 = vmatpush1.msra.mxu0 0.0
    %1662 = vmatprep.subr.mxu0 0.0
    %1663 = vmatpush1.msra.mxu0 0.0
    %1664 = vmatprep.subr.mxu0 0.0
    %1665 = vmatpush1.msra.mxu0 0.0
    %1666 = vmatprep.subr.mxu0 0.0
    %1667 = vmatpush1.msra.mxu0 0.0
    %1668 = vmatprep.subr.mxu0 0.0
    %1669 = vmatpush1.msra.mxu0 0.0
    %1670 = vmatprep.subr.mxu0 0.0
    %1671 = vmatpush1.msra.mxu0 0.0
    %1672 = vmatprep.subr.mxu0 0.0
    %1673 = vmatpush1.msra.mxu0 0.0
    %1674 = vmatprep.subr.mxu0 0.0
    %1675 = vmatpush1.msra.mxu0 0.0
    %1676 = vmatprep.subr.mxu0 0.0
    %1677 = vmatpush1.msra.mxu0 0.0
    %1678 = vmatprep.subr.mxu0 0.0
    %1679 = vmatpush1.msra.mxu0 0.0
    %1680 = vmatprep.subr.mxu0 0.0
    %1681 = vmatpush1.msra.mxu0 0.0
    %1682 = vmatprep.subr.mxu0 0.0
    %1683 = vmatpush1.msra.mxu0 0.0
    %1684 = vmatprep.subr.mxu0 0.0
    %1685 = vmatpush1.msra.mxu0 0.0
    %1686 = vmatprep.subr.mxu0 0.0
    %1687 = vmatpush1.msra.mxu0 0.0
    %1688 = vmatprep.subr.mxu0 0.0
    %1689 = vmatpush1.msra.mxu0 0.0
    %1690 = vmatprep.subr.mxu0 0.0
    %1691 = vmatpush1.msra.mxu0 0.0
    %1692 = vmatprep.subr.mxu0 0.0
    %1693 = vmatpush1.msra.mxu0 0.0
    %1694 = vmatprep.mubr.f32.mxu0 0.0
    %1695 = vmatmul.mubr.f32.gmra.mrb[0].mxu0 %v1628
    %v1696 = vpop.f32.mrb[0].mxu0
    %v1697 = vadd.f32 0.0, %v1696
    %v1698 = vpop.f32.mrb[0].mxu0
    %1699 = vdwg.mxu0
    %v1701 = vsel %vm1197, %v1552, 0
    %1703 = vmatprep.subr.mxu0 0.0
    %1704 = vmatpush1.msra.mxu0 %v1124
    %1705 = vmatprep.subr.mxu0 0.0
    %1706 = vmatpush1.msra.mxu0 0.0
    %1707 = vmatprep.subr.mxu0 0.0
    %1708 = vmatpush1.msra.mxu0 0.0
    %1709 = vmatprep.subr.mxu0 0.0
    %1710 = vmatpush1.msra.mxu0 0.0
    %1711 = vmatprep.subr.mxu0 0.0
    %1712 = vmatpush1.msra.mxu0 0.0
    %1713 = vmatprep.subr.mxu0 0.0
    %1714 = vmatpush1.msra.mxu0 0.0
    %1715 = vmatprep.subr.mxu0 0.0
    %1716 = vmatpush1.msra.mxu0 0.0
    %1717 = vmatprep.subr.mxu0 0.0
    %1718 = vmatpush1.msra.mxu0 0.0
    %1719 = vmatprep.subr.mxu0 0.0
    %1720 = vmatpush1.msra.mxu0 0.0
    %1721 = vmatprep.subr.mxu0 0.0
    %1722 = vmatpush1.msra.mxu0 0.0
    %1723 = vmatprep.subr.mxu0 0.0
    %1724 = vmatpush1.msra.mxu0 0.0
    %1725 = vmatprep.subr.mxu0 0.0
    %1726 = vmatpush1.msra.mxu0 0.0
    %1727 = vmatprep.subr.mxu0 0.0
    %1728 = vmatpush1.msra.mxu0 0.0
    %1729 = vmatprep.subr.mxu0 0.0
    %1730 = vmatpush1.msra.mxu0 0.0
    %1731 = vmatprep.subr.mxu0 0.0
    %1732 = vmatpush1.msra.mxu0 0.0
    %1733 = vmatprep.subr.mxu0 0.0
    %1734 = vmatpush1.msra.mxu0 0.0
    %1735 = vmatprep.subr.mxu0 0.0
    %1736 = vmatpush1.msra.mxu0 0.0
    %1737 = vmatprep.subr.mxu0 0.0
    %1738 = vmatpush1.msra.mxu0 0.0
    %1739 = vmatprep.subr.mxu0 0.0
    %1740 = vmatpush1.msra.mxu0 0.0
    %1741 = vmatprep.subr.mxu0 0.0
    %1742 = vmatpush1.msra.mxu0 0.0
    %1743 = vmatprep.subr.mxu0 0.0
    %1744 = vmatpush1.msra.mxu0 0.0
    %1745 = vmatprep.subr.mxu0 0.0
    %1746 = vmatpush1.msra.mxu0 0.0
    %1747 = vmatprep.subr.mxu0 0.0
    %1748 = vmatpush1.msra.mxu0 0.0
    %1749 = vmatprep.subr.mxu0 0.0
    %1750 = vmatpush1.msra.mxu0 0.0
    %1751 = vmatprep.subr.mxu0 0.0
    %1752 = vmatpush1.msra.mxu0 0.0
    %1753 = vmatprep.subr.mxu0 0.0
    %1754 = vmatpush1.msra.mxu0 0.0
    %1755 = vmatprep.subr.mxu0 0.0
    %1756 = vmatpush1.msra.mxu0 0.0
    %1757 = vmatprep.subr.mxu0 0.0
    %1758 = vmatpush1.msra.mxu0 0.0
    %1759 = vmatprep.subr.mxu0 0.0
    %1760 = vmatpush1.msra.mxu0 0.0
    %1761 = vmatprep.subr.mxu0 0.0
    %1762 = vmatpush1.msra.mxu0 0.0
    %1763 = vmatprep.subr.mxu0 0.0
    %1764 = vmatpush1.msra.mxu0 0.0
    %1765 = vmatprep.subr.mxu0 0.0
    %1766 = vmatpush1.msra.mxu0 0.0
    %1767 = vmatprep.mubr.f32.mxu0 0.0
    %1768 = vmatmul.mubr.f32.gmra.mrb[0].mxu0 %v1701
    %v1769 = vpop.f32.mrb[0].mxu0
    %v1770 = vadd.f32 0.0, %v1769
    %v1771 = vpop.f32.mrb[0].mxu0
    %1772 = vdwg.mxu0
    %v1774 = vsel %vm1197, %v1553, 0
    %1776 = vmatprep.subr.mxu0 0.0
    %1777 = vmatpush1.msra.mxu0 %v1194
    %1778 = vmatprep.subr.mxu0 0.0
    %1779 = vmatpush1.msra.mxu0 0.0
    %1780 = vmatprep.subr.mxu0 0.0
    %1781 = vmatpush1.msra.mxu0 0.0
    %1782 = vmatprep.subr.mxu0 0.0
    %1783 = vmatpush1.msra.mxu0 0.0
    %1784 = vmatprep.subr.mxu0 0.0
    %1785 = vmatpush1.msra.mxu0 0.0
    %1786 = vmatprep.subr.mxu0 0.0
    %1787 = vmatpush1.msra.mxu0 0.0
    %1788 = vmatprep.subr.mxu0 0.0
    %1789 = vmatpush1.msra.mxu0 0.0
    %1790 = vmatprep.subr.mxu0 0.0
    %1791 = vmatpush1.msra.mxu0 0.0
    %1792 = vmatprep.subr.mxu0 0.0
    %1793 = vmatpush1.msra.mxu0 0.0
    %1794 = vmatprep.subr.mxu0 0.0
    %1795 = vmatpush1.msra.mxu0 0.0
    %1796 = vmatprep.subr.mxu0 0.0
    %1797 = vmatpush1.msra.mxu0 0.0
    %1798 = vmatprep.subr.mxu0 0.0
    %1799 = vmatpush1.msra.mxu0 0.0
    %1800 = vmatprep.subr.mxu0 0.0
    %1801 = vmatpush1.msra.mxu0 0.0
    %1802 = vmatprep.subr.mxu0 0.0
    %1803 = vmatpush1.msra.mxu0 0.0
    %1804 = vmatprep.subr.mxu0 0.0
    %1805 = vmatpush1.msra.mxu0 0.0
    %1806 = vmatprep.subr.mxu0 0.0
    %1807 = vmatpush1.msra.mxu0 0.0
    %1808 = vmatprep.subr.mxu0 0.0
    %1809 = vmatpush1.msra.mxu0 0.0
    %1810 = vmatprep.subr.mxu0 0.0
    %1811 = vmatpush1.msra.mxu0 0.0
    %1812 = vmatprep.subr.mxu0 0.0
    %1813 = vmatpush1.msra.mxu0 0.0
    %1814 = vmatprep.subr.mxu0 0.0
    %1815 = vmatpush1.msra.mxu0 0.0
    %1816 = vmatprep.subr.mxu0 0.0
    %1817 = vmatpush1.msra.mxu0 0.0
    %1818 = vmatprep.subr.mxu0 0.0
    %1819 = vmatpush1.msra.mxu0 0.0
    %1820 = vmatprep.subr.mxu0 0.0
    %1821 = vmatpush1.msra.mxu0 0.0
    %1822 = vmatprep.subr.mxu0 0.0
    %1823 = vmatpush1.msra.mxu0 0.0
    %1824 = vmatprep.subr.mxu0 0.0
    %1825 = vmatpush1.msra.mxu0 0.0
    %1826 = vmatprep.subr.mxu0 0.0
    %1827 = vmatpush1.msra.mxu0 0.0
    %1828 = vmatprep.subr.mxu0 0.0
    %1829 = vmatpush1.msra.mxu0 0.0
    %1830 = vmatprep.subr.mxu0 0.0
    %1831 = vmatpush1.msra.mxu0 0.0
    %1832 = vmatprep.subr.mxu0 0.0
    %1833 = vmatpush1.msra.mxu0 0.0
    %1834 = vmatprep.subr.mxu0 0.0
    %1835 = vmatpush1.msra.mxu0 0.0
    %1836 = vmatprep.subr.mxu0 0.0
    %1837 = vmatpush1.msra.mxu0 0.0
    %1838 = vmatprep.subr.mxu0 0.0
    %1839 = vmatpush1.msra.mxu0 0.0
    %1840 = vmatprep.mubr.f32.mxu0 0.0
    %1841 = vmatmul.mubr.f32.gmra.mrb[0].mxu0 %v1774
    %v1842 = vpop.f32.mrb[0].mxu0
    %v1843 = vadd.f32 0.0, %v1842
    %v1844 = vpop.f32.mrb[0].mxu0
    %1845 = vdwg.mxu0
    %v1847 = vsel %vm1197, %v1624, 0
    %1849 = vmatprep.subr.mxu0 0.0
    %1850 = vmatpush1.msra.mxu0 %v187
    %1851 = vmatprep.subr.mxu0 0.0
    %1852 = vmatpush1.msra.mxu0 0.0
    %1853 = vmatprep.subr.mxu0 0.0
    %1854 = vmatpush1.msra.mxu0 0.0
    %1855 = vmatprep.subr.mxu0 0.0
    %1856 = vmatpush1.msra.mxu0 0.0
    %1857 = vmatprep.subr.mxu0 0.0
    %1858 = vmatpush1.msra.mxu0 0.0
    %1859 = vmatprep.subr.mxu0 0.0
    %1860 = vmatpush1.msra.mxu0 0.0
    %1861 = vmatprep.subr.mxu0 0.0
    %1862 = vmatpush1.msra.mxu0 0.0
    %1863 = vmatprep.subr.mxu0 0.0
    %1864 = vmatpush1.msra.mxu0 0.0
    %1865 = vmatprep.subr.mxu0 0.0
    %1866 = vmatpush1.msra.mxu0 0.0
    %1867 = vmatprep.subr.mxu0 0.0
    %1868 = vmatpush1.msra.mxu0 0.0
    %1869 = vmatprep.subr.mxu0 0.0
    %1870 = vmatpush1.msra.mxu0 0.0
    %1871 = vmatprep.subr.mxu0 0.0
    %1872 = vmatpush1.msra.mxu0 0.0
    %1873 = vmatprep.subr.mxu0 0.0
    %1874 = vmatpush1.msra.mxu0 0.0
    %1875 = vmatprep.subr.mxu0 0.0
    %1876 = vmatpush1.msra.mxu0 0.0
    %1877 = vmatprep.subr.mxu0 0.0
    %1878 = vmatpush1.msra.mxu0 0.0
    %1879 = vmatprep.subr.mxu0 0.0
    %1880 = vmatpush1.msra.mxu0 0.0
    %1881 = vmatprep.subr.mxu0 0.0
    %1882 = vmatpush1.msra.mxu0 0.0
    %1883 = vmatprep.subr.mxu0 0.0
    %1884 = vmatpush1.msra.mxu0 0.0
    %1885 = vmatprep.subr.mxu0 0.0
    %1886 = vmatpush1.msra.mxu0 0.0
    %1887 = vmatprep.subr.mxu0 0.0
    %1888 = vmatpush1.msra.mxu0 0.0
    %1889 = vmatprep.subr.mxu0 0.0
    %1890 = vmatpush1.msra.mxu0 0.0
    %1891 = vmatprep.subr.mxu0 0.0
    %1892 = vmatpush1.msra.mxu0 0.0
    %1893 = vmatprep.subr.mxu0 0.0
    %1894 = vmatpush1.msra.mxu0 0.0
    %1895 = vmatprep.subr.mxu0 0.0
    %1896 = vmatpush1.msra.mxu0 0.0
    %1897 = vmatprep.subr.mxu0 0.0
    %1898 = vmatpush1.msra.mxu0 0.0
    %1899 = vmatprep.subr.mxu0 0.0
    %1900 = vmatpush1.msra.mxu0 0.0
    %1901 = vmatprep.subr.mxu0 0.0
    %1902 = vmatpush1.msra.mxu0 0.0
    %1903 = vmatprep.subr.mxu0 0.0
    %1904 = vmatpush1.msra.mxu0 0.0
    %1905 = vmatprep.subr.mxu0 0.0
    %1906 = vmatpush1.msra.mxu0 0.0
    %1907 = vmatprep.subr.mxu0 0.0
    %1908 = vmatpush1.msra.mxu0 0.0
    %1909 = vmatprep.subr.mxu0 0.0
    %1910 = vmatpush1.msra.mxu0 0.0
    %1911 = vmatprep.subr.mxu0 0.0
    %1912 = vmatpush1.msra.mxu0 0.0
    %1913 = vmatprep.mubr.f32.mxu0 0.0
    %1914 = vmatmul.mubr.f32.gmra.mrb[0].mxu0 %v1847
    %v1915 = vpop.f32.mrb[0].mxu0
    %v1916 = vadd.f32 0.0, %v1915
    %v1917 = vpop.f32.mrb[0].mxu0
    %1918 = vdwg.mxu0
    %v1920 = vsel %vm1197, %v1697, 0
    %1922 = vmatprep.subr.mxu0 0.0
    %1923 = vmatpush1.msra.mxu0 %v188
    %1924 = vmatprep.subr.mxu0 0.0
    %1925 = vmatpush1.msra.mxu0 0.0
    %1926 = vmatprep.subr.mxu0 0.0
    %1927 = vmatpush1.msra.mxu0 0.0
    %1928 = vmatprep.subr.mxu0 0.0
    %1929 = vmatpush1.msra.mxu0 0.0
    %1930 = vmatprep.subr.mxu0 0.0
    %1931 = vmatpush1.msra.mxu0 0.0
    %1932 = vmatprep.subr.mxu0 0.0
    %1933 = vmatpush1.msra.mxu0 0.0
    %1934 = vmatprep.subr.mxu0 0.0
    %1935 = vmatpush1.msra.mxu0 0.0
    %1936 = vmatprep.subr.mxu0 0.0
    %1937 = vmatpush1.msra.mxu0 0.0
    %1938 = vmatprep.subr.mxu0 0.0
    %1939 = vmatpush1.msra.mxu0 0.0
    %1940 = vmatprep.subr.mxu0 0.0
    %1941 = vmatpush1.msra.mxu0 0.0
    %1942 = vmatprep.subr.mxu0 0.0
    %1943 = vmatpush1.msra.mxu0 0.0
    %1944 = vmatprep.subr.mxu0 0.0
    %1945 = vmatpush1.msra.mxu0 0.0
    %1946 = vmatprep.subr.mxu0 0.0
    %1947 = vmatpush1.msra.mxu0 0.0
    %1948 = vmatprep.subr.mxu0 0.0
    %1949 = vmatpush1.msra.mxu0 0.0
    %1950 = vmatprep.subr.mxu0 0.0
    %1951 = vmatpush1.msra.mxu0 0.0
    %1952 = vmatprep.subr.mxu0 0.0
    %1953 = vmatpush1.msra.mxu0 0.0
    %1954 = vmatprep.subr.mxu0 0.0
    %1955 = vmatpush1.msra.mxu0 0.0
    %1956 = vmatprep.subr.mxu0 0.0
    %1957 = vmatpush1.msra.mxu0 0.0
    %1958 = vmatprep.subr.mxu0 0.0
    %1959 = vmatpush1.msra.mxu0 0.0
    %1960 = vmatprep.subr.mxu0 0.0
    %1961 = vmatpush1.msra.mxu0 0.0
    %1962 = vmatprep.subr.mxu0 0.0
    %1963 = vmatpush1.msra.mxu0 0.0
    %1964 = vmatprep.subr.mxu0 0.0
    %1965 = vmatpush1.msra.mxu0 0.0
    %1966 = vmatprep.subr.mxu0 0.0
    %1967 = vmatpush1.msra.mxu0 0.0
    %1968 = vmatprep.subr.mxu0 0.0
    %1969 = vmatpush1.msra.mxu0 0.0
    %1970 = vmatprep.subr.mxu0 0.0
    %1971 = vmatpush1.msra.mxu0 0.0
    %1972 = vmatprep.subr.mxu0 0.0
    %1973 = vmatpush1.msra.mxu0 0.0
    %1974 = vmatprep.subr.mxu0 0.0
    %1975 = vmatpush1.msra.mxu0 0.0
    %1976 = vmatprep.subr.mxu0 0.0
    %1977 = vmatpush1.msra.mxu0 0.0
    %1978 = vmatprep.subr.mxu0 0.0
    %1979 = vmatpush1.msra.mxu0 0.0
    %1980 = vmatprep.subr.mxu0 0.0
    %1981 = vmatpush1.msra.mxu0 0.0
    %1982 = vmatprep.subr.mxu0 0.0
    %1983 = vmatpush1.msra.mxu0 0.0
    %1984 = vmatprep.subr.mxu0 0.0
    %1985 = vmatpush1.msra.mxu0 0.0
    %1986 = vmatprep.mubr.f32.mxu0 0.0
    %1987 = vmatmul.mubr.f32.gmra.mrb[0].mxu0 %v1920
    %v1988 = vpop.f32.mrb[0].mxu0
    %v1989 = vadd.f32 0.0, %v1988
    %v1990 = vpop.f32.mrb[0].mxu0
    %1991 = vdwg.mxu0
    %v1993 = vsel %vm1197, %v1770, 0
    %1995 = vmatprep.subr.mxu0 0.0
    %1996 = vmatpush1.msra.mxu0 %v189
    %1997 = vmatprep.subr.mxu0 0.0
    %1998 = vmatpush1.msra.mxu0 0.0
    %1999 = vmatprep.subr.mxu0 0.0
    %2000 = vmatpush1.msra.mxu0 0.0
    %2001 = vmatprep.subr.mxu0 0.0
    %2002 = vmatpush1.msra.mxu0 0.0
    %2003 = vmatprep.subr.mxu0 0.0
    %2004 = vmatpush1.msra.mxu0 0.0
    %2005 = vmatprep.subr.mxu0 0.0
    %2006 = vmatpush1.msra.mxu0 0.0
    %2007 = vmatprep.subr.mxu0 0.0
    %2008 = vmatpush1.msra.mxu0 0.0
    %2009 = vmatprep.subr.mxu0 0.0
    %2010 = vmatpush1.msra.mxu0 0.0
    %2011 = vmatprep.subr.mxu0 0.0
    %2012 = vmatpush1.msra.mxu0 0.0
    %2013 = vmatprep.subr.mxu0 0.0
    %2014 = vmatpush1.msra.mxu0 0.0
    %2015 = vmatprep.subr.mxu0 0.0
    %2016 = vmatpush1.msra.mxu0 0.0
    %2017 = vmatprep.subr.mxu0 0.0
    %2018 = vmatpush1.msra.mxu0 0.0
    %2019 = vmatprep.subr.mxu0 0.0
    %2020 = vmatpush1.msra.mxu0 0.0
    %2021 = vmatprep.subr.mxu0 0.0
    %2022 = vmatpush1.msra.mxu0 0.0
    %2023 = vmatprep.subr.mxu0 0.0
    %2024 = vmatpush1.msra.mxu0 0.0
    %2025 = vmatprep.subr.mxu0 0.0
    %2026 = vmatpush1.msra.mxu0 0.0
    %2027 = vmatprep.subr.mxu0 0.0
    %2028 = vmatpush1.msra.mxu0 0.0
    %2029 = vmatprep.subr.mxu0 0.0
    %2030 = vmatpush1.msra.mxu0 0.0
    %2031 = vmatprep.subr.mxu0 0.0
    %2032 = vmatpush1.msra.mxu0 0.0
    %2033 = vmatprep.subr.mxu0 0.0
    %2034 = vmatpush1.msra.mxu0 0.0
    %2035 = vmatprep.subr.mxu0 0.0
    %2036 = vmatpush1.msra.mxu0 0.0
    %2037 = vmatprep.subr.mxu0 0.0
    %2038 = vmatpush1.msra.mxu0 0.0
    %2039 = vmatprep.subr.mxu0 0.0
    %2040 = vmatpush1.msra.mxu0 0.0
    %2041 = vmatprep.subr.mxu0 0.0
    %2042 = vmatpush1.msra.mxu0 0.0
    %2043 = vmatprep.subr.mxu0 0.0
    %2044 = vmatpush1.msra.mxu0 0.0
    %2045 = vmatprep.subr.mxu0 0.0
    %2046 = vmatpush1.msra.mxu0 0.0
    %2047 = vmatprep.subr.mxu0 0.0
    %2048 = vmatpush1.msra.mxu0 0.0
    %2049 = vmatprep.subr.mxu0 0.0
    %2050 = vmatpush1.msra.mxu0 0.0
    %2051 = vmatprep.subr.mxu0 0.0
    %2052 = vmatpush1.msra.mxu0 0.0
    %2053 = vmatprep.subr.mxu0 0.0
    %2054 = vmatpush1.msra.mxu0 0.0
    %2055 = vmatprep.subr.mxu0 0.0
    %2056 = vmatpush1.msra.mxu0 0.0
    %2057 = vmatprep.subr.mxu0 0.0
    %2058 = vmatpush1.msra.mxu0 0.0
    %2059 = vmatprep.mubr.f32.mxu0 0.0
    %2060 = vmatmul.mubr.f32.gmra.mrb[0].mxu0 %v1993
    %v2061 = vpop.f32.mrb[0].mxu0
    %v2062 = vadd.f32 0.0, %v2061
    %v2063 = vpop.f32.mrb[0].mxu0
    %2064 = vdwg.mxu0
    %v2066 = vsel %vm1197, %v1843, 0
    %2068 = vmatprep.subr.mxu0 0.0
    %2069 = vmatpush1.msra.mxu0 %v190
    %2070 = vmatprep.subr.mxu0 0.0
    %2071 = vmatpush1.msra.mxu0 0.0
    %2072 = vmatprep.subr.mxu0 0.0
    %2073 = vmatpush1.msra.mxu0 0.0
    %2074 = vmatprep.subr.mxu0 0.0
    %2075 = vmatpush1.msra.mxu0 0.0
    %2076 = vmatprep.subr.mxu0 0.0
    %2077 = vmatpush1.msra.mxu0 0.0
    %2078 = vmatprep.subr.mxu0 0.0
    %2079 = vmatpush1.msra.mxu0 0.0
    %2080 = vmatprep.subr.mxu0 0.0
    %2081 = vmatpush1.msra.mxu0 0.0
    %2082 = vmatprep.subr.mxu0 0.0
    %2083 = vmatpush1.msra.mxu0 0.0
    %2084 = vmatprep.subr.mxu0 0.0
    %2085 = vmatpush1.msra.mxu0 0.0
    %2086 = vmatprep.subr.mxu0 0.0
    %2087 = vmatpush1.msra.mxu0 0.0
    %2088 = vmatprep.subr.mxu0 0.0
    %2089 = vmatpush1.msra.mxu0 0.0
    %2090 = vmatprep.subr.mxu0 0.0
    %2091 = vmatpush1.msra.mxu0 0.0
    %2092 = vmatprep.subr.mxu0 0.0
    %2093 = vmatpush1.msra.mxu0 0.0
    %2094 = vmatprep.subr.mxu0 0.0
    %2095 = vmatpush1.msra.mxu0 0.0
    %2096 = vmatprep.subr.mxu0 0.0
    %2097 = vmatpush1.msra.mxu0 0.0
    %2098 = vmatprep.subr.mxu0 0.0
    %2099 = vmatpush1.msra.mxu0 0.0
    %2100 = vmatprep.subr.mxu0 0.0
    %2101 = vmatpush1.msra.mxu0 0.0
    %2102 = vmatprep.subr.mxu0 0.0
    %2103 = vmatpush1.msra.mxu0 0.0
    %2104 = vmatprep.subr.mxu0 0.0
    %2105 = vmatpush1.msra.mxu0 0.0
    %2106 = vmatprep.subr.mxu0 0.0
    %2107 = vmatpush1.msra.mxu0 0.0
    %2108 = vmatprep.subr.mxu0 0.0
    %2109 = vmatpush1.msra.mxu0 0.0
    %2110 = vmatprep.subr.mxu0 0.0
    %2111 = vmatpush1.msra.mxu0 0.0
    %2112 = vmatprep.subr.mxu0 0.0
    %2113 = vmatpush1.msra.mxu0 0.0
    %2114 = vmatprep.subr.mxu0 0.0
    %2115 = vmatpush1.msra.mxu0 0.0
    %2116 = vmatprep.subr.mxu0 0.0
    %2117 = vmatpush1.msra.mxu0 0.0
    %2118 = vmatprep.subr.mxu0 0.0
    %2119 = vmatpush1.msra.mxu0 0.0
    %2120 = vmatprep.subr.mxu0 0.0
    %2121 = vmatpush1.msra.mxu0 0.0
    %2122 = vmatprep.subr.mxu0 0.0
    %2123 = vmatpush1.msra.mxu0 0.0
    %2124 = vmatprep.subr.mxu0 0.0
    %2125 = vmatpush1.msra.mxu0 0.0
    %2126 = vmatprep.subr.mxu0 0.0
    %2127 = vmatpush1.msra.mxu0 0.0
    %2128 = vmatprep.subr.mxu0 0.0
    %2129 = vmatpush1.msra.mxu0 0.0
    %2130 = vmatprep.subr.mxu0 0.0
    %2131 = vmatpush1.msra.mxu0 0.0
    %2132 = vmatprep.mubr.f32.mxu0 0.0
    %2133 = vmatmul.mubr.f32.gmra.mrb[0].mxu0 %v2066
    %v2134 = vpop.f32.mrb[0].mxu0
    %v2135 = vadd.f32 0.0, %v2134
    %v2136 = vpop.f32.mrb[0].mxu0
    %2137 = vdwg.mxu0
    %v2138 = vsel %vm305, %v1916, 0.0
    %v2139 = vsel %vm305, %v1989, 0.0
    %v2140 = vadd.f32 %v2138, %v2139
    %v2141 = vsel %vm305, %v2062, 0.0
    %v2142 = vadd.f32 %v2140, %v2141
    %v2143 = vsel %vm305, %v2135, 0.0
    %v2144 = vadd.f32 %v2142, %v2143
    %v2146 = vlaneseq
    %v2147 = vshrl.u32 %v2146, 7
    %v2148 = vsub.s32 0, %v2147
    %v2149 = vrot.slane %v191, %v2148
    %v2151 = vadd.f32 %v2144, %v2149
    %v2152 = vadd.f32 %v2151, %v277
    %v2153 = vsel %vm305, %v2152, 0.0
    %2154 = vadd.xlane.f32.xlu0 %v2153
    %v2155 = vpop.xlane.xlu0 %2154
    %v2156 = vrcp.pop 32.0
    %v2157 = vmul.f32 %v2155, %v2156
    %v2158 = vsub.f32 %v2152, %v2157
    %v2159 = vmul.f32 %v2158, %v2158
    %v2160 = vsel %vm305, %v2159, 0.0
    %2161 = vadd.xlane.f32.xlu0 %v2160
    %v2162 = vpop.xlane.xlu0 %2161
    %v2163 = vmul.f32 %v2162, 0.032258064
    %v2164 = vrsqrt.pop %v2163
    %v2165 = vmul.f32 %v2163, %v2164
    %vm2166 = vcmp.eq.f32.partialorder %v2163, inf
    %v2167 = vsel %vm2166, %v2163, %v2165
    %vm2168 = vcmp.eq.f32.partialorder %v2163, 0.0
    %v2169 = vand.u32 %v2163, 2147483648
    %v2170 = vsel %vm2168, %v2169, %v2167
    %v2172 = vlaneseq
    %v2173 = vshrl.u32 %v2172, 7
    %v2174 = vsub.s32 0, %v2173
    %v2175 = vrot.slane %v192, %v2174
    %v2177 = vmul.f32 %v2175, %v2158
    %v2178 = vadd.f32 %v2170, 1e-06
    %v2179 = vrcp.pop %v2178
    %v2180 = vmul.f32 %v2177, %v2179
    %v2182 = vlaneseq
    %v2183 = vshrl.u32 %v2182, 7
    %v2184 = vsub.s32 0, %v2183
    %v2185 = vrot.slane %v193, %v2184
    %v2187 = vadd.f32 %v2180, %v2185
    %v2192 = vlaneseq
    %v2193 = vshrl.u32 %v2192, 7
    %v2194 = vsub.s32 0, %v2193
    %v2195 = vrot.slane %v210, %v2194
    %v2196 = vlaneseq
    %v2197 = vshrl.u32 %v2196, 7
    %v2198 = vsub.s32 0, %v2197
    %v2199 = vrot.slane %v211, %v2198
    %v2200 = vlaneseq
    %v2201 = vshrl.u32 %v2200, 7
    %v2202 = vsub.s32 0, %v2201
    %v2203 = vrot.slane %v212, %v2202
    %v2204 = vlaneseq
    %v2205 = vshrl.u32 %v2204, 7
    %v2206 = vsub.s32 0, %v2205
    %v2207 = vrot.slane %v213, %v2206
    %v2213 = vsel %vm305, %v2187, 0
    %2215 = vmatprep.subr.mxu0 0.0
    %2216 = vmatpush1.msra.mxu0 %v194
    %2217 = vmatprep.subr.mxu0 0.0
    %2218 = vmatpush1.msra.mxu0 %v195
    %2219 = vmatprep.subr.mxu0 0.0
    %2220 = vmatpush1.msra.mxu0 %v196
    %2221 = vmatprep.subr.mxu0 0.0
    %2222 = vmatpush1.msra.mxu0 %v197
    %2223 = vmatprep.subr.mxu0 0.0
    %2224 = vmatpush1.msra.mxu0 0.0
    %2225 = vmatprep.subr.mxu0 0.0
    %2226 = vmatpush1.msra.mxu0 0.0
    %2227 = vmatprep.subr.mxu0 0.0
    %2228 = vmatpush1.msra.mxu0 0.0
    %2229 = vmatprep.subr.mxu0 0.0
    %2230 = vmatpush1.msra.mxu0 0.0
    %2231 = vmatprep.subr.mxu0 0.0
    %2232 = vmatpush1.msra.mxu0 0.0
    %2233 = vmatprep.subr.mxu0 0.0
    %2234 = vmatpush1.msra.mxu0 0.0
    %2235 = vmatprep.subr.mxu0 0.0
    %2236 = vmatpush1.msra.mxu0 0.0
    %2237 = vmatprep.subr.mxu0 0.0
    %2238 = vmatpush1.msra.mxu0 0.0
    %2239 = vmatprep.subr.mxu0 0.0
    %2240 = vmatpush1.msra.mxu0 0.0
    %2241 = vmatprep.subr.mxu0 0.0
    %2242 = vmatpush1.msra.mxu0 0.0
    %2243 = vmatprep.subr.mxu0 0.0
    %2244 = vmatpush1.msra.mxu0 0.0
    %2245 = vmatprep.subr.mxu0 0.0
    %2246 = vmatpush1.msra.mxu0 0.0
    %2247 = vmatprep.subr.mxu0 0.0
    %2248 = vmatpush1.msra.mxu0 0.0
    %2249 = vmatprep.subr.mxu0 0.0
    %2250 = vmatpush1.msra.mxu0 0.0
    %2251 = vmatprep.subr.mxu0 0.0
    %2252 = vmatpush1.msra.mxu0 0.0
    %2253 = vmatprep.subr.mxu0 0.0
    %2254 = vmatpush1.msra.mxu0 0.0
    %2255 = vmatprep.subr.mxu0 0.0
    %2256 = vmatpush1.msra.mxu0 0.0
    %2257 = vmatprep.subr.mxu0 0.0
    %2258 = vmatpush1.msra.mxu0 0.0
    %2259 = vmatprep.subr.mxu0 0.0
    %2260 = vmatpush1.msra.mxu0 0.0
    %2261 = vmatprep.subr.mxu0 0.0
    %2262 = vmatpush1.msra.mxu0 0.0
    %2263 = vmatprep.subr.mxu0 0.0
    %2264 = vmatpush1.msra.mxu0 0.0
    %2265 = vmatprep.subr.mxu0 0.0
    %2266 = vmatpush1.msra.mxu0 0.0
    %2267 = vmatprep.subr.mxu0 0.0
    %2268 = vmatpush1.msra.mxu0 0.0
    %2269 = vmatprep.subr.mxu0 0.0
    %2270 = vmatpush1.msra.mxu0 0.0
    %2271 = vmatprep.subr.mxu0 0.0
    %2272 = vmatpush1.msra.mxu0 0.0
    %2273 = vmatprep.subr.mxu0 0.0
    %2274 = vmatpush1.msra.mxu0 0.0
    %2275 = vmatprep.subr.mxu0 0.0
    %2276 = vmatpush1.msra.mxu0 0.0
    %2277 = vmatprep.subr.mxu0 0.0
    %2278 = vmatpush1.msra.mxu0 0.0
    %2279 = vmatprep.mubr.f32.mxu0 0.0
    %2280 = vmatmul.mubr.f32.gmra.mrb[0].mxu0 %v2213
    %v2281 = vpop.f32.mrb[0].mxu0
    %v2282 = vadd.f32 %v2195, %v2281
    %v2283 = vpop.f32.mrb[0].mxu0
    %2284 = vdwg.mxu0
    %2285 = vmatprep.subr.mxu0 0.0
    %2286 = vmatpush1.msra.mxu0 %v198
    %2287 = vmatprep.subr.mxu0 0.0
    %2288 = vmatpush1.msra.mxu0 %v199
    %2289 = vmatprep.subr.mxu0 0.0
    %2290 = vmatpush1.msra.mxu0 %v200
    %2291 = vmatprep.subr.mxu0 0.0
    %2292 = vmatpush1.msra.mxu0 %v201
    %2293 = vmatprep.subr.mxu0 0.0
    %2294 = vmatpush1.msra.mxu0 0.0
    %2295 = vmatprep.subr.mxu0 0.0
    %2296 = vmatpush1.msra.mxu0 0.0
    %2297 = vmatprep.subr.mxu0 0.0
    %2298 = vmatpush1.msra.mxu0 0.0
    %2299 = vmatprep.subr.mxu0 0.0
    %2300 = vmatpush1.msra.mxu0 0.0
    %2301 = vmatprep.subr.mxu0 0.0
    %2302 = vmatpush1.msra.mxu0 0.0
    %2303 = vmatprep.subr.mxu0 0.0
    %2304 = vmatpush1.msra.mxu0 0.0
    %2305 = vmatprep.subr.mxu0 0.0
    %2306 = vmatpush1.msra.mxu0 0.0
    %2307 = vmatprep.subr.mxu0 0.0
    %2308 = vmatpush1.msra.mxu0 0.0
    %2309 = vmatprep.subr.mxu0 0.0
    %2310 = vmatpush1.msra.mxu0 0.0
    %2311 = vmatprep.subr.mxu0 0.0
    %2312 = vmatpush1.msra.mxu0 0.0
    %2313 = vmatprep.subr.mxu0 0.0
    %2314 = vmatpush1.msra.mxu0 0.0
    %2315 = vmatprep.subr.mxu0 0.0
    %2316 = vmatpush1.msra.mxu0 0.0
    %2317 = vmatprep.subr.mxu0 0.0
    %2318 = vmatpush1.msra.mxu0 0.0
    %2319 = vmatprep.subr.mxu0 0.0
    %2320 = vmatpush1.msra.mxu0 0.0
    %2321 = vmatprep.subr.mxu0 0.0
    %2322 = vmatpush1.msra.mxu0 0.0
    %2323 = vmatprep.subr.mxu0 0.0
    %2324 = vmatpush1.msra.mxu0 0.0
    %2325 = vmatprep.subr.mxu0 0.0
    %2326 = vmatpush1.msra.mxu0 0.0
    %2327 = vmatprep.subr.mxu0 0.0
    %2328 = vmatpush1.msra.mxu0 0.0
    %2329 = vmatprep.subr.mxu0 0.0
    %2330 = vmatpush1.msra.mxu0 0.0
    %2331 = vmatprep.subr.mxu0 0.0
    %2332 = vmatpush1.msra.mxu0 0.0
    %2333 = vmatprep.subr.mxu0 0.0
    %2334 = vmatpush1.msra.mxu0 0.0
    %2335 = vmatprep.subr.mxu0 0.0
    %2336 = vmatpush1.msra.mxu0 0.0
    %2337 = vmatprep.subr.mxu0 0.0
    %2338 = vmatpush1.msra.mxu0 0.0
    %2339 = vmatprep.subr.mxu0 0.0
    %2340 = vmatpush1.msra.mxu0 0.0
    %2341 = vmatprep.subr.mxu0 0.0
    %2342 = vmatpush1.msra.mxu0 0.0
    %2343 = vmatprep.subr.mxu0 0.0
    %2344 = vmatpush1.msra.mxu0 0.0
    %2345 = vmatprep.subr.mxu0 0.0
    %2346 = vmatpush1.msra.mxu0 0.0
    %2347 = vmatprep.subr.mxu0 0.0
    %2348 = vmatpush1.msra.mxu0 0.0
    %2349 = vmatprep.mubr.f32.mxu0 0.0
    %2350 = vmatmul.mubr.f32.gmra.mrb[0].mxu0 %v2213
    %v2351 = vpop.f32.mrb[0].mxu0
    %v2352 = vadd.f32 %v2199, %v2351
    %v2353 = vpop.f32.mrb[0].mxu0
    %2354 = vdwg.mxu0
    %2355 = vmatprep.subr.mxu0 0.0
    %2356 = vmatpush1.msra.mxu0 %v202
    %2357 = vmatprep.subr.mxu0 0.0
    %2358 = vmatpush1.msra.mxu0 %v203
    %2359 = vmatprep.subr.mxu0 0.0
    %2360 = vmatpush1.msra.mxu0 %v204
    %2361 = vmatprep.subr.mxu0 0.0
    %2362 = vmatpush1.msra.mxu0 %v205
    %2363 = vmatprep.subr.mxu0 0.0
    %2364 = vmatpush1.msra.mxu0 0.0
    %2365 = vmatprep.subr.mxu0 0.0
    %2366 = vmatpush1.msra.mxu0 0.0
    %2367 = vmatprep.subr.mxu0 0.0
    %2368 = vmatpush1.msra.mxu0 0.0
    %2369 = vmatprep.subr.mxu0 0.0
    %2370 = vmatpush1.msra.mxu0 0.0
    %2371 = vmatprep.subr.mxu0 0.0
    %2372 = vmatpush1.msra.mxu0 0.0
    %2373 = vmatprep.subr.mxu0 0.0
    %2374 = vmatpush1.msra.mxu0 0.0
    %2375 = vmatprep.subr.mxu0 0.0
    %2376 = vmatpush1.msra.mxu0 0.0
    %2377 = vmatprep.subr.mxu0 0.0
    %2378 = vmatpush1.msra.mxu0 0.0
    %2379 = vmatprep.subr.mxu0 0.0
    %2380 = vmatpush1.msra.mxu0 0.0
    %2381 = vmatprep.subr.mxu0 0.0
    %2382 = vmatpush1.msra.mxu0 0.0
    %2383 = vmatprep.subr.mxu0 0.0
    %2384 = vmatpush1.msra.mxu0 0.0
    %2385 = vmatprep.subr.mxu0 0.0
    %2386 = vmatpush1.msra.mxu0 0.0
    %2387 = vmatprep.subr.mxu0 0.0
    %2388 = vmatpush1.msra.mxu0 0.0
    %2389 = vmatprep.subr.mxu0 0.0
    %2390 = vmatpush1.msra.mxu0 0.0
    %2391 = vmatprep.subr.mxu0 0.0
    %2392 = vmatpush1.msra.mxu0 0.0
    %2393 = vmatprep.subr.mxu0 0.0
    %2394 = vmatpush1.msra.mxu0 0.0
    %2395 = vmatprep.subr.mxu0 0.0
    %2396 = vmatpush1.msra.mxu0 0.0
    %2397 = vmatprep.subr.mxu0 0.0
    %2398 = vmatpush1.msra.mxu0 0.0
    %2399 = vmatprep.subr.mxu0 0.0
    %2400 = vmatpush1.msra.mxu0 0.0
    %2401 = vmatprep.subr.mxu0 0.0
    %2402 = vmatpush1.msra.mxu0 0.0
    %2403 = vmatprep.subr.mxu0 0.0
    %2404 = vmatpush1.msra.mxu0 0.0
    %2405 = vmatprep.subr.mxu0 0.0
    %2406 = vmatpush1.msra.mxu0 0.0
    %2407 = vmatprep.subr.mxu0 0.0
    %2408 = vmatpush1.msra.mxu0 0.0
    %2409 = vmatprep.subr.mxu0 0.0
    %2410 = vmatpush1.msra.mxu0 0.0
    %2411 = vmatprep.subr.mxu0 0.0
    %2412 = vmatpush1.msra.mxu0 0.0
    %2413 = vmatprep.subr.mxu0 0.0
    %2414 = vmatpush1.msra.mxu0 0.0
    %2415 = vmatprep.subr.mxu0 0.0
    %2416 = vmatpush1.msra.mxu0 0.0
    %2417 = vmatprep.subr.mxu0 0.0
    %2418 = vmatpush1.msra.mxu0 0.0
    %2419 = vmatprep.mubr.f32.mxu0 0.0
    %2420 = vmatmul.mubr.f32.gmra.mrb[0].mxu0 %v2213
    %v2421 = vpop.f32.mrb[0].mxu0
    %v2422 = vadd.f32 %v2203, %v2421
    %v2423 = vpop.f32.mrb[0].mxu0
    %2424 = vdwg.mxu0
    %2425 = vmatprep.subr.mxu0 0.0
    %2426 = vmatpush1.msra.mxu0 %v206
    %2427 = vmatprep.subr.mxu0 0.0
    %2428 = vmatpush1.msra.mxu0 %v207
    %2429 = vmatprep.subr.mxu0 0.0
    %2430 = vmatpush1.msra.mxu0 %v208
    %2431 = vmatprep.subr.mxu0 0.0
    %2432 = vmatpush1.msra.mxu0 %v209
    %2433 = vmatprep.subr.mxu0 0.0
    %2434 = vmatpush1.msra.mxu0 0.0
    %2435 = vmatprep.subr.mxu0 0.0
    %2436 = vmatpush1.msra.mxu0 0.0
    %2437 = vmatprep.subr.mxu0 0.0
    %2438 = vmatpush1.msra.mxu0 0.0
    %2439 = vmatprep.subr.mxu0 0.0
    %2440 = vmatpush1.msra.mxu0 0.0
    %2441 = vmatprep.subr.mxu0 0.0
    %2442 = vmatpush1.msra.mxu0 0.0
    %2443 = vmatprep.subr.mxu0 0.0
    %2444 = vmatpush1.msra.mxu0 0.0
    %2445 = vmatprep.subr.mxu0 0.0
    %2446 = vmatpush1.msra.mxu0 0.0
    %2447 = vmatprep.subr.mxu0 0.0
    %2448 = vmatpush1.msra.mxu0 0.0
    %2449 = vmatprep.subr.mxu0 0.0
    %2450 = vmatpush1.msra.mxu0 0.0
    %2451 = vmatprep.subr.mxu0 0.0
    %2452 = vmatpush1.msra.mxu0 0.0
    %2453 = vmatprep.subr.mxu0 0.0
    %2454 = vmatpush1.msra.mxu0 0.0
    %2455 = vmatprep.subr.mxu0 0.0
    %2456 = vmatpush1.msra.mxu0 0.0
    %2457 = vmatprep.subr.mxu0 0.0
    %2458 = vmatpush1.msra.mxu0 0.0
    %2459 = vmatprep.subr.mxu0 0.0
    %2460 = vmatpush1.msra.mxu0 0.0
    %2461 = vmatprep.subr.mxu0 0.0
    %2462 = vmatpush1.msra.mxu0 0.0
    %2463 = vmatprep.subr.mxu0 0.0
    %2464 = vmatpush1.msra.mxu0 0.0
    %2465 = vmatprep.subr.mxu0 0.0
    %2466 = vmatpush1.msra.mxu0 0.0
    %2467 = vmatprep.subr.mxu0 0.0
    %2468 = vmatpush1.msra.mxu0 0.0
    %2469 = vmatprep.subr.mxu0 0.0
    %2470 = vmatpush1.msra.mxu0 0.0
    %2471 = vmatprep.subr.mxu0 0.0
    %2472 = vmatpush1.msra.mxu0 0.0
    %2473 = vmatprep.subr.mxu0 0.0
    %2474 = vmatpush1.msra.mxu0 0.0
    %2475 = vmatprep.subr.mxu0 0.0
    %2476 = vmatpush1.msra.mxu0 0.0
    %2477 = vmatprep.subr.mxu0 0.0
    %2478 = vmatpush1.msra.mxu0 0.0
    %2479 = vmatprep.subr.mxu0 0.0
    %2480 = vmatpush1.msra.mxu0 0.0
    %2481 = vmatprep.subr.mxu0 0.0
    %2482 = vmatpush1.msra.mxu0 0.0
    %2483 = vmatprep.subr.mxu0 0.0
    %2484 = vmatpush1.msra.mxu0 0.0
    %2485 = vmatprep.subr.mxu0 0.0
    %2486 = vmatpush1.msra.mxu0 0.0
    %2487 = vmatprep.subr.mxu0 0.0
    %2488 = vmatpush1.msra.mxu0 0.0
    %2489 = vmatprep.mubr.f32.mxu0 0.0
    %2490 = vmatmul.mubr.f32.gmra.mrb[0].mxu0 %v2213
    %v2491 = vpop.f32.mrb[0].mxu0
    %v2492 = vadd.f32 %v2207, %v2491
    %v2493 = vpop.f32.mrb[0].mxu0
    %2494 = vdwg.mxu0
    %v2499 = vlaneseq
    %v2500 = vshrl.u32 %v2499, 7
    %v2501 = vsub.s32 0, %v2500
    %v2502 = vrot.slane %v230, %v2501
    %v2503 = vlaneseq
    %v2504 = vshrl.u32 %v2503, 7
    %v2505 = vsub.s32 0, %v2504
    %v2506 = vrot.slane %v231, %v2505
    %v2507 = vlaneseq
    %v2508 = vshrl.u32 %v2507, 7
    %v2509 = vsub.s32 0, %v2508
    %v2510 = vrot.slane %v232, %v2509
    %v2511 = vlaneseq
    %v2512 = vshrl.u32 %v2511, 7
    %v2513 = vsub.s32 0, %v2512
    %v2514 = vrot.slane %v233, %v2513
    %v2520 = vsel %vm305, %v278, 0
    %2522 = vmatprep.subr.mxu0 0.0
    %2523 = vmatpush1.msra.mxu0 %v214
    %2524 = vmatprep.subr.mxu0 0.0
    %2525 = vmatpush1.msra.mxu0 %v215
    %2526 = vmatprep.subr.mxu0 0.0
    %2527 = vmatpush1.msra.mxu0 %v216
    %2528 = vmatprep.subr.mxu0 0.0
    %2529 = vmatpush1.msra.mxu0 %v217
    %2530 = vmatprep.subr.mxu0 0.0
    %2531 = vmatpush1.msra.mxu0 0.0
    %2532 = vmatprep.subr.mxu0 0.0
    %2533 = vmatpush1.msra.mxu0 0.0
    %2534 = vmatprep.subr.mxu0 0.0
    %2535 = vmatpush1.msra.mxu0 0.0
    %2536 = vmatprep.subr.mxu0 0.0
    %2537 = vmatpush1.msra.mxu0 0.0
    %2538 = vmatprep.subr.mxu0 0.0
    %2539 = vmatpush1.msra.mxu0 0.0
    %2540 = vmatprep.subr.mxu0 0.0
    %2541 = vmatpush1.msra.mxu0 0.0
    %2542 = vmatprep.subr.mxu0 0.0
    %2543 = vmatpush1.msra.mxu0 0.0
    %2544 = vmatprep.subr.mxu0 0.0
    %2545 = vmatpush1.msra.mxu0 0.0
    %2546 = vmatprep.subr.mxu0 0.0
    %2547 = vmatpush1.msra.mxu0 0.0
    %2548 = vmatprep.subr.mxu0 0.0
    %2549 = vmatpush1.msra.mxu0 0.0
    %2550 = vmatprep.subr.mxu0 0.0
    %2551 = vmatpush1.msra.mxu0 0.0
    %2552 = vmatprep.subr.mxu0 0.0
    %2553 = vmatpush1.msra.mxu0 0.0
    %2554 = vmatprep.subr.mxu0 0.0
    %2555 = vmatpush1.msra.mxu0 0.0
    %2556 = vmatprep.subr.mxu0 0.0
    %2557 = vmatpush1.msra.mxu0 0.0
    %2558 = vmatprep.subr.mxu0 0.0
    %2559 = vmatpush1.msra.mxu0 0.0
    %2560 = vmatprep.subr.mxu0 0.0
    %2561 = vmatpush1.msra.mxu0 0.0
    %2562 = vmatprep.subr.mxu0 0.0
    %2563 = vmatpush1.msra.mxu0 0.0
    %2564 = vmatprep.subr.mxu0 0.0
    %2565 = vmatpush1.msra.mxu0 0.0
    %2566 = vmatprep.subr.mxu0 0.0
    %2567 = vmatpush1.msra.mxu0 0.0
    %2568 = vmatprep.subr.mxu0 0.0
    %2569 = vmatpush1.msra.mxu0 0.0
    %2570 = vmatprep.subr.mxu0 0.0
    %2571 = vmatpush1.msra.mxu0 0.0
    %2572 = vmatprep.subr.mxu0 0.0
    %2573 = vmatpush1.msra.mxu0 0.0
    %2574 = vmatprep.subr.mxu0 0.0
    %2575 = vmatpush1.msra.mxu0 0.0
    %2576 = vmatprep.subr.mxu0 0.0
    %2577 = vmatpush1.msra.mxu0 0.0
    %2578 = vmatprep.subr.mxu0 0.0
    %2579 = vmatpush1.msra.mxu0 0.0
    %2580 = vmatprep.subr.mxu0 0.0
    %2581 = vmatpush1.msra.mxu0 0.0
    %2582 = vmatprep.subr.mxu0 0.0
    %2583 = vmatpush1.msra.mxu0 0.0
    %2584 = vmatprep.subr.mxu0 0.0
    %2585 = vmatpush1.msra.mxu0 0.0
    %2586 = vmatprep.mubr.f32.mxu0 0.0
    %2587 = vmatmul.mubr.f32.gmra.mrb[0].mxu0 %v2520
    %v2588 = vpop.f32.mrb[0].mxu0
    %v2589 = vadd.f32 %v2502, %v2588
    %v2590 = vpop.f32.mrb[0].mxu0
    %2591 = vdwg.mxu0
    %2592 = vmatprep.subr.mxu0 0.0
    %2593 = vmatpush1.msra.mxu0 %v218
    %2594 = vmatprep.subr.mxu0 0.0
    %2595 = vmatpush1.msra.mxu0 %v219
    %2596 = vmatprep.subr.mxu0 0.0
    %2597 = vmatpush1.msra.mxu0 %v220
    %2598 = vmatprep.subr.mxu0 0.0
    %2599 = vmatpush1.msra.mxu0 %v221
    %2600 = vmatprep.subr.mxu0 0.0
    %2601 = vmatpush1.msra.mxu0 0.0
    %2602 = vmatprep.subr.mxu0 0.0
    %2603 = vmatpush1.msra.mxu0 0.0
    %2604 = vmatprep.subr.mxu0 0.0
    %2605 = vmatpush1.msra.mxu0 0.0
    %2606 = vmatprep.subr.mxu0 0.0
    %2607 = vmatpush1.msra.mxu0 0.0
    %2608 = vmatprep.subr.mxu0 0.0
    %2609 = vmatpush1.msra.mxu0 0.0
    %2610 = vmatprep.subr.mxu0 0.0
    %2611 = vmatpush1.msra.mxu0 0.0
    %2612 = vmatprep.subr.mxu0 0.0
    %2613 = vmatpush1.msra.mxu0 0.0
    %2614 = vmatprep.subr.mxu0 0.0
    %2615 = vmatpush1.msra.mxu0 0.0
    %2616 = vmatprep.subr.mxu0 0.0
    %2617 = vmatpush1.msra.mxu0 0.0
    %2618 = vmatprep.subr.mxu0 0.0
    %2619 = vmatpush1.msra.mxu0 0.0
    %2620 = vmatprep.subr.mxu0 0.0
    %2621 = vmatpush1.msra.mxu0 0.0
    %2622 = vmatprep.subr.mxu0 0.0
    %2623 = vmatpush1.msra.mxu0 0.0
    %2624 = vmatprep.subr.mxu0 0.0
    %2625 = vmatpush1.msra.mxu0 0.0
    %2626 = vmatprep.subr.mxu0 0.0
    %2627 = vmatpush1.msra.mxu0 0.0
    %2628 = vmatprep.subr.mxu0 0.0
    %2629 = vmatpush1.msra.mxu0 0.0
    %2630 = vmatprep.subr.mxu0 0.0
    %2631 = vmatpush1.msra.mxu0 0.0
    %2632 = vmatprep.subr.mxu0 0.0
    %2633 = vmatpush1.msra.mxu0 0.0
    %2634 = vmatprep.subr.mxu0 0.0
    %2635 = vmatpush1.msra.mxu0 0.0
    %2636 = vmatprep.subr.mxu0 0.0
    %2637 = vmatpush1.msra.mxu0 0.0
    %2638 = vmatprep.subr.mxu0 0.0
    %2639 = vmatpush1.msra.mxu0 0.0
    %2640 = vmatprep.subr.mxu0 0.0
    %2641 = vmatpush1.msra.mxu0 0.0
    %2642 = vmatprep.subr.mxu0 0.0
    %2643 = vmatpush1.msra.mxu0 0.0
    %2644 = vmatprep.subr.mxu0 0.0
    %2645 = vmatpush1.msra.mxu0 0.0
    %2646 = vmatprep.subr.mxu0 0.0
    %2647 = vmatpush1.msra.mxu0 0.0
    %2648 = vmatprep.subr.mxu0 0.0
    %2649 = vmatpush1.msra.mxu0 0.0
    %2650 = vmatprep.subr.mxu0 0.0
    %2651 = vmatpush1.msra.mxu0 0.0
    %2652 = vmatprep.subr.mxu0 0.0
    %2653 = vmatpush1.msra.mxu0 0.0
    %2654 = vmatprep.subr.mxu0 0.0
    %2655 = vmatpush1.msra.mxu0 0.0
    %2656 = vmatprep.mubr.f32.mxu0 0.0
    %2657 = vmatmul.mubr.f32.gmra.mrb[0].mxu0 %v2520
    %v2658 = vpop.f32.mrb[0].mxu0
    %v2659 = vadd.f32 %v2506, %v2658
    %v2660 = vpop.f32.mrb[0].mxu0
    %2661 = vdwg.mxu0
    %2662 = vmatprep.subr.mxu0 0.0
    %2663 = vmatpush1.msra.mxu0 %v222
    %2664 = vmatprep.subr.mxu0 0.0
    %2665 = vmatpush1.msra.mxu0 %v223
    %2666 = vmatprep.subr.mxu0 0.0
    %2667 = vmatpush1.msra.mxu0 %v224
    %2668 = vmatprep.subr.mxu0 0.0
    %2669 = vmatpush1.msra.mxu0 %v225
    %2670 = vmatprep.subr.mxu0 0.0
    %2671 = vmatpush1.msra.mxu0 0.0
    %2672 = vmatprep.subr.mxu0 0.0
    %2673 = vmatpush1.msra.mxu0 0.0
    %2674 = vmatprep.subr.mxu0 0.0
    %2675 = vmatpush1.msra.mxu0 0.0
    %2676 = vmatprep.subr.mxu0 0.0
    %2677 = vmatpush1.msra.mxu0 0.0
    %2678 = vmatprep.subr.mxu0 0.0
    %2679 = vmatpush1.msra.mxu0 0.0
    %2680 = vmatprep.subr.mxu0 0.0
    %2681 = vmatpush1.msra.mxu0 0.0
    %2682 = vmatprep.subr.mxu0 0.0
    %2683 = vmatpush1.msra.mxu0 0.0
    %2684 = vmatprep.subr.mxu0 0.0
    %2685 = vmatpush1.msra.mxu0 0.0
    %2686 = vmatprep.subr.mxu0 0.0
    %2687 = vmatpush1.msra.mxu0 0.0
    %2688 = vmatprep.subr.mxu0 0.0
    %2689 = vmatpush1.msra.mxu0 0.0
    %2690 = vmatprep.subr.mxu0 0.0
    %2691 = vmatpush1.msra.mxu0 0.0
    %2692 = vmatprep.subr.mxu0 0.0
    %2693 = vmatpush1.msra.mxu0 0.0
    %2694 = vmatprep.subr.mxu0 0.0
    %2695 = vmatpush1.msra.mxu0 0.0
    %2696 = vmatprep.subr.mxu0 0.0
    %2697 = vmatpush1.msra.mxu0 0.0
    %2698 = vmatprep.subr.mxu0 0.0
    %2699 = vmatpush1.msra.mxu0 0.0
    %2700 = vmatprep.subr.mxu0 0.0
    %2701 = vmatpush1.msra.mxu0 0.0
    %2702 = vmatprep.subr.mxu0 0.0
    %2703 = vmatpush1.msra.mxu0 0.0
    %2704 = vmatprep.subr.mxu0 0.0
    %2705 = vmatpush1.msra.mxu0 0.0
    %2706 = vmatprep.subr.mxu0 0.0
    %2707 = vmatpush1.msra.mxu0 0.0
    %2708 = vmatprep.subr.mxu0 0.0
    %2709 = vmatpush1.msra.mxu0 0.0
    %2710 = vmatprep.subr.mxu0 0.0
    %2711 = vmatpush1.msra.mxu0 0.0
    %2712 = vmatprep.subr.mxu0 0.0
    %2713 = vmatpush1.msra.mxu0 0.0
    %2714 = vmatprep.subr.mxu0 0.0
    %2715 = vmatpush1.msra.mxu0 0.0
    %2716 = vmatprep.subr.mxu0 0.0
    %2717 = vmatpush1.msra.mxu0 0.0
    %2718 = vmatprep.subr.mxu0 0.0
    %2719 = vmatpush1.msra.mxu0 0.0
    %2720 = vmatprep.subr.mxu0 0.0
    %2721 = vmatpush1.msra.mxu0 0.0
    %2722 = vmatprep.subr.mxu0 0.0
    %2723 = vmatpush1.msra.mxu0 0.0
    %2724 = vmatprep.subr.mxu0 0.0
    %2725 = vmatpush1.msra.mxu0 0.0
    %2726 = vmatprep.mubr.f32.mxu0 0.0
    %2727 = vmatmul.mubr.f32.gmra.mrb[0].mxu0 %v2520
    %v2728 = vpop.f32.mrb[0].mxu0
    %v2729 = vadd.f32 %v2510, %v2728
    %v2730 = vpop.f32.mrb[0].mxu0
    %2731 = vdwg.mxu0
    %2732 = vmatprep.subr.mxu0 0.0
    %2733 = vmatpush1.msra.mxu0 %v226
    %2734 = vmatprep.subr.mxu0 0.0
    %2735 = vmatpush1.msra.mxu0 %v227
    %2736 = vmatprep.subr.mxu0 0.0
    %2737 = vmatpush1.msra.mxu0 %v228
    %2738 = vmatprep.subr.mxu0 0.0
    %2739 = vmatpush1.msra.mxu0 %v229
    %2740 = vmatprep.subr.mxu0 0.0
    %2741 = vmatpush1.msra.mxu0 0.0
    %2742 = vmatprep.subr.mxu0 0.0
    %2743 = vmatpush1.msra.mxu0 0.0
    %2744 = vmatprep.subr.mxu0 0.0
    %2745 = vmatpush1.msra.mxu0 0.0
    %2746 = vmatprep.subr.mxu0 0.0
    %2747 = vmatpush1.msra.mxu0 0.0
    %2748 = vmatprep.subr.mxu0 0.0
    %2749 = vmatpush1.msra.mxu0 0.0
    %2750 = vmatprep.subr.mxu0 0.0
    %2751 = vmatpush1.msra.mxu0 0.0
    %2752 = vmatprep.subr.mxu0 0.0
    %2753 = vmatpush1.msra.mxu0 0.0
    %2754 = vmatprep.subr.mxu0 0.0
    %2755 = vmatpush1.msra.mxu0 0.0
    %2756 = vmatprep.subr.mxu0 0.0
    %2757 = vmatpush1.msra.mxu0 0.0
    %2758 = vmatprep.subr.mxu0 0.0
    %2759 = vmatpush1.msra.mxu0 0.0
    %2760 = vmatprep.subr.mxu0 0.0
    %2761 = vmatpush1.msra.mxu0 0.0
    %2762 = vmatprep.subr.mxu0 0.0
    %2763 = vmatpush1.msra.mxu0 0.0
    %2764 = vmatprep.subr.mxu0 0.0
    %2765 = vmatpush1.msra.mxu0 0.0
    %2766 = vmatprep.subr.mxu0 0.0
    %2767 = vmatpush1.msra.mxu0 0.0
    %2768 = vmatprep.subr.mxu0 0.0
    %2769 = vmatpush1.msra.mxu0 0.0
    %2770 = vmatprep.subr.mxu0 0.0
    %2771 = vmatpush1.msra.mxu0 0.0
    %2772 = vmatprep.subr.mxu0 0.0
    %2773 = vmatpush1.msra.mxu0 0.0
    %2774 = vmatprep.subr.mxu0 0.0
    %2775 = vmatpush1.msra.mxu0 0.0
    %2776 = vmatprep.subr.mxu0 0.0
    %2777 = vmatpush1.msra.mxu0 0.0
    %2778 = vmatprep.subr.mxu0 0.0
    %2779 = vmatpush1.msra.mxu0 0.0
    %2780 = vmatprep.subr.mxu0 0.0
    %2781 = vmatpush1.msra.mxu0 0.0
    %2782 = vmatprep.subr.mxu0 0.0
    %2783 = vmatpush1.msra.mxu0 0.0
    %2784 = vmatprep.subr.mxu0 0.0
    %2785 = vmatpush1.msra.mxu0 0.0
    %2786 = vmatprep.subr.mxu0 0.0
    %2787 = vmatpush1.msra.mxu0 0.0
    %2788 = vmatprep.subr.mxu0 0.0
    %2789 = vmatpush1.msra.mxu0 0.0
    %2790 = vmatprep.subr.mxu0 0.0
    %2791 = vmatpush1.msra.mxu0 0.0
    %2792 = vmatprep.subr.mxu0 0.0
    %2793 = vmatpush1.msra.mxu0 0.0
    %2794 = vmatprep.subr.mxu0 0.0
    %2795 = vmatpush1.msra.mxu0 0.0
    %2796 = vmatprep.mubr.f32.mxu0 0.0
    %2797 = vmatmul.mubr.f32.gmra.mrb[0].mxu0 %v2520
    %v2798 = vpop.f32.mrb[0].mxu0
    %v2799 = vadd.f32 %v2514, %v2798
    %v2800 = vpop.f32.mrb[0].mxu0
    %2801 = vdwg.mxu0
    %v2806 = vlaneseq
    %v2807 = vshrl.u32 %v2806, 7
    %v2808 = vsub.s32 0, %v2807
    %v2809 = vrot.slane %v250, %v2808
    %v2810 = vlaneseq
    %v2811 = vshrl.u32 %v2810, 7
    %v2812 = vsub.s32 0, %v2811
    %v2813 = vrot.slane %v251, %v2812
    %v2814 = vlaneseq
    %v2815 = vshrl.u32 %v2814, 7
    %v2816 = vsub.s32 0, %v2815
    %v2817 = vrot.slane %v252, %v2816
    %v2818 = vlaneseq
    %v2819 = vshrl.u32 %v2818, 7
    %v2820 = vsub.s32 0, %v2819
    %v2821 = vrot.slane %v253, %v2820
    %2826 = vmatprep.subr.mxu0 0.0
    %2827 = vmatpush1.msra.mxu0 %v234
    %2828 = vmatprep.subr.mxu0 0.0
    %2829 = vmatpush1.msra.mxu0 %v235
    %2830 = vmatprep.subr.mxu0 0.0
    %2831 = vmatpush1.msra.mxu0 %v236
    %2832 = vmatprep.subr.mxu0 0.0
    %2833 = vmatpush1.msra.mxu0 %v237
    %2834 = vmatprep.subr.mxu0 0.0
    %2835 = vmatpush1.msra.mxu0 0.0
    %2836 = vmatprep.subr.mxu0 0.0
    %2837 = vmatpush1.msra.mxu0 0.0
    %2838 = vmatprep.subr.mxu0 0.0
    %2839 = vmatpush1.msra.mxu0 0.0
    %2840 = vmatprep.subr.mxu0 0.0
    %2841 = vmatpush1.msra.mxu0 0.0
    %2842 = vmatprep.subr.mxu0 0.0
    %2843 = vmatpush1.msra.mxu0 0.0
    %2844 = vmatprep.subr.mxu0 0.0
    %2845 = vmatpush1.msra.mxu0 0.0
    %2846 = vmatprep.subr.mxu0 0.0
    %2847 = vmatpush1.msra.mxu0 0.0
    %2848 = vmatprep.subr.mxu0 0.0
    %2849 = vmatpush1.msra.mxu0 0.0
    %2850 = vmatprep.subr.mxu0 0.0
    %2851 = vmatpush1.msra.mxu0 0.0
    %2852 = vmatprep.subr.mxu0 0.0
    %2853 = vmatpush1.msra.mxu0 0.0
    %2854 = vmatprep.subr.mxu0 0.0
    %2855 = vmatpush1.msra.mxu0 0.0
    %2856 = vmatprep.subr.mxu0 0.0
    %2857 = vmatpush1.msra.mxu0 0.0
    %2858 = vmatprep.subr.mxu0 0.0
    %2859 = vmatpush1.msra.mxu0 0.0
    %2860 = vmatprep.subr.mxu0 0.0
    %2861 = vmatpush1.msra.mxu0 0.0
    %2862 = vmatprep.subr.mxu0 0.0
    %2863 = vmatpush1.msra.mxu0 0.0
    %2864 = vmatprep.subr.mxu0 0.0
    %2865 = vmatpush1.msra.mxu0 0.0
    %2866 = vmatprep.subr.mxu0 0.0
    %2867 = vmatpush1.msra.mxu0 0.0
    %2868 = vmatprep.subr.mxu0 0.0
    %2869 = vmatpush1.msra.mxu0 0.0
    %2870 = vmatprep.subr.mxu0 0.0
    %2871 = vmatpush1.msra.mxu0 0.0
    %2872 = vmatprep.subr.mxu0 0.0
    %2873 = vmatpush1.msra.mxu0 0.0
    %2874 = vmatprep.subr.mxu0 0.0
    %2875 = vmatpush1.msra.mxu0 0.0
    %2876 = vmatprep.subr.mxu0 0.0
    %2877 = vmatpush1.msra.mxu0 0.0
    %2878 = vmatprep.subr.mxu0 0.0
    %2879 = vmatpush1.msra.mxu0 0.0
    %2880 = vmatprep.subr.mxu0 0.0
    %2881 = vmatpush1.msra.mxu0 0.0
    %2882 = vmatprep.subr.mxu0 0.0
    %2883 = vmatpush1.msra.mxu0 0.0
    %2884 = vmatprep.subr.mxu0 0.0
    %2885 = vmatpush1.msra.mxu0 0.0
    %2886 = vmatprep.subr.mxu0 0.0
    %2887 = vmatpush1.msra.mxu0 0.0
    %2888 = vmatprep.subr.mxu0 0.0
    %2889 = vmatpush1.msra.mxu0 0.0
    %2890 = vmatprep.mubr.f32.mxu0 0.0
    %2891 = vmatmul.mubr.f32.gmra.mrb[0].mxu0 %v2520
    %v2892 = vpop.f32.mrb[0].mxu0
    %v2893 = vadd.f32 %v2809, %v2892
    %v2894 = vpop.f32.mrb[0].mxu0
    %2895 = vdwg.mxu0
    %2896 = vmatprep.subr.mxu0 0.0
    %2897 = vmatpush1.msra.mxu0 %v238
    %2898 = vmatprep.subr.mxu0 0.0
    %2899 = vmatpush1.msra.mxu0 %v239
    %2900 = vmatprep.subr.mxu0 0.0
    %2901 = vmatpush1.msra.mxu0 %v240
    %2902 = vmatprep.subr.mxu0 0.0
    %2903 = vmatpush1.msra.mxu0 %v241
    %2904 = vmatprep.subr.mxu0 0.0
    %2905 = vmatpush1.msra.mxu0 0.0
    %2906 = vmatprep.subr.mxu0 0.0
    %2907 = vmatpush1.msra.mxu0 0.0
    %2908 = vmatprep.subr.mxu0 0.0
    %2909 = vmatpush1.msra.mxu0 0.0
    %2910 = vmatprep.subr.mxu0 0.0
    %2911 = vmatpush1.msra.mxu0 0.0
    %2912 = vmatprep.subr.mxu0 0.0
    %2913 = vmatpush1.msra.mxu0 0.0
    %2914 = vmatprep.subr.mxu0 0.0
    %2915 = vmatpush1.msra.mxu0 0.0
    %2916 = vmatprep.subr.mxu0 0.0
    %2917 = vmatpush1.msra.mxu0 0.0
    %2918 = vmatprep.subr.mxu0 0.0
    %2919 = vmatpush1.msra.mxu0 0.0
    %2920 = vmatprep.subr.mxu0 0.0
    %2921 = vmatpush1.msra.mxu0 0.0
    %2922 = vmatprep.subr.mxu0 0.0
    %2923 = vmatpush1.msra.mxu0 0.0
    %2924 = vmatprep.subr.mxu0 0.0
    %2925 = vmatpush1.msra.mxu0 0.0
    %2926 = vmatprep.subr.mxu0 0.0
    %2927 = vmatpush1.msra.mxu0 0.0
    %2928 = vmatprep.subr.mxu0 0.0
    %2929 = vmatpush1.msra.mxu0 0.0
    %2930 = vmatprep.subr.mxu0 0.0
    %2931 = vmatpush1.msra.mxu0 0.0
    %2932 = vmatprep.subr.mxu0 0.0
    %2933 = vmatpush1.msra.mxu0 0.0
    %2934 = vmatprep.subr.mxu0 0.0
    %2935 = vmatpush1.msra.mxu0 0.0
    %2936 = vmatprep.subr.mxu0 0.0
    %2937 = vmatpush1.msra.mxu0 0.0
    %2938 = vmatprep.subr.mxu0 0.0
    %2939 = vmatpush1.msra.mxu0 0.0
    %2940 = vmatprep.subr.mxu0 0.0
    %2941 = vmatpush1.msra.mxu0 0.0
    %2942 = vmatprep.subr.mxu0 0.0
    %2943 = vmatpush1.msra.mxu0 0.0
    %2944 = vmatprep.subr.mxu0 0.0
    %2945 = vmatpush1.msra.mxu0 0.0
    %2946 = vmatprep.subr.mxu0 0.0
    %2947 = vmatpush1.msra.mxu0 0.0
    %2948 = vmatprep.subr.mxu0 0.0
    %2949 = vmatpush1.msra.mxu0 0.0
    %2950 = vmatprep.subr.mxu0 0.0
    %2951 = vmatpush1.msra.mxu0 0.0
    %2952 = vmatprep.subr.mxu0 0.0
    %2953 = vmatpush1.msra.mxu0 0.0
    %2954 = vmatprep.subr.mxu0 0.0
    %2955 = vmatpush1.msra.mxu0 0.0
    %2956 = vmatprep.subr.mxu0 0.0
    %2957 = vmatpush1.msra.mxu0 0.0
    %2958 = vmatprep.subr.mxu0 0.0
    %2959 = vmatpush1.msra.mxu0 0.0
    %2960 = vmatprep.mubr.f32.mxu0 0.0
    %2961 = vmatmul.mubr.f32.gmra.mrb[0].mxu0 %v2520
    %v2962 = vpop.f32.mrb[0].mxu0
    %v2963 = vadd.f32 %v2813, %v2962
    %v2964 = vpop.f32.mrb[0].mxu0
    %2965 = vdwg.mxu0
    %2966 = vmatprep.subr.mxu0 0.0
    %2967 = vmatpush1.msra.mxu0 %v242
    %2968 = vmatprep.subr.mxu0 0.0
    %2969 = vmatpush1.msra.mxu0 %v243
    %2970 = vmatprep.subr.mxu0 0.0
    %2971 = vmatpush1.msra.mxu0 %v244
    %2972 = vmatprep.subr.mxu0 0.0
    %2973 = vmatpush1.msra.mxu0 %v245
    %2974 = vmatprep.subr.mxu0 0.0
    %2975 = vmatpush1.msra.mxu0 0.0
    %2976 = vmatprep.subr.mxu0 0.0
    %2977 = vmatpush1.msra.mxu0 0.0
    %2978 = vmatprep.subr.mxu0 0.0
    %2979 = vmatpush1.msra.mxu0 0.0
    %2980 = vmatprep.subr.mxu0 0.0
    %2981 = vmatpush1.msra.mxu0 0.0
    %2982 = vmatprep.subr.mxu0 0.0
    %2983 = vmatpush1.msra.mxu0 0.0
    %2984 = vmatprep.subr.mxu0 0.0
    %2985 = vmatpush1.msra.mxu0 0.0
    %2986 = vmatprep.subr.mxu0 0.0
    %2987 = vmatpush1.msra.mxu0 0.0
    %2988 = vmatprep.subr.mxu0 0.0
    %2989 = vmatpush1.msra.mxu0 0.0
    %2990 = vmatprep.subr.mxu0 0.0
    %2991 = vmatpush1.msra.mxu0 0.0
    %2992 = vmatprep.subr.mxu0 0.0
    %2993 = vmatpush1.msra.mxu0 0.0
    %2994 = vmatprep.subr.mxu0 0.0
    %2995 = vmatpush1.msra.mxu0 0.0
    %2996 = vmatprep.subr.mxu0 0.0
    %2997 = vmatpush1.msra.mxu0 0.0
    %2998 = vmatprep.subr.mxu0 0.0
    %2999 = vmatpush1.msra.mxu0 0.0
    %3000 = vmatprep.subr.mxu0 0.0
    %3001 = vmatpush1.msra.mxu0 0.0
    %3002 = vmatprep.subr.mxu0 0.0
    %3003 = vmatpush1.msra.mxu0 0.0
    %3004 = vmatprep.subr.mxu0 0.0
    %3005 = vmatpush1.msra.mxu0 0.0
    %3006 = vmatprep.subr.mxu0 0.0
    %3007 = vmatpush1.msra.mxu0 0.0
    %3008 = vmatprep.subr.mxu0 0.0
    %3009 = vmatpush1.msra.mxu0 0.0
    %3010 = vmatprep.subr.mxu0 0.0
    %3011 = vmatpush1.msra.mxu0 0.0
    %3012 = vmatprep.subr.mxu0 0.0
    %3013 = vmatpush1.msra.mxu0 0.0
    %3014 = vmatprep.subr.mxu0 0.0
    %3015 = vmatpush1.msra.mxu0 0.0
    %3016 = vmatprep.subr.mxu0 0.0
    %3017 = vmatpush1.msra.mxu0 0.0
    %3018 = vmatprep.subr.mxu0 0.0
    %3019 = vmatpush1.msra.mxu0 0.0
    %3020 = vmatprep.subr.mxu0 0.0
    %3021 = vmatpush1.msra.mxu0 0.0
    %3022 = vmatprep.subr.mxu0 0.0
    %3023 = vmatpush1.msra.mxu0 0.0
    %3024 = vmatprep.subr.mxu0 0.0
    %3025 = vmatpush1.msra.mxu0 0.0
    %3026 = vmatprep.subr.mxu0 0.0
    %3027 = vmatpush1.msra.mxu0 0.0
    %3028 = vmatprep.subr.mxu0 0.0
    %3029 = vmatpush1.msra.mxu0 0.0
    %3030 = vmatprep.mubr.f32.mxu0 0.0
    %3031 = vmatmul.mubr.f32.gmra.mrb[0].mxu0 %v2520
    %v3032 = vpop.f32.mrb[0].mxu0
    %v3033 = vadd.f32 %v2817, %v3032
    %v3034 = vpop.f32.mrb[0].mxu0
    %3035 = vdwg.mxu0
    %3036 = vmatprep.subr.mxu0 0.0
    %3037 = vmatpush1.msra.mxu0 %v246
    %3038 = vmatprep.subr.mxu0 0.0
    %3039 = vmatpush1.msra.mxu0 %v247
    %3040 = vmatprep.subr.mxu0 0.0
    %3041 = vmatpush1.msra.mxu0 %v248
    %3042 = vmatprep.subr.mxu0 0.0
    %3043 = vmatpush1.msra.mxu0 %v249
    %3044 = vmatprep.subr.mxu0 0.0
    %3045 = vmatpush1.msra.mxu0 0.0
    %3046 = vmatprep.subr.mxu0 0.0
    %3047 = vmatpush1.msra.mxu0 0.0
    %3048 = vmatprep.subr.mxu0 0.0
    %3049 = vmatpush1.msra.mxu0 0.0
    %3050 = vmatprep.subr.mxu0 0.0
    %3051 = vmatpush1.msra.mxu0 0.0
    %3052 = vmatprep.subr.mxu0 0.0
    %3053 = vmatpush1.msra.mxu0 0.0
    %3054 = vmatprep.subr.mxu0 0.0
    %3055 = vmatpush1.msra.mxu0 0.0
    %3056 = vmatprep.subr.mxu0 0.0
    %3057 = vmatpush1.msra.mxu0 0.0
    %3058 = vmatprep.subr.mxu0 0.0
    %3059 = vmatpush1.msra.mxu0 0.0
    %3060 = vmatprep.subr.mxu0 0.0
    %3061 = vmatpush1.msra.mxu0 0.0
    %3062 = vmatprep.subr.mxu0 0.0
    %3063 = vmatpush1.msra.mxu0 0.0
    %3064 = vmatprep.subr.mxu0 0.0
    %3065 = vmatpush1.msra.mxu0 0.0
    %3066 = vmatprep.subr.mxu0 0.0
    %3067 = vmatpush1.msra.mxu0 0.0
    %3068 = vmatprep.subr.mxu0 0.0
    %3069 = vmatpush1.msra.mxu0 0.0
    %3070 = vmatprep.subr.mxu0 0.0
    %3071 = vmatpush1.msra.mxu0 0.0
    %3072 = vmatprep.subr.mxu0 0.0
    %3073 = vmatpush1.msra.mxu0 0.0
    %3074 = vmatprep.subr.mxu0 0.0
    %3075 = vmatpush1.msra.mxu0 0.0
    %3076 = vmatprep.subr.mxu0 0.0
    %3077 = vmatpush1.msra.mxu0 0.0
    %3078 = vmatprep.subr.mxu0 0.0
    %3079 = vmatpush1.msra.mxu0 0.0
    %3080 = vmatprep.subr.mxu0 0.0
    %3081 = vmatpush1.msra.mxu0 0.0
    %3082 = vmatprep.subr.mxu0 0.0
    %3083 = vmatpush1.msra.mxu0 0.0
    %3084 = vmatprep.subr.mxu0 0.0
    %3085 = vmatpush1.msra.mxu0 0.0
    %3086 = vmatprep.subr.mxu0 0.0
    %3087 = vmatpush1.msra.mxu0 0.0
    %3088 = vmatprep.subr.mxu0 0.0
    %3089 = vmatpush1.msra.mxu0 0.0
    %3090 = vmatprep.subr.mxu0 0.0
    %3091 = vmatpush1.msra.mxu0 0.0
    %3092 = vmatprep.subr.mxu0 0.0
    %3093 = vmatpush1.msra.mxu0 0.0
    %3094 = vmatprep.subr.mxu0 0.0
    %3095 = vmatpush1.msra.mxu0 0.0
    %3096 = vmatprep.subr.mxu0 0.0
    %3097 = vmatpush1.msra.mxu0 0.0
    %3098 = vmatprep.subr.mxu0 0.0
    %3099 = vmatpush1.msra.mxu0 0.0
    %3100 = vmatprep.mubr.f32.mxu0 0.0
    %3101 = vmatmul.mubr.f32.gmra.mrb[0].mxu0 %v2520
    %v3102 = vpop.f32.mrb[0].mxu0
    %v3103 = vadd.f32 %v2821, %v3102
    %v3104 = vpop.f32.mrb[0].mxu0
    %3105 = vdwg.mxu0
    %v3107 = vsel %vm1197, %v2282, 0
    %v3110 = vsel %vm1197, %v2589, 0
    %3112 = vmatprep.subr.mxu0 0.0
    %3113 = vmatpush1.xpose.msra.mxu0 %v3110
    %3114 = vmatprep.subr.mxu0 0.0
    %3115 = vmatpush1.xpose.msra.mxu0 0.0
    %3116 = vmatprep.subr.mxu0 0.0
    %3117 = vmatpush1.xpose.msra.mxu0 0.0
    %3118 = vmatprep.subr.mxu0 0.0
    %3119 = vmatpush1.xpose.msra.mxu0 0.0
    %3120 = vmatprep.subr.mxu0 0.0
    %3121 = vmatpush1.xpose.msra.mxu0 0.0
    %3122 = vmatprep.subr.mxu0 0.0
    %3123 = vmatpush1.xpose.msra.mxu0 0.0
    %3124 = vmatprep.subr.mxu0 0.0
    %3125 = vmatpush1.xpose.msra.mxu0 0.0
    %3126 = vmatprep.subr.mxu0 0.0
    %3127 = vmatpush1.xpose.msra.mxu0 0.0
    %3128 = vmatprep.subr.mxu0 0.0
    %3129 = vmatpush1.xpose.msra.mxu0 0.0
    %3130 = vmatprep.subr.mxu0 0.0
    %3131 = vmatpush1.xpose.msra.mxu0 0.0
    %3132 = vmatprep.subr.mxu0 0.0
    %3133 = vmatpush1.xpose.msra.mxu0 0.0
    %3134 = vmatprep.subr.mxu0 0.0
    %3135 = vmatpush1.xpose.msra.mxu0 0.0
    %3136 = vmatprep.subr.mxu0 0.0
    %3137 = vmatpush1.xpose.msra.mxu0 0.0
    %3138 = vmatprep.subr.mxu0 0.0
    %3139 = vmatpush1.xpose.msra.mxu0 0.0
    %3140 = vmatprep.subr.mxu0 0.0
    %3141 = vmatpush1.xpose.msra.mxu0 0.0
    %3142 = vmatprep.subr.mxu0 0.0
    %3143 = vmatpush1.xpose.msra.mxu0 0.0
    %3144 = vmatprep.subr.mxu0 0.0
    %3145 = vmatpush1.xpose.msra.mxu0 0.0
    %3146 = vmatprep.subr.mxu0 0.0
    %3147 = vmatpush1.xpose.msra.mxu0 0.0
    %3148 = vmatprep.subr.mxu0 0.0
    %3149 = vmatpush1.xpose.msra.mxu0 0.0
    %3150 = vmatprep.subr.mxu0 0.0
    %3151 = vmatpush1.xpose.msra.mxu0 0.0
    %3152 = vmatprep.subr.mxu0 0.0
    %3153 = vmatpush1.xpose.msra.mxu0 0.0
    %3154 = vmatprep.subr.mxu0 0.0
    %3155 = vmatpush1.xpose.msra.mxu0 0.0
    %3156 = vmatprep.subr.mxu0 0.0
    %3157 = vmatpush1.xpose.msra.mxu0 0.0
    %3158 = vmatprep.subr.mxu0 0.0
    %3159 = vmatpush1.xpose.msra.mxu0 0.0
    %3160 = vmatprep.subr.mxu0 0.0
    %3161 = vmatpush1.xpose.msra.mxu0 0.0
    %3162 = vmatprep.subr.mxu0 0.0
    %3163 = vmatpush1.xpose.msra.mxu0 0.0
    %3164 = vmatprep.subr.mxu0 0.0
    %3165 = vmatpush1.xpose.msra.mxu0 0.0
    %3166 = vmatprep.subr.mxu0 0.0
    %3167 = vmatpush1.xpose.msra.mxu0 0.0
    %3168 = vmatprep.subr.mxu0 0.0
    %3169 = vmatpush1.xpose.msra.mxu0 0.0
    %3170 = vmatprep.subr.mxu0 0.0
    %3171 = vmatpush1.xpose.msra.mxu0 0.0
    %3172 = vmatprep.subr.mxu0 0.0
    %3173 = vmatpush1.xpose.msra.mxu0 0.0
    %3174 = vmatprep.subr.mxu0 0.0
    %3175 = vmatpush1.xpose.msra.mxu0 0.0
    %3176 = vmatprep.mubr.f32.mxu0 0.0
    %3177 = vmatmul.mubr.f32.gmra.mrb[0].mxu0 %v3107
    %v3178 = vpop.f32.mrb[0].mxu0
    %v3179 = vadd.f32 0.0, %v3178
    %v3180 = vpop.f32.mrb[0].mxu0
    %3181 = vdwg.mxu0
    %v3183 = vsel %vm1197, %v2352, 0
    %v3186 = vsel %vm1197, %v2659, 0
    %3188 = vmatprep.subr.mxu0 0.0
    %3189 = vmatpush1.xpose.msra.mxu0 %v3186
    %3190 = vmatprep.subr.mxu0 0.0
    %3191 = vmatpush1.xpose.msra.mxu0 0.0
    %3192 = vmatprep.subr.mxu0 0.0
    %3193 = vmatpush1.xpose.msra.mxu0 0.0
    %3194 = vmatprep.subr.mxu0 0.0
    %3195 = vmatpush1.xpose.msra.mxu0 0.0
    %3196 = vmatprep.subr.mxu0 0.0
    %3197 = vmatpush1.xpose.msra.mxu0 0.0
    %3198 = vmatprep.subr.mxu0 0.0
    %3199 = vmatpush1.xpose.msra.mxu0 0.0
    %3200 = vmatprep.subr.mxu0 0.0
    %3201 = vmatpush1.xpose.msra.mxu0 0.0
    %3202 = vmatprep.subr.mxu0 0.0
    %3203 = vmatpush1.xpose.msra.mxu0 0.0
    %3204 = vmatprep.subr.mxu0 0.0
    %3205 = vmatpush1.xpose.msra.mxu0 0.0
    %3206 = vmatprep.subr.mxu0 0.0
    %3207 = vmatpush1.xpose.msra.mxu0 0.0
    %3208 = vmatprep.subr.mxu0 0.0
    %3209 = vmatpush1.xpose.msra.mxu0 0.0
    %3210 = vmatprep.subr.mxu0 0.0
    %3211 = vmatpush1.xpose.msra.mxu0 0.0
    %3212 = vmatprep.subr.mxu0 0.0
    %3213 = vmatpush1.xpose.msra.mxu0 0.0
    %3214 = vmatprep.subr.mxu0 0.0
    %3215 = vmatpush1.xpose.msra.mxu0 0.0
    %3216 = vmatprep.subr.mxu0 0.0
    %3217 = vmatpush1.xpose.msra.mxu0 0.0
    %3218 = vmatprep.subr.mxu0 0.0
    %3219 = vmatpush1.xpose.msra.mxu0 0.0
    %3220 = vmatprep.subr.mxu0 0.0
    %3221 = vmatpush1.xpose.msra.mxu0 0.0
    %3222 = vmatprep.subr.mxu0 0.0
    %3223 = vmatpush1.xpose.msra.mxu0 0.0
    %3224 = vmatprep.subr.mxu0 0.0
    %3225 = vmatpush1.xpose.msra.mxu0 0.0
    %3226 = vmatprep.subr.mxu0 0.0
    %3227 = vmatpush1.xpose.msra.mxu0 0.0
    %3228 = vmatprep.subr.mxu0 0.0
    %3229 = vmatpush1.xpose.msra.mxu0 0.0
    %3230 = vmatprep.subr.mxu0 0.0
    %3231 = vmatpush1.xpose.msra.mxu0 0.0
    %3232 = vmatprep.subr.mxu0 0.0
    %3233 = vmatpush1.xpose.msra.mxu0 0.0
    %3234 = vmatprep.subr.mxu0 0.0
    %3235 = vmatpush1.xpose.msra.mxu0 0.0
    %3236 = vmatprep.subr.mxu0 0.0
    %3237 = vmatpush1.xpose.msra.mxu0 0.0
    %3238 = vmatprep.subr.mxu0 0.0
    %3239 = vmatpush1.xpose.msra.mxu0 0.0
    %3240 = vmatprep.subr.mxu0 0.0
    %3241 = vmatpush1.xpose.msra.mxu0 0.0
    %3242 = vmatprep.subr.mxu0 0.0
    %3243 = vmatpush1.xpose.msra.mxu0 0.0
    %3244 = vmatprep.subr.mxu0 0.0
    %3245 = vmatpush1.xpose.msra.mxu0 0.0
    %3246 = vmatprep.subr.mxu0 0.0
    %3247 = vmatpush1.xpose.msra.mxu0 0.0
    %3248 = vmatprep.subr.mxu0 0.0
    %3249 = vmatpush1.xpose.msra.mxu0 0.0
    %3250 = vmatprep.subr.mxu0 0.0
    %3251 = vmatpush1.xpose.msra.mxu0 0.0
    %3252 = vmatprep.mubr.f32.mxu0 0.0
    %3253 = vmatmul.mubr.f32.gmra.mrb[0].mxu0 %v3183
    %v3254 = vpop.f32.mrb[0].mxu0
    %v3255 = vadd.f32 0.0, %v3254
    %v3256 = vpop.f32.mrb[0].mxu0
    %3257 = vdwg.mxu0
    %v3259 = vsel %vm1197, %v2422, 0
    %v3262 = vsel %vm1197, %v2729, 0
    %3264 = vmatprep.subr.mxu0 0.0
    %3265 = vmatpush1.xpose.msra.mxu0 %v3262
    %3266 = vmatprep.subr.mxu0 0.0
    %3267 = vmatpush1.xpose.msra.mxu0 0.0
    %3268 = vmatprep.subr.mxu0 0.0
    %3269 = vmatpush1.xpose.msra.mxu0 0.0
    %3270 = vmatprep.subr.mxu0 0.0
    %3271 = vmatpush1.xpose.msra.mxu0 0.0
    %3272 = vmatprep.subr.mxu0 0.0
    %3273 = vmatpush1.xpose.msra.mxu0 0.0
    %3274 = vmatprep.subr.mxu0 0.0
    %3275 = vmatpush1.xpose.msra.mxu0 0.0
    %3276 = vmatprep.subr.mxu0 0.0
    %3277 = vmatpush1.xpose.msra.mxu0 0.0
    %3278 = vmatprep.subr.mxu0 0.0
    %3279 = vmatpush1.xpose.msra.mxu0 0.0
    %3280 = vmatprep.subr.mxu0 0.0
    %3281 = vmatpush1.xpose.msra.mxu0 0.0
    %3282 = vmatprep.subr.mxu0 0.0
    %3283 = vmatpush1.xpose.msra.mxu0 0.0
    %3284 = vmatprep.subr.mxu0 0.0
    %3285 = vmatpush1.xpose.msra.mxu0 0.0
    %3286 = vmatprep.subr.mxu0 0.0
    %3287 = vmatpush1.xpose.msra.mxu0 0.0
    %3288 = vmatprep.subr.mxu0 0.0
    %3289 = vmatpush1.xpose.msra.mxu0 0.0
    %3290 = vmatprep.subr.mxu0 0.0
    %3291 = vmatpush1.xpose.msra.mxu0 0.0
    %3292 = vmatprep.subr.mxu0 0.0
    %3293 = vmatpush1.xpose.msra.mxu0 0.0
    %3294 = vmatprep.subr.mxu0 0.0
    %3295 = vmatpush1.xpose.msra.mxu0 0.0
    %3296 = vmatprep.subr.mxu0 0.0
    %3297 = vmatpush1.xpose.msra.mxu0 0.0
    %3298 = vmatprep.subr.mxu0 0.0
    %3299 = vmatpush1.xpose.msra.mxu0 0.0
    %3300 = vmatprep.subr.mxu0 0.0
    %3301 = vmatpush1.xpose.msra.mxu0 0.0
    %3302 = vmatprep.subr.mxu0 0.0
    %3303 = vmatpush1.xpose.msra.mxu0 0.0
    %3304 = vmatprep.subr.mxu0 0.0
    %3305 = vmatpush1.xpose.msra.mxu0 0.0
    %3306 = vmatprep.subr.mxu0 0.0
    %3307 = vmatpush1.xpose.msra.mxu0 0.0
    %3308 = vmatprep.subr.mxu0 0.0
    %3309 = vmatpush1.xpose.msra.mxu0 0.0
    %3310 = vmatprep.subr.mxu0 0.0
    %3311 = vmatpush1.xpose.msra.mxu0 0.0
    %3312 = vmatprep.subr.mxu0 0.0
    %3313 = vmatpush1.xpose.msra.mxu0 0.0
    %3314 = vmatprep.subr.mxu0 0.0
    %3315 = vmatpush1.xpose.msra.mxu0 0.0
    %3316 = vmatprep.subr.mxu0 0.0
    %3317 = vmatpush1.xpose.msra.mxu0 0.0
    %3318 = vmatprep.subr.mxu0 0.0
    %3319 = vmatpush1.xpose.msra.mxu0 0.0
    %3320 = vmatprep.subr.mxu0 0.0
    %3321 = vmatpush1.xpose.msra.mxu0 0.0
    %3322 = vmatprep.subr.mxu0 0.0
    %3323 = vmatpush1.xpose.msra.mxu0 0.0
    %3324 = vmatprep.subr.mxu0 0.0
    %3325 = vmatpush1.xpose.msra.mxu0 0.0
    %3326 = vmatprep.subr.mxu0 0.0
    %3327 = vmatpush1.xpose.msra.mxu0 0.0
    %3328 = vmatprep.mubr.f32.mxu0 0.0
    %3329 = vmatmul.mubr.f32.gmra.mrb[0].mxu0 %v3259
    %v3330 = vpop.f32.mrb[0].mxu0
    %v3331 = vadd.f32 0.0, %v3330
    %v3332 = vpop.f32.mrb[0].mxu0
    %3333 = vdwg.mxu0
    %v3335 = vsel %vm1197, %v2492, 0
    %v3338 = vsel %vm1197, %v2799, 0
    %3340 = vmatprep.subr.mxu0 0.0
    %3341 = vmatpush1.xpose.msra.mxu0 %v3338
    %3342 = vmatprep.subr.mxu0 0.0
    %3343 = vmatpush1.xpose.msra.mxu0 0.0
    %3344 = vmatprep.subr.mxu0 0.0
    %3345 = vmatpush1.xpose.msra.mxu0 0.0
    %3346 = vmatprep.subr.mxu0 0.0
    %3347 = vmatpush1.xpose.msra.mxu0 0.0
    %3348 = vmatprep.subr.mxu0 0.0
    %3349 = vmatpush1.xpose.msra.mxu0 0.0
    %3350 = vmatprep.subr.mxu0 0.0
    %3351 = vmatpush1.xpose.msra.mxu0 0.0
    %3352 = vmatprep.subr.mxu0 0.0
    %3353 = vmatpush1.xpose.msra.mxu0 0.0
    %3354 = vmatprep.subr.mxu0 0.0
    %3355 = vmatpush1.xpose.msra.mxu0 0.0
    %3356 = vmatprep.subr.mxu0 0.0
    %3357 = vmatpush1.xpose.msra.mxu0 0.0
    %3358 = vmatprep.subr.mxu0 0.0
    %3359 = vmatpush1.xpose.msra.mxu0 0.0
    %3360 = vmatprep.subr.mxu0 0.0
    %3361 = vmatpush1.xpose.msra.mxu0 0.0
    %3362 = vmatprep.subr.mxu0 0.0
    %3363 = vmatpush1.xpose.msra.mxu0 0.0
    %3364 = vmatprep.subr.mxu0 0.0
    %3365 = vmatpush1.xpose.msra.mxu0 0.0
    %3366 = vmatprep.subr.mxu0 0.0
    %3367 = vmatpush1.xpose.msra.mxu0 0.0
    %3368 = vmatprep.subr.mxu0 0.0
    %3369 = vmatpush1.xpose.msra.mxu0 0.0
    %3370 = vmatprep.subr.mxu0 0.0
    %3371 = vmatpush1.xpose.msra.mxu0 0.0
    %3372 = vmatprep.subr.mxu0 0.0
    %3373 = vmatpush1.xpose.msra.mxu0 0.0
    %3374 = vmatprep.subr.mxu0 0.0
    %3375 = vmatpush1.xpose.msra.mxu0 0.0
    %3376 = vmatprep.subr.mxu0 0.0
    %3377 = vmatpush1.xpose.msra.mxu0 0.0
    %3378 = vmatprep.subr.mxu0 0.0
    %3379 = vmatpush1.xpose.msra.mxu0 0.0
    %3380 = vmatprep.subr.mxu0 0.0
    %3381 = vmatpush1.xpose.msra.mxu0 0.0
    %3382 = vmatprep.subr.mxu0 0.0
    %3383 = vmatpush1.xpose.msra.mxu0 0.0
    %3384 = vmatprep.subr.mxu0 0.0
    %3385 = vmatpush1.xpose.msra.mxu0 0.0
    %3386 = vmatprep.subr.mxu0 0.0
    %3387 = vmatpush1.xpose.msra.mxu0 0.0
    %3388 = vmatprep.subr.mxu0 0.0
    %3389 = vmatpush1.xpose.msra.mxu0 0.0
    %3390 = vmatprep.subr.mxu0 0.0
    %3391 = vmatpush1.xpose.msra.mxu0 0.0
    %3392 = vmatprep.subr.mxu0 0.0
    %3393 = vmatpush1.xpose.msra.mxu0 0.0
    %3394 = vmatprep.subr.mxu0 0.0
    %3395 = vmatpush1.xpose.msra.mxu0 0.0
    %3396 = vmatprep.subr.mxu0 0.0
    %3397 = vmatpush1.xpose.msra.mxu0 0.0
    %3398 = vmatprep.subr.mxu0 0.0
    %3399 = vmatpush1.xpose.msra.mxu0 0.0
    %3400 = vmatprep.subr.mxu0 0.0
    %3401 = vmatpush1.xpose.msra.mxu0 0.0
    %3402 = vmatprep.subr.mxu0 0.0
    %3403 = vmatpush1.xpose.msra.mxu0 0.0
    %3404 = vmatprep.mubr.f32.mxu0 0.0
    %3405 = vmatmul.mubr.f32.gmra.mrb[0].mxu0 %v3335
    %v3406 = vpop.f32.mrb[0].mxu0
    %v3407 = vadd.f32 0.0, %v3406
    %v3408 = vpop.f32.mrb[0].mxu0
    %3409 = vdwg.mxu0
    %v3410 = vmul.f32 %v3179, 0.35355338
    %v3411 = vmul.f32 %v3255, 0.35355338
    %v3412 = vmul.f32 %v3331, 0.35355338
    %v3413 = vmul.f32 %v3407, 0.35355338
    %v3414 = vadd.f32 %v3410, %v280
    %v3415 = vadd.f32 %v3411, %v280
    %v3416 = vadd.f32 %v3412, %v280
    %v3417 = vadd.f32 %v3413, %v280
    %v3418 = vsel %vm1197, %v3414, -inf
    %3419 = vmax.xlane.f32.xlu0 %v3418
    %v3420 = vpop.xlane.xlu0 %3419
    %v3421 = vsel %vm1197, %v3415, -inf
    %3422 = vmax.xlane.f32.xlu0 %v3421
    %v3423 = vpop.xlane.xlu0 %3422
    %v3424 = vsel %vm1197, %v3416, -inf
    %3425 = vmax.xlane.f32.xlu0 %v3424
    %v3426 = vpop.xlane.xlu0 %3425
    %v3427 = vsel %vm1197, %v3417, -inf
    %3428 = vmax.xlane.f32.xlu0 %v3427
    %v3429 = vpop.xlane.xlu0 %3428
    %v3430 = vsub.f32 %v3414, %v3420
    %v3431 = vsub.f32 %v3415, %v3423
    %v3432 = vsub.f32 %v3416, %v3426
    %v3433 = vsub.f32 %v3417, %v3429
    %v3434 = vmul.f32 %v3430, 1.442695
    %v3435 = vpow.pop %v3434
    %v3436 = vmul.f32 %v3431, 1.442695
    %v3437 = vpow.pop %v3436
    %v3438 = vmul.f32 %v3432, 1.442695
    %v3439 = vpow.pop %v3438
    %v3440 = vmul.f32 %v3433, 1.442695
    %v3441 = vpow.pop %v3440
    %v3442 = vsel %vm1197, %v3435, 0.0
    %3443 = vadd.xlane.f32.xlu0 %v3442
    %v3444 = vpop.xlane.xlu0 %3443
    %v3445 = vsel %vm1197, %v3437, 0.0
    %3446 = vadd.xlane.f32.xlu0 %v3445
    %v3447 = vpop.xlane.xlu0 %3446
    %v3448 = vsel %vm1197, %v3439, 0.0
    %3449 = vadd.xlane.f32.xlu0 %v3448
    %v3450 = vpop.xlane.xlu0 %3449
    %v3451 = vsel %vm1197, %v3441, 0.0
    %3452 = vadd.xlane.f32.xlu0 %v3451
    %v3453 = vpop.xlane.xlu0 %3452
    %v3454 = vrcp.pop %v3444
    %v3455 = vrcp.pop %v3447
    %v3456 = vrcp.pop %v3450
    %v3457 = vrcp.pop %v3453
    %v3458 = vmul.f32 %v3435, %v3454
    %v3459 = vmul.f32 %v3437, %v3455
    %v3460 = vmul.f32 %v3439, %v3456
    %v3461 = vmul.f32 %v3441, %v3457
    %v3463 = vsel %vm1197, %v3458, 0
    %3465 = vmatprep.subr.mxu0 0.0
    %3466 = vmatpush1.msra.mxu0 %v2893
    %3467 = vmatprep.subr.mxu0 0.0
    %3468 = vmatpush1.msra.mxu0 0.0
    %3469 = vmatprep.subr.mxu0 0.0
    %3470 = vmatpush1.msra.mxu0 0.0
    %3471 = vmatprep.subr.mxu0 0.0
    %3472 = vmatpush1.msra.mxu0 0.0
    %3473 = vmatprep.subr.mxu0 0.0
    %3474 = vmatpush1.msra.mxu0 0.0
    %3475 = vmatprep.subr.mxu0 0.0
    %3476 = vmatpush1.msra.mxu0 0.0
    %3477 = vmatprep.subr.mxu0 0.0
    %3478 = vmatpush1.msra.mxu0 0.0
    %3479 = vmatprep.subr.mxu0 0.0
    %3480 = vmatpush1.msra.mxu0 0.0
    %3481 = vmatprep.subr.mxu0 0.0
    %3482 = vmatpush1.msra.mxu0 0.0
    %3483 = vmatprep.subr.mxu0 0.0
    %3484 = vmatpush1.msra.mxu0 0.0
    %3485 = vmatprep.subr.mxu0 0.0
    %3486 = vmatpush1.msra.mxu0 0.0
    %3487 = vmatprep.subr.mxu0 0.0
    %3488 = vmatpush1.msra.mxu0 0.0
    %3489 = vmatprep.subr.mxu0 0.0
    %3490 = vmatpush1.msra.mxu0 0.0
    %3491 = vmatprep.subr.mxu0 0.0
    %3492 = vmatpush1.msra.mxu0 0.0
    %3493 = vmatprep.subr.mxu0 0.0
    %3494 = vmatpush1.msra.mxu0 0.0
    %3495 = vmatprep.subr.mxu0 0.0
    %3496 = vmatpush1.msra.mxu0 0.0
    %3497 = vmatprep.subr.mxu0 0.0
    %3498 = vmatpush1.msra.mxu0 0.0
    %3499 = vmatprep.subr.mxu0 0.0
    %3500 = vmatpush1.msra.mxu0 0.0
    %3501 = vmatprep.subr.mxu0 0.0
    %3502 = vmatpush1.msra.mxu0 0.0
    %3503 = vmatprep.subr.mxu0 0.0
    %3504 = vmatpush1.msra.mxu0 0.0
    %3505 = vmatprep.subr.mxu0 0.0
    %3506 = vmatpush1.msra.mxu0 0.0
    %3507 = vmatprep.subr.mxu0 0.0
    %3508 = vmatpush1.msra.mxu0 0.0
    %3509 = vmatprep.subr.mxu0 0.0
    %3510 = vmatpush1.msra.mxu0 0.0
    %3511 = vmatprep.subr.mxu0 0.0
    %3512 = vmatpush1.msra.mxu0 0.0
    %3513 = vmatprep.subr.mxu0 0.0
    %3514 = vmatpush1.msra.mxu0 0.0
    %3515 = vmatprep.subr.mxu0 0.0
    %3516 = vmatpush1.msra.mxu0 0.0
    %3517 = vmatprep.subr.mxu0 0.0
    %3518 = vmatpush1.msra.mxu0 0.0
    %3519 = vmatprep.subr.mxu0 0.0
    %3520 = vmatpush1.msra.mxu0 0.0
    %3521 = vmatprep.subr.mxu0 0.0
    %3522 = vmatpush1.msra.mxu0 0.0
    %3523 = vmatprep.subr.mxu0 0.0
    %3524 = vmatpush1.msra.mxu0 0.0
    %3525 = vmatprep.subr.mxu0 0.0
    %3526 = vmatpush1.msra.mxu0 0.0
    %3527 = vmatprep.subr.mxu0 0.0
    %3528 = vmatpush1.msra.mxu0 0.0
    %3529 = vmatprep.mubr.f32.mxu0 0.0
    %3530 = vmatmul.mubr.f32.gmra.mrb[0].mxu0 %v3463
    %v3531 = vpop.f32.mrb[0].mxu0
    %v3532 = vadd.f32 0.0, %v3531
    %v3533 = vpop.f32.mrb[0].mxu0
    %3534 = vdwg.mxu0
    %v3536 = vsel %vm1197, %v3459, 0
    %3538 = vmatprep.subr.mxu0 0.0
    %3539 = vmatpush1.msra.mxu0 %v2963
    %3540 = vmatprep.subr.mxu0 0.0
    %3541 = vmatpush1.msra.mxu0 0.0
    %3542 = vmatprep.subr.mxu0 0.0
    %3543 = vmatpush1.msra.mxu0 0.0
    %3544 = vmatprep.subr.mxu0 0.0
    %3545 = vmatpush1.msra.mxu0 0.0
    %3546 = vmatprep.subr.mxu0 0.0
    %3547 = vmatpush1.msra.mxu0 0.0
    %3548 = vmatprep.subr.mxu0 0.0
    %3549 = vmatpush1.msra.mxu0 0.0
    %3550 = vmatprep.subr.mxu0 0.0
    %3551 = vmatpush1.msra.mxu0 0.0
    %3552 = vmatprep.subr.mxu0 0.0
    %3553 = vmatpush1.msra.mxu0 0.0
    %3554 = vmatprep.subr.mxu0 0.0
    %3555 = vmatpush1.msra.mxu0 0.0
    %3556 = vmatprep.subr.mxu0 0.0
    %3557 = vmatpush1.msra.mxu0 0.0
    %3558 = vmatprep.subr.mxu0 0.0
    %3559 = vmatpush1.msra.mxu0 0.0
    %3560 = vmatprep.subr.mxu0 0.0
    %3561 = vmatpush1.msra.mxu0 0.0
    %3562 = vmatprep.subr.mxu0 0.0
    %3563 = vmatpush1.msra.mxu0 0.0
    %3564 = vmatprep.subr.mxu0 0.0
    %3565 = vmatpush1.msra.mxu0 0.0
    %3566 = vmatprep.subr.mxu0 0.0
    %3567 = vmatpush1.msra.mxu0 0.0
    %3568 = vmatprep.subr.mxu0 0.0
    %3569 = vmatpush1.msra.mxu0 0.0
    %3570 = vmatprep.subr.mxu0 0.0
    %3571 = vmatpush1.msra.mxu0 0.0
    %3572 = vmatprep.subr.mxu0 0.0
    %3573 = vmatpush1.msra.mxu0 0.0
    %3574 = vmatprep.subr.mxu0 0.0
    %3575 = vmatpush1.msra.mxu0 0.0
    %3576 = vmatprep.subr.mxu0 0.0
    %3577 = vmatpush1.msra.mxu0 0.0
    %3578 = vmatprep.subr.mxu0 0.0
    %3579 = vmatpush1.msra.mxu0 0.0
    %3580 = vmatprep.subr.mxu0 0.0
    %3581 = vmatpush1.msra.mxu0 0.0
    %3582 = vmatprep.subr.mxu0 0.0
    %3583 = vmatpush1.msra.mxu0 0.0
    %3584 = vmatprep.subr.mxu0 0.0
    %3585 = vmatpush1.msra.mxu0 0.0
    %3586 = vmatprep.subr.mxu0 0.0
    %3587 = vmatpush1.msra.mxu0 0.0
    %3588 = vmatprep.subr.mxu0 0.0
    %3589 = vmatpush1.msra.mxu0 0.0
    %3590 = vmatprep.subr.mxu0 0.0
    %3591 = vmatpush1.msra.mxu0 0.0
    %3592 = vmatprep.subr.mxu0 0.0
    %3593 = vmatpush1.msra.mxu0 0.0
    %3594 = vmatprep.subr.mxu0 0.0
    %3595 = vmatpush1.msra.mxu0 0.0
    %3596 = vmatprep.subr.mxu0 0.0
    %3597 = vmatpush1.msra.mxu0 0.0
    %3598 = vmatprep.subr.mxu0 0.0
    %3599 = vmatpush1.msra.mxu0 0.0
    %3600 = vmatprep.subr.mxu0 0.0
    %3601 = vmatpush1.msra.mxu0 0.0
    %3602 = vmatprep.mubr.f32.mxu0 0.0
    %3603 = vmatmul.mubr.f32.gmra.mrb[0].mxu0 %v3536
    %v3604 = vpop.f32.mrb[0].mxu0
    %v3605 = vadd.f32 0.0, %v3604
    %v3606 = vpop.f32.mrb[0].mxu0
    %3607 = vdwg.mxu0
    %v3609 = vsel %vm1197, %v3460, 0
    %3611 = vmatprep.subr.mxu0 0.0
    %3612 = vmatpush1.msra.mxu0 %v3033
    %3613 = vmatprep.subr.mxu0 0.0
    %3614 = vmatpush1.msra.mxu0 0.0
    %3615 = vmatprep.subr.mxu0 0.0
    %3616 = vmatpush1.msra.mxu0 0.0
    %3617 = vmatprep.subr.mxu0 0.0
    %3618 = vmatpush1.msra.mxu0 0.0
    %3619 = vmatprep.subr.mxu0 0.0
    %3620 = vmatpush1.msra.mxu0 0.0
    %3621 = vmatprep.subr.mxu0 0.0
    %3622 = vmatpush1.msra.mxu0 0.0
    %3623 = vmatprep.subr.mxu0 0.0
    %3624 = vmatpush1.msra.mxu0 0.0
    %3625 = vmatprep.subr.mxu0 0.0
    %3626 = vmatpush1.msra.mxu0 0.0
    %3627 = vmatprep.subr.mxu0 0.0
    %3628 = vmatpush1.msra.mxu0 0.0
    %3629 = vmatprep.subr.mxu0 0.0
    %3630 = vmatpush1.msra.mxu0 0.0
    %3631 = vmatprep.subr.mxu0 0.0
    %3632 = vmatpush1.msra.mxu0 0.0
    %3633 = vmatprep.subr.mxu0 0.0
    %3634 = vmatpush1.msra.mxu0 0.0
    %3635 = vmatprep.subr.mxu0 0.0
    %3636 = vmatpush1.msra.mxu0 0.0
    %3637 = vmatprep.subr.mxu0 0.0
    %3638 = vmatpush1.msra.mxu0 0.0
    %3639 = vmatprep.subr.mxu0 0.0
    %3640 = vmatpush1.msra.mxu0 0.0
    %3641 = vmatprep.subr.mxu0 0.0
    %3642 = vmatpush1.msra.mxu0 0.0
    %3643 = vmatprep.subr.mxu0 0.0
    %3644 = vmatpush1.msra.mxu0 0.0
    %3645 = vmatprep.subr.mxu0 0.0
    %3646 = vmatpush1.msra.mxu0 0.0
    %3647 = vmatprep.subr.mxu0 0.0
    %3648 = vmatpush1.msra.mxu0 0.0
    %3649 = vmatprep.subr.mxu0 0.0
    %3650 = vmatpush1.msra.mxu0 0.0
    %3651 = vmatprep.subr.mxu0 0.0
    %3652 = vmatpush1.msra.mxu0 0.0
    %3653 = vmatprep.subr.mxu0 0.0
    %3654 = vmatpush1.msra.mxu0 0.0
    %3655 = vmatprep.subr.mxu0 0.0
    %3656 = vmatpush1.msra.mxu0 0.0
    %3657 = vmatprep.subr.mxu0 0.0
    %3658 = vmatpush1.msra.mxu0 0.0
    %3659 = vmatprep.subr.mxu0 0.0
    %3660 = vmatpush1.msra.mxu0 0.0
    %3661 = vmatprep.subr.mxu0 0.0
    %3662 = vmatpush1.msra.mxu0 0.0
    %3663 = vmatprep.subr.mxu0 0.0
    %3664 = vmatpush1.msra.mxu0 0.0
    %3665 = vmatprep.subr.mxu0 0.0
    %3666 = vmatpush1.msra.mxu0 0.0
    %3667 = vmatprep.subr.mxu0 0.0
    %3668 = vmatpush1.msra.mxu0 0.0
    %3669 = vmatprep.subr.mxu0 0.0
    %3670 = vmatpush1.msra.mxu0 0.0
    %3671 = vmatprep.subr.mxu0 0.0
    %3672 = vmatpush1.msra.mxu0 0.0
    %3673 = vmatprep.subr.mxu0 0.0
    %3674 = vmatpush1.msra.mxu0 0.0
    %3675 = vmatprep.mubr.f32.mxu0 0.0
    %3676 = vmatmul.mubr.f32.gmra.mrb[0].mxu0 %v3609
    %v3677 = vpop.f32.mrb[0].mxu0
    %v3678 = vadd.f32 0.0, %v3677
    %v3679 = vpop.f32.mrb[0].mxu0
    %3680 = vdwg.mxu0
    %v3682 = vsel %vm1197, %v3461, 0
    %3684 = vmatprep.subr.mxu0 0.0
    %3685 = vmatpush1.msra.mxu0 %v3103
    %3686 = vmatprep.subr.mxu0 0.0
    %3687 = vmatpush1.msra.mxu0 0.0
    %3688 = vmatprep.subr.mxu0 0.0
    %3689 = vmatpush1.msra.mxu0 0.0
    %3690 = vmatprep.subr.mxu0 0.0
    %3691 = vmatpush1.msra.mxu0 0.0
    %3692 = vmatprep.subr.mxu0 0.0
    %3693 = vmatpush1.msra.mxu0 0.0
    %3694 = vmatprep.subr.mxu0 0.0
    %3695 = vmatpush1.msra.mxu0 0.0
    %3696 = vmatprep.subr.mxu0 0.0
    %3697 = vmatpush1.msra.mxu0 0.0
    %3698 = vmatprep.subr.mxu0 0.0
    %3699 = vmatpush1.msra.mxu0 0.0
    %3700 = vmatprep.subr.mxu0 0.0
    %3701 = vmatpush1.msra.mxu0 0.0
    %3702 = vmatprep.subr.mxu0 0.0
    %3703 = vmatpush1.msra.mxu0 0.0
    %3704 = vmatprep.subr.mxu0 0.0
    %3705 = vmatpush1.msra.mxu0 0.0
    %3706 = vmatprep.subr.mxu0 0.0
    %3707 = vmatpush1.msra.mxu0 0.0
    %3708 = vmatprep.subr.mxu0 0.0
    %3709 = vmatpush1.msra.mxu0 0.0
    %3710 = vmatprep.subr.mxu0 0.0
    %3711 = vmatpush1.msra.mxu0 0.0
    %3712 = vmatprep.subr.mxu0 0.0
    %3713 = vmatpush1.msra.mxu0 0.0
    %3714 = vmatprep.subr.mxu0 0.0
    %3715 = vmatpush1.msra.mxu0 0.0
    %3716 = vmatprep.subr.mxu0 0.0
    %3717 = vmatpush1.msra.mxu0 0.0
    %3718 = vmatprep.subr.mxu0 0.0
    %3719 = vmatpush1.msra.mxu0 0.0
    %3720 = vmatprep.subr.mxu0 0.0
    %3721 = vmatpush1.msra.mxu0 0.0
    %3722 = vmatprep.subr.mxu0 0.0
    %3723 = vmatpush1.msra.mxu0 0.0
    %3724 = vmatprep.subr.mxu0 0.0
    %3725 = vmatpush1.msra.mxu0 0.0
    %3726 = vmatprep.subr.mxu0 0.0
    %3727 = vmatpush1.msra.mxu0 0.0
    %3728 = vmatprep.subr.mxu0 0.0
    %3729 = vmatpush1.msra.mxu0 0.0
    %3730 = vmatprep.subr.mxu0 0.0
    %3731 = vmatpush1.msra.mxu0 0.0
    %3732 = vmatprep.subr.mxu0 0.0
    %3733 = vmatpush1.msra.mxu0 0.0
    %3734 = vmatprep.subr.mxu0 0.0
    %3735 = vmatpush1.msra.mxu0 0.0
    %3736 = vmatprep.subr.mxu0 0.0
    %3737 = vmatpush1.msra.mxu0 0.0
    %3738 = vmatprep.subr.mxu0 0.0
    %3739 = vmatpush1.msra.mxu0 0.0
    %3740 = vmatprep.subr.mxu0 0.0
    %3741 = vmatpush1.msra.mxu0 0.0
    %3742 = vmatprep.subr.mxu0 0.0
    %3743 = vmatpush1.msra.mxu0 0.0
    %3744 = vmatprep.subr.mxu0 0.0
    %3745 = vmatpush1.msra.mxu0 0.0
    %3746 = vmatprep.subr.mxu0 0.0
    %3747 = vmatpush1.msra.mxu0 0.0
    %3748 = vmatprep.mubr.f32.mxu0 0.0
    %3749 = vmatmul.mubr.f32.gmra.mrb[0].mxu0 %v3682
    %v3750 = vpop.f32.mrb[0].mxu0
    %v3751 = vadd.f32 0.0, %v3750
    %v3752 = vpop.f32.mrb[0].mxu0
    %3753 = vdwg.mxu0
    %v3755 = vsel %vm1197, %v3532, 0
    %3757 = vmatprep.subr.mxu0 0.0
    %3758 = vmatpush1.msra.mxu0 %v254
    %3759 = vmatprep.subr.mxu0 0.0
    %3760 = vmatpush1.msra.mxu0 0.0
    %3761 = vmatprep.subr.mxu0 0.0
    %3762 = vmatpush1.msra.mxu0 0.0
    %3763 = vmatprep.subr.mxu0 0.0
    %3764 = vmatpush1.msra.mxu0 0.0
    %3765 = vmatprep.subr.mxu0 0.0
    %3766 = vmatpush1.msra.mxu0 0.0
    %3767 = vmatprep.subr.mxu0 0.0
    %3768 = vmatpush1.msra.mxu0 0.0
    %3769 = vmatprep.subr.mxu0 0.0
    %3770 = vmatpush1.msra.mxu0 0.0
    %3771 = vmatprep.subr.mxu0 0.0
    %3772 = vmatpush1.msra.mxu0 0.0
    %3773 = vmatprep.subr.mxu0 0.0
    %3774 = vmatpush1.msra.mxu0 0.0
    %3775 = vmatprep.subr.mxu0 0.0
    %3776 = vmatpush1.msra.mxu0 0.0
    %3777 = vmatprep.subr.mxu0 0.0
    %3778 = vmatpush1.msra.mxu0 0.0
    %3779 = vmatprep.subr.mxu0 0.0
    %3780 = vmatpush1.msra.mxu0 0.0
    %3781 = vmatprep.subr.mxu0 0.0
    %3782 = vmatpush1.msra.mxu0 0.0
    %3783 = vmatprep.subr.mxu0 0.0
    %3784 = vmatpush1.msra.mxu0 0.0
    %3785 = vmatprep.subr.mxu0 0.0
    %3786 = vmatpush1.msra.mxu0 0.0
    %3787 = vmatprep.subr.mxu0 0.0
    %3788 = vmatpush1.msra.mxu0 0.0
    %3789 = vmatprep.subr.mxu0 0.0
    %3790 = vmatpush1.msra.mxu0 0.0
    %3791 = vmatprep.subr.mxu0 0.0
    %3792 = vmatpush1.msra.mxu0 0.0
    %3793 = vmatprep.subr.mxu0 0.0
    %3794 = vmatpush1.msra.mxu0 0.0
    %3795 = vmatprep.subr.mxu0 0.0
    %3796 = vmatpush1.msra.mxu0 0.0
    %3797 = vmatprep.subr.mxu0 0.0
    %3798 = vmatpush1.msra.mxu0 0.0
    %3799 = vmatprep.subr.mxu0 0.0
    %3800 = vmatpush1.msra.mxu0 0.0
    %3801 = vmatprep.subr.mxu0 0.0
    %3802 = vmatpush1.msra.mxu0 0.0
    %3803 = vmatprep.subr.mxu0 0.0
    %3804 = vmatpush1.msra.mxu0 0.0
    %3805 = vmatprep.subr.mxu0 0.0
    %3806 = vmatpush1.msra.mxu0 0.0
    %3807 = vmatprep.subr.mxu0 0.0
    %3808 = vmatpush1.msra.mxu0 0.0
    %3809 = vmatprep.subr.mxu0 0.0
    %3810 = vmatpush1.msra.mxu0 0.0
    %3811 = vmatprep.subr.mxu0 0.0
    %3812 = vmatpush1.msra.mxu0 0.0
    %3813 = vmatprep.subr.mxu0 0.0
    %3814 = vmatpush1.msra.mxu0 0.0
    %3815 = vmatprep.subr.mxu0 0.0
    %3816 = vmatpush1.msra.mxu0 0.0
    %3817 = vmatprep.subr.mxu0 0.0
    %3818 = vmatpush1.msra.mxu0 0.0
    %3819 = vmatprep.subr.mxu0 0.0
    %3820 = vmatpush1.msra.mxu0 0.0
    %3821 = vmatprep.mubr.f32.mxu0 0.0
    %3822 = vmatmul.mubr.f32.gmra.mrb[0].mxu0 %v3755
    %v3823 = vpop.f32.mrb[0].mxu0
    %v3824 = vadd.f32 0.0, %v3823
    %v3825 = vpop.f32.mrb[0].mxu0
    %3826 = vdwg.mxu0
    %v3828 = vsel %vm1197, %v3605, 0
    %3830 = vmatprep.subr.mxu0 0.0
    %3831 = vmatpush1.msra.mxu0 %v255
    %3832 = vmatprep.subr.mxu0 0.0
    %3833 = vmatpush1.msra.mxu0 0.0
    %3834 = vmatprep.subr.mxu0 0.0
    %3835 = vmatpush1.msra.mxu0 0.0
    %3836 = vmatprep.subr.mxu0 0.0
    %3837 = vmatpush1.msra.mxu0 0.0
    %3838 = vmatprep.subr.mxu0 0.0
    %3839 = vmatpush1.msra.mxu0 0.0
    %3840 = vmatprep.subr.mxu0 0.0
    %3841 = vmatpush1.msra.mxu0 0.0
    %3842 = vmatprep.subr.mxu0 0.0
    %3843 = vmatpush1.msra.mxu0 0.0
    %3844 = vmatprep.subr.mxu0 0.0
    %3845 = vmatpush1.msra.mxu0 0.0
    %3846 = vmatprep.subr.mxu0 0.0
    %3847 = vmatpush1.msra.mxu0 0.0
    %3848 = vmatprep.subr.mxu0 0.0
    %3849 = vmatpush1.msra.mxu0 0.0
    %3850 = vmatprep.subr.mxu0 0.0
    %3851 = vmatpush1.msra.mxu0 0.0
    %3852 = vmatprep.subr.mxu0 0.0
    %3853 = vmatpush1.msra.mxu0 0.0
    %3854 = vmatprep.subr.mxu0 0.0
    %3855 = vmatpush1.msra.mxu0 0.0
    %3856 = vmatprep.subr.mxu0 0.0
    %3857 = vmatpush1.msra.mxu0 0.0
    %3858 = vmatprep.subr.mxu0 0.0
    %3859 = vmatpush1.msra.mxu0 0.0
    %3860 = vmatprep.subr.mxu0 0.0
    %3861 = vmatpush1.msra.mxu0 0.0
    %3862 = vmatprep.subr.mxu0 0.0
    %3863 = vmatpush1.msra.mxu0 0.0
    %3864 = vmatprep.subr.mxu0 0.0
    %3865 = vmatpush1.msra.mxu0 0.0
    %3866 = vmatprep.subr.mxu0 0.0
    %3867 = vmatpush1.msra.mxu0 0.0
    %3868 = vmatprep.subr.mxu0 0.0
    %3869 = vmatpush1.msra.mxu0 0.0
    %3870 = vmatprep.subr.mxu0 0.0
    %3871 = vmatpush1.msra.mxu0 0.0
    %3872 = vmatprep.subr.mxu0 0.0
    %3873 = vmatpush1.msra.mxu0 0.0
    %3874 = vmatprep.subr.mxu0 0.0
    %3875 = vmatpush1.msra.mxu0 0.0
    %3876 = vmatprep.subr.mxu0 0.0
    %3877 = vmatpush1.msra.mxu0 0.0
    %3878 = vmatprep.subr.mxu0 0.0
    %3879 = vmatpush1.msra.mxu0 0.0
    %3880 = vmatprep.subr.mxu0 0.0
    %3881 = vmatpush1.msra.mxu0 0.0
    %3882 = vmatprep.subr.mxu0 0.0
    %3883 = vmatpush1.msra.mxu0 0.0
    %3884 = vmatprep.subr.mxu0 0.0
    %3885 = vmatpush1.msra.mxu0 0.0
    %3886 = vmatprep.subr.mxu0 0.0
    %3887 = vmatpush1.msra.mxu0 0.0
    %3888 = vmatprep.subr.mxu0 0.0
    %3889 = vmatpush1.msra.mxu0 0.0
    %3890 = vmatprep.subr.mxu0 0.0
    %3891 = vmatpush1.msra.mxu0 0.0
    %3892 = vmatprep.subr.mxu0 0.0
    %3893 = vmatpush1.msra.mxu0 0.0
    %3894 = vmatprep.mubr.f32.mxu0 0.0
    %3895 = vmatmul.mubr.f32.gmra.mrb[0].mxu0 %v3828
    %v3896 = vpop.f32.mrb[0].mxu0
    %v3897 = vadd.f32 0.0, %v3896
    %v3898 = vpop.f32.mrb[0].mxu0
    %3899 = vdwg.mxu0
    %v3901 = vsel %vm1197, %v3678, 0
    %3903 = vmatprep.subr.mxu0 0.0
    %3904 = vmatpush1.msra.mxu0 %v256
    %3905 = vmatprep.subr.mxu0 0.0
    %3906 = vmatpush1.msra.mxu0 0.0
    %3907 = vmatprep.subr.mxu0 0.0
    %3908 = vmatpush1.msra.mxu0 0.0
    %3909 = vmatprep.subr.mxu0 0.0
    %3910 = vmatpush1.msra.mxu0 0.0
    %3911 = vmatprep.subr.mxu0 0.0
    %3912 = vmatpush1.msra.mxu0 0.0
    %3913 = vmatprep.subr.mxu0 0.0
    %3914 = vmatpush1.msra.mxu0 0.0
    %3915 = vmatprep.subr.mxu0 0.0
    %3916 = vmatpush1.msra.mxu0 0.0
    %3917 = vmatprep.subr.mxu0 0.0
    %3918 = vmatpush1.msra.mxu0 0.0
    %3919 = vmatprep.subr.mxu0 0.0
    %3920 = vmatpush1.msra.mxu0 0.0
    %3921 = vmatprep.subr.mxu0 0.0
    %3922 = vmatpush1.msra.mxu0 0.0
    %3923 = vmatprep.subr.mxu0 0.0
    %3924 = vmatpush1.msra.mxu0 0.0
    %3925 = vmatprep.subr.mxu0 0.0
    %3926 = vmatpush1.msra.mxu0 0.0
    %3927 = vmatprep.subr.mxu0 0.0
    %3928 = vmatpush1.msra.mxu0 0.0
    %3929 = vmatprep.subr.mxu0 0.0
    %3930 = vmatpush1.msra.mxu0 0.0
    %3931 = vmatprep.subr.mxu0 0.0
    %3932 = vmatpush1.msra.mxu0 0.0
    %3933 = vmatprep.subr.mxu0 0.0
    %3934 = vmatpush1.msra.mxu0 0.0
    %3935 = vmatprep.subr.mxu0 0.0
    %3936 = vmatpush1.msra.mxu0 0.0
    %3937 = vmatprep.subr.mxu0 0.0
    %3938 = vmatpush1.msra.mxu0 0.0
    %3939 = vmatprep.subr.mxu0 0.0
    %3940 = vmatpush1.msra.mxu0 0.0
    %3941 = vmatprep.subr.mxu0 0.0
    %3942 = vmatpush1.msra.mxu0 0.0
    %3943 = vmatprep.subr.mxu0 0.0
    %3944 = vmatpush1.msra.mxu0 0.0
    %3945 = vmatprep.subr.mxu0 0.0
    %3946 = vmatpush1.msra.mxu0 0.0
    %3947 = vmatprep.subr.mxu0 0.0
    %3948 = vmatpush1.msra.mxu0 0.0
    %3949 = vmatprep.subr.mxu0 0.0
    %3950 = vmatpush1.msra.mxu0 0.0
    %3951 = vmatprep.subr.mxu0 0.0
    %3952 = vmatpush1.msra.mxu0 0.0
    %3953 = vmatprep.subr.mxu0 0.0
    %3954 = vmatpush1.msra.mxu0 0.0
    %3955 = vmatprep.subr.mxu0 0.0
    %3956 = vmatpush1.msra.mxu0 0.0
    %3957 = vmatprep.subr.mxu0 0.0
    %3958 = vmatpush1.msra.mxu0 0.0
    %3959 = vmatprep.subr.mxu0 0.0
    %3960 = vmatpush1.msra.mxu0 0.0
    %3961 = vmatprep.subr.mxu0 0.0
    %3962 = vmatpush1.msra.mxu0 0.0
    %3963 = vmatprep.subr.mxu0 0.0
    %3964 = vmatpush1.msra.mxu0 0.0
    %3965 = vmatprep.subr.mxu0 0.0
    %3966 = vmatpush1.msra.mxu0 0.0
    %3967 = vmatprep.mubr.f32.mxu0 0.0
    %3968 = vmatmul.mubr.f32.gmra.mrb[0].mxu0 %v3901
    %v3969 = vpop.f32.mrb[0].mxu0
    %v3970 = vadd.f32 0.0, %v3969
    %v3971 = vpop.f32.mrb[0].mxu0
    %3972 = vdwg.mxu0
    %v3974 = vsel %vm1197, %v3751, 0
    %3976 = vmatprep.subr.mxu0 0.0
    %3977 = vmatpush1.msra.mxu0 %v257
    %3978 = vmatprep.subr.mxu0 0.0
    %3979 = vmatpush1.msra.mxu0 0.0
    %3980 = vmatprep.subr.mxu0 0.0
    %3981 = vmatpush1.msra.mxu0 0.0
    %3982 = vmatprep.subr.mxu0 0.0
    %3983 = vmatpush1.msra.mxu0 0.0
    %3984 = vmatprep.subr.mxu0 0.0
    %3985 = vmatpush1.msra.mxu0 0.0
    %3986 = vmatprep.subr.mxu0 0.0
    %3987 = vmatpush1.msra.mxu0 0.0
    %3988 = vmatprep.subr.mxu0 0.0
    %3989 = vmatpush1.msra.mxu0 0.0
    %3990 = vmatprep.subr.mxu0 0.0
    %3991 = vmatpush1.msra.mxu0 0.0
    %3992 = vmatprep.subr.mxu0 0.0
    %3993 = vmatpush1.msra.mxu0 0.0
    %3994 = vmatprep.subr.mxu0 0.0
    %3995 = vmatpush1.msra.mxu0 0.0
    %3996 = vmatprep.subr.mxu0 0.0
    %3997 = vmatpush1.msra.mxu0 0.0
    %3998 = vmatprep.subr.mxu0 0.0
    %3999 = vmatpush1.msra.mxu0 0.0
    %4000 = vmatprep.subr.mxu0 0.0
    %4001 = vmatpush1.msra.mxu0 0.0
    %4002 = vmatprep.subr.mxu0 0.0
    %4003 = vmatpush1.msra.mxu0 0.0
    %4004 = vmatprep.subr.mxu0 0.0
    %4005 = vmatpush1.msra.mxu0 0.0
    %4006 = vmatprep.subr.mxu0 0.0
    %4007 = vmatpush1.msra.mxu0 0.0
    %4008 = vmatprep.subr.mxu0 0.0
    %4009 = vmatpush1.msra.mxu0 0.0
    %4010 = vmatprep.subr.mxu0 0.0
    %4011 = vmatpush1.msra.mxu0 0.0
    %4012 = vmatprep.subr.mxu0 0.0
    %4013 = vmatpush1.msra.mxu0 0.0
    %4014 = vmatprep.subr.mxu0 0.0
    %4015 = vmatpush1.msra.mxu0 0.0
    %4016 = vmatprep.subr.mxu0 0.0
    %4017 = vmatpush1.msra.mxu0 0.0
    %4018 = vmatprep.subr.mxu0 0.0
    %4019 = vmatpush1.msra.mxu0 0.0
    %4020 = vmatprep.subr.mxu0 0.0
    %4021 = vmatpush1.msra.mxu0 0.0
    %4022 = vmatprep.subr.mxu0 0.0
    %4023 = vmatpush1.msra.mxu0 0.0
    %4024 = vmatprep.subr.mxu0 0.0
    %4025 = vmatpush1.msra.mxu0 0.0
    %4026 = vmatprep.subr.mxu0 0.0
    %4027 = vmatpush1.msra.mxu0 0.0
    %4028 = vmatprep.subr.mxu0 0.0
    %4029 = vmatpush1.msra.mxu0 0.0
    %4030 = vmatprep.subr.mxu0 0.0
    %4031 = vmatpush1.msra.mxu0 0.0
    %4032 = vmatprep.subr.mxu0 0.0
    %4033 = vmatpush1.msra.mxu0 0.0
    %4034 = vmatprep.subr.mxu0 0.0
    %4035 = vmatpush1.msra.mxu0 0.0
    %4036 = vmatprep.subr.mxu0 0.0
    %4037 = vmatpush1.msra.mxu0 0.0
    %4038 = vmatprep.subr.mxu0 0.0
    %4039 = vmatpush1.msra.mxu0 0.0
    %4040 = vmatprep.mubr.f32.mxu0 0.0
    %4041 = vmatmul.mubr.f32.gmra.mrb[0].mxu0 %v3974
    %v4042 = vpop.f32.mrb[0].mxu0
    %v4043 = vadd.f32 0.0, %v4042
    %v4044 = vpop.f32.mrb[0].mxu0
    %4045 = vdwg.mxu0
    %v4046 = vsel %vm305, %v3824, 0.0
    %v4047 = vsel %vm305, %v3897, 0.0
    %v4048 = vadd.f32 %v4046, %v4047
    %v4049 = vsel %vm305, %v3970, 0.0
    %v4050 = vadd.f32 %v4048, %v4049
    %v4051 = vsel %vm305, %v4043, 0.0
    %v4052 = vadd.f32 %v4050, %v4051
    %v4054 = vlaneseq
    %v4055 = vshrl.u32 %v4054, 7
    %v4056 = vsub.s32 0, %v4055
    %v4057 = vrot.slane %v258, %v4056
    %v4059 = vadd.f32 %v4052, %v4057
    %v4060 = vadd.f32 %v4059, %v2187
    %v4061 = vsel %vm305, %v4060, 0.0
    %4062 = vadd.xlane.f32.xlu0 %v4061
    %v4063 = vpop.xlane.xlu0 %4062
    %v4064 = vmul.f32 %v4063, %v2156
    %v4065 = vsub.f32 %v4060, %v4064
    %v4066 = vmul.f32 %v4065, %v4065
    %v4067 = vsel %vm305, %v4066, 0.0
    %4068 = vadd.xlane.f32.xlu0 %v4067
    %v4069 = vpop.xlane.xlu0 %4068
    %v4070 = vmul.f32 %v4069, 0.032258064
    %v4071 = vrsqrt.pop %v4070
    %v4072 = vmul.f32 %v4070, %v4071
    %vm4073 = vcmp.eq.f32.partialorder %v4070, inf
    %v4074 = vsel %vm4073, %v4070, %v4072
    %vm4075 = vcmp.eq.f32.partialorder %v4070, 0.0
    %v4076 = vand.u32 %v4070, 2147483648
    %v4077 = vsel %vm4075, %v4076, %v4074
    %v4079 = vlaneseq
    %v4080 = vshrl.u32 %v4079, 7
    %v4081 = vsub.s32 0, %v4080
    %v4082 = vrot.slane %v259, %v4081
    %v4084 = vmul.f32 %v4082, %v4065
    %v4085 = vadd.f32 %v4077, 1e-06
    %v4086 = vrcp.pop %v4085
    %v4087 = vmul.f32 %v4084, %v4086
    %v4089 = vlaneseq
    %v4090 = vshrl.u32 %v4089, 7
    %v4091 = vsub.s32 0, %v4090
    %v4092 = vrot.slane %v260, %v4091
    %v4094 = vadd.f32 %v4087, %v4092
    %v4096 = vlaneseq
    %v4097 = vshrl.u32 %v4096, 7
    %v4098 = vsub.s32 0, %v4097
    %v4099 = vrot.slane %v265, %v4098
    %v4102 = vsel %vm305, %v4094, 0
    %4104 = vmatprep.subr.mxu0 0.0
    %4105 = vmatpush1.msra.mxu0 %v261
    %4106 = vmatprep.subr.mxu0 0.0
    %4107 = vmatpush1.msra.mxu0 %v262
    %4108 = vmatprep.subr.mxu0 0.0
    %4109 = vmatpush1.msra.mxu0 %v263
    %4110 = vmatprep.subr.mxu0 0.0
    %4111 = vmatpush1.msra.mxu0 %v264
    %4112 = vmatprep.subr.mxu0 0.0
    %4113 = vmatpush1.msra.mxu0 0.0
    %4114 = vmatprep.subr.mxu0 0.0
    %4115 = vmatpush1.msra.mxu0 0.0
    %4116 = vmatprep.subr.mxu0 0.0
    %4117 = vmatpush1.msra.mxu0 0.0
    %4118 = vmatprep.subr.mxu0 0.0
    %4119 = vmatpush1.msra.mxu0 0.0
    %4120 = vmatprep.subr.mxu0 0.0
    %4121 = vmatpush1.msra.mxu0 0.0
    %4122 = vmatprep.subr.mxu0 0.0
    %4123 = vmatpush1.msra.mxu0 0.0
    %4124 = vmatprep.subr.mxu0 0.0
    %4125 = vmatpush1.msra.mxu0 0.0
    %4126 = vmatprep.subr.mxu0 0.0
    %4127 = vmatpush1.msra.mxu0 0.0
    %4128 = vmatprep.subr.mxu0 0.0
    %4129 = vmatpush1.msra.mxu0 0.0
    %4130 = vmatprep.subr.mxu0 0.0
    %4131 = vmatpush1.msra.mxu0 0.0
    %4132 = vmatprep.subr.mxu0 0.0
    %4133 = vmatpush1.msra.mxu0 0.0
    %4134 = vmatprep.subr.mxu0 0.0
    %4135 = vmatpush1.msra.mxu0 0.0
    %4136 = vmatprep.subr.mxu0 0.0
    %4137 = vmatpush1.msra.mxu0 0.0
    %4138 = vmatprep.subr.mxu0 0.0
    %4139 = vmatpush1.msra.mxu0 0.0
    %4140 = vmatprep.subr.mxu0 0.0
    %4141 = vmatpush1.msra.mxu0 0.0
    %4142 = vmatprep.subr.mxu0 0.0
    %4143 = vmatpush1.msra.mxu0 0.0
    %4144 = vmatprep.subr.mxu0 0.0
    %4145 = vmatpush1.msra.mxu0 0.0
    %4146 = vmatprep.subr.mxu0 0.0
    %4147 = vmatpush1.msra.mxu0 0.0
    %4148 = vmatprep.subr.mxu0 0.0
    %4149 = vmatpush1.msra.mxu0 0.0
    %4150 = vmatprep.subr.mxu0 0.0
    %4151 = vmatpush1.msra.mxu0 0.0
    %4152 = vmatprep.subr.mxu0 0.0
    %4153 = vmatpush1.msra.mxu0 0.0
    %4154 = vmatprep.subr.mxu0 0.0
    %4155 = vmatpush1.msra.mxu0 0.0
    %4156 = vmatprep.subr.mxu0 0.0
    %4157 = vmatpush1.msra.mxu0 0.0
    %4158 = vmatprep.subr.mxu0 0.0
    %4159 = vmatpush1.msra.mxu0 0.0
    %4160 = vmatprep.subr.mxu0 0.0
    %4161 = vmatpush1.msra.mxu0 0.0
    %4162 = vmatprep.subr.mxu0 0.0
    %4163 = vmatpush1.msra.mxu0 0.0
    %4164 = vmatprep.subr.mxu0 0.0
    %4165 = vmatpush1.msra.mxu0 0.0
    %4166 = vmatprep.subr.mxu0 0.0
    %4167 = vmatpush1.msra.mxu0 0.0
    %4168 = vmatprep.mubr.f32.mxu0 0.0
    %4169 = vmatmul.mubr.f32.gmra.mrb[0].mxu0 %v4102
    %v4170 = vpop.f32.mrb[0].mxu0
    %v4171 = vadd.f32 %v4099, %v4170
    %v4172 = vpop.f32.mrb[0].mxu0
    %4173 = vdwg.mxu0
    %v4174 = vmax.f32 %v4171, 0.0
    %v4176 = vlaneseq
    %v4177 = vshrl.u32 %v4176, 7
    %v4178 = vsub.s32 0, %v4177
    %v4179 = vrot.slane %v274, %v4178
    %vm4181 = vcmask 523264
    %v4183 = vsel %vm4181, %v4174, 0
    %4185 = vmatprep.subr.mxu0 0.0
    %4186 = vmatpush1.msra.mxu0 %v266
    %4187 = vmatprep.subr.mxu0 0.0
    %4188 = vmatpush1.msra.mxu0 %v267
    %4189 = vmatprep.subr.mxu0 0.0
    %4190 = vmatpush1.msra.mxu0 %v268
    %4191 = vmatprep.subr.mxu0 0.0
    %4192 = vmatpush1.msra.mxu0 %v269
    %4193 = vmatprep.subr.mxu0 0.0
    %4194 = vmatpush1.msra.mxu0 %v270
    %4195 = vmatprep.subr.mxu0 0.0
    %4196 = vmatpush1.msra.mxu0 %v271
    %4197 = vmatprep.subr.mxu0 0.0
    %4198 = vmatpush1.msra.mxu0 %v272
    %4199 = vmatprep.subr.mxu0 0.0
    %4200 = vmatpush1.msra.mxu0 %v273
    %4201 = vmatprep.subr.mxu0 0.0
    %4202 = vmatpush1.msra.mxu0 0.0
    %4203 = vmatprep.subr.mxu0 0.0
    %4204 = vmatpush1.msra.mxu0 0.0
    %4205 = vmatprep.subr.mxu0 0.0
    %4206 = vmatpush1.msra.mxu0 0.0
    %4207 = vmatprep.subr.mxu0 0.0
    %4208 = vmatpush1.msra.mxu0 0.0
    %4209 = vmatprep.subr.mxu0 0.0
    %4210 = vmatpush1.msra.mxu0 0.0
    %4211 = vmatprep.subr.mxu0 0.0
    %4212 = vmatpush1.msra.mxu0 0.0
    %4213 = vmatprep.subr.mxu0 0.0
    %4214 = vmatpush1.msra.mxu0 0.0
    %4215 = vmatprep.subr.mxu0 0.0
    %4216 = vmatpush1.msra.mxu0 0.0
    %4217 = vmatprep.subr.mxu0 0.0
    %4218 = vmatpush1.msra.mxu0 0.0
    %4219 = vmatprep.subr.mxu0 0.0
    %4220 = vmatpush1.msra.mxu0 0.0
    %4221 = vmatprep.subr.mxu0 0.0
    %4222 = vmatpush1.msra.mxu0 0.0
    %4223 = vmatprep.subr.mxu0 0.0
    %4224 = vmatpush1.msra.mxu0 0.0
    %4225 = vmatprep.subr.mxu0 0.0
    %4226 = vmatpush1.msra.mxu0 0.0
    %4227 = vmatprep.subr.mxu0 0.0
    %4228 = vmatpush1.msra.mxu0 0.0
    %4229 = vmatprep.subr.mxu0 0.0
    %4230 = vmatpush1.msra.mxu0 0.0
    %4231 = vmatprep.subr.mxu0 0.0
    %4232 = vmatpush1.msra.mxu0 0.0
    %4233 = vmatprep.subr.mxu0 0.0
    %4234 = vmatpush1.msra.mxu0 0.0
    %4235 = vmatprep.subr.mxu0 0.0
    %4236 = vmatpush1.msra.mxu0 0.0
    %4237 = vmatprep.subr.mxu0 0.0
    %4238 = vmatpush1.msra.mxu0 0.0
    %4239 = vmatprep.subr.mxu0 0.0
    %4240 = vmatpush1.msra.mxu0 0.0
    %4241 = vmatprep.subr.mxu0 0.0
    %4242 = vmatpush1.msra.mxu0 0.0
    %4243 = vmatprep.subr.mxu0 0.0
    %4244 = vmatpush1.msra.mxu0 0.0
    %4245 = vmatprep.subr.mxu0 0.0
    %4246 = vmatpush1.msra.mxu0 0.0
    %4247 = vmatprep.subr.mxu0 0.0
    %4248 = vmatpush1.msra.mxu0 0.0
    %4249 = vmatprep.mubr.f32.mxu0 0.0
    %4250 = vmatmul.mubr.f32.gmra.mrb[0].mxu0 %v4183
    %v4251 = vpop.f32.mrb[0].mxu0
    %v4252 = vadd.f32 %v4179, %v4251
    %v4253 = vpop.f32.mrb[0].mxu0
    %4254 = vdwg.mxu0
    %v4255 = vadd.f32 %v4252, %v4094
    %v4256 = vsel %vm305, %v4255, 0.0
    %4257 = vadd.xlane.f32.xlu0 %v4256
    %v4258 = vpop.xlane.xlu0 %4257
    %v4259 = vmul.f32 %v4258, %v2156
    %v4260 = vsub.f32 %v4255, %v4259
    %v4261 = vmul.f32 %v4260, %v4260
    %v4262 = vsel %vm305, %v4261, 0.0
    %4263 = vadd.xlane.f32.xlu0 %v4262
    %v4264 = vpop.xlane.xlu0 %4263
    %v4265 = vmul.f32 %v4264, 0.032258064
    %v4266 = vrsqrt.pop %v4265
    %v4267 = vmul.f32 %v4265, %v4266
    %vm4268 = vcmp.eq.f32.partialorder %v4265, inf
    %v4269 = vsel %vm4268, %v4265, %v4267
    %vm4270 = vcmp.eq.f32.partialorder %v4265, 0.0
    %v4271 = vand.u32 %v4265, 2147483648
    %v4272 = vsel %vm4270, %v4271, %v4269
    %v4274 = vlaneseq
    %v4275 = vshrl.u32 %v4274, 7
    %v4276 = vsub.s32 0, %v4275
    %v4277 = vrot.slane %v275, %v4276
    %v4279 = vmul.f32 %v4277, %v4260
    %v4280 = vadd.f32 %v4272, 1e-06
    %v4281 = vrcp.pop %v4280
    %v4282 = vmul.f32 %v4279, %v4281
    %v4284 = vlaneseq
    %v4285 = vshrl.u32 %v4284, 7
    %v4286 = vsub.s32 0, %v4285
    %v4287 = vrot.slane %v276, %v4286
    %v4289 = vadd.f32 %v4282, %v4287
    %4290 = vst.msk [vmem:[#allocation2] sm:$0xff] %vm305, %v4289
    %s4291 = scalar_lea.vmem %s1, 8
    %v4292 = vld [vmem:[%s4291] sm:$0xff]
    %s4293 = scalar_lea.vmem %s3, 8
    %v4294 = vld [vmem:[%s4293] sm:$0xff]
    %s4295 = scalar_lea.vmem %s5, 8
    %v4296 = vld [vmem:[%s4295] sm:$0xff]
    %s4297 = scalar_lea.vmem %s7, 8
    %v4298 = vld [vmem:[%s4297] sm:$0xff]
    %v4300 = vsel %vm305, %v4292, 0
    %4302 = vmatprep.subr.mxu0 0.0
    %4303 = vmatpush1.msra.mxu0 %v127
    %4304 = vmatprep.subr.mxu0 0.0
    %4305 = vmatpush1.msra.mxu0 %v128
    %4306 = vmatprep.subr.mxu0 0.0
    %4307 = vmatpush1.msra.mxu0 %v129
    %4308 = vmatprep.subr.mxu0 0.0
    %4309 = vmatpush1.msra.mxu0 %v130
    %4310 = vmatprep.subr.mxu0 0.0
    %4311 = vmatpush1.msra.mxu0 0.0
    %4312 = vmatprep.subr.mxu0 0.0
    %4313 = vmatpush1.msra.mxu0 0.0
    %4314 = vmatprep.subr.mxu0 0.0
    %4315 = vmatpush1.msra.mxu0 0.0
    %4316 = vmatprep.subr.mxu0 0.0
    %4317 = vmatpush1.msra.mxu0 0.0
    %4318 = vmatprep.subr.mxu0 0.0
    %4319 = vmatpush1.msra.mxu0 0.0
    %4320 = vmatprep.subr.mxu0 0.0
    %4321 = vmatpush1.msra.mxu0 0.0
    %4322 = vmatprep.subr.mxu0 0.0
    %4323 = vmatpush1.msra.mxu0 0.0
    %4324 = vmatprep.subr.mxu0 0.0
    %4325 = vmatpush1.msra.mxu0 0.0
    %4326 = vmatprep.subr.mxu0 0.0
    %4327 = vmatpush1.msra.mxu0 0.0
    %4328 = vmatprep.subr.mxu0 0.0
    %4329 = vmatpush1.msra.mxu0 0.0
    %4330 = vmatprep.subr.mxu0 0.0
    %4331 = vmatpush1.msra.mxu0 0.0
    %4332 = vmatprep.subr.mxu0 0.0
    %4333 = vmatpush1.msra.mxu0 0.0
    %4334 = vmatprep.subr.mxu0 0.0
    %4335 = vmatpush1.msra.mxu0 0.0
    %4336 = vmatprep.subr.mxu0 0.0
    %4337 = vmatpush1.msra.mxu0 0.0
    %4338 = vmatprep.subr.mxu0 0.0
    %4339 = vmatpush1.msra.mxu0 0.0
    %4340 = vmatprep.subr.mxu0 0.0
    %4341 = vmatpush1.msra.mxu0 0.0
    %4342 = vmatprep.subr.mxu0 0.0
    %4343 = vmatpush1.msra.mxu0 0.0
    %4344 = vmatprep.subr.mxu0 0.0
    %4345 = vmatpush1.msra.mxu0 0.0
    %4346 = vmatprep.subr.mxu0 0.0
    %4347 = vmatpush1.msra.mxu0 0.0
    %4348 = vmatprep.subr.mxu0 0.0
    %4349 = vmatpush1.msra.mxu0 0.0
    %4350 = vmatprep.subr.mxu0 0.0
    %4351 = vmatpush1.msra.mxu0 0.0
    %4352 = vmatprep.subr.mxu0 0.0
    %4353 = vmatpush1.msra.mxu0 0.0
    %4354 = vmatprep.subr.mxu0 0.0
    %4355 = vmatpush1.msra.mxu0 0.0
    %4356 = vmatprep.subr.mxu0 0.0
    %4357 = vmatpush1.msra.mxu0 0.0
    %4358 = vmatprep.subr.mxu0 0.0
    %4359 = vmatpush1.msra.mxu0 0.0
    %4360 = vmatprep.subr.mxu0 0.0
    %4361 = vmatpush1.msra.mxu0 0.0
    %4362 = vmatprep.subr.mxu0 0.0
    %4363 = vmatpush1.msra.mxu0 0.0
    %4364 = vmatprep.subr.mxu0 0.0
    %4365 = vmatpush1.msra.mxu0 0.0
    %4366 = vmatprep.mubr.f32.mxu0 0.0
    %4367 = vmatmul.mubr.f32.gmra.mrb[0].mxu0 %v4300
    %v4368 = vpop.f32.mrb[0].mxu0
    %v4369 = vadd.f32 %v288, %v4368
    %v4370 = vpop.f32.mrb[0].mxu0
    %4371 = vdwg.mxu0
    %4372 = vmatprep.subr.mxu0 0.0
    %4373 = vmatpush1.msra.mxu0 %v131
    %4374 = vmatprep.subr.mxu0 0.0
    %4375 = vmatpush1.msra.mxu0 %v132
    %4376 = vmatprep.subr.mxu0 0.0
    %4377 = vmatpush1.msra.mxu0 %v133
    %4378 = vmatprep.subr.mxu0 0.0
    %4379 = vmatpush1.msra.mxu0 %v134
    %4380 = vmatprep.subr.mxu0 0.0
    %4381 = vmatpush1.msra.mxu0 0.0
    %4382 = vmatprep.subr.mxu0 0.0
    %4383 = vmatpush1.msra.mxu0 0.0
    %4384 = vmatprep.subr.mxu0 0.0
    %4385 = vmatpush1.msra.mxu0 0.0
    %4386 = vmatprep.subr.mxu0 0.0
    %4387 = vmatpush1.msra.mxu0 0.0
    %4388 = vmatprep.subr.mxu0 0.0
    %4389 = vmatpush1.msra.mxu0 0.0
    %4390 = vmatprep.subr.mxu0 0.0
    %4391 = vmatpush1.msra.mxu0 0.0
    %4392 = vmatprep.subr.mxu0 0.0
    %4393 = vmatpush1.msra.mxu0 0.0
    %4394 = vmatprep.subr.mxu0 0.0
    %4395 = vmatpush1.msra.mxu0 0.0
    %4396 = vmatprep.subr.mxu0 0.0
    %4397 = vmatpush1.msra.mxu0 0.0
    %4398 = vmatprep.subr.mxu0 0.0
    %4399 = vmatpush1.msra.mxu0 0.0
    %4400 = vmatprep.subr.mxu0 0.0
    %4401 = vmatpush1.msra.mxu0 0.0
    %4402 = vmatprep.subr.mxu0 0.0
    %4403 = vmatpush1.msra.mxu0 0.0
    %4404 = vmatprep.subr.mxu0 0.0
    %4405 = vmatpush1.msra.mxu0 0.0
    %4406 = vmatprep.subr.mxu0 0.0
    %4407 = vmatpush1.msra.mxu0 0.0
    %4408 = vmatprep.subr.mxu0 0.0
    %4409 = vmatpush1.msra.mxu0 0.0
    %4410 = vmatprep.subr.mxu0 0.0
    %4411 = vmatpush1.msra.mxu0 0.0
    %4412 = vmatprep.subr.mxu0 0.0
    %4413 = vmatpush1.msra.mxu0 0.0
    %4414 = vmatprep.subr.mxu0 0.0
    %4415 = vmatpush1.msra.mxu0 0.0
    %4416 = vmatprep.subr.mxu0 0.0
    %4417 = vmatpush1.msra.mxu0 0.0
    %4418 = vmatprep.subr.mxu0 0.0
    %4419 = vmatpush1.msra.mxu0 0.0
    %4420 = vmatprep.subr.mxu0 0.0
    %4421 = vmatpush1.msra.mxu0 0.0
    %4422 = vmatprep.subr.mxu0 0.0
    %4423 = vmatpush1.msra.mxu0 0.0
    %4424 = vmatprep.subr.mxu0 0.0
    %4425 = vmatpush1.msra.mxu0 0.0
    %4426 = vmatprep.subr.mxu0 0.0
    %4427 = vmatpush1.msra.mxu0 0.0
    %4428 = vmatprep.subr.mxu0 0.0
    %4429 = vmatpush1.msra.mxu0 0.0
    %4430 = vmatprep.subr.mxu0 0.0
    %4431 = vmatpush1.msra.mxu0 0.0
    %4432 = vmatprep.subr.mxu0 0.0
    %4433 = vmatpush1.msra.mxu0 0.0
    %4434 = vmatprep.subr.mxu0 0.0
    %4435 = vmatpush1.msra.mxu0 0.0
    %4436 = vmatprep.mubr.f32.mxu0 0.0
    %4437 = vmatmul.mubr.f32.gmra.mrb[0].mxu0 %v4300
    %v4438 = vpop.f32.mrb[0].mxu0
    %v4439 = vadd.f32 %v292, %v4438
    %v4440 = vpop.f32.mrb[0].mxu0
    %4441 = vdwg.mxu0
    %4442 = vmatprep.subr.mxu0 0.0
    %4443 = vmatpush1.msra.mxu0 %v135
    %4444 = vmatprep.subr.mxu0 0.0
    %4445 = vmatpush1.msra.mxu0 %v136
    %4446 = vmatprep.subr.mxu0 0.0
    %4447 = vmatpush1.msra.mxu0 %v137
    %4448 = vmatprep.subr.mxu0 0.0
    %4449 = vmatpush1.msra.mxu0 %v138
    %4450 = vmatprep.subr.mxu0 0.0
    %4451 = vmatpush1.msra.mxu0 0.0
    %4452 = vmatprep.subr.mxu0 0.0
    %4453 = vmatpush1.msra.mxu0 0.0
    %4454 = vmatprep.subr.mxu0 0.0
    %4455 = vmatpush1.msra.mxu0 0.0
    %4456 = vmatprep.subr.mxu0 0.0
    %4457 = vmatpush1.msra.mxu0 0.0
    %4458 = vmatprep.subr.mxu0 0.0
    %4459 = vmatpush1.msra.mxu0 0.0
    %4460 = vmatprep.subr.mxu0 0.0
    %4461 = vmatpush1.msra.mxu0 0.0
    %4462 = vmatprep.subr.mxu0 0.0
    %4463 = vmatpush1.msra.mxu0 0.0
    %4464 = vmatprep.subr.mxu0 0.0
    %4465 = vmatpush1.msra.mxu0 0.0
    %4466 = vmatprep.subr.mxu0 0.0
    %4467 = vmatpush1.msra.mxu0 0.0
    %4468 = vmatprep.subr.mxu0 0.0
    %4469 = vmatpush1.msra.mxu0 0.0
    %4470 = vmatprep.subr.mxu0 0.0
    %4471 = vmatpush1.msra.mxu0 0.0
    %4472 = vmatprep.subr.mxu0 0.0
    %4473 = vmatpush1.msra.mxu0 0.0
    %4474 = vmatprep.subr.mxu0 0.0
    %4475 = vmatpush1.msra.mxu0 0.0
    %4476 = vmatprep.subr.mxu0 0.0
    %4477 = vmatpush1.msra.mxu0 0.0
    %4478 = vmatprep.subr.mxu0 0.0
    %4479 = vmatpush1.msra.mxu0 0.0
    %4480 = vmatprep.subr.mxu0 0.0
    %4481 = vmatpush1.msra.mxu0 0.0
    %4482 = vmatprep.subr.mxu0 0.0
    %4483 = vmatpush1.msra.mxu0 0.0
    %4484 = vmatprep.subr.mxu0 0.0
    %4485 = vmatpush1.msra.mxu0 0.0
    %4486 = vmatprep.subr.mxu0 0.0
    %4487 = vmatpush1.msra.mxu0 0.0
    %4488 = vmatprep.subr.mxu0 0.0
    %4489 = vmatpush1.msra.mxu0 0.0
    %4490 = vmatprep.subr.mxu0 0.0
    %4491 = vmatpush1.msra.mxu0 0.0
    %4492 = vmatprep.subr.mxu0 0.0
    %4493 = vmatpush1.msra.mxu0 0.0
    %4494 = vmatprep.subr.mxu0 0.0
    %4495 = vmatpush1.msra.mxu0 0.0
    %4496 = vmatprep.subr.mxu0 0.0
    %4497 = vmatpush1.msra.mxu0 0.0
    %4498 = vmatprep.subr.mxu0 0.0
    %4499 = vmatpush1.msra.mxu0 0.0
    %4500 = vmatprep.subr.mxu0 0.0
    %4501 = vmatpush1.msra.mxu0 0.0
    %4502 = vmatprep.subr.mxu0 0.0
    %4503 = vmatpush1.msra.mxu0 0.0
    %4504 = vmatprep.subr.mxu0 0.0
    %4505 = vmatpush1.msra.mxu0 0.0
    %4506 = vmatprep.mubr.f32.mxu0 0.0
    %4507 = vmatmul.mubr.f32.gmra.mrb[0].mxu0 %v4300
    %v4508 = vpop.f32.mrb[0].mxu0
    %v4509 = vadd.f32 %v296, %v4508
    %v4510 = vpop.f32.mrb[0].mxu0
    %4511 = vdwg.mxu0
    %4512 = vmatprep.subr.mxu0 0.0
    %4513 = vmatpush1.msra.mxu0 %v139
    %4514 = vmatprep.subr.mxu0 0.0
    %4515 = vmatpush1.msra.mxu0 %v140
    %4516 = vmatprep.subr.mxu0 0.0
    %4517 = vmatpush1.msra.mxu0 %v141
    %4518 = vmatprep.subr.mxu0 0.0
    %4519 = vmatpush1.msra.mxu0 %v142
    %4520 = vmatprep.subr.mxu0 0.0
    %4521 = vmatpush1.msra.mxu0 0.0
    %4522 = vmatprep.subr.mxu0 0.0
    %4523 = vmatpush1.msra.mxu0 0.0
    %4524 = vmatprep.subr.mxu0 0.0
    %4525 = vmatpush1.msra.mxu0 0.0
    %4526 = vmatprep.subr.mxu0 0.0
    %4527 = vmatpush1.msra.mxu0 0.0
    %4528 = vmatprep.subr.mxu0 0.0
    %4529 = vmatpush1.msra.mxu0 0.0
    %4530 = vmatprep.subr.mxu0 0.0
    %4531 = vmatpush1.msra.mxu0 0.0
    %4532 = vmatprep.subr.mxu0 0.0
    %4533 = vmatpush1.msra.mxu0 0.0
    %4534 = vmatprep.subr.mxu0 0.0
    %4535 = vmatpush1.msra.mxu0 0.0
    %4536 = vmatprep.subr.mxu0 0.0
    %4537 = vmatpush1.msra.mxu0 0.0
    %4538 = vmatprep.subr.mxu0 0.0
    %4539 = vmatpush1.msra.mxu0 0.0
    %4540 = vmatprep.subr.mxu0 0.0
    %4541 = vmatpush1.msra.mxu0 0.0
    %4542 = vmatprep.subr.mxu0 0.0
    %4543 = vmatpush1.msra.mxu0 0.0
    %4544 = vmatprep.subr.mxu0 0.0
    %4545 = vmatpush1.msra.mxu0 0.0
    %4546 = vmatprep.subr.mxu0 0.0
    %4547 = vmatpush1.msra.mxu0 0.0
    %4548 = vmatprep.subr.mxu0 0.0
    %4549 = vmatpush1.msra.mxu0 0.0
    %4550 = vmatprep.subr.mxu0 0.0
    %4551 = vmatpush1.msra.mxu0 0.0
    %4552 = vmatprep.subr.mxu0 0.0
    %4553 = vmatpush1.msra.mxu0 0.0
    %4554 = vmatprep.subr.mxu0 0.0
    %4555 = vmatpush1.msra.mxu0 0.0
    %4556 = vmatprep.subr.mxu0 0.0
    %4557 = vmatpush1.msra.mxu0 0.0
    %4558 = vmatprep.subr.mxu0 0.0
    %4559 = vmatpush1.msra.mxu0 0.0
    %4560 = vmatprep.subr.mxu0 0.0
    %4561 = vmatpush1.msra.mxu0 0.0
    %4562 = vmatprep.subr.mxu0 0.0
    %4563 = vmatpush1.msra.mxu0 0.0
    %4564 = vmatprep.subr.mxu0 0.0
    %4565 = vmatpush1.msra.mxu0 0.0
    %4566 = vmatprep.subr.mxu0 0.0
    %4567 = vmatpush1.msra.mxu0 0.0
    %4568 = vmatprep.subr.mxu0 0.0
    %4569 = vmatpush1.msra.mxu0 0.0
    %4570 = vmatprep.subr.mxu0 0.0
    %4571 = vmatpush1.msra.mxu0 0.0
    %4572 = vmatprep.subr.mxu0 0.0
    %4573 = vmatpush1.msra.mxu0 0.0
    %4574 = vmatprep.subr.mxu0 0.0
    %4575 = vmatpush1.msra.mxu0 0.0
    %4576 = vmatprep.mubr.f32.mxu0 0.0
    %4577 = vmatmul.mubr.f32.gmra.mrb[0].mxu0 %v4300
    %v4578 = vpop.f32.mrb[0].mxu0
    %v4579 = vadd.f32 %v300, %v4578
    %v4580 = vpop.f32.mrb[0].mxu0
    %4581 = vdwg.mxu0
    %4582 = vmatprep.subr.mxu0 0.0
    %4583 = vmatpush1.msra.mxu0 %v147
    %4584 = vmatprep.subr.mxu0 0.0
    %4585 = vmatpush1.msra.mxu0 %v148
    %4586 = vmatprep.subr.mxu0 0.0
    %4587 = vmatpush1.msra.mxu0 %v149
    %4588 = vmatprep.subr.mxu0 0.0
    %4589 = vmatpush1.msra.mxu0 %v150
    %4590 = vmatprep.subr.mxu0 0.0
    %4591 = vmatpush1.msra.mxu0 0.0
    %4592 = vmatprep.subr.mxu0 0.0
    %4593 = vmatpush1.msra.mxu0 0.0
    %4594 = vmatprep.subr.mxu0 0.0
    %4595 = vmatpush1.msra.mxu0 0.0
    %4596 = vmatprep.subr.mxu0 0.0
    %4597 = vmatpush1.msra.mxu0 0.0
    %4598 = vmatprep.subr.mxu0 0.0
    %4599 = vmatpush1.msra.mxu0 0.0
    %4600 = vmatprep.subr.mxu0 0.0
    %4601 = vmatpush1.msra.mxu0 0.0
    %4602 = vmatprep.subr.mxu0 0.0
    %4603 = vmatpush1.msra.mxu0 0.0
    %4604 = vmatprep.subr.mxu0 0.0
    %4605 = vmatpush1.msra.mxu0 0.0
    %4606 = vmatprep.subr.mxu0 0.0
    %4607 = vmatpush1.msra.mxu0 0.0
    %4608 = vmatprep.subr.mxu0 0.0
    %4609 = vmatpush1.msra.mxu0 0.0
    %4610 = vmatprep.subr.mxu0 0.0
    %4611 = vmatpush1.msra.mxu0 0.0
    %4612 = vmatprep.subr.mxu0 0.0
    %4613 = vmatpush1.msra.mxu0 0.0
    %4614 = vmatprep.subr.mxu0 0.0
    %4615 = vmatpush1.msra.mxu0 0.0
    %4616 = vmatprep.subr.mxu0 0.0
    %4617 = vmatpush1.msra.mxu0 0.0
    %4618 = vmatprep.subr.mxu0 0.0
    %4619 = vmatpush1.msra.mxu0 0.0
    %4620 = vmatprep.subr.mxu0 0.0
    %4621 = vmatpush1.msra.mxu0 0.0
    %4622 = vmatprep.subr.mxu0 0.0
    %4623 = vmatpush1.msra.mxu0 0.0
    %4624 = vmatprep.subr.mxu0 0.0
    %4625 = vmatpush1.msra.mxu0 0.0
    %4626 = vmatprep.subr.mxu0 0.0
    %4627 = vmatpush1.msra.mxu0 0.0
    %4628 = vmatprep.subr.mxu0 0.0
    %4629 = vmatpush1.msra.mxu0 0.0
    %4630 = vmatprep.subr.mxu0 0.0
    %4631 = vmatpush1.msra.mxu0 0.0
    %4632 = vmatprep.subr.mxu0 0.0
    %4633 = vmatpush1.msra.mxu0 0.0
    %4634 = vmatprep.subr.mxu0 0.0
    %4635 = vmatpush1.msra.mxu0 0.0
    %4636 = vmatprep.subr.mxu0 0.0
    %4637 = vmatpush1.msra.mxu0 0.0
    %4638 = vmatprep.subr.mxu0 0.0
    %4639 = vmatpush1.msra.mxu0 0.0
    %4640 = vmatprep.subr.mxu0 0.0
    %4641 = vmatpush1.msra.mxu0 0.0
    %4642 = vmatprep.subr.mxu0 0.0
    %4643 = vmatpush1.msra.mxu0 0.0
    %4644 = vmatprep.subr.mxu0 0.0
    %4645 = vmatpush1.msra.mxu0 0.0
    %4646 = vmatprep.mubr.f32.mxu0 0.0
    %4647 = vmatmul.mubr.f32.gmra.mrb[0].mxu0 %v4300
    %v4648 = vpop.f32.mrb[0].mxu0
    %v4649 = vadd.f32 %v596, %v4648
    %v4650 = vpop.f32.mrb[0].mxu0
    %4651 = vdwg.mxu0
    %4652 = vmatprep.subr.mxu0 0.0
    %4653 = vmatpush1.msra.mxu0 %v151
    %4654 = vmatprep.subr.mxu0 0.0
    %4655 = vmatpush1.msra.mxu0 %v152
    %4656 = vmatprep.subr.mxu0 0.0
    %4657 = vmatpush1.msra.mxu0 %v153
    %4658 = vmatprep.subr.mxu0 0.0
    %4659 = vmatpush1.msra.mxu0 %v154
    %4660 = vmatprep.subr.mxu0 0.0
    %4661 = vmatpush1.msra.mxu0 0.0
    %4662 = vmatprep.subr.mxu0 0.0
    %4663 = vmatpush1.msra.mxu0 0.0
    %4664 = vmatprep.subr.mxu0 0.0
    %4665 = vmatpush1.msra.mxu0 0.0
    %4666 = vmatprep.subr.mxu0 0.0
    %4667 = vmatpush1.msra.mxu0 0.0
    %4668 = vmatprep.subr.mxu0 0.0
    %4669 = vmatpush1.msra.mxu0 0.0
    %4670 = vmatprep.subr.mxu0 0.0
    %4671 = vmatpush1.msra.mxu0 0.0
    %4672 = vmatprep.subr.mxu0 0.0
    %4673 = vmatpush1.msra.mxu0 0.0
    %4674 = vmatprep.subr.mxu0 0.0
    %4675 = vmatpush1.msra.mxu0 0.0
    %4676 = vmatprep.subr.mxu0 0.0
    %4677 = vmatpush1.msra.mxu0 0.0
    %4678 = vmatprep.subr.mxu0 0.0
    %4679 = vmatpush1.msra.mxu0 0.0
    %4680 = vmatprep.subr.mxu0 0.0
    %4681 = vmatpush1.msra.mxu0 0.0
    %4682 = vmatprep.subr.mxu0 0.0
    %4683 = vmatpush1.msra.mxu0 0.0
    %4684 = vmatprep.subr.mxu0 0.0
    %4685 = vmatpush1.msra.mxu0 0.0
    %4686 = vmatprep.subr.mxu0 0.0
    %4687 = vmatpush1.msra.mxu0 0.0
    %4688 = vmatprep.subr.mxu0 0.0
    %4689 = vmatpush1.msra.mxu0 0.0
    %4690 = vmatprep.subr.mxu0 0.0
    %4691 = vmatpush1.msra.mxu0 0.0
    %4692 = vmatprep.subr.mxu0 0.0
    %4693 = vmatpush1.msra.mxu0 0.0
    %4694 = vmatprep.subr.mxu0 0.0
    %4695 = vmatpush1.msra.mxu0 0.0
    %4696 = vmatprep.subr.mxu0 0.0
    %4697 = vmatpush1.msra.mxu0 0.0
    %4698 = vmatprep.subr.mxu0 0.0
    %4699 = vmatpush1.msra.mxu0 0.0
    %4700 = vmatprep.subr.mxu0 0.0
    %4701 = vmatpush1.msra.mxu0 0.0
    %4702 = vmatprep.subr.mxu0 0.0
    %4703 = vmatpush1.msra.mxu0 0.0
    %4704 = vmatprep.subr.mxu0 0.0
    %4705 = vmatpush1.msra.mxu0 0.0
    %4706 = vmatprep.subr.mxu0 0.0
    %4707 = vmatpush1.msra.mxu0 0.0
    %4708 = vmatprep.subr.mxu0 0.0
    %4709 = vmatpush1.msra.mxu0 0.0
    %4710 = vmatprep.subr.mxu0 0.0
    %4711 = vmatpush1.msra.mxu0 0.0
    %4712 = vmatprep.subr.mxu0 0.0
    %4713 = vmatpush1.msra.mxu0 0.0
    %4714 = vmatprep.subr.mxu0 0.0
    %4715 = vmatpush1.msra.mxu0 0.0
    %4716 = vmatprep.mubr.f32.mxu0 0.0
    %4717 = vmatmul.mubr.f32.gmra.mrb[0].mxu0 %v4300
    %v4718 = vpop.f32.mrb[0].mxu0
    %v4719 = vadd.f32 %v600, %v4718
    %v4720 = vpop.f32.mrb[0].mxu0
    %4721 = vdwg.mxu0
    %4722 = vmatprep.subr.mxu0 0.0
    %4723 = vmatpush1.msra.mxu0 %v155
    %4724 = vmatprep.subr.mxu0 0.0
    %4725 = vmatpush1.msra.mxu0 %v156
    %4726 = vmatprep.subr.mxu0 0.0
    %4727 = vmatpush1.msra.mxu0 %v157
    %4728 = vmatprep.subr.mxu0 0.0
    %4729 = vmatpush1.msra.mxu0 %v158
    %4730 = vmatprep.subr.mxu0 0.0
    %4731 = vmatpush1.msra.mxu0 0.0
    %4732 = vmatprep.subr.mxu0 0.0
    %4733 = vmatpush1.msra.mxu0 0.0
    %4734 = vmatprep.subr.mxu0 0.0
    %4735 = vmatpush1.msra.mxu0 0.0
    %4736 = vmatprep.subr.mxu0 0.0
    %4737 = vmatpush1.msra.mxu0 0.0
    %4738 = vmatprep.subr.mxu0 0.0
    %4739 = vmatpush1.msra.mxu0 0.0
    %4740 = vmatprep.subr.mxu0 0.0
    %4741 = vmatpush1.msra.mxu0 0.0
    %4742 = vmatprep.subr.mxu0 0.0
    %4743 = vmatpush1.msra.mxu0 0.0
    %4744 = vmatprep.subr.mxu0 0.0
    %4745 = vmatpush1.msra.mxu0 0.0
    %4746 = vmatprep.subr.mxu0 0.0
    %4747 = vmatpush1.msra.mxu0 0.0
    %4748 = vmatprep.subr.mxu0 0.0
    %4749 = vmatpush1.msra.mxu0 0.0
    %4750 = vmatprep.subr.mxu0 0.0
    %4751 = vmatpush1.msra.mxu0 0.0
    %4752 = vmatprep.subr.mxu0 0.0
    %4753 = vmatpush1.msra.mxu0 0.0
    %4754 = vmatprep.subr.mxu0 0.0
    %4755 = vmatpush1.msra.mxu0 0.0
    %4756 = vmatprep.subr.mxu0 0.0
    %4757 = vmatpush1.msra.mxu0 0.0
    %4758 = vmatprep.subr.mxu0 0.0
    %4759 = vmatpush1.msra.mxu0 0.0
    %4760 = vmatprep.subr.mxu0 0.0
    %4761 = vmatpush1.msra.mxu0 0.0
    %4762 = vmatprep.subr.mxu0 0.0
    %4763 = vmatpush1.msra.mxu0 0.0
    %4764 = vmatprep.subr.mxu0 0.0
    %4765 = vmatpush1.msra.mxu0 0.0
    %4766 = vmatprep.subr.mxu0 0.0
    %4767 = vmatpush1.msra.mxu0 0.0
    %4768 = vmatprep.subr.mxu0 0.0
    %4769 = vmatpush1.msra.mxu0 0.0
    %4770 = vmatprep.subr.mxu0 0.0
    %4771 = vmatpush1.msra.mxu0 0.0
    %4772 = vmatprep.subr.mxu0 0.0
    %4773 = vmatpush1.msra.mxu0 0.0
    %4774 = vmatprep.subr.mxu0 0.0
    %4775 = vmatpush1.msra.mxu0 0.0
    %4776 = vmatprep.subr.mxu0 0.0
    %4777 = vmatpush1.msra.mxu0 0.0
    %4778 = vmatprep.subr.mxu0 0.0
    %4779 = vmatpush1.msra.mxu0 0.0
    %4780 = vmatprep.subr.mxu0 0.0
    %4781 = vmatpush1.msra.mxu0 0.0
    %4782 = vmatprep.subr.mxu0 0.0
    %4783 = vmatpush1.msra.mxu0 0.0
    %4784 = vmatprep.subr.mxu0 0.0
    %4785 = vmatpush1.msra.mxu0 0.0
    %4786 = vmatprep.mubr.f32.mxu0 0.0
    %4787 = vmatmul.mubr.f32.gmra.mrb[0].mxu0 %v4300
    %v4788 = vpop.f32.mrb[0].mxu0
    %v4789 = vadd.f32 %v604, %v4788
    %v4790 = vpop.f32.mrb[0].mxu0
    %4791 = vdwg.mxu0
    %4792 = vmatprep.subr.mxu0 0.0
    %4793 = vmatpush1.msra.mxu0 %v159
    %4794 = vmatprep.subr.mxu0 0.0
    %4795 = vmatpush1.msra.mxu0 %v160
    %4796 = vmatprep.subr.mxu0 0.0
    %4797 = vmatpush1.msra.mxu0 %v161
    %4798 = vmatprep.subr.mxu0 0.0
    %4799 = vmatpush1.msra.mxu0 %v162
    %4800 = vmatprep.subr.mxu0 0.0
    %4801 = vmatpush1.msra.mxu0 0.0
    %4802 = vmatprep.subr.mxu0 0.0
    %4803 = vmatpush1.msra.mxu0 0.0
    %4804 = vmatprep.subr.mxu0 0.0
    %4805 = vmatpush1.msra.mxu0 0.0
    %4806 = vmatprep.subr.mxu0 0.0
    %4807 = vmatpush1.msra.mxu0 0.0
    %4808 = vmatprep.subr.mxu0 0.0
    %4809 = vmatpush1.msra.mxu0 0.0
    %4810 = vmatprep.subr.mxu0 0.0
    %4811 = vmatpush1.msra.mxu0 0.0
    %4812 = vmatprep.subr.mxu0 0.0
    %4813 = vmatpush1.msra.mxu0 0.0
    %4814 = vmatprep.subr.mxu0 0.0
    %4815 = vmatpush1.msra.mxu0 0.0
    %4816 = vmatprep.subr.mxu0 0.0
    %4817 = vmatpush1.msra.mxu0 0.0
    %4818 = vmatprep.subr.mxu0 0.0
    %4819 = vmatpush1.msra.mxu0 0.0
    %4820 = vmatprep.subr.mxu0 0.0
    %4821 = vmatpush1.msra.mxu0 0.0
    %4822 = vmatprep.subr.mxu0 0.0
    %4823 = vmatpush1.msra.mxu0 0.0
    %4824 = vmatprep.subr.mxu0 0.0
    %4825 = vmatpush1.msra.mxu0 0.0
    %4826 = vmatprep.subr.mxu0 0.0
    %4827 = vmatpush1.msra.mxu0 0.0
    %4828 = vmatprep.subr.mxu0 0.0
    %4829 = vmatpush1.msra.mxu0 0.0
    %4830 = vmatprep.subr.mxu0 0.0
    %4831 = vmatpush1.msra.mxu0 0.0
    %4832 = vmatprep.subr.mxu0 0.0
    %4833 = vmatpush1.msra.mxu0 0.0
    %4834 = vmatprep.subr.mxu0 0.0
    %4835 = vmatpush1.msra.mxu0 0.0
    %4836 = vmatprep.subr.mxu0 0.0
    %4837 = vmatpush1.msra.mxu0 0.0
    %4838 = vmatprep.subr.mxu0 0.0
    %4839 = vmatpush1.msra.mxu0 0.0
    %4840 = vmatprep.subr.mxu0 0.0
    %4841 = vmatpush1.msra.mxu0 0.0
    %4842 = vmatprep.subr.mxu0 0.0
    %4843 = vmatpush1.msra.mxu0 0.0
    %4844 = vmatprep.subr.mxu0 0.0
    %4845 = vmatpush1.msra.mxu0 0.0
    %4846 = vmatprep.subr.mxu0 0.0
    %4847 = vmatpush1.msra.mxu0 0.0
    %4848 = vmatprep.subr.mxu0 0.0
    %4849 = vmatpush1.msra.mxu0 0.0
    %4850 = vmatprep.subr.mxu0 0.0
    %4851 = vmatpush1.msra.mxu0 0.0
    %4852 = vmatprep.subr.mxu0 0.0
    %4853 = vmatpush1.msra.mxu0 0.0
    %4854 = vmatprep.subr.mxu0 0.0
    %4855 = vmatpush1.msra.mxu0 0.0
    %4856 = vmatprep.mubr.f32.mxu0 0.0
    %4857 = vmatmul.mubr.f32.gmra.mrb[0].mxu0 %v4300
    %v4858 = vpop.f32.mrb[0].mxu0
    %v4859 = vadd.f32 %v608, %v4858
    %v4860 = vpop.f32.mrb[0].mxu0
    %4861 = vdwg.mxu0
    %4862 = vmatprep.subr.mxu0 0.0
    %4863 = vmatpush1.msra.mxu0 %v167
    %4864 = vmatprep.subr.mxu0 0.0
    %4865 = vmatpush1.msra.mxu0 %v168
    %4866 = vmatprep.subr.mxu0 0.0
    %4867 = vmatpush1.msra.mxu0 %v169
    %4868 = vmatprep.subr.mxu0 0.0
    %4869 = vmatpush1.msra.mxu0 %v170
    %4870 = vmatprep.subr.mxu0 0.0
    %4871 = vmatpush1.msra.mxu0 0.0
    %4872 = vmatprep.subr.mxu0 0.0
    %4873 = vmatpush1.msra.mxu0 0.0
    %4874 = vmatprep.subr.mxu0 0.0
    %4875 = vmatpush1.msra.mxu0 0.0
    %4876 = vmatprep.subr.mxu0 0.0
    %4877 = vmatpush1.msra.mxu0 0.0
    %4878 = vmatprep.subr.mxu0 0.0
    %4879 = vmatpush1.msra.mxu0 0.0
    %4880 = vmatprep.subr.mxu0 0.0
    %4881 = vmatpush1.msra.mxu0 0.0
    %4882 = vmatprep.subr.mxu0 0.0
    %4883 = vmatpush1.msra.mxu0 0.0
    %4884 = vmatprep.subr.mxu0 0.0
    %4885 = vmatpush1.msra.mxu0 0.0
    %4886 = vmatprep.subr.mxu0 0.0
    %4887 = vmatpush1.msra.mxu0 0.0
    %4888 = vmatprep.subr.mxu0 0.0
    %4889 = vmatpush1.msra.mxu0 0.0
    %4890 = vmatprep.subr.mxu0 0.0
    %4891 = vmatpush1.msra.mxu0 0.0
    %4892 = vmatprep.subr.mxu0 0.0
    %4893 = vmatpush1.msra.mxu0 0.0
    %4894 = vmatprep.subr.mxu0 0.0
    %4895 = vmatpush1.msra.mxu0 0.0
    %4896 = vmatprep.subr.mxu0 0.0
    %4897 = vmatpush1.msra.mxu0 0.0
    %4898 = vmatprep.subr.mxu0 0.0
    %4899 = vmatpush1.msra.mxu0 0.0
    %4900 = vmatprep.subr.mxu0 0.0
    %4901 = vmatpush1.msra.mxu0 0.0
    %4902 = vmatprep.subr.mxu0 0.0
    %4903 = vmatpush1.msra.mxu0 0.0
    %4904 = vmatprep.subr.mxu0 0.0
    %4905 = vmatpush1.msra.mxu0 0.0
    %4906 = vmatprep.subr.mxu0 0.0
    %4907 = vmatpush1.msra.mxu0 0.0
    %4908 = vmatprep.subr.mxu0 0.0
    %4909 = vmatpush1.msra.mxu0 0.0
    %4910 = vmatprep.subr.mxu0 0.0
    %4911 = vmatpush1.msra.mxu0 0.0
    %4912 = vmatprep.subr.mxu0 0.0
    %4913 = vmatpush1.msra.mxu0 0.0
    %4914 = vmatprep.subr.mxu0 0.0
    %4915 = vmatpush1.msra.mxu0 0.0
    %4916 = vmatprep.subr.mxu0 0.0
    %4917 = vmatpush1.msra.mxu0 0.0
    %4918 = vmatprep.subr.mxu0 0.0
    %4919 = vmatpush1.msra.mxu0 0.0
    %4920 = vmatprep.subr.mxu0 0.0
    %4921 = vmatpush1.msra.mxu0 0.0
    %4922 = vmatprep.subr.mxu0 0.0
    %4923 = vmatpush1.msra.mxu0 0.0
    %4924 = vmatprep.subr.mxu0 0.0
    %4925 = vmatpush1.msra.mxu0 0.0
    %4926 = vmatprep.mubr.f32.mxu0 0.0
    %4927 = vmatmul.mubr.f32.gmra.mrb[0].mxu0 %v4300
    %v4928 = vpop.f32.mrb[0].mxu0
    %v4929 = vadd.f32 %v900, %v4928
    %v4930 = vpop.f32.mrb[0].mxu0
    %4931 = vdwg.mxu0
    %4932 = vmatprep.subr.mxu0 0.0
    %4933 = vmatpush1.msra.mxu0 %v171
    %4934 = vmatprep.subr.mxu0 0.0
    %4935 = vmatpush1.msra.mxu0 %v172
    %4936 = vmatprep.subr.mxu0 0.0
    %4937 = vmatpush1.msra.mxu0 %v173
    %4938 = vmatprep.subr.mxu0 0.0
    %4939 = vmatpush1.msra.mxu0 %v174
    %4940 = vmatprep.subr.mxu0 0.0
    %4941 = vmatpush1.msra.mxu0 0.0
    %4942 = vmatprep.subr.mxu0 0.0
    %4943 = vmatpush1.msra.mxu0 0.0
    %4944 = vmatprep.subr.mxu0 0.0
    %4945 = vmatpush1.msra.mxu0 0.0
    %4946 = vmatprep.subr.mxu0 0.0
    %4947 = vmatpush1.msra.mxu0 0.0
    %4948 = vmatprep.subr.mxu0 0.0
    %4949 = vmatpush1.msra.mxu0 0.0
    %4950 = vmatprep.subr.mxu0 0.0
    %4951 = vmatpush1.msra.mxu0 0.0
    %4952 = vmatprep.subr.mxu0 0.0
    %4953 = vmatpush1.msra.mxu0 0.0
    %4954 = vmatprep.subr.mxu0 0.0
    %4955 = vmatpush1.msra.mxu0 0.0
    %4956 = vmatprep.subr.mxu0 0.0
    %4957 = vmatpush1.msra.mxu0 0.0
    %4958 = vmatprep.subr.mxu0 0.0
    %4959 = vmatpush1.msra.mxu0 0.0
    %4960 = vmatprep.subr.mxu0 0.0
    %4961 = vmatpush1.msra.mxu0 0.0
    %4962 = vmatprep.subr.mxu0 0.0
    %4963 = vmatpush1.msra.mxu0 0.0
    %4964 = vmatprep.subr.mxu0 0.0
    %4965 = vmatpush1.msra.mxu0 0.0
    %4966 = vmatprep.subr.mxu0 0.0
    %4967 = vmatpush1.msra.mxu0 0.0
    %4968 = vmatprep.subr.mxu0 0.0
    %4969 = vmatpush1.msra.mxu0 0.0
    %4970 = vmatprep.subr.mxu0 0.0
    %4971 = vmatpush1.msra.mxu0 0.0
    %4972 = vmatprep.subr.mxu0 0.0
    %4973 = vmatpush1.msra.mxu0 0.0
    %4974 = vmatprep.subr.mxu0 0.0
    %4975 = vmatpush1.msra.mxu0 0.0
    %4976 = vmatprep.subr.mxu0 0.0
    %4977 = vmatpush1.msra.mxu0 0.0
    %4978 = vmatprep.subr.mxu0 0.0
    %4979 = vmatpush1.msra.mxu0 0.0
    %4980 = vmatprep.subr.mxu0 0.0
    %4981 = vmatpush1.msra.mxu0 0.0
    %4982 = vmatprep.subr.mxu0 0.0
    %4983 = vmatpush1.msra.mxu0 0.0
    %4984 = vmatprep.subr.mxu0 0.0
    %4985 = vmatpush1.msra.mxu0 0.0
    %4986 = vmatprep.subr.mxu0 0.0
    %4987 = vmatpush1.msra.mxu0 0.0
    %4988 = vmatprep.subr.mxu0 0.0
    %4989 = vmatpush1.msra.mxu0 0.0
    %4990 = vmatprep.subr.mxu0 0.0
    %4991 = vmatpush1.msra.mxu0 0.0
    %4992 = vmatprep.subr.mxu0 0.0
    %4993 = vmatpush1.msra.mxu0 0.0
    %4994 = vmatprep.subr.mxu0 0.0
    %4995 = vmatpush1.msra.mxu0 0.0
    %4996 = vmatprep.mubr.f32.mxu0 0.0
    %4997 = vmatmul.mubr.f32.gmra.mrb[0].mxu0 %v4300
    %v4998 = vpop.f32.mrb[0].mxu0
    %v4999 = vadd.f32 %v904, %v4998
    %v5000 = vpop.f32.mrb[0].mxu0
    %5001 = vdwg.mxu0
    %5002 = vmatprep.subr.mxu0 0.0
    %5003 = vmatpush1.msra.mxu0 %v175
    %5004 = vmatprep.subr.mxu0 0.0
    %5005 = vmatpush1.msra.mxu0 %v176
    %5006 = vmatprep.subr.mxu0 0.0
    %5007 = vmatpush1.msra.mxu0 %v177
    %5008 = vmatprep.subr.mxu0 0.0
    %5009 = vmatpush1.msra.mxu0 %v178
    %5010 = vmatprep.subr.mxu0 0.0
    %5011 = vmatpush1.msra.mxu0 0.0
    %5012 = vmatprep.subr.mxu0 0.0
    %5013 = vmatpush1.msra.mxu0 0.0
    %5014 = vmatprep.subr.mxu0 0.0
    %5015 = vmatpush1.msra.mxu0 0.0
    %5016 = vmatprep.subr.mxu0 0.0
    %5017 = vmatpush1.msra.mxu0 0.0
    %5018 = vmatprep.subr.mxu0 0.0
    %5019 = vmatpush1.msra.mxu0 0.0
    %5020 = vmatprep.subr.mxu0 0.0
    %5021 = vmatpush1.msra.mxu0 0.0
    %5022 = vmatprep.subr.mxu0 0.0
    %5023 = vmatpush1.msra.mxu0 0.0
    %5024 = vmatprep.subr.mxu0 0.0
    %5025 = vmatpush1.msra.mxu0 0.0
    %5026 = vmatprep.subr.mxu0 0.0
    %5027 = vmatpush1.msra.mxu0 0.0
    %5028 = vmatprep.subr.mxu0 0.0
    %5029 = vmatpush1.msra.mxu0 0.0
    %5030 = vmatprep.subr.mxu0 0.0
    %5031 = vmatpush1.msra.mxu0 0.0
    %5032 = vmatprep.subr.mxu0 0.0
    %5033 = vmatpush1.msra.mxu0 0.0
    %5034 = vmatprep.subr.mxu0 0.0
    %5035 = vmatpush1.msra.mxu0 0.0
    %5036 = vmatprep.subr.mxu0 0.0
    %5037 = vmatpush1.msra.mxu0 0.0
    %5038 = vmatprep.subr.mxu0 0.0
    %5039 = vmatpush1.msra.mxu0 0.0
    %5040 = vmatprep.subr.mxu0 0.0
    %5041 = vmatpush1.msra.mxu0 0.0
    %5042 = vmatprep.subr.mxu0 0.0
    %5043 = vmatpush1.msra.mxu0 0.0
    %5044 = vmatprep.subr.mxu0 0.0
    %5045 = vmatpush1.msra.mxu0 0.0
    %5046 = vmatprep.subr.mxu0 0.0
    %5047 = vmatpush1.msra.mxu0 0.0
    %5048 = vmatprep.subr.mxu0 0.0
    %5049 = vmatpush1.msra.mxu0 0.0
    %5050 = vmatprep.subr.mxu0 0.0
    %5051 = vmatpush1.msra.mxu0 0.0
    %5052 = vmatprep.subr.mxu0 0.0
    %5053 = vmatpush1.msra.mxu0 0.0
    %5054 = vmatprep.subr.mxu0 0.0
    %5055 = vmatpush1.msra.mxu0 0.0
    %5056 = vmatprep.subr.mxu0 0.0
    %5057 = vmatpush1.msra.mxu0 0.0
    %5058 = vmatprep.subr.mxu0 0.0
    %5059 = vmatpush1.msra.mxu0 0.0
    %5060 = vmatprep.subr.mxu0 0.0
    %5061 = vmatpush1.msra.mxu0 0.0
    %5062 = vmatprep.subr.mxu0 0.0
    %5063 = vmatpush1.msra.mxu0 0.0
    %5064 = vmatprep.subr.mxu0 0.0
    %5065 = vmatpush1.msra.mxu0 0.0
    %5066 = vmatprep.mubr.f32.mxu0 0.0
    %5067 = vmatmul.mubr.f32.gmra.mrb[0].mxu0 %v4300
    %v5068 = vpop.f32.mrb[0].mxu0
    %v5069 = vadd.f32 %v908, %v5068
    %v5070 = vpop.f32.mrb[0].mxu0
    %5071 = vdwg.mxu0
    %5072 = vmatprep.subr.mxu0 0.0
    %5073 = vmatpush1.msra.mxu0 %v179
    %5074 = vmatprep.subr.mxu0 0.0
    %5075 = vmatpush1.msra.mxu0 %v180
    %5076 = vmatprep.subr.mxu0 0.0
    %5077 = vmatpush1.msra.mxu0 %v181
    %5078 = vmatprep.subr.mxu0 0.0
    %5079 = vmatpush1.msra.mxu0 %v182
    %5080 = vmatprep.subr.mxu0 0.0
    %5081 = vmatpush1.msra.mxu0 0.0
    %5082 = vmatprep.subr.mxu0 0.0
    %5083 = vmatpush1.msra.mxu0 0.0
    %5084 = vmatprep.subr.mxu0 0.0
    %5085 = vmatpush1.msra.mxu0 0.0
    %5086 = vmatprep.subr.mxu0 0.0
    %5087 = vmatpush1.msra.mxu0 0.0
    %5088 = vmatprep.subr.mxu0 0.0
    %5089 = vmatpush1.msra.mxu0 0.0
    %5090 = vmatprep.subr.mxu0 0.0
    %5091 = vmatpush1.msra.mxu0 0.0
    %5092 = vmatprep.subr.mxu0 0.0
    %5093 = vmatpush1.msra.mxu0 0.0
    %5094 = vmatprep.subr.mxu0 0.0
    %5095 = vmatpush1.msra.mxu0 0.0
    %5096 = vmatprep.subr.mxu0 0.0
    %5097 = vmatpush1.msra.mxu0 0.0
    %5098 = vmatprep.subr.mxu0 0.0
    %5099 = vmatpush1.msra.mxu0 0.0
    %5100 = vmatprep.subr.mxu0 0.0
    %5101 = vmatpush1.msra.mxu0 0.0
    %5102 = vmatprep.subr.mxu0 0.0
    %5103 = vmatpush1.msra.mxu0 0.0
    %5104 = vmatprep.subr.mxu0 0.0
    %5105 = vmatpush1.msra.mxu0 0.0
    %5106 = vmatprep.subr.mxu0 0.0
    %5107 = vmatpush1.msra.mxu0 0.0
    %5108 = vmatprep.subr.mxu0 0.0
    %5109 = vmatpush1.msra.mxu0 0.0
    %5110 = vmatprep.subr.mxu0 0.0
    %5111 = vmatpush1.msra.mxu0 0.0
    %5112 = vmatprep.subr.mxu0 0.0
    %5113 = vmatpush1.msra.mxu0 0.0
    %5114 = vmatprep.subr.mxu0 0.0
    %5115 = vmatpush1.msra.mxu0 0.0
    %5116 = vmatprep.subr.mxu0 0.0
    %5117 = vmatpush1.msra.mxu0 0.0
    %5118 = vmatprep.subr.mxu0 0.0
    %5119 = vmatpush1.msra.mxu0 0.0
    %5120 = vmatprep.subr.mxu0 0.0
    %5121 = vmatpush1.msra.mxu0 0.0
    %5122 = vmatprep.subr.mxu0 0.0
    %5123 = vmatpush1.msra.mxu0 0.0
    %5124 = vmatprep.subr.mxu0 0.0
    %5125 = vmatpush1.msra.mxu0 0.0
    %5126 = vmatprep.subr.mxu0 0.0
    %5127 = vmatpush1.msra.mxu0 0.0
    %5128 = vmatprep.subr.mxu0 0.0
    %5129 = vmatpush1.msra.mxu0 0.0
    %5130 = vmatprep.subr.mxu0 0.0
    %5131 = vmatpush1.msra.mxu0 0.0
    %5132 = vmatprep.subr.mxu0 0.0
    %5133 = vmatpush1.msra.mxu0 0.0
    %5134 = vmatprep.subr.mxu0 0.0
    %5135 = vmatpush1.msra.mxu0 0.0
    %5136 = vmatprep.mubr.f32.mxu0 0.0
    %5137 = vmatmul.mubr.f32.gmra.mrb[0].mxu0 %v4300
    %v5138 = vpop.f32.mrb[0].mxu0
    %v5139 = vadd.f32 %v912, %v5138
    %v5140 = vpop.f32.mrb[0].mxu0
    %5141 = vdwg.mxu0
    %v5143 = vsel %vm1197, %v4369, 0
    %v5146 = vsel %vm1197, %v4649, 0
    %5148 = vmatprep.subr.mxu0 0.0
    %5149 = vmatpush1.xpose.msra.mxu0 %v5146
    %5150 = vmatprep.subr.mxu0 0.0
    %5151 = vmatpush1.xpose.msra.mxu0 0.0
    %5152 = vmatprep.subr.mxu0 0.0
    %5153 = vmatpush1.xpose.msra.mxu0 0.0
    %5154 = vmatprep.subr.mxu0 0.0
    %5155 = vmatpush1.xpose.msra.mxu0 0.0
    %5156 = vmatprep.subr.mxu0 0.0
    %5157 = vmatpush1.xpose.msra.mxu0 0.0
    %5158 = vmatprep.subr.mxu0 0.0
    %5159 = vmatpush1.xpose.msra.mxu0 0.0
    %5160 = vmatprep.subr.mxu0 0.0
    %5161 = vmatpush1.xpose.msra.mxu0 0.0
    %5162 = vmatprep.subr.mxu0 0.0
    %5163 = vmatpush1.xpose.msra.mxu0 0.0
    %5164 = vmatprep.subr.mxu0 0.0
    %5165 = vmatpush1.xpose.msra.mxu0 0.0
    %5166 = vmatprep.subr.mxu0 0.0
    %5167 = vmatpush1.xpose.msra.mxu0 0.0
    %5168 = vmatprep.subr.mxu0 0.0
    %5169 = vmatpush1.xpose.msra.mxu0 0.0
    %5170 = vmatprep.subr.mxu0 0.0
    %5171 = vmatpush1.xpose.msra.mxu0 0.0
    %5172 = vmatprep.subr.mxu0 0.0
    %5173 = vmatpush1.xpose.msra.mxu0 0.0
    %5174 = vmatprep.subr.mxu0 0.0
    %5175 = vmatpush1.xpose.msra.mxu0 0.0
    %5176 = vmatprep.subr.mxu0 0.0
    %5177 = vmatpush1.xpose.msra.mxu0 0.0
    %5178 = vmatprep.subr.mxu0 0.0
    %5179 = vmatpush1.xpose.msra.mxu0 0.0
    %5180 = vmatprep.subr.mxu0 0.0
    %5181 = vmatpush1.xpose.msra.mxu0 0.0
    %5182 = vmatprep.subr.mxu0 0.0
    %5183 = vmatpush1.xpose.msra.mxu0 0.0
    %5184 = vmatprep.subr.mxu0 0.0
    %5185 = vmatpush1.xpose.msra.mxu0 0.0
    %5186 = vmatprep.subr.mxu0 0.0
    %5187 = vmatpush1.xpose.msra.mxu0 0.0
    %5188 = vmatprep.subr.mxu0 0.0
    %5189 = vmatpush1.xpose.msra.mxu0 0.0
    %5190 = vmatprep.subr.mxu0 0.0
    %5191 = vmatpush1.xpose.msra.mxu0 0.0
    %5192 = vmatprep.subr.mxu0 0.0
    %5193 = vmatpush1.xpose.msra.mxu0 0.0
    %5194 = vmatprep.subr.mxu0 0.0
    %5195 = vmatpush1.xpose.msra.mxu0 0.0
    %5196 = vmatprep.subr.mxu0 0.0
    %5197 = vmatpush1.xpose.msra.mxu0 0.0
    %5198 = vmatprep.subr.mxu0 0.0
    %5199 = vmatpush1.xpose.msra.mxu0 0.0
    %5200 = vmatprep.subr.mxu0 0.0
    %5201 = vmatpush1.xpose.msra.mxu0 0.0
    %5202 = vmatprep.subr.mxu0 0.0
    %5203 = vmatpush1.xpose.msra.mxu0 0.0
    %5204 = vmatprep.subr.mxu0 0.0
    %5205 = vmatpush1.xpose.msra.mxu0 0.0
    %5206 = vmatprep.subr.mxu0 0.0
    %5207 = vmatpush1.xpose.msra.mxu0 0.0
    %5208 = vmatprep.subr.mxu0 0.0
    %5209 = vmatpush1.xpose.msra.mxu0 0.0
    %5210 = vmatprep.subr.mxu0 0.0
    %5211 = vmatpush1.xpose.msra.mxu0 0.0
    %5212 = vmatprep.mubr.f32.mxu0 0.0
    %5213 = vmatmul.mubr.f32.gmra.mrb[0].mxu0 %v5143
    %v5214 = vpop.f32.mrb[0].mxu0
    %v5215 = vadd.f32 0.0, %v5214
    %v5216 = vpop.f32.mrb[0].mxu0
    %5217 = vdwg.mxu0
    %v5219 = vsel %vm1197, %v4439, 0
    %v5222 = vsel %vm1197, %v4719, 0
    %5224 = vmatprep.subr.mxu0 0.0
    %5225 = vmatpush1.xpose.msra.mxu0 %v5222
    %5226 = vmatprep.subr.mxu0 0.0
    %5227 = vmatpush1.xpose.msra.mxu0 0.0
    %5228 = vmatprep.subr.mxu0 0.0
    %5229 = vmatpush1.xpose.msra.mxu0 0.0
    %5230 = vmatprep.subr.mxu0 0.0
    %5231 = vmatpush1.xpose.msra.mxu0 0.0
    %5232 = vmatprep.subr.mxu0 0.0
    %5233 = vmatpush1.xpose.msra.mxu0 0.0
    %5234 = vmatprep.subr.mxu0 0.0
    %5235 = vmatpush1.xpose.msra.mxu0 0.0
    %5236 = vmatprep.subr.mxu0 0.0
    %5237 = vmatpush1.xpose.msra.mxu0 0.0
    %5238 = vmatprep.subr.mxu0 0.0
    %5239 = vmatpush1.xpose.msra.mxu0 0.0
    %5240 = vmatprep.subr.mxu0 0.0
    %5241 = vmatpush1.xpose.msra.mxu0 0.0
    %5242 = vmatprep.subr.mxu0 0.0
    %5243 = vmatpush1.xpose.msra.mxu0 0.0
    %5244 = vmatprep.subr.mxu0 0.0
    %5245 = vmatpush1.xpose.msra.mxu0 0.0
    %5246 = vmatprep.subr.mxu0 0.0
    %5247 = vmatpush1.xpose.msra.mxu0 0.0
    %5248 = vmatprep.subr.mxu0 0.0
    %5249 = vmatpush1.xpose.msra.mxu0 0.0
    %5250 = vmatprep.subr.mxu0 0.0
    %5251 = vmatpush1.xpose.msra.mxu0 0.0
    %5252 = vmatprep.subr.mxu0 0.0
    %5253 = vmatpush1.xpose.msra.mxu0 0.0
    %5254 = vmatprep.subr.mxu0 0.0
    %5255 = vmatpush1.xpose.msra.mxu0 0.0
    %5256 = vmatprep.subr.mxu0 0.0
    %5257 = vmatpush1.xpose.msra.mxu0 0.0
    %5258 = vmatprep.subr.mxu0 0.0
    %5259 = vmatpush1.xpose.msra.mxu0 0.0
    %5260 = vmatprep.subr.mxu0 0.0
    %5261 = vmatpush1.xpose.msra.mxu0 0.0
    %5262 = vmatprep.subr.mxu0 0.0
    %5263 = vmatpush1.xpose.msra.mxu0 0.0
    %5264 = vmatprep.subr.mxu0 0.0
    %5265 = vmatpush1.xpose.msra.mxu0 0.0
    %5266 = vmatprep.subr.mxu0 0.0
    %5267 = vmatpush1.xpose.msra.mxu0 0.0
    %5268 = vmatprep.subr.mxu0 0.0
    %5269 = vmatpush1.xpose.msra.mxu0 0.0
    %5270 = vmatprep.subr.mxu0 0.0
    %5271 = vmatpush1.xpose.msra.mxu0 0.0
    %5272 = vmatprep.subr.mxu0 0.0
    %5273 = vmatpush1.xpose.msra.mxu0 0.0
    %5274 = vmatprep.subr.mxu0 0.0
    %5275 = vmatpush1.xpose.msra.mxu0 0.0
    %5276 = vmatprep.subr.mxu0 0.0
    %5277 = vmatpush1.xpose.msra.mxu0 0.0
    %5278 = vmatprep.subr.mxu0 0.0
    %5279 = vmatpush1.xpose.msra.mxu0 0.0
    %5280 = vmatprep.subr.mxu0 0.0
    %5281 = vmatpush1.xpose.msra.mxu0 0.0
    %5282 = vmatprep.subr.mxu0 0.0
    %5283 = vmatpush1.xpose.msra.mxu0 0.0
    %5284 = vmatprep.subr.mxu0 0.0
    %5285 = vmatpush1.xpose.msra.mxu0 0.0
    %5286 = vmatprep.subr.mxu0 0.0
    %5287 = vmatpush1.xpose.msra.mxu0 0.0
    %5288 = vmatprep.mubr.f32.mxu0 0.0
    %5289 = vmatmul.mubr.f32.gmra.mrb[0].mxu0 %v5219
    %v5290 = vpop.f32.mrb[0].mxu0
    %v5291 = vadd.f32 0.0, %v5290
    %v5292 = vpop.f32.mrb[0].mxu0
    %5293 = vdwg.mxu0
    %v5295 = vsel %vm1197, %v4509, 0
    %v5298 = vsel %vm1197, %v4789, 0
    %5300 = vmatprep.subr.mxu0 0.0
    %5301 = vmatpush1.xpose.msra.mxu0 %v5298
    %5302 = vmatprep.subr.mxu0 0.0
    %5303 = vmatpush1.xpose.msra.mxu0 0.0
    %5304 = vmatprep.subr.mxu0 0.0
    %5305 = vmatpush1.xpose.msra.mxu0 0.0
    %5306 = vmatprep.subr.mxu0 0.0
    %5307 = vmatpush1.xpose.msra.mxu0 0.0
    %5308 = vmatprep.subr.mxu0 0.0
    %5309 = vmatpush1.xpose.msra.mxu0 0.0
    %5310 = vmatprep.subr.mxu0 0.0
    %5311 = vmatpush1.xpose.msra.mxu0 0.0
    %5312 = vmatprep.subr.mxu0 0.0
    %5313 = vmatpush1.xpose.msra.mxu0 0.0
    %5314 = vmatprep.subr.mxu0 0.0
    %5315 = vmatpush1.xpose.msra.mxu0 0.0
    %5316 = vmatprep.subr.mxu0 0.0
    %5317 = vmatpush1.xpose.msra.mxu0 0.0
    %5318 = vmatprep.subr.mxu0 0.0
    %5319 = vmatpush1.xpose.msra.mxu0 0.0
    %5320 = vmatprep.subr.mxu0 0.0
    %5321 = vmatpush1.xpose.msra.mxu0 0.0
    %5322 = vmatprep.subr.mxu0 0.0
    %5323 = vmatpush1.xpose.msra.mxu0 0.0
    %5324 = vmatprep.subr.mxu0 0.0
    %5325 = vmatpush1.xpose.msra.mxu0 0.0
    %5326 = vmatprep.subr.mxu0 0.0
    %5327 = vmatpush1.xpose.msra.mxu0 0.0
    %5328 = vmatprep.subr.mxu0 0.0
    %5329 = vmatpush1.xpose.msra.mxu0 0.0
    %5330 = vmatprep.subr.mxu0 0.0
    %5331 = vmatpush1.xpose.msra.mxu0 0.0
    %5332 = vmatprep.subr.mxu0 0.0
    %5333 = vmatpush1.xpose.msra.mxu0 0.0
    %5334 = vmatprep.subr.mxu0 0.0
    %5335 = vmatpush1.xpose.msra.mxu0 0.0
    %5336 = vmatprep.subr.mxu0 0.0
    %5337 = vmatpush1.xpose.msra.mxu0 0.0
    %5338 = vmatprep.subr.mxu0 0.0
    %5339 = vmatpush1.xpose.msra.mxu0 0.0
    %5340 = vmatprep.subr.mxu0 0.0
    %5341 = vmatpush1.xpose.msra.mxu0 0.0
    %5342 = vmatprep.subr.mxu0 0.0
    %5343 = vmatpush1.xpose.msra.mxu0 0.0
    %5344 = vmatprep.subr.mxu0 0.0
    %5345 = vmatpush1.xpose.msra.mxu0 0.0
    %5346 = vmatprep.subr.mxu0 0.0
    %5347 = vmatpush1.xpose.msra.mxu0 0.0
    %5348 = vmatprep.subr.mxu0 0.0
    %5349 = vmatpush1.xpose.msra.mxu0 0.0
    %5350 = vmatprep.subr.mxu0 0.0
    %5351 = vmatpush1.xpose.msra.mxu0 0.0
    %5352 = vmatprep.subr.mxu0 0.0
    %5353 = vmatpush1.xpose.msra.mxu0 0.0
    %5354 = vmatprep.subr.mxu0 0.0
    %5355 = vmatpush1.xpose.msra.mxu0 0.0
    %5356 = vmatprep.subr.mxu0 0.0
    %5357 = vmatpush1.xpose.msra.mxu0 0.0
    %5358 = vmatprep.subr.mxu0 0.0
    %5359 = vmatpush1.xpose.msra.mxu0 0.0
    %5360 = vmatprep.subr.mxu0 0.0
    %5361 = vmatpush1.xpose.msra.mxu0 0.0
    %5362 = vmatprep.subr.mxu0 0.0
    %5363 = vmatpush1.xpose.msra.mxu0 0.0
    %5364 = vmatprep.mubr.f32.mxu0 0.0
    %5365 = vmatmul.mubr.f32.gmra.mrb[0].mxu0 %v5295
    %v5366 = vpop.f32.mrb[0].mxu0
    %v5367 = vadd.f32 0.0, %v5366
    %v5368 = vpop.f32.mrb[0].mxu0
    %5369 = vdwg.mxu0
    %v5371 = vsel %vm1197, %v4579, 0
    %v5374 = vsel %vm1197, %v4859, 0
    %5376 = vmatprep.subr.mxu0 0.0
    %5377 = vmatpush1.xpose.msra.mxu0 %v5374
    %5378 = vmatprep.subr.mxu0 0.0
    %5379 = vmatpush1.xpose.msra.mxu0 0.0
    %5380 = vmatprep.subr.mxu0 0.0
    %5381 = vmatpush1.xpose.msra.mxu0 0.0
    %5382 = vmatprep.subr.mxu0 0.0
    %5383 = vmatpush1.xpose.msra.mxu0 0.0
    %5384 = vmatprep.subr.mxu0 0.0
    %5385 = vmatpush1.xpose.msra.mxu0 0.0
    %5386 = vmatprep.subr.mxu0 0.0
    %5387 = vmatpush1.xpose.msra.mxu0 0.0
    %5388 = vmatprep.subr.mxu0 0.0
    %5389 = vmatpush1.xpose.msra.mxu0 0.0
    %5390 = vmatprep.subr.mxu0 0.0
    %5391 = vmatpush1.xpose.msra.mxu0 0.0
    %5392 = vmatprep.subr.mxu0 0.0
    %5393 = vmatpush1.xpose.msra.mxu0 0.0
    %5394 = vmatprep.subr.mxu0 0.0
    %5395 = vmatpush1.xpose.msra.mxu0 0.0
    %5396 = vmatprep.subr.mxu0 0.0
    %5397 = vmatpush1.xpose.msra.mxu0 0.0
    %5398 = vmatprep.subr.mxu0 0.0
    %5399 = vmatpush1.xpose.msra.mxu0 0.0
    %5400 = vmatprep.subr.mxu0 0.0
    %5401 = vmatpush1.xpose.msra.mxu0 0.0
    %5402 = vmatprep.subr.mxu0 0.0
    %5403 = vmatpush1.xpose.msra.mxu0 0.0
    %5404 = vmatprep.subr.mxu0 0.0
    %5405 = vmatpush1.xpose.msra.mxu0 0.0
    %5406 = vmatprep.subr.mxu0 0.0
    %5407 = vmatpush1.xpose.msra.mxu0 0.0
    %5408 = vmatprep.subr.mxu0 0.0
    %5409 = vmatpush1.xpose.msra.mxu0 0.0
    %5410 = vmatprep.subr.mxu0 0.0
    %5411 = vmatpush1.xpose.msra.mxu0 0.0
    %5412 = vmatprep.subr.mxu0 0.0
    %5413 = vmatpush1.xpose.msra.mxu0 0.0
    %5414 = vmatprep.subr.mxu0 0.0
    %5415 = vmatpush1.xpose.msra.mxu0 0.0
    %5416 = vmatprep.subr.mxu0 0.0
    %5417 = vmatpush1.xpose.msra.mxu0 0.0
    %5418 = vmatprep.subr.mxu0 0.0
    %5419 = vmatpush1.xpose.msra.mxu0 0.0
    %5420 = vmatprep.subr.mxu0 0.0
    %5421 = vmatpush1.xpose.msra.mxu0 0.0
    %5422 = vmatprep.subr.mxu0 0.0
    %5423 = vmatpush1.xpose.msra.mxu0 0.0
    %5424 = vmatprep.subr.mxu0 0.0
    %5425 = vmatpush1.xpose.msra.mxu0 0.0
    %5426 = vmatprep.subr.mxu0 0.0
    %5427 = vmatpush1.xpose.msra.mxu0 0.0
    %5428 = vmatprep.subr.mxu0 0.0
    %5429 = vmatpush1.xpose.msra.mxu0 0.0
    %5430 = vmatprep.subr.mxu0 0.0
    %5431 = vmatpush1.xpose.msra.mxu0 0.0
    %5432 = vmatprep.subr.mxu0 0.0
    %5433 = vmatpush1.xpose.msra.mxu0 0.0
    %5434 = vmatprep.subr.mxu0 0.0
    %5435 = vmatpush1.xpose.msra.mxu0 0.0
    %5436 = vmatprep.subr.mxu0 0.0
    %5437 = vmatpush1.xpose.msra.mxu0 0.0
    %5438 = vmatprep.subr.mxu0 0.0
    %5439 = vmatpush1.xpose.msra.mxu0 0.0
    %5440 = vmatprep.mubr.f32.mxu0 0.0
    %5441 = vmatmul.mubr.f32.gmra.mrb[0].mxu0 %v5371
    %v5442 = vpop.f32.mrb[0].mxu0
    %v5443 = vadd.f32 0.0, %v5442
    %v5444 = vpop.f32.mrb[0].mxu0
    %5445 = vdwg.mxu0
    %v5446 = vmul.f32 %v5215, 0.35355338
    %v5447 = vmul.f32 %v5291, 0.35355338
    %v5448 = vmul.f32 %v5367, 0.35355338
    %v5449 = vmul.f32 %v5443, 0.35355338
    %v5450 = vadd.f32 %v5446, %v4296
    %v5451 = vadd.f32 %v5447, %v4296
    %v5452 = vadd.f32 %v5448, %v4296
    %v5453 = vadd.f32 %v5449, %v4296
    %v5454 = vsel %vm1197, %v5450, -inf
    %5455 = vmax.xlane.f32.xlu0 %v5454
    %v5456 = vpop.xlane.xlu0 %5455
    %v5457 = vsel %vm1197, %v5451, -inf
    %5458 = vmax.xlane.f32.xlu0 %v5457
    %v5459 = vpop.xlane.xlu0 %5458
    %v5460 = vsel %vm1197, %v5452, -inf
    %5461 = vmax.xlane.f32.xlu0 %v5460
    %v5462 = vpop.xlane.xlu0 %5461
    %v5463 = vsel %vm1197, %v5453, -inf
    %5464 = vmax.xlane.f32.xlu0 %v5463
    %v5465 = vpop.xlane.xlu0 %5464
    %v5466 = vsub.f32 %v5450, %v5456
    %v5467 = vsub.f32 %v5451, %v5459
    %v5468 = vsub.f32 %v5452, %v5462
    %v5469 = vsub.f32 %v5453, %v5465
    %v5470 = vmul.f32 %v5466, 1.442695
    %v5471 = vpow.pop %v5470
    %v5472 = vmul.f32 %v5467, 1.442695
    %v5473 = vpow.pop %v5472
    %v5474 = vmul.f32 %v5468, 1.442695
    %v5475 = vpow.pop %v5474
    %v5476 = vmul.f32 %v5469, 1.442695
    %v5477 = vpow.pop %v5476
    %v5478 = vsel %vm1197, %v5471, 0.0
    %5479 = vadd.xlane.f32.xlu0 %v5478
    %v5480 = vpop.xlane.xlu0 %5479
    %v5481 = vsel %vm1197, %v5473, 0.0
    %5482 = vadd.xlane.f32.xlu0 %v5481
    %v5483 = vpop.xlane.xlu0 %5482
    %v5484 = vsel %vm1197, %v5475, 0.0
    %5485 = vadd.xlane.f32.xlu0 %v5484
    %v5486 = vpop.xlane.xlu0 %5485
    %v5487 = vsel %vm1197, %v5477, 0.0
    %5488 = vadd.xlane.f32.xlu0 %v5487
    %v5489 = vpop.xlane.xlu0 %5488
    %v5490 = vrcp.pop %v5480
    %v5491 = vrcp.pop %v5483
    %v5492 = vrcp.pop %v5486
    %v5493 = vrcp.pop %v5489
    %v5494 = vmul.f32 %v5471, %v5490
    %v5495 = vmul.f32 %v5473, %v5491
    %v5496 = vmul.f32 %v5475, %v5492
    %v5497 = vmul.f32 %v5477, %v5493
    %v5499 = vsel %vm1197, %v5494, 0
    %5501 = vmatprep.subr.mxu0 0.0
    %5502 = vmatpush1.msra.mxu0 %v4929
    %5503 = vmatprep.subr.mxu0 0.0
    %5504 = vmatpush1.msra.mxu0 0.0
    %5505 = vmatprep.subr.mxu0 0.0
    %5506 = vmatpush1.msra.mxu0 0.0
    %5507 = vmatprep.subr.mxu0 0.0
    %5508 = vmatpush1.msra.mxu0 0.0
    %5509 = vmatprep.subr.mxu0 0.0
    %5510 = vmatpush1.msra.mxu0 0.0
    %5511 = vmatprep.subr.mxu0 0.0
    %5512 = vmatpush1.msra.mxu0 0.0
    %5513 = vmatprep.subr.mxu0 0.0
    %5514 = vmatpush1.msra.mxu0 0.0
    %5515 = vmatprep.subr.mxu0 0.0
    %5516 = vmatpush1.msra.mxu0 0.0
    %5517 = vmatprep.subr.mxu0 0.0
    %5518 = vmatpush1.msra.mxu0 0.0
    %5519 = vmatprep.subr.mxu0 0.0
    %5520 = vmatpush1.msra.mxu0 0.0
    %5521 = vmatprep.subr.mxu0 0.0
    %5522 = vmatpush1.msra.mxu0 0.0
    %5523 = vmatprep.subr.mxu0 0.0
    %5524 = vmatpush1.msra.mxu0 0.0
    %5525 = vmatprep.subr.mxu0 0.0
    %5526 = vmatpush1.msra.mxu0 0.0
    %5527 = vmatprep.subr.mxu0 0.0
    %5528 = vmatpush1.msra.mxu0 0.0
    %5529 = vmatprep.subr.mxu0 0.0
    %5530 = vmatpush1.msra.mxu0 0.0
    %5531 = vmatprep.subr.mxu0 0.0
    %5532 = vmatpush1.msra.mxu0 0.0
    %5533 = vmatprep.subr.mxu0 0.0
    %5534 = vmatpush1.msra.mxu0 0.0
    %5535 = vmatprep.subr.mxu0 0.0
    %5536 = vmatpush1.msra.mxu0 0.0
    %5537 = vmatprep.subr.mxu0 0.0
    %5538 = vmatpush1.msra.mxu0 0.0
    %5539 = vmatprep.subr.mxu0 0.0
    %5540 = vmatpush1.msra.mxu0 0.0
    %5541 = vmatprep.subr.mxu0 0.0
    %5542 = vmatpush1.msra.mxu0 0.0
    %5543 = vmatprep.subr.mxu0 0.0
    %5544 = vmatpush1.msra.mxu0 0.0
    %5545 = vmatprep.subr.mxu0 0.0
    %5546 = vmatpush1.msra.mxu0 0.0
    %5547 = vmatprep.subr.mxu0 0.0
    %5548 = vmatpush1.msra.mxu0 0.0
    %5549 = vmatprep.subr.mxu0 0.0
    %5550 = vmatpush1.msra.mxu0 0.0
    %5551 = vmatprep.subr.mxu0 0.0
    %5552 = vmatpush1.msra.mxu0 0.0
    %5553 = vmatprep.subr.mxu0 0.0
    %5554 = vmatpush1.msra.mxu0 0.0
    %5555 = vmatprep.subr.mxu0 0.0
    %5556 = vmatpush1.msra.mxu0 0.0
    %5557 = vmatprep.subr.mxu0 0.0
    %5558 = vmatpush1.msra.mxu0 0.0
    %5559 = vmatprep.subr.mxu0 0.0
    %5560 = vmatpush1.msra.mxu0 0.0
    %5561 = vmatprep.subr.mxu0 0.0
    %5562 = vmatpush1.msra.mxu0 0.0
    %5563 = vmatprep.subr.mxu0 0.0
    %5564 = vmatpush1.msra.mxu0 0.0
    %5565 = vmatprep.mubr.f32.mxu0 0.0
    %5566 = vmatmul.mubr.f32.gmra.mrb[0].mxu0 %v5499
    %v5567 = vpop.f32.mrb[0].mxu0
    %v5568 = vadd.f32 0.0, %v5567
    %v5569 = vpop.f32.mrb[0].mxu0
    %5570 = vdwg.mxu0
    %v5572 = vsel %vm1197, %v5495, 0
    %5574 = vmatprep.subr.mxu0 0.0
    %5575 = vmatpush1.msra.mxu0 %v4999
    %5576 = vmatprep.subr.mxu0 0.0
    %5577 = vmatpush1.msra.mxu0 0.0
    %5578 = vmatprep.subr.mxu0 0.0
    %5579 = vmatpush1.msra.mxu0 0.0
    %5580 = vmatprep.subr.mxu0 0.0
    %5581 = vmatpush1.msra.mxu0 0.0
    %5582 = vmatprep.subr.mxu0 0.0
    %5583 = vmatpush1.msra.mxu0 0.0
    %5584 = vmatprep.subr.mxu0 0.0
    %5585 = vmatpush1.msra.mxu0 0.0
    %5586 = vmatprep.subr.mxu0 0.0
    %5587 = vmatpush1.msra.mxu0 0.0
    %5588 = vmatprep.subr.mxu0 0.0
    %5589 = vmatpush1.msra.mxu0 0.0
    %5590 = vmatprep.subr.mxu0 0.0
    %5591 = vmatpush1.msra.mxu0 0.0
    %5592 = vmatprep.subr.mxu0 0.0
    %5593 = vmatpush1.msra.mxu0 0.0
    %5594 = vmatprep.subr.mxu0 0.0
    %5595 = vmatpush1.msra.mxu0 0.0
    %5596 = vmatprep.subr.mxu0 0.0
    %5597 = vmatpush1.msra.mxu0 0.0
    %5598 = vmatprep.subr.mxu0 0.0
    %5599 = vmatpush1.msra.mxu0 0.0
    %5600 = vmatprep.subr.mxu0 0.0
    %5601 = vmatpush1.msra.mxu0 0.0
    %5602 = vmatprep.subr.mxu0 0.0
    %5603 = vmatpush1.msra.mxu0 0.0
    %5604 = vmatprep.subr.mxu0 0.0
    %5605 = vmatpush1.msra.mxu0 0.0
    %5606 = vmatprep.subr.mxu0 0.0
    %5607 = vmatpush1.msra.mxu0 0.0
    %5608 = vmatprep.subr.mxu0 0.0
    %5609 = vmatpush1.msra.mxu0 0.0
    %5610 = vmatprep.subr.mxu0 0.0
    %5611 = vmatpush1.msra.mxu0 0.0
    %5612 = vmatprep.subr.mxu0 0.0
    %5613 = vmatpush1.msra.mxu0 0.0
    %5614 = vmatprep.subr.mxu0 0.0
    %5615 = vmatpush1.msra.mxu0 0.0
    %5616 = vmatprep.subr.mxu0 0.0
    %5617 = vmatpush1.msra.mxu0 0.0
    %5618 = vmatprep.subr.mxu0 0.0
    %5619 = vmatpush1.msra.mxu0 0.0
    %5620 = vmatprep.subr.mxu0 0.0
    %5621 = vmatpush1.msra.mxu0 0.0
    %5622 = vmatprep.subr.mxu0 0.0
    %5623 = vmatpush1.msra.mxu0 0.0
    %5624 = vmatprep.subr.mxu0 0.0
    %5625 = vmatpush1.msra.mxu0 0.0
    %5626 = vmatprep.subr.mxu0 0.0
    %5627 = vmatpush1.msra.mxu0 0.0
    %5628 = vmatprep.subr.mxu0 0.0
    %5629 = vmatpush1.msra.mxu0 0.0
    %5630 = vmatprep.subr.mxu0 0.0
    %5631 = vmatpush1.msra.mxu0 0.0
    %5632 = vmatprep.subr.mxu0 0.0
    %5633 = vmatpush1.msra.mxu0 0.0
    %5634 = vmatprep.subr.mxu0 0.0
    %5635 = vmatpush1.msra.mxu0 0.0
    %5636 = vmatprep.subr.mxu0 0.0
    %5637 = vmatpush1.msra.mxu0 0.0
    %5638 = vmatprep.mubr.f32.mxu0 0.0
    %5639 = vmatmul.mubr.f32.gmra.mrb[0].mxu0 %v5572
    %v5640 = vpop.f32.mrb[0].mxu0
    %v5641 = vadd.f32 0.0, %v5640
    %v5642 = vpop.f32.mrb[0].mxu0
    %5643 = vdwg.mxu0
    %v5645 = vsel %vm1197, %v5496, 0
    %5647 = vmatprep.subr.mxu0 0.0
    %5648 = vmatpush1.msra.mxu0 %v5069
    %5649 = vmatprep.subr.mxu0 0.0
    %5650 = vmatpush1.msra.mxu0 0.0
    %5651 = vmatprep.subr.mxu0 0.0
    %5652 = vmatpush1.msra.mxu0 0.0
    %5653 = vmatprep.subr.mxu0 0.0
    %5654 = vmatpush1.msra.mxu0 0.0
    %5655 = vmatprep.subr.mxu0 0.0
    %5656 = vmatpush1.msra.mxu0 0.0
    %5657 = vmatprep.subr.mxu0 0.0
    %5658 = vmatpush1.msra.mxu0 0.0
    %5659 = vmatprep.subr.mxu0 0.0
    %5660 = vmatpush1.msra.mxu0 0.0
    %5661 = vmatprep.subr.mxu0 0.0
    %5662 = vmatpush1.msra.mxu0 0.0
    %5663 = vmatprep.subr.mxu0 0.0
    %5664 = vmatpush1.msra.mxu0 0.0
    %5665 = vmatprep.subr.mxu0 0.0
    %5666 = vmatpush1.msra.mxu0 0.0
    %5667 = vmatprep.subr.mxu0 0.0
    %5668 = vmatpush1.msra.mxu0 0.0
    %5669 = vmatprep.subr.mxu0 0.0
    %5670 = vmatpush1.msra.mxu0 0.0
    %5671 = vmatprep.subr.mxu0 0.0
    %5672 = vmatpush1.msra.mxu0 0.0
    %5673 = vmatprep.subr.mxu0 0.0
    %5674 = vmatpush1.msra.mxu0 0.0
    %5675 = vmatprep.subr.mxu0 0.0
    %5676 = vmatpush1.msra.mxu0 0.0
    %5677 = vmatprep.subr.mxu0 0.0
    %5678 = vmatpush1.msra.mxu0 0.0
    %5679 = vmatprep.subr.mxu0 0.0
    %5680 = vmatpush1.msra.mxu0 0.0
    %5681 = vmatprep.subr.mxu0 0.0
    %5682 = vmatpush1.msra.mxu0 0.0
    %5683 = vmatprep.subr.mxu0 0.0
    %5684 = vmatpush1.msra.mxu0 0.0
    %5685 = vmatprep.subr.mxu0 0.0
    %5686 = vmatpush1.msra.mxu0 0.0
    %5687 = vmatprep.subr.mxu0 0.0
    %5688 = vmatpush1.msra.mxu0 0.0
    %5689 = vmatprep.subr.mxu0 0.0
    %5690 = vmatpush1.msra.mxu0 0.0
    %5691 = vmatprep.subr.mxu0 0.0
    %5692 = vmatpush1.msra.mxu0 0.0
    %5693 = vmatprep.subr.mxu0 0.0
    %5694 = vmatpush1.msra.mxu0 0.0
    %5695 = vmatprep.subr.mxu0 0.0
    %5696 = vmatpush1.msra.mxu0 0.0
    %5697 = vmatprep.subr.mxu0 0.0
    %5698 = vmatpush1.msra.mxu0 0.0
    %5699 = vmatprep.subr.mxu0 0.0
    %5700 = vmatpush1.msra.mxu0 0.0
    %5701 = vmatprep.subr.mxu0 0.0
    %5702 = vmatpush1.msra.mxu0 0.0
    %5703 = vmatprep.subr.mxu0 0.0
    %5704 = vmatpush1.msra.mxu0 0.0
    %5705 = vmatprep.subr.mxu0 0.0
    %5706 = vmatpush1.msra.mxu0 0.0
    %5707 = vmatprep.subr.mxu0 0.0
    %5708 = vmatpush1.msra.mxu0 0.0
    %5709 = vmatprep.subr.mxu0 0.0
    %5710 = vmatpush1.msra.mxu0 0.0
    %5711 = vmatprep.mubr.f32.mxu0 0.0
    %5712 = vmatmul.mubr.f32.gmra.mrb[0].mxu0 %v5645
    %v5713 = vpop.f32.mrb[0].mxu0
    %v5714 = vadd.f32 0.0, %v5713
    %v5715 = vpop.f32.mrb[0].mxu0
    %5716 = vdwg.mxu0
    %v5718 = vsel %vm1197, %v5497, 0
    %5720 = vmatprep.subr.mxu0 0.0
    %5721 = vmatpush1.msra.mxu0 %v5139
    %5722 = vmatprep.subr.mxu0 0.0
    %5723 = vmatpush1.msra.mxu0 0.0
    %5724 = vmatprep.subr.mxu0 0.0
    %5725 = vmatpush1.msra.mxu0 0.0
    %5726 = vmatprep.subr.mxu0 0.0
    %5727 = vmatpush1.msra.mxu0 0.0
    %5728 = vmatprep.subr.mxu0 0.0
    %5729 = vmatpush1.msra.mxu0 0.0
    %5730 = vmatprep.subr.mxu0 0.0
    %5731 = vmatpush1.msra.mxu0 0.0
    %5732 = vmatprep.subr.mxu0 0.0
    %5733 = vmatpush1.msra.mxu0 0.0
    %5734 = vmatprep.subr.mxu0 0.0
    %5735 = vmatpush1.msra.mxu0 0.0
    %5736 = vmatprep.subr.mxu0 0.0
    %5737 = vmatpush1.msra.mxu0 0.0
    %5738 = vmatprep.subr.mxu0 0.0
    %5739 = vmatpush1.msra.mxu0 0.0
    %5740 = vmatprep.subr.mxu0 0.0
    %5741 = vmatpush1.msra.mxu0 0.0
    %5742 = vmatprep.subr.mxu0 0.0
    %5743 = vmatpush1.msra.mxu0 0.0
    %5744 = vmatprep.subr.mxu0 0.0
    %5745 = vmatpush1.msra.mxu0 0.0
    %5746 = vmatprep.subr.mxu0 0.0
    %5747 = vmatpush1.msra.mxu0 0.0
    %5748 = vmatprep.subr.mxu0 0.0
    %5749 = vmatpush1.msra.mxu0 0.0
    %5750 = vmatprep.subr.mxu0 0.0
    %5751 = vmatpush1.msra.mxu0 0.0
    %5752 = vmatprep.subr.mxu0 0.0
    %5753 = vmatpush1.msra.mxu0 0.0
    %5754 = vmatprep.subr.mxu0 0.0
    %5755 = vmatpush1.msra.mxu0 0.0
    %5756 = vmatprep.subr.mxu0 0.0
    %5757 = vmatpush1.msra.mxu0 0.0
    %5758 = vmatprep.subr.mxu0 0.0
    %5759 = vmatpush1.msra.mxu0 0.0
    %5760 = vmatprep.subr.mxu0 0.0
    %5761 = vmatpush1.msra.mxu0 0.0
    %5762 = vmatprep.subr.mxu0 0.0
    %5763 = vmatpush1.msra.mxu0 0.0
    %5764 = vmatprep.subr.mxu0 0.0
    %5765 = vmatpush1.msra.mxu0 0.0
    %5766 = vmatprep.subr.mxu0 0.0
    %5767 = vmatpush1.msra.mxu0 0.0
    %5768 = vmatprep.subr.mxu0 0.0
    %5769 = vmatpush1.msra.mxu0 0.0
    %5770 = vmatprep.subr.mxu0 0.0
    %5771 = vmatpush1.msra.mxu0 0.0
    %5772 = vmatprep.subr.mxu0 0.0
    %5773 = vmatpush1.msra.mxu0 0.0
    %5774 = vmatprep.subr.mxu0 0.0
    %5775 = vmatpush1.msra.mxu0 0.0
    %5776 = vmatprep.subr.mxu0 0.0
    %5777 = vmatpush1.msra.mxu0 0.0
    %5778 = vmatprep.subr.mxu0 0.0
    %5779 = vmatpush1.msra.mxu0 0.0
    %5780 = vmatprep.subr.mxu0 0.0
    %5781 = vmatpush1.msra.mxu0 0.0
    %5782 = vmatprep.subr.mxu0 0.0
    %5783 = vmatpush1.msra.mxu0 0.0
    %5784 = vmatprep.mubr.f32.mxu0 0.0
    %5785 = vmatmul.mubr.f32.gmra.mrb[0].mxu0 %v5718
    %v5786 = vpop.f32.mrb[0].mxu0
    %v5787 = vadd.f32 0.0, %v5786
    %v5788 = vpop.f32.mrb[0].mxu0
    %5789 = vdwg.mxu0
    %v5791 = vsel %vm1197, %v5568, 0
    %5793 = vmatprep.subr.mxu0 0.0
    %5794 = vmatpush1.msra.mxu0 %v187
    %5795 = vmatprep.subr.mxu0 0.0
    %5796 = vmatpush1.msra.mxu0 0.0
    %5797 = vmatprep.subr.mxu0 0.0
    %5798 = vmatpush1.msra.mxu0 0.0
    %5799 = vmatprep.subr.mxu0 0.0
    %5800 = vmatpush1.msra.mxu0 0.0
    %5801 = vmatprep.subr.mxu0 0.0
    %5802 = vmatpush1.msra.mxu0 0.0
    %5803 = vmatprep.subr.mxu0 0.0
    %5804 = vmatpush1.msra.mxu0 0.0
    %5805 = vmatprep.subr.mxu0 0.0
    %5806 = vmatpush1.msra.mxu0 0.0
    %5807 = vmatprep.subr.mxu0 0.0
    %5808 = vmatpush1.msra.mxu0 0.0
    %5809 = vmatprep.subr.mxu0 0.0
    %5810 = vmatpush1.msra.mxu0 0.0
    %5811 = vmatprep.subr.mxu0 0.0
    %5812 = vmatpush1.msra.mxu0 0.0
    %5813 = vmatprep.subr.mxu0 0.0
    %5814 = vmatpush1.msra.mxu0 0.0
    %5815 = vmatprep.subr.mxu0 0.0
    %5816 = vmatpush1.msra.mxu0 0.0
    %5817 = vmatprep.subr.mxu0 0.0
    %5818 = vmatpush1.msra.mxu0 0.0
    %5819 = vmatprep.subr.mxu0 0.0
    %5820 = vmatpush1.msra.mxu0 0.0
    %5821 = vmatprep.subr.mxu0 0.0
    %5822 = vmatpush1.msra.mxu0 0.0
    %5823 = vmatprep.subr.mxu0 0.0
    %5824 = vmatpush1.msra.mxu0 0.0
    %5825 = vmatprep.subr.mxu0 0.0
    %5826 = vmatpush1.msra.mxu0 0.0
    %5827 = vmatprep.subr.mxu0 0.0
    %5828 = vmatpush1.msra.mxu0 0.0
    %5829 = vmatprep.subr.mxu0 0.0
    %5830 = vmatpush1.msra.mxu0 0.0
    %5831 = vmatprep.subr.mxu0 0.0
    %5832 = vmatpush1.msra.mxu0 0.0
    %5833 = vmatprep.subr.mxu0 0.0
    %5834 = vmatpush1.msra.mxu0 0.0
    %5835 = vmatprep.subr.mxu0 0.0
    %5836 = vmatpush1.msra.mxu0 0.0
    %5837 = vmatprep.subr.mxu0 0.0
    %5838 = vmatpush1.msra.mxu0 0.0
    %5839 = vmatprep.subr.mxu0 0.0
    %5840 = vmatpush1.msra.mxu0 0.0
    %5841 = vmatprep.subr.mxu0 0.0
    %5842 = vmatpush1.msra.mxu0 0.0
    %5843 = vmatprep.subr.mxu0 0.0
    %5844 = vmatpush1.msra.mxu0 0.0
    %5845 = vmatprep.subr.mxu0 0.0
    %5846 = vmatpush1.msra.mxu0 0.0
    %5847 = vmatprep.subr.mxu0 0.0
    %5848 = vmatpush1.msra.mxu0 0.0
    %5849 = vmatprep.subr.mxu0 0.0
    %5850 = vmatpush1.msra.mxu0 0.0
    %5851 = vmatprep.subr.mxu0 0.0
    %5852 = vmatpush1.msra.mxu0 0.0
    %5853 = vmatprep.subr.mxu0 0.0
    %5854 = vmatpush1.msra.mxu0 0.0
    %5855 = vmatprep.subr.mxu0 0.0
    %5856 = vmatpush1.msra.mxu0 0.0
    %5857 = vmatprep.mubr.f32.mxu0 0.0
    %5858 = vmatmul.mubr.f32.gmra.mrb[0].mxu0 %v5791
    %v5859 = vpop.f32.mrb[0].mxu0
    %v5860 = vadd.f32 0.0, %v5859
    %v5861 = vpop.f32.mrb[0].mxu0
    %5862 = vdwg.mxu0
    %v5864 = vsel %vm1197, %v5641, 0
    %5866 = vmatprep.subr.mxu0 0.0
    %5867 = vmatpush1.msra.mxu0 %v188
    %5868 = vmatprep.subr.mxu0 0.0
    %5869 = vmatpush1.msra.mxu0 0.0
    %5870 = vmatprep.subr.mxu0 0.0
    %5871 = vmatpush1.msra.mxu0 0.0
    %5872 = vmatprep.subr.mxu0 0.0
    %5873 = vmatpush1.msra.mxu0 0.0
    %5874 = vmatprep.subr.mxu0 0.0
    %5875 = vmatpush1.msra.mxu0 0.0
    %5876 = vmatprep.subr.mxu0 0.0
    %5877 = vmatpush1.msra.mxu0 0.0
    %5878 = vmatprep.subr.mxu0 0.0
    %5879 = vmatpush1.msra.mxu0 0.0
    %5880 = vmatprep.subr.mxu0 0.0
    %5881 = vmatpush1.msra.mxu0 0.0
    %5882 = vmatprep.subr.mxu0 0.0
    %5883 = vmatpush1.msra.mxu0 0.0
    %5884 = vmatprep.subr.mxu0 0.0
    %5885 = vmatpush1.msra.mxu0 0.0
    %5886 = vmatprep.subr.mxu0 0.0
    %5887 = vmatpush1.msra.mxu0 0.0
    %5888 = vmatprep.subr.mxu0 0.0
    %5889 = vmatpush1.msra.mxu0 0.0
    %5890 = vmatprep.subr.mxu0 0.0
    %5891 = vmatpush1.msra.mxu0 0.0
    %5892 = vmatprep.subr.mxu0 0.0
    %5893 = vmatpush1.msra.mxu0 0.0
    %5894 = vmatprep.subr.mxu0 0.0
    %5895 = vmatpush1.msra.mxu0 0.0
    %5896 = vmatprep.subr.mxu0 0.0
    %5897 = vmatpush1.msra.mxu0 0.0
    %5898 = vmatprep.subr.mxu0 0.0
    %5899 = vmatpush1.msra.mxu0 0.0
    %5900 = vmatprep.subr.mxu0 0.0
    %5901 = vmatpush1.msra.mxu0 0.0
    %5902 = vmatprep.subr.mxu0 0.0
    %5903 = vmatpush1.msra.mxu0 0.0
    %5904 = vmatprep.subr.mxu0 0.0
    %5905 = vmatpush1.msra.mxu0 0.0
    %5906 = vmatprep.subr.mxu0 0.0
    %5907 = vmatpush1.msra.mxu0 0.0
    %5908 = vmatprep.subr.mxu0 0.0
    %5909 = vmatpush1.msra.mxu0 0.0
    %5910 = vmatprep.subr.mxu0 0.0
    %5911 = vmatpush1.msra.mxu0 0.0
    %5912 = vmatprep.subr.mxu0 0.0
    %5913 = vmatpush1.msra.mxu0 0.0
    %5914 = vmatprep.subr.mxu0 0.0
    %5915 = vmatpush1.msra.mxu0 0.0
    %5916 = vmatprep.subr.mxu0 0.0
    %5917 = vmatpush1.msra.mxu0 0.0
    %5918 = vmatprep.subr.mxu0 0.0
    %5919 = vmatpush1.msra.mxu0 0.0
    %5920 = vmatprep.subr.mxu0 0.0
    %5921 = vmatpush1.msra.mxu0 0.0
    %5922 = vmatprep.subr.mxu0 0.0
    %5923 = vmatpush1.msra.mxu0 0.0
    %5924 = vmatprep.subr.mxu0 0.0
    %5925 = vmatpush1.msra.mxu0 0.0
    %5926 = vmatprep.subr.mxu0 0.0
    %5927 = vmatpush1.msra.mxu0 0.0
    %5928 = vmatprep.subr.mxu0 0.0
    %5929 = vmatpush1.msra.mxu0 0.0
    %5930 = vmatprep.mubr.f32.mxu0 0.0
    %5931 = vmatmul.mubr.f32.gmra.mrb[0].mxu0 %v5864
    %v5932 = vpop.f32.mrb[0].mxu0
    %v5933 = vadd.f32 0.0, %v5932
    %v5934 = vpop.f32.mrb[0].mxu0
    %5935 = vdwg.mxu0
    %v5937 = vsel %vm1197, %v5714, 0
    %5939 = vmatprep.subr.mxu0 0.0
    %5940 = vmatpush1.msra.mxu0 %v189
    %5941 = vmatprep.subr.mxu0 0.0
    %5942 = vmatpush1.msra.mxu0 0.0
    %5943 = vmatprep.subr.mxu0 0.0
    %5944 = vmatpush1.msra.mxu0 0.0
    %5945 = vmatprep.subr.mxu0 0.0
    %5946 = vmatpush1.msra.mxu0 0.0
    %5947 = vmatprep.subr.mxu0 0.0
    %5948 = vmatpush1.msra.mxu0 0.0
    %5949 = vmatprep.subr.mxu0 0.0
    %5950 = vmatpush1.msra.mxu0 0.0
    %5951 = vmatprep.subr.mxu0 0.0
    %5952 = vmatpush1.msra.mxu0 0.0
    %5953 = vmatprep.subr.mxu0 0.0
    %5954 = vmatpush1.msra.mxu0 0.0
    %5955 = vmatprep.subr.mxu0 0.0
    %5956 = vmatpush1.msra.mxu0 0.0
    %5957 = vmatprep.subr.mxu0 0.0
    %5958 = vmatpush1.msra.mxu0 0.0
    %5959 = vmatprep.subr.mxu0 0.0
    %5960 = vmatpush1.msra.mxu0 0.0
    %5961 = vmatprep.subr.mxu0 0.0
    %5962 = vmatpush1.msra.mxu0 0.0
    %5963 = vmatprep.subr.mxu0 0.0
    %5964 = vmatpush1.msra.mxu0 0.0
    %5965 = vmatprep.subr.mxu0 0.0
    %5966 = vmatpush1.msra.mxu0 0.0
    %5967 = vmatprep.subr.mxu0 0.0
    %5968 = vmatpush1.msra.mxu0 0.0
    %5969 = vmatprep.subr.mxu0 0.0
    %5970 = vmatpush1.msra.mxu0 0.0
    %5971 = vmatprep.subr.mxu0 0.0
    %5972 = vmatpush1.msra.mxu0 0.0
    %5973 = vmatprep.subr.mxu0 0.0
    %5974 = vmatpush1.msra.mxu0 0.0
    %5975 = vmatprep.subr.mxu0 0.0
    %5976 = vmatpush1.msra.mxu0 0.0
    %5977 = vmatprep.subr.mxu0 0.0
    %5978 = vmatpush1.msra.mxu0 0.0
    %5979 = vmatprep.subr.mxu0 0.0
    %5980 = vmatpush1.msra.mxu0 0.0
    %5981 = vmatprep.subr.mxu0 0.0
    %5982 = vmatpush1.msra.mxu0 0.0
    %5983 = vmatprep.subr.mxu0 0.0
    %5984 = vmatpush1.msra.mxu0 0.0
    %5985 = vmatprep.subr.mxu0 0.0
    %5986 = vmatpush1.msra.mxu0 0.0
    %5987 = vmatprep.subr.mxu0 0.0
    %5988 = vmatpush1.msra.mxu0 0.0
    %5989 = vmatprep.subr.mxu0 0.0
    %5990 = vmatpush1.msra.mxu0 0.0
    %5991 = vmatprep.subr.mxu0 0.0
    %5992 = vmatpush1.msra.mxu0 0.0
    %5993 = vmatprep.subr.mxu0 0.0
    %5994 = vmatpush1.msra.mxu0 0.0
    %5995 = vmatprep.subr.mxu0 0.0
    %5996 = vmatpush1.msra.mxu0 0.0
    %5997 = vmatprep.subr.mxu0 0.0
    %5998 = vmatpush1.msra.mxu0 0.0
    %5999 = vmatprep.subr.mxu0 0.0
    %6000 = vmatpush1.msra.mxu0 0.0
    %6001 = vmatprep.subr.mxu0 0.0
    %6002 = vmatpush1.msra.mxu0 0.0
    %6003 = vmatprep.mubr.f32.mxu0 0.0
    %6004 = vmatmul.mubr.f32.gmra.mrb[0].mxu0 %v5937
    %v6005 = vpop.f32.mrb[0].mxu0
    %v6006 = vadd.f32 0.0, %v6005
    %v6007 = vpop.f32.mrb[0].mxu0
    %6008 = vdwg.mxu0
    %v6010 = vsel %vm1197, %v5787, 0
    %6012 = vmatprep.subr.mxu0 0.0
    %6013 = vmatpush1.msra.mxu0 %v190
    %6014 = vmatprep.subr.mxu0 0.0
    %6015 = vmatpush1.msra.mxu0 0.0
    %6016 = vmatprep.subr.mxu0 0.0
    %6017 = vmatpush1.msra.mxu0 0.0
    %6018 = vmatprep.subr.mxu0 0.0
    %6019 = vmatpush1.msra.mxu0 0.0
    %6020 = vmatprep.subr.mxu0 0.0
    %6021 = vmatpush1.msra.mxu0 0.0
    %6022 = vmatprep.subr.mxu0 0.0
    %6023 = vmatpush1.msra.mxu0 0.0
    %6024 = vmatprep.subr.mxu0 0.0
    %6025 = vmatpush1.msra.mxu0 0.0
    %6026 = vmatprep.subr.mxu0 0.0
    %6027 = vmatpush1.msra.mxu0 0.0
    %6028 = vmatprep.subr.mxu0 0.0
    %6029 = vmatpush1.msra.mxu0 0.0
    %6030 = vmatprep.subr.mxu0 0.0
    %6031 = vmatpush1.msra.mxu0 0.0
    %6032 = vmatprep.subr.mxu0 0.0
    %6033 = vmatpush1.msra.mxu0 0.0
    %6034 = vmatprep.subr.mxu0 0.0
    %6035 = vmatpush1.msra.mxu0 0.0
    %6036 = vmatprep.subr.mxu0 0.0
    %6037 = vmatpush1.msra.mxu0 0.0
    %6038 = vmatprep.subr.mxu0 0.0
    %6039 = vmatpush1.msra.mxu0 0.0
    %6040 = vmatprep.subr.mxu0 0.0
    %6041 = vmatpush1.msra.mxu0 0.0
    %6042 = vmatprep.subr.mxu0 0.0
    %6043 = vmatpush1.msra.mxu0 0.0
    %6044 = vmatprep.subr.mxu0 0.0
    %6045 = vmatpush1.msra.mxu0 0.0
    %6046 = vmatprep.subr.mxu0 0.0
    %6047 = vmatpush1.msra.mxu0 0.0
    %6048 = vmatprep.subr.mxu0 0.0
    %6049 = vmatpush1.msra.mxu0 0.0
    %6050 = vmatprep.subr.mxu0 0.0
    %6051 = vmatpush1.msra.mxu0 0.0
    %6052 = vmatprep.subr.mxu0 0.0
    %6053 = vmatpush1.msra.mxu0 0.0
    %6054 = vmatprep.subr.mxu0 0.0
    %6055 = vmatpush1.msra.mxu0 0.0
    %6056 = vmatprep.subr.mxu0 0.0
    %6057 = vmatpush1.msra.mxu0 0.0
    %6058 = vmatprep.subr.mxu0 0.0
    %6059 = vmatpush1.msra.mxu0 0.0
    %6060 = vmatprep.subr.mxu0 0.0
    %6061 = vmatpush1.msra.mxu0 0.0
    %6062 = vmatprep.subr.mxu0 0.0
    %6063 = vmatpush1.msra.mxu0 0.0
    %6064 = vmatprep.subr.mxu0 0.0
    %6065 = vmatpush1.msra.mxu0 0.0
    %6066 = vmatprep.subr.mxu0 0.0
    %6067 = vmatpush1.msra.mxu0 0.0
    %6068 = vmatprep.subr.mxu0 0.0
    %6069 = vmatpush1.msra.mxu0 0.0
    %6070 = vmatprep.subr.mxu0 0.0
    %6071 = vmatpush1.msra.mxu0 0.0
    %6072 = vmatprep.subr.mxu0 0.0
    %6073 = vmatpush1.msra.mxu0 0.0
    %6074 = vmatprep.subr.mxu0 0.0
    %6075 = vmatpush1.msra.mxu0 0.0
    %6076 = vmatprep.mubr.f32.mxu0 0.0
    %6077 = vmatmul.mubr.f32.gmra.mrb[0].mxu0 %v6010
    %v6078 = vpop.f32.mrb[0].mxu0
    %v6079 = vadd.f32 0.0, %v6078
    %v6080 = vpop.f32.mrb[0].mxu0
    %6081 = vdwg.mxu0
    %v6082 = vsel %vm305, %v5860, 0.0
    %v6083 = vsel %vm305, %v5933, 0.0
    %v6084 = vadd.f32 %v6082, %v6083
    %v6085 = vsel %vm305, %v6006, 0.0
    %v6086 = vadd.f32 %v6084, %v6085
    %v6087 = vsel %vm305, %v6079, 0.0
    %v6088 = vadd.f32 %v6086, %v6087
    %v6089 = vadd.f32 %v6088, %v2149
    %v6090 = vadd.f32 %v6089, %v4292
    %v6091 = vsel %vm305, %v6090, 0.0
    %6092 = vadd.xlane.f32.xlu0 %v6091
    %v6093 = vpop.xlane.xlu0 %6092
    %v6094 = vmul.f32 %v6093, %v2156
    %v6095 = vsub.f32 %v6090, %v6094
    %v6096 = vmul.f32 %v6095, %v6095
    %v6097 = vsel %vm305, %v6096, 0.0
    %6098 = vadd.xlane.f32.xlu0 %v6097
    %v6099 = vpop.xlane.xlu0 %6098
    %v6100 = vmul.f32 %v6099, 0.032258064
    %v6101 = vrsqrt.pop %v6100
    %v6102 = vmul.f32 %v6100, %v6101
    %vm6103 = vcmp.eq.f32.partialorder %v6100, inf
    %v6104 = vsel %vm6103, %v6100, %v6102
    %vm6105 = vcmp.eq.f32.partialorder %v6100, 0.0
    %v6106 = vand.u32 %v6100, 2147483648
    %v6107 = vsel %vm6105, %v6106, %v6104
    %v6108 = vmul.f32 %v2175, %v6095
    %v6109 = vadd.f32 %v6107, 1e-06
    %v6110 = vrcp.pop %v6109
    %v6111 = vmul.f32 %v6108, %v6110
    %v6112 = vadd.f32 %v6111, %v2185
    %v6114 = vsel %vm305, %v6112, 0
    %6116 = vmatprep.subr.mxu0 0.0
    %6117 = vmatpush1.msra.mxu0 %v194
    %6118 = vmatprep.subr.mxu0 0.0
    %6119 = vmatpush1.msra.mxu0 %v195
    %6120 = vmatprep.subr.mxu0 0.0
    %6121 = vmatpush1.msra.mxu0 %v196
    %6122 = vmatprep.subr.mxu0 0.0
    %6123 = vmatpush1.msra.mxu0 %v197
    %6124 = vmatprep.subr.mxu0 0.0
    %6125 = vmatpush1.msra.mxu0 0.0
    %6126 = vmatprep.subr.mxu0 0.0
    %6127 = vmatpush1.msra.mxu0 0.0
    %6128 = vmatprep.subr.mxu0 0.0
    %6129 = vmatpush1.msra.mxu0 0.0
    %6130 = vmatprep.subr.mxu0 0.0
    %6131 = vmatpush1.msra.mxu0 0.0
    %6132 = vmatprep.subr.mxu0 0.0
    %6133 = vmatpush1.msra.mxu0 0.0
    %6134 = vmatprep.subr.mxu0 0.0
    %6135 = vmatpush1.msra.mxu0 0.0
    %6136 = vmatprep.subr.mxu0 0.0
    %6137 = vmatpush1.msra.mxu0 0.0
    %6138 = vmatprep.subr.mxu0 0.0
    %6139 = vmatpush1.msra.mxu0 0.0
    %6140 = vmatprep.subr.mxu0 0.0
    %6141 = vmatpush1.msra.mxu0 0.0
    %6142 = vmatprep.subr.mxu0 0.0
    %6143 = vmatpush1.msra.mxu0 0.0
    %6144 = vmatprep.subr.mxu0 0.0
    %6145 = vmatpush1.msra.mxu0 0.0
    %6146 = vmatprep.subr.mxu0 0.0
    %6147 = vmatpush1.msra.mxu0 0.0
    %6148 = vmatprep.subr.mxu0 0.0
    %6149 = vmatpush1.msra.mxu0 0.0
    %6150 = vmatprep.subr.mxu0 0.0
    %6151 = vmatpush1.msra.mxu0 0.0
    %6152 = vmatprep.subr.mxu0 0.0
    %6153 = vmatpush1.msra.mxu0 0.0
    %6154 = vmatprep.subr.mxu0 0.0
    %6155 = vmatpush1.msra.mxu0 0.0
    %6156 = vmatprep.subr.mxu0 0.0
    %6157 = vmatpush1.msra.mxu0 0.0
    %6158 = vmatprep.subr.mxu0 0.0
    %6159 = vmatpush1.msra.mxu0 0.0
    %6160 = vmatprep.subr.mxu0 0.0
    %6161 = vmatpush1.msra.mxu0 0.0
    %6162 = vmatprep.subr.mxu0 0.0
    %6163 = vmatpush1.msra.mxu0 0.0
    %6164 = vmatprep.subr.mxu0 0.0
    %6165 = vmatpush1.msra.mxu0 0.0
    %6166 = vmatprep.subr.mxu0 0.0
    %6167 = vmatpush1.msra.mxu0 0.0
    %6168 = vmatprep.subr.mxu0 0.0
    %6169 = vmatpush1.msra.mxu0 0.0
    %6170 = vmatprep.subr.mxu0 0.0
    %6171 = vmatpush1.msra.mxu0 0.0
    %6172 = vmatprep.subr.mxu0 0.0
    %6173 = vmatpush1.msra.mxu0 0.0
    %6174 = vmatprep.subr.mxu0 0.0
    %6175 = vmatpush1.msra.mxu0 0.0
    %6176 = vmatprep.subr.mxu0 0.0
    %6177 = vmatpush1.msra.mxu0 0.0
    %6178 = vmatprep.subr.mxu0 0.0
    %6179 = vmatpush1.msra.mxu0 0.0
    %6180 = vmatprep.mubr.f32.mxu0 0.0
    %6181 = vmatmul.mubr.f32.gmra.mrb[0].mxu0 %v6114
    %v6182 = vpop.f32.mrb[0].mxu0
    %v6183 = vadd.f32 %v2195, %v6182
    %v6184 = vpop.f32.mrb[0].mxu0
    %6185 = vdwg.mxu0
    %6186 = vmatprep.subr.mxu0 0.0
    %6187 = vmatpush1.msra.mxu0 %v198
    %6188 = vmatprep.subr.mxu0 0.0
    %6189 = vmatpush1.msra.mxu0 %v199
    %6190 = vmatprep.subr.mxu0 0.0
    %6191 = vmatpush1.msra.mxu0 %v200
    %6192 = vmatprep.subr.mxu0 0.0
    %6193 = vmatpush1.msra.mxu0 %v201
    %6194 = vmatprep.subr.mxu0 0.0
    %6195 = vmatpush1.msra.mxu0 0.0
    %6196 = vmatprep.subr.mxu0 0.0
    %6197 = vmatpush1.msra.mxu0 0.0
    %6198 = vmatprep.subr.mxu0 0.0
    %6199 = vmatpush1.msra.mxu0 0.0
    %6200 = vmatprep.subr.mxu0 0.0
    %6201 = vmatpush1.msra.mxu0 0.0
    %6202 = vmatprep.subr.mxu0 0.0
    %6203 = vmatpush1.msra.mxu0 0.0
    %6204 = vmatprep.subr.mxu0 0.0
    %6205 = vmatpush1.msra.mxu0 0.0
    %6206 = vmatprep.subr.mxu0 0.0
    %6207 = vmatpush1.msra.mxu0 0.0
    %6208 = vmatprep.subr.mxu0 0.0
    %6209 = vmatpush1.msra.mxu0 0.0
    %6210 = vmatprep.subr.mxu0 0.0
    %6211 = vmatpush1.msra.mxu0 0.0
    %6212 = vmatprep.subr.mxu0 0.0
    %6213 = vmatpush1.msra.mxu0 0.0
    %6214 = vmatprep.subr.mxu0 0.0
    %6215 = vmatpush1.msra.mxu0 0.0
    %6216 = vmatprep.subr.mxu0 0.0
    %6217 = vmatpush1.msra.mxu0 0.0
    %6218 = vmatprep.subr.mxu0 0.0
    %6219 = vmatpush1.msra.mxu0 0.0
    %6220 = vmatprep.subr.mxu0 0.0
    %6221 = vmatpush1.msra.mxu0 0.0
    %6222 = vmatprep.subr.mxu0 0.0
    %6223 = vmatpush1.msra.mxu0 0.0
    %6224 = vmatprep.subr.mxu0 0.0
    %6225 = vmatpush1.msra.mxu0 0.0
    %6226 = vmatprep.subr.mxu0 0.0
    %6227 = vmatpush1.msra.mxu0 0.0
    %6228 = vmatprep.subr.mxu0 0.0
    %6229 = vmatpush1.msra.mxu0 0.0
    %6230 = vmatprep.subr.mxu0 0.0
    %6231 = vmatpush1.msra.mxu0 0.0
    %6232 = vmatprep.subr.mxu0 0.0
    %6233 = vmatpush1.msra.mxu0 0.0
    %6234 = vmatprep.subr.mxu0 0.0
    %6235 = vmatpush1.msra.mxu0 0.0
    %6236 = vmatprep.subr.mxu0 0.0
    %6237 = vmatpush1.msra.mxu0 0.0
    %6238 = vmatprep.subr.mxu0 0.0
    %6239 = vmatpush1.msra.mxu0 0.0
    %6240 = vmatprep.subr.mxu0 0.0
    %6241 = vmatpush1.msra.mxu0 0.0
    %6242 = vmatprep.subr.mxu0 0.0
    %6243 = vmatpush1.msra.mxu0 0.0
    %6244 = vmatprep.subr.mxu0 0.0
    %6245 = vmatpush1.msra.mxu0 0.0
    %6246 = vmatprep.subr.mxu0 0.0
    %6247 = vmatpush1.msra.mxu0 0.0
    %6248 = vmatprep.subr.mxu0 0.0
    %6249 = vmatpush1.msra.mxu0 0.0
    %6250 = vmatprep.mubr.f32.mxu0 0.0
    %6251 = vmatmul.mubr.f32.gmra.mrb[0].mxu0 %v6114
    %v6252 = vpop.f32.mrb[0].mxu0
    %v6253 = vadd.f32 %v2199, %v6252
    %v6254 = vpop.f32.mrb[0].mxu0
    %6255 = vdwg.mxu0
    %6256 = vmatprep.subr.mxu0 0.0
    %6257 = vmatpush1.msra.mxu0 %v202
    %6258 = vmatprep.subr.mxu0 0.0
    %6259 = vmatpush1.msra.mxu0 %v203
    %6260 = vmatprep.subr.mxu0 0.0
    %6261 = vmatpush1.msra.mxu0 %v204
    %6262 = vmatprep.subr.mxu0 0.0
    %6263 = vmatpush1.msra.mxu0 %v205
    %6264 = vmatprep.subr.mxu0 0.0
    %6265 = vmatpush1.msra.mxu0 0.0
    %6266 = vmatprep.subr.mxu0 0.0
    %6267 = vmatpush1.msra.mxu0 0.0
    %6268 = vmatprep.subr.mxu0 0.0
    %6269 = vmatpush1.msra.mxu0 0.0
    %6270 = vmatprep.subr.mxu0 0.0
    %6271 = vmatpush1.msra.mxu0 0.0
    %6272 = vmatprep.subr.mxu0 0.0
    %6273 = vmatpush1.msra.mxu0 0.0
    %6274 = vmatprep.subr.mxu0 0.0
    %6275 = vmatpush1.msra.mxu0 0.0
    %6276 = vmatprep.subr.mxu0 0.0
    %6277 = vmatpush1.msra.mxu0 0.0
    %6278 = vmatprep.subr.mxu0 0.0
    %6279 = vmatpush1.msra.mxu0 0.0
    %6280 = vmatprep.subr.mxu0 0.0
    %6281 = vmatpush1.msra.mxu0 0.0
    %6282 = vmatprep.subr.mxu0 0.0
    %6283 = vmatpush1.msra.mxu0 0.0
    %6284 = vmatprep.subr.mxu0 0.0
    %6285 = vmatpush1.msra.mxu0 0.0
    %6286 = vmatprep.subr.mxu0 0.0
    %6287 = vmatpush1.msra.mxu0 0.0
    %6288 = vmatprep.subr.mxu0 0.0
    %6289 = vmatpush1.msra.mxu0 0.0
    %6290 = vmatprep.subr.mxu0 0.0
    %6291 = vmatpush1.msra.mxu0 0.0
    %6292 = vmatprep.subr.mxu0 0.0
    %6293 = vmatpush1.msra.mxu0 0.0
    %6294 = vmatprep.subr.mxu0 0.0
    %6295 = vmatpush1.msra.mxu0 0.0
    %6296 = vmatprep.subr.mxu0 0.0
    %6297 = vmatpush1.msra.mxu0 0.0
    %6298 = vmatprep.subr.mxu0 0.0
    %6299 = vmatpush1.msra.mxu0 0.0
    %6300 = vmatprep.subr.mxu0 0.0
    %6301 = vmatpush1.msra.mxu0 0.0
    %6302 = vmatprep.subr.mxu0 0.0
    %6303 = vmatpush1.msra.mxu0 0.0
    %6304 = vmatprep.subr.mxu0 0.0
    %6305 = vmatpush1.msra.mxu0 0.0
    %6306 = vmatprep.subr.mxu0 0.0
    %6307 = vmatpush1.msra.mxu0 0.0
    %6308 = vmatprep.subr.mxu0 0.0
    %6309 = vmatpush1.msra.mxu0 0.0
    %6310 = vmatprep.subr.mxu0 0.0
    %6311 = vmatpush1.msra.mxu0 0.0
    %6312 = vmatprep.subr.mxu0 0.0
    %6313 = vmatpush1.msra.mxu0 0.0
    %6314 = vmatprep.subr.mxu0 0.0
    %6315 = vmatpush1.msra.mxu0 0.0
    %6316 = vmatprep.subr.mxu0 0.0
    %6317 = vmatpush1.msra.mxu0 0.0
    %6318 = vmatprep.subr.mxu0 0.0
    %6319 = vmatpush1.msra.mxu0 0.0
    %6320 = vmatprep.mubr.f32.mxu0 0.0
    %6321 = vmatmul.mubr.f32.gmra.mrb[0].mxu0 %v6114
    %v6322 = vpop.f32.mrb[0].mxu0
    %v6323 = vadd.f32 %v2203, %v6322
    %v6324 = vpop.f32.mrb[0].mxu0
    %6325 = vdwg.mxu0
    %6326 = vmatprep.subr.mxu0 0.0
    %6327 = vmatpush1.msra.mxu0 %v206
    %6328 = vmatprep.subr.mxu0 0.0
    %6329 = vmatpush1.msra.mxu0 %v207
    %6330 = vmatprep.subr.mxu0 0.0
    %6331 = vmatpush1.msra.mxu0 %v208
    %6332 = vmatprep.subr.mxu0 0.0
    %6333 = vmatpush1.msra.mxu0 %v209
    %6334 = vmatprep.subr.mxu0 0.0
    %6335 = vmatpush1.msra.mxu0 0.0
    %6336 = vmatprep.subr.mxu0 0.0
    %6337 = vmatpush1.msra.mxu0 0.0
    %6338 = vmatprep.subr.mxu0 0.0
    %6339 = vmatpush1.msra.mxu0 0.0
    %6340 = vmatprep.subr.mxu0 0.0
    %6341 = vmatpush1.msra.mxu0 0.0
    %6342 = vmatprep.subr.mxu0 0.0
    %6343 = vmatpush1.msra.mxu0 0.0
    %6344 = vmatprep.subr.mxu0 0.0
    %6345 = vmatpush1.msra.mxu0 0.0
    %6346 = vmatprep.subr.mxu0 0.0
    %6347 = vmatpush1.msra.mxu0 0.0
    %6348 = vmatprep.subr.mxu0 0.0
    %6349 = vmatpush1.msra.mxu0 0.0
    %6350 = vmatprep.subr.mxu0 0.0
    %6351 = vmatpush1.msra.mxu0 0.0
    %6352 = vmatprep.subr.mxu0 0.0
    %6353 = vmatpush1.msra.mxu0 0.0
    %6354 = vmatprep.subr.mxu0 0.0
    %6355 = vmatpush1.msra.mxu0 0.0
    %6356 = vmatprep.subr.mxu0 0.0
    %6357 = vmatpush1.msra.mxu0 0.0
    %6358 = vmatprep.subr.mxu0 0.0
    %6359 = vmatpush1.msra.mxu0 0.0
    %6360 = vmatprep.subr.mxu0 0.0
    %6361 = vmatpush1.msra.mxu0 0.0
    %6362 = vmatprep.subr.mxu0 0.0
    %6363 = vmatpush1.msra.mxu0 0.0
    %6364 = vmatprep.subr.mxu0 0.0
    %6365 = vmatpush1.msra.mxu0 0.0
    %6366 = vmatprep.subr.mxu0 0.0
    %6367 = vmatpush1.msra.mxu0 0.0
    %6368 = vmatprep.subr.mxu0 0.0
    %6369 = vmatpush1.msra.mxu0 0.0
    %6370 = vmatprep.subr.mxu0 0.0
    %6371 = vmatpush1.msra.mxu0 0.0
    %6372 = vmatprep.subr.mxu0 0.0
    %6373 = vmatpush1.msra.mxu0 0.0
    %6374 = vmatprep.subr.mxu0 0.0
    %6375 = vmatpush1.msra.mxu0 0.0
    %6376 = vmatprep.subr.mxu0 0.0
    %6377 = vmatpush1.msra.mxu0 0.0
    %6378 = vmatprep.subr.mxu0 0.0
    %6379 = vmatpush1.msra.mxu0 0.0
    %6380 = vmatprep.subr.mxu0 0.0
    %6381 = vmatpush1.msra.mxu0 0.0
    %6382 = vmatprep.subr.mxu0 0.0
    %6383 = vmatpush1.msra.mxu0 0.0
    %6384 = vmatprep.subr.mxu0 0.0
    %6385 = vmatpush1.msra.mxu0 0.0
    %6386 = vmatprep.subr.mxu0 0.0
    %6387 = vmatpush1.msra.mxu0 0.0
    %6388 = vmatprep.subr.mxu0 0.0
    %6389 = vmatpush1.msra.mxu0 0.0
    %6390 = vmatprep.mubr.f32.mxu0 0.0
    %6391 = vmatmul.mubr.f32.gmra.mrb[0].mxu0 %v6114
    %v6392 = vpop.f32.mrb[0].mxu0
    %v6393 = vadd.f32 %v2207, %v6392
    %v6394 = vpop.f32.mrb[0].mxu0
    %6395 = vdwg.mxu0
    %v6397 = vsel %vm305, %v4294, 0
    %6399 = vmatprep.subr.mxu0 0.0
    %6400 = vmatpush1.msra.mxu0 %v214
    %6401 = vmatprep.subr.mxu0 0.0
    %6402 = vmatpush1.msra.mxu0 %v215
    %6403 = vmatprep.subr.mxu0 0.0
    %6404 = vmatpush1.msra.mxu0 %v216
    %6405 = vmatprep.subr.mxu0 0.0
    %6406 = vmatpush1.msra.mxu0 %v217
    %6407 = vmatprep.subr.mxu0 0.0
    %6408 = vmatpush1.msra.mxu0 0.0
    %6409 = vmatprep.subr.mxu0 0.0
    %6410 = vmatpush1.msra.mxu0 0.0
    %6411 = vmatprep.subr.mxu0 0.0
    %6412 = vmatpush1.msra.mxu0 0.0
    %6413 = vmatprep.subr.mxu0 0.0
    %6414 = vmatpush1.msra.mxu0 0.0
    %6415 = vmatprep.subr.mxu0 0.0
    %6416 = vmatpush1.msra.mxu0 0.0
    %6417 = vmatprep.subr.mxu0 0.0
    %6418 = vmatpush1.msra.mxu0 0.0
    %6419 = vmatprep.subr.mxu0 0.0
    %6420 = vmatpush1.msra.mxu0 0.0
    %6421 = vmatprep.subr.mxu0 0.0
    %6422 = vmatpush1.msra.mxu0 0.0
    %6423 = vmatprep.subr.mxu0 0.0
    %6424 = vmatpush1.msra.mxu0 0.0
    %6425 = vmatprep.subr.mxu0 0.0
    %6426 = vmatpush1.msra.mxu0 0.0
    %6427 = vmatprep.subr.mxu0 0.0
    %6428 = vmatpush1.msra.mxu0 0.0
    %6429 = vmatprep.subr.mxu0 0.0
    %6430 = vmatpush1.msra.mxu0 0.0
    %6431 = vmatprep.subr.mxu0 0.0
    %6432 = vmatpush1.msra.mxu0 0.0
    %6433 = vmatprep.subr.mxu0 0.0
    %6434 = vmatpush1.msra.mxu0 0.0
    %6435 = vmatprep.subr.mxu0 0.0
    %6436 = vmatpush1.msra.mxu0 0.0
    %6437 = vmatprep.subr.mxu0 0.0
    %6438 = vmatpush1.msra.mxu0 0.0
    %6439 = vmatprep.subr.mxu0 0.0
    %6440 = vmatpush1.msra.mxu0 0.0
    %6441 = vmatprep.subr.mxu0 0.0
    %6442 = vmatpush1.msra.mxu0 0.0
    %6443 = vmatprep.subr.mxu0 0.0
    %6444 = vmatpush1.msra.mxu0 0.0
    %6445 = vmatprep.subr.mxu0 0.0
    %6446 = vmatpush1.msra.mxu0 0.0
    %6447 = vmatprep.subr.mxu0 0.0
    %6448 = vmatpush1.msra.mxu0 0.0
    %6449 = vmatprep.subr.mxu0 0.0
    %6450 = vmatpush1.msra.mxu0 0.0
    %6451 = vmatprep.subr.mxu0 0.0
    %6452 = vmatpush1.msra.mxu0 0.0
    %6453 = vmatprep.subr.mxu0 0.0
    %6454 = vmatpush1.msra.mxu0 0.0
    %6455 = vmatprep.subr.mxu0 0.0
    %6456 = vmatpush1.msra.mxu0 0.0
    %6457 = vmatprep.subr.mxu0 0.0
    %6458 = vmatpush1.msra.mxu0 0.0
    %6459 = vmatprep.subr.mxu0 0.0
    %6460 = vmatpush1.msra.mxu0 0.0
    %6461 = vmatprep.subr.mxu0 0.0
    %6462 = vmatpush1.msra.mxu0 0.0
    %6463 = vmatprep.mubr.f32.mxu0 0.0
    %6464 = vmatmul.mubr.f32.gmra.mrb[0].mxu0 %v6397
    %v6465 = vpop.f32.mrb[0].mxu0
    %v6466 = vadd.f32 %v2502, %v6465
    %v6467 = vpop.f32.mrb[0].mxu0
    %6468 = vdwg.mxu0
    %6469 = vmatprep.subr.mxu0 0.0
    %6470 = vmatpush1.msra.mxu0 %v218
    %6471 = vmatprep.subr.mxu0 0.0
    %6472 = vmatpush1.msra.mxu0 %v219
    %6473 = vmatprep.subr.mxu0 0.0
    %6474 = vmatpush1.msra.mxu0 %v220
    %6475 = vmatprep.subr.mxu0 0.0
    %6476 = vmatpush1.msra.mxu0 %v221
    %6477 = vmatprep.subr.mxu0 0.0
    %6478 = vmatpush1.msra.mxu0 0.0
    %6479 = vmatprep.subr.mxu0 0.0
    %6480 = vmatpush1.msra.mxu0 0.0
    %6481 = vmatprep.subr.mxu0 0.0
    %6482 = vmatpush1.msra.mxu0 0.0
    %6483 = vmatprep.subr.mxu0 0.0
    %6484 = vmatpush1.msra.mxu0 0.0
    %6485 = vmatprep.subr.mxu0 0.0
    %6486 = vmatpush1.msra.mxu0 0.0
    %6487 = vmatprep.subr.mxu0 0.0
    %6488 = vmatpush1.msra.mxu0 0.0
    %6489 = vmatprep.subr.mxu0 0.0
    %6490 = vmatpush1.msra.mxu0 0.0
    %6491 = vmatprep.subr.mxu0 0.0
    %6492 = vmatpush1.msra.mxu0 0.0
    %6493 = vmatprep.subr.mxu0 0.0
    %6494 = vmatpush1.msra.mxu0 0.0
    %6495 = vmatprep.subr.mxu0 0.0
    %6496 = vmatpush1.msra.mxu0 0.0
    %6497 = vmatprep.subr.mxu0 0.0
    %6498 = vmatpush1.msra.mxu0 0.0
    %6499 = vmatprep.subr.mxu0 0.0
    %6500 = vmatpush1.msra.mxu0 0.0
    %6501 = vmatprep.subr.mxu0 0.0
    %6502 = vmatpush1.msra.mxu0 0.0
    %6503 = vmatprep.subr.mxu0 0.0
    %6504 = vmatpush1.msra.mxu0 0.0
    %6505 = vmatprep.subr.mxu0 0.0
    %6506 = vmatpush1.msra.mxu0 0.0
    %6507 = vmatprep.subr.mxu0 0.0
    %6508 = vmatpush1.msra.mxu0 0.0
    %6509 = vmatprep.subr.mxu0 0.0
    %6510 = vmatpush1.msra.mxu0 0.0
    %6511 = vmatprep.subr.mxu0 0.0
    %6512 = vmatpush1.msra.mxu0 0.0
    %6513 = vmatprep.subr.mxu0 0.0
    %6514 = vmatpush1.msra.mxu0 0.0
    %6515 = vmatprep.subr.mxu0 0.0
    %6516 = vmatpush1.msra.mxu0 0.0
    %6517 = vmatprep.subr.mxu0 0.0
    %6518 = vmatpush1.msra.mxu0 0.0
    %6519 = vmatprep.subr.mxu0 0.0
    %6520 = vmatpush1.msra.mxu0 0.0
    %6521 = vmatprep.subr.mxu0 0.0
    %6522 = vmatpush1.msra.mxu0 0.0
    %6523 = vmatprep.subr.mxu0 0.0
    %6524 = vmatpush1.msra.mxu0 0.0
    %6525 = vmatprep.subr.mxu0 0.0
    %6526 = vmatpush1.msra.mxu0 0.0
    %6527 = vmatprep.subr.mxu0 0.0
    %6528 = vmatpush1.msra.mxu0 0.0
    %6529 = vmatprep.subr.mxu0 0.0
    %6530 = vmatpush1.msra.mxu0 0.0
    %6531 = vmatprep.subr.mxu0 0.0
    %6532 = vmatpush1.msra.mxu0 0.0
    %6533 = vmatprep.mubr.f32.mxu0 0.0
    %6534 = vmatmul.mubr.f32.gmra.mrb[0].mxu0 %v6397
    %v6535 = vpop.f32.mrb[0].mxu0
    %v6536 = vadd.f32 %v2506, %v6535
    %v6537 = vpop.f32.mrb[0].mxu0
    %6538 = vdwg.mxu0
    %6539 = vmatprep.subr.mxu0 0.0
    %6540 = vmatpush1.msra.mxu0 %v222
    %6541 = vmatprep.subr.mxu0 0.0
    %6542 = vmatpush1.msra.mxu0 %v223
    %6543 = vmatprep.subr.mxu0 0.0
    %6544 = vmatpush1.msra.mxu0 %v224
    %6545 = vmatprep.subr.mxu0 0.0
    %6546 = vmatpush1.msra.mxu0 %v225
    %6547 = vmatprep.subr.mxu0 0.0
    %6548 = vmatpush1.msra.mxu0 0.0
    %6549 = vmatprep.subr.mxu0 0.0
    %6550 = vmatpush1.msra.mxu0 0.0
    %6551 = vmatprep.subr.mxu0 0.0
    %6552 = vmatpush1.msra.mxu0 0.0
    %6553 = vmatprep.subr.mxu0 0.0
    %6554 = vmatpush1.msra.mxu0 0.0
    %6555 = vmatprep.subr.mxu0 0.0
    %6556 = vmatpush1.msra.mxu0 0.0
    %6557 = vmatprep.subr.mxu0 0.0
    %6558 = vmatpush1.msra.mxu0 0.0
    %6559 = vmatprep.subr.mxu0 0.0
    %6560 = vmatpush1.msra.mxu0 0.0
    %6561 = vmatprep.subr.mxu0 0.0
    %6562 = vmatpush1.msra.mxu0 0.0
    %6563 = vmatprep.subr.mxu0 0.0
    %6564 = vmatpush1.msra.mxu0 0.0
    %6565 = vmatprep.subr.mxu0 0.0
    %6566 = vmatpush1.msra.mxu0 0.0
    %6567 = vmatprep.subr.mxu0 0.0
    %6568 = vmatpush1.msra.mxu0 0.0
    %6569 = vmatprep.subr.mxu0 0.0
    %6570 = vmatpush1.msra.mxu0 0.0
    %6571 = vmatprep.subr.mxu0 0.0
    %6572 = vmatpush1.msra.mxu0 0.0
    %6573 = vmatprep.subr.mxu0 0.0
    %6574 = vmatpush1.msra.mxu0 0.0
    %6575 = vmatprep.subr.mxu0 0.0
    %6576 = vmatpush1.msra.mxu0 0.0
    %6577 = vmatprep.subr.mxu0 0.0
    %6578 = vmatpush1.msra.mxu0 0.0
    %6579 = vmatprep.subr.mxu0 0.0
    %6580 = vmatpush1.msra.mxu0 0.0
    %6581 = vmatprep.subr.mxu0 0.0
    %6582 = vmatpush1.msra.mxu0 0.0
    %6583 = vmatprep.subr.mxu0 0.0
    %6584 = vmatpush1.msra.mxu0 0.0
    %6585 = vmatprep.subr.mxu0 0.0
    %6586 = vmatpush1.msra.mxu0 0.0
    %6587 = vmatprep.subr.mxu0 0.0
    %6588 = vmatpush1.msra.mxu0 0.0
    %6589 = vmatprep.subr.mxu0 0.0
    %6590 = vmatpush1.msra.mxu0 0.0
    %6591 = vmatprep.subr.mxu0 0.0
    %6592 = vmatpush1.msra.mxu0 0.0
    %6593 = vmatprep.subr.mxu0 0.0
    %6594 = vmatpush1.msra.mxu0 0.0
    %6595 = vmatprep.subr.mxu0 0.0
    %6596 = vmatpush1.msra.mxu0 0.0
    %6597 = vmatprep.subr.mxu0 0.0
    %6598 = vmatpush1.msra.mxu0 0.0
    %6599 = vmatprep.subr.mxu0 0.0
    %6600 = vmatpush1.msra.mxu0 0.0
    %6601 = vmatprep.subr.mxu0 0.0
    %6602 = vmatpush1.msra.mxu0 0.0
    %6603 = vmatprep.mubr.f32.mxu0 0.0
    %6604 = vmatmul.mubr.f32.gmra.mrb[0].mxu0 %v6397
    %v6605 = vpop.f32.mrb[0].mxu0
    %v6606 = vadd.f32 %v2510, %v6605
    %v6607 = vpop.f32.mrb[0].mxu0
    %6608 = vdwg.mxu0
    %6609 = vmatprep.subr.mxu0 0.0
    %6610 = vmatpush1.msra.mxu0 %v226
    %6611 = vmatprep.subr.mxu0 0.0
    %6612 = vmatpush1.msra.mxu0 %v227
    %6613 = vmatprep.subr.mxu0 0.0
    %6614 = vmatpush1.msra.mxu0 %v228
    %6615 = vmatprep.subr.mxu0 0.0
    %6616 = vmatpush1.msra.mxu0 %v229
    %6617 = vmatprep.subr.mxu0 0.0
    %6618 = vmatpush1.msra.mxu0 0.0
    %6619 = vmatprep.subr.mxu0 0.0
    %6620 = vmatpush1.msra.mxu0 0.0
    %6621 = vmatprep.subr.mxu0 0.0
    %6622 = vmatpush1.msra.mxu0 0.0
    %6623 = vmatprep.subr.mxu0 0.0
    %6624 = vmatpush1.msra.mxu0 0.0
    %6625 = vmatprep.subr.mxu0 0.0
    %6626 = vmatpush1.msra.mxu0 0.0
    %6627 = vmatprep.subr.mxu0 0.0
    %6628 = vmatpush1.msra.mxu0 0.0
    %6629 = vmatprep.subr.mxu0 0.0
    %6630 = vmatpush1.msra.mxu0 0.0
    %6631 = vmatprep.subr.mxu0 0.0
    %6632 = vmatpush1.msra.mxu0 0.0
    %6633 = vmatprep.subr.mxu0 0.0
    %6634 = vmatpush1.msra.mxu0 0.0
    %6635 = vmatprep.subr.mxu0 0.0
    %6636 = vmatpush1.msra.mxu0 0.0
    %6637 = vmatprep.subr.mxu0 0.0
    %6638 = vmatpush1.msra.mxu0 0.0
    %6639 = vmatprep.subr.mxu0 0.0
    %6640 = vmatpush1.msra.mxu0 0.0
    %6641 = vmatprep.subr.mxu0 0.0
    %6642 = vmatpush1.msra.mxu0 0.0
    %6643 = vmatprep.subr.mxu0 0.0
    %6644 = vmatpush1.msra.mxu0 0.0
    %6645 = vmatprep.subr.mxu0 0.0
    %6646 = vmatpush1.msra.mxu0 0.0
    %6647 = vmatprep.subr.mxu0 0.0
    %6648 = vmatpush1.msra.mxu0 0.0
    %6649 = vmatprep.subr.mxu0 0.0
    %6650 = vmatpush1.msra.mxu0 0.0
    %6651 = vmatprep.subr.mxu0 0.0
    %6652 = vmatpush1.msra.mxu0 0.0
    %6653 = vmatprep.subr.mxu0 0.0
    %6654 = vmatpush1.msra.mxu0 0.0
    %6655 = vmatprep.subr.mxu0 0.0
    %6656 = vmatpush1.msra.mxu0 0.0
    %6657 = vmatprep.subr.mxu0 0.0
    %6658 = vmatpush1.msra.mxu0 0.0
    %6659 = vmatprep.subr.mxu0 0.0
    %6660 = vmatpush1.msra.mxu0 0.0
    %6661 = vmatprep.subr.mxu0 0.0
    %6662 = vmatpush1.msra.mxu0 0.0
    %6663 = vmatprep.subr.mxu0 0.0
    %6664 = vmatpush1.msra.mxu0 0.0
    %6665 = vmatprep.subr.mxu0 0.0
    %6666 = vmatpush1.msra.mxu0 0.0
    %6667 = vmatprep.subr.mxu0 0.0
    %6668 = vmatpush1.msra.mxu0 0.0
    %6669 = vmatprep.subr.mxu0 0.0
    %6670 = vmatpush1.msra.mxu0 0.0
    %6671 = vmatprep.subr.mxu0 0.0
    %6672 = vmatpush1.msra.mxu0 0.0
    %6673 = vmatprep.mubr.f32.mxu0 0.0
    %6674 = vmatmul.mubr.f32.gmra.mrb[0].mxu0 %v6397
    %v6675 = vpop.f32.mrb[0].mxu0
    %v6676 = vadd.f32 %v2514, %v6675
    %v6677 = vpop.f32.mrb[0].mxu0
    %6678 = vdwg.mxu0
    %6679 = vmatprep.subr.mxu0 0.0
    %6680 = vmatpush1.msra.mxu0 %v234
    %6681 = vmatprep.subr.mxu0 0.0
    %6682 = vmatpush1.msra.mxu0 %v235
    %6683 = vmatprep.subr.mxu0 0.0
    %6684 = vmatpush1.msra.mxu0 %v236
    %6685 = vmatprep.subr.mxu0 0.0
    %6686 = vmatpush1.msra.mxu0 %v237
    %6687 = vmatprep.subr.mxu0 0.0
    %6688 = vmatpush1.msra.mxu0 0.0
    %6689 = vmatprep.subr.mxu0 0.0
    %6690 = vmatpush1.msra.mxu0 0.0
    %6691 = vmatprep.subr.mxu0 0.0
    %6692 = vmatpush1.msra.mxu0 0.0
    %6693 = vmatprep.subr.mxu0 0.0
    %6694 = vmatpush1.msra.mxu0 0.0
    %6695 = vmatprep.subr.mxu0 0.0
    %6696 = vmatpush1.msra.mxu0 0.0
    %6697 = vmatprep.subr.mxu0 0.0
    %6698 = vmatpush1.msra.mxu0 0.0
    %6699 = vmatprep.subr.mxu0 0.0
    %6700 = vmatpush1.msra.mxu0 0.0
    %6701 = vmatprep.subr.mxu0 0.0
    %6702 = vmatpush1.msra.mxu0 0.0
    %6703 = vmatprep.subr.mxu0 0.0
    %6704 = vmatpush1.msra.mxu0 0.0
    %6705 = vmatprep.subr.mxu0 0.0
    %6706 = vmatpush1.msra.mxu0 0.0
    %6707 = vmatprep.subr.mxu0 0.0
    %6708 = vmatpush1.msra.mxu0 0.0
    %6709 = vmatprep.subr.mxu0 0.0
    %6710 = vmatpush1.msra.mxu0 0.0
    %6711 = vmatprep.subr.mxu0 0.0
    %6712 = vmatpush1.msra.mxu0 0.0
    %6713 = vmatprep.subr.mxu0 0.0
    %6714 = vmatpush1.msra.mxu0 0.0
    %6715 = vmatprep.subr.mxu0 0.0
    %6716 = vmatpush1.msra.mxu0 0.0
    %6717 = vmatprep.subr.mxu0 0.0
    %6718 = vmatpush1.msra.mxu0 0.0
    %6719 = vmatprep.subr.mxu0 0.0
    %6720 = vmatpush1.msra.mxu0 0.0
    %6721 = vmatprep.subr.mxu0 0.0
    %6722 = vmatpush1.msra.mxu0 0.0
    %6723 = vmatprep.subr.mxu0 0.0
    %6724 = vmatpush1.msra.mxu0 0.0
    %6725 = vmatprep.subr.mxu0 0.0
    %6726 = vmatpush1.msra.mxu0 0.0
    %6727 = vmatprep.subr.mxu0 0.0
    %6728 = vmatpush1.msra.mxu0 0.0
    %6729 = vmatprep.subr.mxu0 0.0
    %6730 = vmatpush1.msra.mxu0 0.0
    %6731 = vmatprep.subr.mxu0 0.0
    %6732 = vmatpush1.msra.mxu0 0.0
    %6733 = vmatprep.subr.mxu0 0.0
    %6734 = vmatpush1.msra.mxu0 0.0
    %6735 = vmatprep.subr.mxu0 0.0
    %6736 = vmatpush1.msra.mxu0 0.0
    %6737 = vmatprep.subr.mxu0 0.0
    %6738 = vmatpush1.msra.mxu0 0.0
    %6739 = vmatprep.subr.mxu0 0.0
    %6740 = vmatpush1.msra.mxu0 0.0
    %6741 = vmatprep.subr.mxu0 0.0
    %6742 = vmatpush1.msra.mxu0 0.0
    %6743 = vmatprep.mubr.f32.mxu0 0.0
    %6744 = vmatmul.mubr.f32.gmra.mrb[0].mxu0 %v6397
    %v6745 = vpop.f32.mrb[0].mxu0
    %v6746 = vadd.f32 %v2809, %v6745
    %v6747 = vpop.f32.mrb[0].mxu0
    %6748 = vdwg.mxu0
    %6749 = vmatprep.subr.mxu0 0.0
    %6750 = vmatpush1.msra.mxu0 %v238
    %6751 = vmatprep.subr.mxu0 0.0
    %6752 = vmatpush1.msra.mxu0 %v239
    %6753 = vmatprep.subr.mxu0 0.0
    %6754 = vmatpush1.msra.mxu0 %v240
    %6755 = vmatprep.subr.mxu0 0.0
    %6756 = vmatpush1.msra.mxu0 %v241
    %6757 = vmatprep.subr.mxu0 0.0
    %6758 = vmatpush1.msra.mxu0 0.0
    %6759 = vmatprep.subr.mxu0 0.0
    %6760 = vmatpush1.msra.mxu0 0.0
    %6761 = vmatprep.subr.mxu0 0.0
    %6762 = vmatpush1.msra.mxu0 0.0
    %6763 = vmatprep.subr.mxu0 0.0
    %6764 = vmatpush1.msra.mxu0 0.0
    %6765 = vmatprep.subr.mxu0 0.0
    %6766 = vmatpush1.msra.mxu0 0.0
    %6767 = vmatprep.subr.mxu0 0.0
    %6768 = vmatpush1.msra.mxu0 0.0
    %6769 = vmatprep.subr.mxu0 0.0
    %6770 = vmatpush1.msra.mxu0 0.0
    %6771 = vmatprep.subr.mxu0 0.0
    %6772 = vmatpush1.msra.mxu0 0.0
    %6773 = vmatprep.subr.mxu0 0.0
    %6774 = vmatpush1.msra.mxu0 0.0
    %6775 = vmatprep.subr.mxu0 0.0
    %6776 = vmatpush1.msra.mxu0 0.0
    %6777 = vmatprep.subr.mxu0 0.0
    %6778 = vmatpush1.msra.mxu0 0.0
    %6779 = vmatprep.subr.mxu0 0.0
    %6780 = vmatpush1.msra.mxu0 0.0
    %6781 = vmatprep.subr.mxu0 0.0
    %6782 = vmatpush1.msra.mxu0 0.0
    %6783 = vmatprep.subr.mxu0 0.0
    %6784 = vmatpush1.msra.mxu0 0.0
    %6785 = vmatprep.subr.mxu0 0.0
    %6786 = vmatpush1.msra.mxu0 0.0
    %6787 = vmatprep.subr.mxu0 0.0
    %6788 = vmatpush1.msra.mxu0 0.0
    %6789 = vmatprep.subr.mxu0 0.0
    %6790 = vmatpush1.msra.mxu0 0.0
    %6791 = vmatprep.subr.mxu0 0.0
    %6792 = vmatpush1.msra.mxu0 0.0
    %6793 = vmatprep.subr.mxu0 0.0
    %6794 = vmatpush1.msra.mxu0 0.0
    %6795 = vmatprep.subr.mxu0 0.0
    %6796 = vmatpush1.msra.mxu0 0.0
    %6797 = vmatprep.subr.mxu0 0.0
    %6798 = vmatpush1.msra.mxu0 0.0
    %6799 = vmatprep.subr.mxu0 0.0
    %6800 = vmatpush1.msra.mxu0 0.0
    %6801 = vmatprep.subr.mxu0 0.0
    %6802 = vmatpush1.msra.mxu0 0.0
    %6803 = vmatprep.subr.mxu0 0.0
    %6804 = vmatpush1.msra.mxu0 0.0
    %6805 = vmatprep.subr.mxu0 0.0
    %6806 = vmatpush1.msra.mxu0 0.0
    %6807 = vmatprep.subr.mxu0 0.0
    %6808 = vmatpush1.msra.mxu0 0.0
    %6809 = vmatprep.subr.mxu0 0.0
    %6810 = vmatpush1.msra.mxu0 0.0
    %6811 = vmatprep.subr.mxu0 0.0
    %6812 = vmatpush1.msra.mxu0 0.0
    %6813 = vmatprep.mubr.f32.mxu0 0.0
    %6814 = vmatmul.mubr.f32.gmra.mrb[0].mxu0 %v6397
    %v6815 = vpop.f32.mrb[0].mxu0
    %v6816 = vadd.f32 %v2813, %v6815
    %v6817 = vpop.f32.mrb[0].mxu0
    %6818 = vdwg.mxu0
    %6819 = vmatprep.subr.mxu0 0.0
    %6820 = vmatpush1.msra.mxu0 %v242
    %6821 = vmatprep.subr.mxu0 0.0
    %6822 = vmatpush1.msra.mxu0 %v243
    %6823 = vmatprep.subr.mxu0 0.0
    %6824 = vmatpush1.msra.mxu0 %v244
    %6825 = vmatprep.subr.mxu0 0.0
    %6826 = vmatpush1.msra.mxu0 %v245
    %6827 = vmatprep.subr.mxu0 0.0
    %6828 = vmatpush1.msra.mxu0 0.0
    %6829 = vmatprep.subr.mxu0 0.0
    %6830 = vmatpush1.msra.mxu0 0.0
    %6831 = vmatprep.subr.mxu0 0.0
    %6832 = vmatpush1.msra.mxu0 0.0
    %6833 = vmatprep.subr.mxu0 0.0
    %6834 = vmatpush1.msra.mxu0 0.0
    %6835 = vmatprep.subr.mxu0 0.0
    %6836 = vmatpush1.msra.mxu0 0.0
    %6837 = vmatprep.subr.mxu0 0.0
    %6838 = vmatpush1.msra.mxu0 0.0
    %6839 = vmatprep.subr.mxu0 0.0
    %6840 = vmatpush1.msra.mxu0 0.0
    %6841 = vmatprep.subr.mxu0 0.0
    %6842 = vmatpush1.msra.mxu0 0.0
    %6843 = vmatprep.subr.mxu0 0.0
    %6844 = vmatpush1.msra.mxu0 0.0
    %6845 = vmatprep.subr.mxu0 0.0
    %6846 = vmatpush1.msra.mxu0 0.0
    %6847 = vmatprep.subr.mxu0 0.0
    %6848 = vmatpush1.msra.mxu0 0.0
    %6849 = vmatprep.subr.mxu0 0.0
    %6850 = vmatpush1.msra.mxu0 0.0
    %6851 = vmatprep.subr.mxu0 0.0
    %6852 = vmatpush1.msra.mxu0 0.0
    %6853 = vmatprep.subr.mxu0 0.0
    %6854 = vmatpush1.msra.mxu0 0.0
    %6855 = vmatprep.subr.mxu0 0.0
    %6856 = vmatpush1.msra.mxu0 0.0
    %6857 = vmatprep.subr.mxu0 0.0
    %6858 = vmatpush1.msra.mxu0 0.0
    %6859 = vmatprep.subr.mxu0 0.0
    %6860 = vmatpush1.msra.mxu0 0.0
    %6861 = vmatprep.subr.mxu0 0.0
    %6862 = vmatpush1.msra.mxu0 0.0
    %6863 = vmatprep.subr.mxu0 0.0
    %6864 = vmatpush1.msra.mxu0 0.0
    %6865 = vmatprep.subr.mxu0 0.0
    %6866 = vmatpush1.msra.mxu0 0.0
    %6867 = vmatprep.subr.mxu0 0.0
    %6868 = vmatpush1.msra.mxu0 0.0
    %6869 = vmatprep.subr.mxu0 0.0
    %6870 = vmatpush1.msra.mxu0 0.0
    %6871 = vmatprep.subr.mxu0 0.0
    %6872 = vmatpush1.msra.mxu0 0.0
    %6873 = vmatprep.subr.mxu0 0.0
    %6874 = vmatpush1.msra.mxu0 0.0
    %6875 = vmatprep.subr.mxu0 0.0
    %6876 = vmatpush1.msra.mxu0 0.0
    %6877 = vmatprep.subr.mxu0 0.0
    %6878 = vmatpush1.msra.mxu0 0.0
    %6879 = vmatprep.subr.mxu0 0.0
    %6880 = vmatpush1.msra.mxu0 0.0
    %6881 = vmatprep.subr.mxu0 0.0
    %6882 = vmatpush1.msra.mxu0 0.0
    %6883 = vmatprep.mubr.f32.mxu0 0.0
    %6884 = vmatmul.mubr.f32.gmra.mrb[0].mxu0 %v6397
    %v6885 = vpop.f32.mrb[0].mxu0
    %v6886 = vadd.f32 %v2817, %v6885
    %v6887 = vpop.f32.mrb[0].mxu0
    %6888 = vdwg.mxu0
    %6889 = vmatprep.subr.mxu0 0.0
    %6890 = vmatpush1.msra.mxu0 %v246
    %6891 = vmatprep.subr.mxu0 0.0
    %6892 = vmatpush1.msra.mxu0 %v247
    %6893 = vmatprep.subr.mxu0 0.0
    %6894 = vmatpush1.msra.mxu0 %v248
    %6895 = vmatprep.subr.mxu0 0.0
    %6896 = vmatpush1.msra.mxu0 %v249
    %6897 = vmatprep.subr.mxu0 0.0
    %6898 = vmatpush1.msra.mxu0 0.0
    %6899 = vmatprep.subr.mxu0 0.0
    %6900 = vmatpush1.msra.mxu0 0.0
    %6901 = vmatprep.subr.mxu0 0.0
    %6902 = vmatpush1.msra.mxu0 0.0
    %6903 = vmatprep.subr.mxu0 0.0
    %6904 = vmatpush1.msra.mxu0 0.0
    %6905 = vmatprep.subr.mxu0 0.0
    %6906 = vmatpush1.msra.mxu0 0.0
    %6907 = vmatprep.subr.mxu0 0.0
    %6908 = vmatpush1.msra.mxu0 0.0
    %6909 = vmatprep.subr.mxu0 0.0
    %6910 = vmatpush1.msra.mxu0 0.0
    %6911 = vmatprep.subr.mxu0 0.0
    %6912 = vmatpush1.msra.mxu0 0.0
    %6913 = vmatprep.subr.mxu0 0.0
    %6914 = vmatpush1.msra.mxu0 0.0
    %6915 = vmatprep.subr.mxu0 0.0
    %6916 = vmatpush1.msra.mxu0 0.0
    %6917 = vmatprep.subr.mxu0 0.0
    %6918 = vmatpush1.msra.mxu0 0.0
    %6919 = vmatprep.subr.mxu0 0.0
    %6920 = vmatpush1.msra.mxu0 0.0
    %6921 = vmatprep.subr.mxu0 0.0
    %6922 = vmatpush1.msra.mxu0 0.0
    %6923 = vmatprep.subr.mxu0 0.0
    %6924 = vmatpush1.msra.mxu0 0.0
    %6925 = vmatprep.subr.mxu0 0.0
    %6926 = vmatpush1.msra.mxu0 0.0
    %6927 = vmatprep.subr.mxu0 0.0
    %6928 = vmatpush1.msra.mxu0 0.0
    %6929 = vmatprep.subr.mxu0 0.0
    %6930 = vmatpush1.msra.mxu0 0.0
    %6931 = vmatprep.subr.mxu0 0.0
    %6932 = vmatpush1.msra.mxu0 0.0
    %6933 = vmatprep.subr.mxu0 0.0
    %6934 = vmatpush1.msra.mxu0 0.0
    %6935 = vmatprep.subr.mxu0 0.0
    %6936 = vmatpush1.msra.mxu0 0.0
    %6937 = vmatprep.subr.mxu0 0.0
    %6938 = vmatpush1.msra.mxu0 0.0
    %6939 = vmatprep.subr.mxu0 0.0
    %6940 = vmatpush1.msra.mxu0 0.0
    %6941 = vmatprep.subr.mxu0 0.0
    %6942 = vmatpush1.msra.mxu0 0.0
    %6943 = vmatprep.subr.mxu0 0.0
    %6944 = vmatpush1.msra.mxu0 0.0
    %6945 = vmatprep.subr.mxu0 0.0
    %6946 = vmatpush1.msra.mxu0 0.0
    %6947 = vmatprep.subr.mxu0 0.0
    %6948 = vmatpush1.msra.mxu0 0.0
    %6949 = vmatprep.subr.mxu0 0.0
    %6950 = vmatpush1.msra.mxu0 0.0
    %6951 = vmatprep.subr.mxu0 0.0
    %6952 = vmatpush1.msra.mxu0 0.0
    %6953 = vmatprep.mubr.f32.mxu0 0.0
    %6954 = vmatmul.mubr.f32.gmra.mrb[0].mxu0 %v6397
    %v6955 = vpop.f32.mrb[0].mxu0
    %v6956 = vadd.f32 %v2821, %v6955
    %v6957 = vpop.f32.mrb[0].mxu0
    %6958 = vdwg.mxu0
    %v6960 = vsel %vm1197, %v6183, 0
    %v6963 = vsel %vm1197, %v6466, 0
    %6965 = vmatprep.subr.mxu0 0.0
    %6966 = vmatpush1.xpose.msra.mxu0 %v6963
    %6967 = vmatprep.subr.mxu0 0.0
    %6968 = vmatpush1.xpose.msra.mxu0 0.0
    %6969 = vmatprep.subr.mxu0 0.0
    %6970 = vmatpush1.xpose.msra.mxu0 0.0
    %6971 = vmatprep.subr.mxu0 0.0
    %6972 = vmatpush1.xpose.msra.mxu0 0.0
    %6973 = vmatprep.subr.mxu0 0.0
    %6974 = vmatpush1.xpose.msra.mxu0 0.0
    %6975 = vmatprep.subr.mxu0 0.0
    %6976 = vmatpush1.xpose.msra.mxu0 0.0
    %6977 = vmatprep.subr.mxu0 0.0
    %6978 = vmatpush1.xpose.msra.mxu0 0.0
    %6979 = vmatprep.subr.mxu0 0.0
    %6980 = vmatpush1.xpose.msra.mxu0 0.0
    %6981 = vmatprep.subr.mxu0 0.0
    %6982 = vmatpush1.xpose.msra.mxu0 0.0
    %6983 = vmatprep.subr.mxu0 0.0
    %6984 = vmatpush1.xpose.msra.mxu0 0.0
    %6985 = vmatprep.subr.mxu0 0.0
    %6986 = vmatpush1.xpose.msra.mxu0 0.0
    %6987 = vmatprep.subr.mxu0 0.0
    %6988 = vmatpush1.xpose.msra.mxu0 0.0
    %6989 = vmatprep.subr.mxu0 0.0
    %6990 = vmatpush1.xpose.msra.mxu0 0.0
    %6991 = vmatprep.subr.mxu0 0.0
    %6992 = vmatpush1.xpose.msra.mxu0 0.0
    %6993 = vmatprep.subr.mxu0 0.0
    %6994 = vmatpush1.xpose.msra.mxu0 0.0
    %6995 = vmatprep.subr.mxu0 0.0
    %6996 = vmatpush1.xpose.msra.mxu0 0.0
    %6997 = vmatprep.subr.mxu0 0.0
    %6998 = vmatpush1.xpose.msra.mxu0 0.0
    %6999 = vmatprep.subr.mxu0 0.0
    %7000 = vmatpush1.xpose.msra.mxu0 0.0
    %7001 = vmatprep.subr.mxu0 0.0
    %7002 = vmatpush1.xpose.msra.mxu0 0.0
    %7003 = vmatprep.subr.mxu0 0.0
    %7004 = vmatpush1.xpose.msra.mxu0 0.0
    %7005 = vmatprep.subr.mxu0 0.0
    %7006 = vmatpush1.xpose.msra.mxu0 0.0
    %7007 = vmatprep.subr.mxu0 0.0
    %7008 = vmatpush1.xpose.msra.mxu0 0.0
    %7009 = vmatprep.subr.mxu0 0.0
    %7010 = vmatpush1.xpose.msra.mxu0 0.0
    %7011 = vmatprep.subr.mxu0 0.0
    %7012 = vmatpush1.xpose.msra.mxu0 0.0
    %7013 = vmatprep.subr.mxu0 0.0
    %7014 = vmatpush1.xpose.msra.mxu0 0.0
    %7015 = vmatprep.subr.mxu0 0.0
    %7016 = vmatpush1.xpose.msra.mxu0 0.0
    %7017 = vmatprep.subr.mxu0 0.0
    %7018 = vmatpush1.xpose.msra.mxu0 0.0
    %7019 = vmatprep.subr.mxu0 0.0
    %7020 = vmatpush1.xpose.msra.mxu0 0.0
    %7021 = vmatprep.subr.mxu0 0.0
    %7022 = vmatpush1.xpose.msra.mxu0 0.0
    %7023 = vmatprep.subr.mxu0 0.0
    %7024 = vmatpush1.xpose.msra.mxu0 0.0
    %7025 = vmatprep.subr.mxu0 0.0
    %7026 = vmatpush1.xpose.msra.mxu0 0.0
    %7027 = vmatprep.subr.mxu0 0.0
    %7028 = vmatpush1.xpose.msra.mxu0 0.0
    %7029 = vmatprep.mubr.f32.mxu0 0.0
    %7030 = vmatmul.mubr.f32.gmra.mrb[0].mxu0 %v6960
    %v7031 = vpop.f32.mrb[0].mxu0
    %v7032 = vadd.f32 0.0, %v7031
    %v7033 = vpop.f32.mrb[0].mxu0
    %7034 = vdwg.mxu0
    %v7036 = vsel %vm1197, %v6253, 0
    %v7039 = vsel %vm1197, %v6536, 0
    %7041 = vmatprep.subr.mxu0 0.0
    %7042 = vmatpush1.xpose.msra.mxu0 %v7039
    %7043 = vmatprep.subr.mxu0 0.0
    %7044 = vmatpush1.xpose.msra.mxu0 0.0
    %7045 = vmatprep.subr.mxu0 0.0
    %7046 = vmatpush1.xpose.msra.mxu0 0.0
    %7047 = vmatprep.subr.mxu0 0.0
    %7048 = vmatpush1.xpose.msra.mxu0 0.0
    %7049 = vmatprep.subr.mxu0 0.0
    %7050 = vmatpush1.xpose.msra.mxu0 0.0
    %7051 = vmatprep.subr.mxu0 0.0
    %7052 = vmatpush1.xpose.msra.mxu0 0.0
    %7053 = vmatprep.subr.mxu0 0.0
    %7054 = vmatpush1.xpose.msra.mxu0 0.0
    %7055 = vmatprep.subr.mxu0 0.0
    %7056 = vmatpush1.xpose.msra.mxu0 0.0
    %7057 = vmatprep.subr.mxu0 0.0
    %7058 = vmatpush1.xpose.msra.mxu0 0.0
    %7059 = vmatprep.subr.mxu0 0.0
    %7060 = vmatpush1.xpose.msra.mxu0 0.0
    %7061 = vmatprep.subr.mxu0 0.0
    %7062 = vmatpush1.xpose.msra.mxu0 0.0
    %7063 = vmatprep.subr.mxu0 0.0
    %7064 = vmatpush1.xpose.msra.mxu0 0.0
    %7065 = vmatprep.subr.mxu0 0.0
    %7066 = vmatpush1.xpose.msra.mxu0 0.0
    %7067 = vmatprep.subr.mxu0 0.0
    %7068 = vmatpush1.xpose.msra.mxu0 0.0
    %7069 = vmatprep.subr.mxu0 0.0
    %7070 = vmatpush1.xpose.msra.mxu0 0.0
    %7071 = vmatprep.subr.mxu0 0.0
    %7072 = vmatpush1.xpose.msra.mxu0 0.0
    %7073 = vmatprep.subr.mxu0 0.0
    %7074 = vmatpush1.xpose.msra.mxu0 0.0
    %7075 = vmatprep.subr.mxu0 0.0
    %7076 = vmatpush1.xpose.msra.mxu0 0.0
    %7077 = vmatprep.subr.mxu0 0.0
    %7078 = vmatpush1.xpose.msra.mxu0 0.0
    %7079 = vmatprep.subr.mxu0 0.0
    %7080 = vmatpush1.xpose.msra.mxu0 0.0
    %7081 = vmatprep.subr.mxu0 0.0
    %7082 = vmatpush1.xpose.msra.mxu0 0.0
    %7083 = vmatprep.subr.mxu0 0.0
    %7084 = vmatpush1.xpose.msra.mxu0 0.0
    %7085 = vmatprep.subr.mxu0 0.0
    %7086 = vmatpush1.xpose.msra.mxu0 0.0
    %7087 = vmatprep.subr.mxu0 0.0
    %7088 = vmatpush1.xpose.msra.mxu0 0.0
    %7089 = vmatprep.subr.mxu0 0.0
    %7090 = vmatpush1.xpose.msra.mxu0 0.0
    %7091 = vmatprep.subr.mxu0 0.0
    %7092 = vmatpush1.xpose.msra.mxu0 0.0
    %7093 = vmatprep.subr.mxu0 0.0
    %7094 = vmatpush1.xpose.msra.mxu0 0.0
    %7095 = vmatprep.subr.mxu0 0.0
    %7096 = vmatpush1.xpose.msra.mxu0 0.0
    %7097 = vmatprep.subr.mxu0 0.0
    %7098 = vmatpush1.xpose.msra.mxu0 0.0
    %7099 = vmatprep.subr.mxu0 0.0
    %7100 = vmatpush1.xpose.msra.mxu0 0.0
    %7101 = vmatprep.subr.mxu0 0.0
    %7102 = vmatpush1.xpose.msra.mxu0 0.0
    %7103 = vmatprep.subr.mxu0 0.0
    %7104 = vmatpush1.xpose.msra.mxu0 0.0
    %7105 = vmatprep.mubr.f32.mxu0 0.0
    %7106 = vmatmul.mubr.f32.gmra.mrb[0].mxu0 %v7036
    %v7107 = vpop.f32.mrb[0].mxu0
    %v7108 = vadd.f32 0.0, %v7107
    %v7109 = vpop.f32.mrb[0].mxu0
    %7110 = vdwg.mxu0
    %v7112 = vsel %vm1197, %v6323, 0
    %v7115 = vsel %vm1197, %v6606, 0
    %7117 = vmatprep.subr.mxu0 0.0
    %7118 = vmatpush1.xpose.msra.mxu0 %v7115
    %7119 = vmatprep.subr.mxu0 0.0
    %7120 = vmatpush1.xpose.msra.mxu0 0.0
    %7121 = vmatprep.subr.mxu0 0.0
    %7122 = vmatpush1.xpose.msra.mxu0 0.0
    %7123 = vmatprep.subr.mxu0 0.0
    %7124 = vmatpush1.xpose.msra.mxu0 0.0
    %7125 = vmatprep.subr.mxu0 0.0
    %7126 = vmatpush1.xpose.msra.mxu0 0.0
    %7127 = vmatprep.subr.mxu0 0.0
    %7128 = vmatpush1.xpose.msra.mxu0 0.0
    %7129 = vmatprep.subr.mxu0 0.0
    %7130 = vmatpush1.xpose.msra.mxu0 0.0
    %7131 = vmatprep.subr.mxu0 0.0
    %7132 = vmatpush1.xpose.msra.mxu0 0.0
    %7133 = vmatprep.subr.mxu0 0.0
    %7134 = vmatpush1.xpose.msra.mxu0 0.0
    %7135 = vmatprep.subr.mxu0 0.0
    %7136 = vmatpush1.xpose.msra.mxu0 0.0
    %7137 = vmatprep.subr.mxu0 0.0
    %7138 = vmatpush1.xpose.msra.mxu0 0.0
    %7139 = vmatprep.subr.mxu0 0.0
    %7140 = vmatpush1.xpose.msra.mxu0 0.0
    %7141 = vmatprep.subr.mxu0 0.0
    %7142 = vmatpush1.xpose.msra.mxu0 0.0
    %7143 = vmatprep.subr.mxu0 0.0
    %7144 = vmatpush1.xpose.msra.mxu0 0.0
    %7145 = vmatprep.subr.mxu0 0.0
    %7146 = vmatpush1.xpose.msra.mxu0 0.0
    %7147 = vmatprep.subr.mxu0 0.0
    %7148 = vmatpush1.xpose.msra.mxu0 0.0
    %7149 = vmatprep.subr.mxu0 0.0
    %7150 = vmatpush1.xpose.msra.mxu0 0.0
    %7151 = vmatprep.subr.mxu0 0.0
    %7152 = vmatpush1.xpose.msra.mxu0 0.0
    %7153 = vmatprep.subr.mxu0 0.0
    %7154 = vmatpush1.xpose.msra.mxu0 0.0
    %7155 = vmatprep.subr.mxu0 0.0
    %7156 = vmatpush1.xpose.msra.mxu0 0.0
    %7157 = vmatprep.subr.mxu0 0.0
    %7158 = vmatpush1.xpose.msra.mxu0 0.0
    %7159 = vmatprep.subr.mxu0 0.0
    %7160 = vmatpush1.xpose.msra.mxu0 0.0
    %7161 = vmatprep.subr.mxu0 0.0
    %7162 = vmatpush1.xpose.msra.mxu0 0.0
    %7163 = vmatprep.subr.mxu0 0.0
    %7164 = vmatpush1.xpose.msra.mxu0 0.0
    %7165 = vmatprep.subr.mxu0 0.0
    %7166 = vmatpush1.xpose.msra.mxu0 0.0
    %7167 = vmatprep.subr.mxu0 0.0
    %7168 = vmatpush1.xpose.msra.mxu0 0.0
    %7169 = vmatprep.subr.mxu0 0.0
    %7170 = vmatpush1.xpose.msra.mxu0 0.0
    %7171 = vmatprep.subr.mxu0 0.0
    %7172 = vmatpush1.xpose.msra.mxu0 0.0
    %7173 = vmatprep.subr.mxu0 0.0
    %7174 = vmatpush1.xpose.msra.mxu0 0.0
    %7175 = vmatprep.subr.mxu0 0.0
    %7176 = vmatpush1.xpose.msra.mxu0 0.0
    %7177 = vmatprep.subr.mxu0 0.0
    %7178 = vmatpush1.xpose.msra.mxu0 0.0
    %7179 = vmatprep.subr.mxu0 0.0
    %7180 = vmatpush1.xpose.msra.mxu0 0.0
    %7181 = vmatprep.mubr.f32.mxu0 0.0
    %7182 = vmatmul.mubr.f32.gmra.mrb[0].mxu0 %v7112
    %v7183 = vpop.f32.mrb[0].mxu0
    %v7184 = vadd.f32 0.0, %v7183
    %v7185 = vpop.f32.mrb[0].mxu0
    %7186 = vdwg.mxu0
    %v7188 = vsel %vm1197, %v6393, 0
    %v7191 = vsel %vm1197, %v6676, 0
    %7193 = vmatprep.subr.mxu0 0.0
    %7194 = vmatpush1.xpose.msra.mxu0 %v7191
    %7195 = vmatprep.subr.mxu0 0.0
    %7196 = vmatpush1.xpose.msra.mxu0 0.0
    %7197 = vmatprep.subr.mxu0 0.0
    %7198 = vmatpush1.xpose.msra.mxu0 0.0
    %7199 = vmatprep.subr.mxu0 0.0
    %7200 = vmatpush1.xpose.msra.mxu0 0.0
    %7201 = vmatprep.subr.mxu0 0.0
    %7202 = vmatpush1.xpose.msra.mxu0 0.0
    %7203 = vmatprep.subr.mxu0 0.0
    %7204 = vmatpush1.xpose.msra.mxu0 0.0
    %7205 = vmatprep.subr.mxu0 0.0
    %7206 = vmatpush1.xpose.msra.mxu0 0.0
    %7207 = vmatprep.subr.mxu0 0.0
    %7208 = vmatpush1.xpose.msra.mxu0 0.0
    %7209 = vmatprep.subr.mxu0 0.0
    %7210 = vmatpush1.xpose.msra.mxu0 0.0
    %7211 = vmatprep.subr.mxu0 0.0
    %7212 = vmatpush1.xpose.msra.mxu0 0.0
    %7213 = vmatprep.subr.mxu0 0.0
    %7214 = vmatpush1.xpose.msra.mxu0 0.0
    %7215 = vmatprep.subr.mxu0 0.0
    %7216 = vmatpush1.xpose.msra.mxu0 0.0
    %7217 = vmatprep.subr.mxu0 0.0
    %7218 = vmatpush1.xpose.msra.mxu0 0.0
    %7219 = vmatprep.subr.mxu0 0.0
    %7220 = vmatpush1.xpose.msra.mxu0 0.0
    %7221 = vmatprep.subr.mxu0 0.0
    %7222 = vmatpush1.xpose.msra.mxu0 0.0
    %7223 = vmatprep.subr.mxu0 0.0
    %7224 = vmatpush1.xpose.msra.mxu0 0.0
    %7225 = vmatprep.subr.mxu0 0.0
    %7226 = vmatpush1.xpose.msra.mxu0 0.0
    %7227 = vmatprep.subr.mxu0 0.0
    %7228 = vmatpush1.xpose.msra.mxu0 0.0
    %7229 = vmatprep.subr.mxu0 0.0
    %7230 = vmatpush1.xpose.msra.mxu0 0.0
    %7231 = vmatprep.subr.mxu0 0.0
    %7232 = vmatpush1.xpose.msra.mxu0 0.0
    %7233 = vmatprep.subr.mxu0 0.0
    %7234 = vmatpush1.xpose.msra.mxu0 0.0
    %7235 = vmatprep.subr.mxu0 0.0
    %7236 = vmatpush1.xpose.msra.mxu0 0.0
    %7237 = vmatprep.subr.mxu0 0.0
    %7238 = vmatpush1.xpose.msra.mxu0 0.0
    %7239 = vmatprep.subr.mxu0 0.0
    %7240 = vmatpush1.xpose.msra.mxu0 0.0
    %7241 = vmatprep.subr.mxu0 0.0
    %7242 = vmatpush1.xpose.msra.mxu0 0.0
    %7243 = vmatprep.subr.mxu0 0.0
    %7244 = vmatpush1.xpose.msra.mxu0 0.0
    %7245 = vmatprep.subr.mxu0 0.0
    %7246 = vmatpush1.xpose.msra.mxu0 0.0
    %7247 = vmatprep.subr.mxu0 0.0
    %7248 = vmatpush1.xpose.msra.mxu0 0.0
    %7249 = vmatprep.subr.mxu0 0.0
    %7250 = vmatpush1.xpose.msra.mxu0 0.0
    %7251 = vmatprep.subr.mxu0 0.0
    %7252 = vmatpush1.xpose.msra.mxu0 0.0
    %7253 = vmatprep.subr.mxu0 0.0
    %7254 = vmatpush1.xpose.msra.mxu0 0.0
    %7255 = vmatprep.subr.mxu0 0.0
    %7256 = vmatpush1.xpose.msra.mxu0 0.0
    %7257 = vmatprep.mubr.f32.mxu0 0.0
    %7258 = vmatmul.mubr.f32.gmra.mrb[0].mxu0 %v7188
    %v7259 = vpop.f32.mrb[0].mxu0
    %v7260 = vadd.f32 0.0, %v7259
    %v7261 = vpop.f32.mrb[0].mxu0
    %7262 = vdwg.mxu0
    %v7263 = vmul.f32 %v7032, 0.35355338
    %v7264 = vmul.f32 %v7108, 0.35355338
    %v7265 = vmul.f32 %v7184, 0.35355338
    %v7266 = vmul.f32 %v7260, 0.35355338
    %v7267 = vadd.f32 %v7263, %v4298
    %v7268 = vadd.f32 %v7264, %v4298
    %v7269 = vadd.f32 %v7265, %v4298
    %v7270 = vadd.f32 %v7266, %v4298
    %v7271 = vsel %vm1197, %v7267, -inf
    %7272 = vmax.xlane.f32.xlu0 %v7271
    %v7273 = vpop.xlane.xlu0 %7272
    %v7274 = vsel %vm1197, %v7268, -inf
    %7275 = vmax.xlane.f32.xlu0 %v7274
    %v7276 = vpop.xlane.xlu0 %7275
    %v7277 = vsel %vm1197, %v7269, -inf
    %7278 = vmax.xlane.f32.xlu0 %v7277
    %v7279 = vpop.xlane.xlu0 %7278
    %v7280 = vsel %vm1197, %v7270, -inf
    %7281 = vmax.xlane.f32.xlu0 %v7280
    %v7282 = vpop.xlane.xlu0 %7281
    %v7283 = vsub.f32 %v7267, %v7273
    %v7284 = vsub.f32 %v7268, %v7276
    %v7285 = vsub.f32 %v7269, %v7279
    %v7286 = vsub.f32 %v7270, %v7282
    %v7287 = vmul.f32 %v7283, 1.442695
    %v7288 = vpow.pop %v7287
    %v7289 = vmul.f32 %v7284, 1.442695
    %v7290 = vpow.pop %v7289
    %v7291 = vmul.f32 %v7285, 1.442695
    %v7292 = vpow.pop %v7291
    %v7293 = vmul.f32 %v7286, 1.442695
    %v7294 = vpow.pop %v7293
    %v7295 = vsel %vm1197, %v7288, 0.0
    %7296 = vadd.xlane.f32.xlu0 %v7295
    %v7297 = vpop.xlane.xlu0 %7296
    %v7298 = vsel %vm1197, %v7290, 0.0
    %7299 = vadd.xlane.f32.xlu0 %v7298
    %v7300 = vpop.xlane.xlu0 %7299
    %v7301 = vsel %vm1197, %v7292, 0.0
    %7302 = vadd.xlane.f32.xlu0 %v7301
    %v7303 = vpop.xlane.xlu0 %7302
    %v7304 = vsel %vm1197, %v7294, 0.0
    %7305 = vadd.xlane.f32.xlu0 %v7304
    %v7306 = vpop.xlane.xlu0 %7305
    %v7307 = vrcp.pop %v7297
    %v7308 = vrcp.pop %v7300
    %v7309 = vrcp.pop %v7303
    %v7310 = vrcp.pop %v7306
    %v7311 = vmul.f32 %v7288, %v7307
    %v7312 = vmul.f32 %v7290, %v7308
    %v7313 = vmul.f32 %v7292, %v7309
    %v7314 = vmul.f32 %v7294, %v7310
    %v7316 = vsel %vm1197, %v7311, 0
    %7318 = vmatprep.subr.mxu0 0.0
    %7319 = vmatpush1.msra.mxu0 %v6746
    %7320 = vmatprep.subr.mxu0 0.0
    %7321 = vmatpush1.msra.mxu0 0.0
    %7322 = vmatprep.subr.mxu0 0.0
    %7323 = vmatpush1.msra.mxu0 0.0
    %7324 = vmatprep.subr.mxu0 0.0
    %7325 = vmatpush1.msra.mxu0 0.0
    %7326 = vmatprep.subr.mxu0 0.0
    %7327 = vmatpush1.msra.mxu0 0.0
    %7328 = vmatprep.subr.mxu0 0.0
    %7329 = vmatpush1.msra.mxu0 0.0
    %7330 = vmatprep.subr.mxu0 0.0
    %7331 = vmatpush1.msra.mxu0 0.0
    %7332 = vmatprep.subr.mxu0 0.0
    %7333 = vmatpush1.msra.mxu0 0.0
    %7334 = vmatprep.subr.mxu0 0.0
    %7335 = vmatpush1.msra.mxu0 0.0
    %7336 = vmatprep.subr.mxu0 0.0
    %7337 = vmatpush1.msra.mxu0 0.0
    %7338 = vmatprep.subr.mxu0 0.0
    %7339 = vmatpush1.msra.mxu0 0.0
    %7340 = vmatprep.subr.mxu0 0.0
    %7341 = vmatpush1.msra.mxu0 0.0
    %7342 = vmatprep.subr.mxu0 0.0
    %7343 = vmatpush1.msra.mxu0 0.0
    %7344 = vmatprep.subr.mxu0 0.0
    %7345 = vmatpush1.msra.mxu0 0.0
    %7346 = vmatprep.subr.mxu0 0.0
    %7347 = vmatpush1.msra.mxu0 0.0
    %7348 = vmatprep.subr.mxu0 0.0
    %7349 = vmatpush1.msra.mxu0 0.0
    %7350 = vmatprep.subr.mxu0 0.0
    %7351 = vmatpush1.msra.mxu0 0.0
    %7352 = vmatprep.subr.mxu0 0.0
    %7353 = vmatpush1.msra.mxu0 0.0
    %7354 = vmatprep.subr.mxu0 0.0
    %7355 = vmatpush1.msra.mxu0 0.0
    %7356 = vmatprep.subr.mxu0 0.0
    %7357 = vmatpush1.msra.mxu0 0.0
    %7358 = vmatprep.subr.mxu0 0.0
    %7359 = vmatpush1.msra.mxu0 0.0
    %7360 = vmatprep.subr.mxu0 0.0
    %7361 = vmatpush1.msra.mxu0 0.0
    %7362 = vmatprep.subr.mxu0 0.0
    %7363 = vmatpush1.msra.mxu0 0.0
    %7364 = vmatprep.subr.mxu0 0.0
    %7365 = vmatpush1.msra.mxu0 0.0
    %7366 = vmatprep.subr.mxu0 0.0
    %7367 = vmatpush1.msra.mxu0 0.0
    %7368 = vmatprep.subr.mxu0 0.0
    %7369 = vmatpush1.msra.mxu0 0.0
    %7370 = vmatprep.subr.mxu0 0.0
    %7371 = vmatpush1.msra.mxu0 0.0
    %7372 = vmatprep.subr.mxu0 0.0
    %7373 = vmatpush1.msra.mxu0 0.0
    %7374 = vmatprep.subr.mxu0 0.0
    %7375 = vmatpush1.msra.mxu0 0.0
    %7376 = vmatprep.subr.mxu0 0.0
    %7377 = vmatpush1.msra.mxu0 0.0
    %7378 = vmatprep.subr.mxu0 0.0
    %7379 = vmatpush1.msra.mxu0 0.0
    %7380 = vmatprep.subr.mxu0 0.0
    %7381 = vmatpush1.msra.mxu0 0.0
    %7382 = vmatprep.mubr.f32.mxu0 0.0
    %7383 = vmatmul.mubr.f32.gmra.mrb[0].mxu0 %v7316
    %v7384 = vpop.f32.mrb[0].mxu0
    %v7385 = vadd.f32 0.0, %v7384
    %v7386 = vpop.f32.mrb[0].mxu0
    %7387 = vdwg.mxu0
    %v7389 = vsel %vm1197, %v7312, 0
    %7391 = vmatprep.subr.mxu0 0.0
    %7392 = vmatpush1.msra.mxu0 %v6816
    %7393 = vmatprep.subr.mxu0 0.0
    %7394 = vmatpush1.msra.mxu0 0.0
    %7395 = vmatprep.subr.mxu0 0.0
    %7396 = vmatpush1.msra.mxu0 0.0
    %7397 = vmatprep.subr.mxu0 0.0
    %7398 = vmatpush1.msra.mxu0 0.0
    %7399 = vmatprep.subr.mxu0 0.0
    %7400 = vmatpush1.msra.mxu0 0.0
    %7401 = vmatprep.subr.mxu0 0.0
    %7402 = vmatpush1.msra.mxu0 0.0
    %7403 = vmatprep.subr.mxu0 0.0
    %7404 = vmatpush1.msra.mxu0 0.0
    %7405 = vmatprep.subr.mxu0 0.0
    %7406 = vmatpush1.msra.mxu0 0.0
    %7407 = vmatprep.subr.mxu0 0.0
    %7408 = vmatpush1.msra.mxu0 0.0
    %7409 = vmatprep.subr.mxu0 0.0
    %7410 = vmatpush1.msra.mxu0 0.0
    %7411 = vmatprep.subr.mxu0 0.0
    %7412 = vmatpush1.msra.mxu0 0.0
    %7413 = vmatprep.subr.mxu0 0.0
    %7414 = vmatpush1.msra.mxu0 0.0
    %7415 = vmatprep.subr.mxu0 0.0
    %7416 = vmatpush1.msra.mxu0 0.0
    %7417 = vmatprep.subr.mxu0 0.0
    %7418 = vmatpush1.msra.mxu0 0.0
    %7419 = vmatprep.subr.mxu0 0.0
    %7420 = vmatpush1.msra.mxu0 0.0
    %7421 = vmatprep.subr.mxu0 0.0
    %7422 = vmatpush1.msra.mxu0 0.0
    %7423 = vmatprep.subr.mxu0 0.0
    %7424 = vmatpush1.msra.mxu0 0.0
    %7425 = vmatprep.subr.mxu0 0.0
    %7426 = vmatpush1.msra.mxu0 0.0
    %7427 = vmatprep.subr.mxu0 0.0
    %7428 = vmatpush1.msra.mxu0 0.0
    %7429 = vmatprep.subr.mxu0 0.0
    %7430 = vmatpush1.msra.mxu0 0.0
    %7431 = vmatprep.subr.mxu0 0.0
    %7432 = vmatpush1.msra.mxu0 0.0
    %7433 = vmatprep.subr.mxu0 0.0
    %7434 = vmatpush1.msra.mxu0 0.0
    %7435 = vmatprep.subr.mxu0 0.0
    %7436 = vmatpush1.msra.mxu0 0.0
    %7437 = vmatprep.subr.mxu0 0.0
    %7438 = vmatpush1.msra.mxu0 0.0
    %7439 = vmatprep.subr.mxu0 0.0
    %7440 = vmatpush1.msra.mxu0 0.0
    %7441 = vmatprep.subr.mxu0 0.0
    %7442 = vmatpush1.msra.mxu0 0.0
    %7443 = vmatprep.subr.mxu0 0.0
    %7444 = vmatpush1.msra.mxu0 0.0
    %7445 = vmatprep.subr.mxu0 0.0
    %7446 = vmatpush1.msra.mxu0 0.0
    %7447 = vmatprep.subr.mxu0 0.0
    %7448 = vmatpush1.msra.mxu0 0.0
    %7449 = vmatprep.subr.mxu0 0.0
    %7450 = vmatpush1.msra.mxu0 0.0
    %7451 = vmatprep.subr.mxu0 0.0
    %7452 = vmatpush1.msra.mxu0 0.0
    %7453 = vmatprep.subr.mxu0 0.0
    %7454 = vmatpush1.msra.mxu0 0.0
    %7455 = vmatprep.mubr.f32.mxu0 0.0
    %7456 = vmatmul.mubr.f32.gmra.mrb[0].mxu0 %v7389
    %v7457 = vpop.f32.mrb[0].mxu0
    %v7458 = vadd.f32 0.0, %v7457
    %v7459 = vpop.f32.mrb[0].mxu0
    %7460 = vdwg.mxu0
    %v7462 = vsel %vm1197, %v7313, 0
    %7464 = vmatprep.subr.mxu0 0.0
    %7465 = vmatpush1.msra.mxu0 %v6886
    %7466 = vmatprep.subr.mxu0 0.0
    %7467 = vmatpush1.msra.mxu0 0.0
    %7468 = vmatprep.subr.mxu0 0.0
    %7469 = vmatpush1.msra.mxu0 0.0
    %7470 = vmatprep.subr.mxu0 0.0
    %7471 = vmatpush1.msra.mxu0 0.0
    %7472 = vmatprep.subr.mxu0 0.0
    %7473 = vmatpush1.msra.mxu0 0.0
    %7474 = vmatprep.subr.mxu0 0.0
    %7475 = vmatpush1.msra.mxu0 0.0
    %7476 = vmatprep.subr.mxu0 0.0
    %7477 = vmatpush1.msra.mxu0 0.0
    %7478 = vmatprep.subr.mxu0 0.0
    %7479 = vmatpush1.msra.mxu0 0.0
    %7480 = vmatprep.subr.mxu0 0.0
    %7481 = vmatpush1.msra.mxu0 0.0
    %7482 = vmatprep.subr.mxu0 0.0
    %7483 = vmatpush1.msra.mxu0 0.0
    %7484 = vmatprep.subr.mxu0 0.0
    %7485 = vmatpush1.msra.mxu0 0.0
    %7486 = vmatprep.subr.mxu0 0.0
    %7487 = vmatpush1.msra.mxu0 0.0
    %7488 = vmatprep.subr.mxu0 0.0
    %7489 = vmatpush1.msra.mxu0 0.0
    %7490 = vmatprep.subr.mxu0 0.0
    %7491 = vmatpush1.msra.mxu0 0.0
    %7492 = vmatprep.subr.mxu0 0.0
    %7493 = vmatpush1.msra.mxu0 0.0
    %7494 = vmatprep.subr.mxu0 0.0
    %7495 = vmatpush1.msra.mxu0 0.0
    %7496 = vmatprep.subr.mxu0 0.0
    %7497 = vmatpush1.msra.mxu0 0.0
    %7498 = vmatprep.subr.mxu0 0.0
    %7499 = vmatpush1.msra.mxu0 0.0
    %7500 = vmatprep.subr.mxu0 0.0
    %7501 = vmatpush1.msra.mxu0 0.0
    %7502 = vmatprep.subr.mxu0 0.0
    %7503 = vmatpush1.msra.mxu0 0.0
    %7504 = vmatprep.subr.mxu0 0.0
    %7505 = vmatpush1.msra.mxu0 0.0
    %7506 = vmatprep.subr.mxu0 0.0
    %7507 = vmatpush1.msra.mxu0 0.0
    %7508 = vmatprep.subr.mxu0 0.0
    %7509 = vmatpush1.msra.mxu0 0.0
    %7510 = vmatprep.subr.mxu0 0.0
    %7511 = vmatpush1.msra.mxu0 0.0
    %7512 = vmatprep.subr.mxu0 0.0
    %7513 = vmatpush1.msra.mxu0 0.0
    %7514 = vmatprep.subr.mxu0 0.0
    %7515 = vmatpush1.msra.mxu0 0.0
    %7516 = vmatprep.subr.mxu0 0.0
    %7517 = vmatpush1.msra.mxu0 0.0
    %7518 = vmatprep.subr.mxu0 0.0
    %7519 = vmatpush1.msra.mxu0 0.0
    %7520 = vmatprep.subr.mxu0 0.0
    %7521 = vmatpush1.msra.mxu0 0.0
    %7522 = vmatprep.subr.mxu0 0.0
    %7523 = vmatpush1.msra.mxu0 0.0
    %7524 = vmatprep.subr.mxu0 0.0
    %7525 = vmatpush1.msra.mxu0 0.0
    %7526 = vmatprep.subr.mxu0 0.0
    %7527 = vmatpush1.msra.mxu0 0.0
    %7528 = vmatprep.mubr.f32.mxu0 0.0
    %7529 = vmatmul.mubr.f32.gmra.mrb[0].mxu0 %v7462
    %v7530 = vpop.f32.mrb[0].mxu0
    %v7531 = vadd.f32 0.0, %v7530
    %v7532 = vpop.f32.mrb[0].mxu0
    %7533 = vdwg.mxu0
    %v7535 = vsel %vm1197, %v7314, 0
    %7537 = vmatprep.subr.mxu0 0.0
    %7538 = vmatpush1.msra.mxu0 %v6956
    %7539 = vmatprep.subr.mxu0 0.0
    %7540 = vmatpush1.msra.mxu0 0.0
    %7541 = vmatprep.subr.mxu0 0.0
    %7542 = vmatpush1.msra.mxu0 0.0
    %7543 = vmatprep.subr.mxu0 0.0
    %7544 = vmatpush1.msra.mxu0 0.0
    %7545 = vmatprep.subr.mxu0 0.0
    %7546 = vmatpush1.msra.mxu0 0.0
    %7547 = vmatprep.subr.mxu0 0.0
    %7548 = vmatpush1.msra.mxu0 0.0
    %7549 = vmatprep.subr.mxu0 0.0
    %7550 = vmatpush1.msra.mxu0 0.0
    %7551 = vmatprep.subr.mxu0 0.0
    %7552 = vmatpush1.msra.mxu0 0.0
    %7553 = vmatprep.subr.mxu0 0.0
    %7554 = vmatpush1.msra.mxu0 0.0
    %7555 = vmatprep.subr.mxu0 0.0
    %7556 = vmatpush1.msra.mxu0 0.0
    %7557 = vmatprep.subr.mxu0 0.0
    %7558 = vmatpush1.msra.mxu0 0.0
    %7559 = vmatprep.subr.mxu0 0.0
    %7560 = vmatpush1.msra.mxu0 0.0
    %7561 = vmatprep.subr.mxu0 0.0
    %7562 = vmatpush1.msra.mxu0 0.0
    %7563 = vmatprep.subr.mxu0 0.0
    %7564 = vmatpush1.msra.mxu0 0.0
    %7565 = vmatprep.subr.mxu0 0.0
    %7566 = vmatpush1.msra.mxu0 0.0
    %7567 = vmatprep.subr.mxu0 0.0
    %7568 = vmatpush1.msra.mxu0 0.0
    %7569 = vmatprep.subr.mxu0 0.0
    %7570 = vmatpush1.msra.mxu0 0.0
    %7571 = vmatprep.subr.mxu0 0.0
    %7572 = vmatpush1.msra.mxu0 0.0
    %7573 = vmatprep.subr.mxu0 0.0
    %7574 = vmatpush1.msra.mxu0 0.0
    %7575 = vmatprep.subr.mxu0 0.0
    %7576 = vmatpush1.msra.mxu0 0.0
    %7577 = vmatprep.subr.mxu0 0.0
    %7578 = vmatpush1.msra.mxu0 0.0
    %7579 = vmatprep.subr.mxu0 0.0
    %7580 = vmatpush1.msra.mxu0 0.0
    %7581 = vmatprep.subr.mxu0 0.0
    %7582 = vmatpush1.msra.mxu0 0.0
    %7583 = vmatprep.subr.mxu0 0.0
    %7584 = vmatpush1.msra.mxu0 0.0
    %7585 = vmatprep.subr.mxu0 0.0
    %7586 = vmatpush1.msra.mxu0 0.0
    %7587 = vmatprep.subr.mxu0 0.0
    %7588 = vmatpush1.msra.mxu0 0.0
    %7589 = vmatprep.subr.mxu0 0.0
    %7590 = vmatpush1.msra.mxu0 0.0
    %7591 = vmatprep.subr.mxu0 0.0
    %7592 = vmatpush1.msra.mxu0 0.0
    %7593 = vmatprep.subr.mxu0 0.0
    %7594 = vmatpush1.msra.mxu0 0.0
    %7595 = vmatprep.subr.mxu0 0.0
    %7596 = vmatpush1.msra.mxu0 0.0
    %7597 = vmatprep.subr.mxu0 0.0
    %7598 = vmatpush1.msra.mxu0 0.0
    %7599 = vmatprep.subr.mxu0 0.0
    %7600 = vmatpush1.msra.mxu0 0.0
    %7601 = vmatprep.mubr.f32.mxu0 0.0
    %7602 = vmatmul.mubr.f32.gmra.mrb[0].mxu0 %v7535
    %v7603 = vpop.f32.mrb[0].mxu0
    %v7604 = vadd.f32 0.0, %v7603
    %v7605 = vpop.f32.mrb[0].mxu0
    %7606 = vdwg.mxu0
    %v7608 = vsel %vm1197, %v7385, 0
    %7610 = vmatprep.subr.mxu0 0.0
    %7611 = vmatpush1.msra.mxu0 %v254
    %7612 = vmatprep.subr.mxu0 0.0
    %7613 = vmatpush1.msra.mxu0 0.0
    %7614 = vmatprep.subr.mxu0 0.0
    %7615 = vmatpush1.msra.mxu0 0.0
    %7616 = vmatprep.subr.mxu0 0.0
    %7617 = vmatpush1.msra.mxu0 0.0
    %7618 = vmatprep.subr.mxu0 0.0
    %7619 = vmatpush1.msra.mxu0 0.0
    %7620 = vmatprep.subr.mxu0 0.0
    %7621 = vmatpush1.msra.mxu0 0.0
    %7622 = vmatprep.subr.mxu0 0.0
    %7623 = vmatpush1.msra.mxu0 0.0
    %7624 = vmatprep.subr.mxu0 0.0
    %7625 = vmatpush1.msra.mxu0 0.0
    %7626 = vmatprep.subr.mxu0 0.0
    %7627 = vmatpush1.msra.mxu0 0.0
    %7628 = vmatprep.subr.mxu0 0.0
    %7629 = vmatpush1.msra.mxu0 0.0
    %7630 = vmatprep.subr.mxu0 0.0
    %7631 = vmatpush1.msra.mxu0 0.0
    %7632 = vmatprep.subr.mxu0 0.0
    %7633 = vmatpush1.msra.mxu0 0.0
    %7634 = vmatprep.subr.mxu0 0.0
    %7635 = vmatpush1.msra.mxu0 0.0
    %7636 = vmatprep.subr.mxu0 0.0
    %7637 = vmatpush1.msra.mxu0 0.0
    %7638 = vmatprep.subr.mxu0 0.0
    %7639 = vmatpush1.msra.mxu0 0.0
    %7640 = vmatprep.subr.mxu0 0.0
    %7641 = vmatpush1.msra.mxu0 0.0
    %7642 = vmatprep.subr.mxu0 0.0
    %7643 = vmatpush1.msra.mxu0 0.0
    %7644 = vmatprep.subr.mxu0 0.0
    %7645 = vmatpush1.msra.mxu0 0.0
    %7646 = vmatprep.subr.mxu0 0.0
    %7647 = vmatpush1.msra.mxu0 0.0
    %7648 = vmatprep.subr.mxu0 0.0
    %7649 = vmatpush1.msra.mxu0 0.0
    %7650 = vmatprep.subr.mxu0 0.0
    %7651 = vmatpush1.msra.mxu0 0.0
    %7652 = vmatprep.subr.mxu0 0.0
    %7653 = vmatpush1.msra.mxu0 0.0
    %7654 = vmatprep.subr.mxu0 0.0
    %7655 = vmatpush1.msra.mxu0 0.0
    %7656 = vmatprep.subr.mxu0 0.0
    %7657 = vmatpush1.msra.mxu0 0.0
    %7658 = vmatprep.subr.mxu0 0.0
    %7659 = vmatpush1.msra.mxu0 0.0
    %7660 = vmatprep.subr.mxu0 0.0
    %7661 = vmatpush1.msra.mxu0 0.0
    %7662 = vmatprep.subr.mxu0 0.0
    %7663 = vmatpush1.msra.mxu0 0.0
    %7664 = vmatprep.subr.mxu0 0.0
    %7665 = vmatpush1.msra.mxu0 0.0
    %7666 = vmatprep.subr.mxu0 0.0
    %7667 = vmatpush1.msra.mxu0 0.0
    %7668 = vmatprep.subr.mxu0 0.0
    %7669 = vmatpush1.msra.mxu0 0.0
    %7670 = vmatprep.subr.mxu0 0.0
    %7671 = vmatpush1.msra.mxu0 0.0
    %7672 = vmatprep.subr.mxu0 0.0
    %7673 = vmatpush1.msra.mxu0 0.0
    %7674 = vmatprep.mubr.f32.mxu0 0.0
    %7675 = vmatmul.mubr.f32.gmra.mrb[0].mxu0 %v7608
    %v7676 = vpop.f32.mrb[0].mxu0
    %v7677 = vadd.f32 0.0, %v7676
    %v7678 = vpop.f32.mrb[0].mxu0
    %7679 = vdwg.mxu0
    %v7681 = vsel %vm1197, %v7458, 0
    %7683 = vmatprep.subr.mxu0 0.0
    %7684 = vmatpush1.msra.mxu0 %v255
    %7685 = vmatprep.subr.mxu0 0.0
    %7686 = vmatpush1.msra.mxu0 0.0
    %7687 = vmatprep.subr.mxu0 0.0
    %7688 = vmatpush1.msra.mxu0 0.0
    %7689 = vmatprep.subr.mxu0 0.0
    %7690 = vmatpush1.msra.mxu0 0.0
    %7691 = vmatprep.subr.mxu0 0.0
    %7692 = vmatpush1.msra.mxu0 0.0
    %7693 = vmatprep.subr.mxu0 0.0
    %7694 = vmatpush1.msra.mxu0 0.0
    %7695 = vmatprep.subr.mxu0 0.0
    %7696 = vmatpush1.msra.mxu0 0.0
    %7697 = vmatprep.subr.mxu0 0.0
    %7698 = vmatpush1.msra.mxu0 0.0
    %7699 = vmatprep.subr.mxu0 0.0
    %7700 = vmatpush1.msra.mxu0 0.0
    %7701 = vmatprep.subr.mxu0 0.0
    %7702 = vmatpush1.msra.mxu0 0.0
    %7703 = vmatprep.subr.mxu0 0.0
    %7704 = vmatpush1.msra.mxu0 0.0
    %7705 = vmatprep.subr.mxu0 0.0
    %7706 = vmatpush1.msra.mxu0 0.0
    %7707 = vmatprep.subr.mxu0 0.0
    %7708 = vmatpush1.msra.mxu0 0.0
    %7709 = vmatprep.subr.mxu0 0.0
    %7710 = vmatpush1.msra.mxu0 0.0
    %7711 = vmatprep.subr.mxu0 0.0
    %7712 = vmatpush1.msra.mxu0 0.0
    %7713 = vmatprep.subr.mxu0 0.0
    %7714 = vmatpush1.msra.mxu0 0.0
    %7715 = vmatprep.subr.mxu0 0.0
    %7716 = vmatpush1.msra.mxu0 0.0
    %7717 = vmatprep.subr.mxu0 0.0
    %7718 = vmatpush1.msra.mxu0 0.0
    %7719 = vmatprep.subr.mxu0 0.0
    %7720 = vmatpush1.msra.mxu0 0.0
    %7721 = vmatprep.subr.mxu0 0.0
    %7722 = vmatpush1.msra.mxu0 0.0
    %7723 = vmatprep.subr.mxu0 0.0
    %7724 = vmatpush1.msra.mxu0 0.0
    %7725 = vmatprep.subr.mxu0 0.0
    %7726 = vmatpush1.msra.mxu0 0.0
    %7727 = vmatprep.subr.mxu0 0.0
    %7728 = vmatpush1.msra.mxu0 0.0
    %7729 = vmatprep.subr.mxu0 0.0
    %7730 = vmatpush1.msra.mxu0 0.0
    %7731 = vmatprep.subr.mxu0 0.0
    %7732 = vmatpush1.msra.mxu0 0.0
    %7733 = vmatprep.subr.mxu0 0.0
    %7734 = vmatpush1.msra.mxu0 0.0
    %7735 = vmatprep.subr.mxu0 0.0
    %7736 = vmatpush1.msra.mxu0 0.0
    %7737 = vmatprep.subr.mxu0 0.0
    %7738 = vmatpush1.msra.mxu0 0.0
    %7739 = vmatprep.subr.mxu0 0.0
    %7740 = vmatpush1.msra.mxu0 0.0
    %7741 = vmatprep.subr.mxu0 0.0
    %7742 = vmatpush1.msra.mxu0 0.0
    %7743 = vmatprep.subr.mxu0 0.0
    %7744 = vmatpush1.msra.mxu0 0.0
    %7745 = vmatprep.subr.mxu0 0.0
    %7746 = vmatpush1.msra.mxu0 0.0
    %7747 = vmatprep.mubr.f32.mxu0 0.0
    %7748 = vmatmul.mubr.f32.gmra.mrb[0].mxu0 %v7681
    %v7749 = vpop.f32.mrb[0].mxu0
    %v7750 = vadd.f32 0.0, %v7749
    %v7751 = vpop.f32.mrb[0].mxu0
    %7752 = vdwg.mxu0
    %v7754 = vsel %vm1197, %v7531, 0
    %7756 = vmatprep.subr.mxu0 0.0
    %7757 = vmatpush1.msra.mxu0 %v256
    %7758 = vmatprep.subr.mxu0 0.0
    %7759 = vmatpush1.msra.mxu0 0.0
    %7760 = vmatprep.subr.mxu0 0.0
    %7761 = vmatpush1.msra.mxu0 0.0
    %7762 = vmatprep.subr.mxu0 0.0
    %7763 = vmatpush1.msra.mxu0 0.0
    %7764 = vmatprep.subr.mxu0 0.0
    %7765 = vmatpush1.msra.mxu0 0.0
    %7766 = vmatprep.subr.mxu0 0.0
    %7767 = vmatpush1.msra.mxu0 0.0
    %7768 = vmatprep.subr.mxu0 0.0
    %7769 = vmatpush1.msra.mxu0 0.0
    %7770 = vmatprep.subr.mxu0 0.0
    %7771 = vmatpush1.msra.mxu0 0.0
    %7772 = vmatprep.subr.mxu0 0.0
    %7773 = vmatpush1.msra.mxu0 0.0
    %7774 = vmatprep.subr.mxu0 0.0
    %7775 = vmatpush1.msra.mxu0 0.0
    %7776 = vmatprep.subr.mxu0 0.0
    %7777 = vmatpush1.msra.mxu0 0.0
    %7778 = vmatprep.subr.mxu0 0.0
    %7779 = vmatpush1.msra.mxu0 0.0
    %7780 = vmatprep.subr.mxu0 0.0
    %7781 = vmatpush1.msra.mxu0 0.0
    %7782 = vmatprep.subr.mxu0 0.0
    %7783 = vmatpush1.msra.mxu0 0.0
    %7784 = vmatprep.subr.mxu0 0.0
    %7785 = vmatpush1.msra.mxu0 0.0
    %7786 = vmatprep.subr.mxu0 0.0
    %7787 = vmatpush1.msra.mxu0 0.0
    %7788 = vmatprep.subr.mxu0 0.0
    %7789 = vmatpush1.msra.mxu0 0.0
    %7790 = vmatprep.subr.mxu0 0.0
    %7791 = vmatpush1.msra.mxu0 0.0
    %7792 = vmatprep.subr.mxu0 0.0
    %7793 = vmatpush1.msra.mxu0 0.0
    %7794 = vmatprep.subr.mxu0 0.0
    %7795 = vmatpush1.msra.mxu0 0.0
    %7796 = vmatprep.subr.mxu0 0.0
    %7797 = vmatpush1.msra.mxu0 0.0
    %7798 = vmatprep.subr.mxu0 0.0
    %7799 = vmatpush1.msra.mxu0 0.0
    %7800 = vmatprep.subr.mxu0 0.0
    %7801 = vmatpush1.msra.mxu0 0.0
    %7802 = vmatprep.subr.mxu0 0.0
    %7803 = vmatpush1.msra.mxu0 0.0
    %7804 = vmatprep.subr.mxu0 0.0
    %7805 = vmatpush1.msra.mxu0 0.0
    %7806 = vmatprep.subr.mxu0 0.0
    %7807 = vmatpush1.msra.mxu0 0.0
    %7808 = vmatprep.subr.mxu0 0.0
    %7809 = vmatpush1.msra.mxu0 0.0
    %7810 = vmatprep.subr.mxu0 0.0
    %7811 = vmatpush1.msra.mxu0 0.0
    %7812 = vmatprep.subr.mxu0 0.0
    %7813 = vmatpush1.msra.mxu0 0.0
    %7814 = vmatprep.subr.mxu0 0.0
    %7815 = vmatpush1.msra.mxu0 0.0
    %7816 = vmatprep.subr.mxu0 0.0
    %7817 = vmatpush1.msra.mxu0 0.0
    %7818 = vmatprep.subr.mxu0 0.0
    %7819 = vmatpush1.msra.mxu0 0.0
    %7820 = vmatprep.mubr.f32.mxu0 0.0
    %7821 = vmatmul.mubr.f32.gmra.mrb[0].mxu0 %v7754
    %v7822 = vpop.f32.mrb[0].mxu0
    %v7823 = vadd.f32 0.0, %v7822
    %v7824 = vpop.f32.mrb[0].mxu0
    %7825 = vdwg.mxu0
    %v7827 = vsel %vm1197, %v7604, 0
    %7829 = vmatprep.subr.mxu0 0.0
    %7830 = vmatpush1.msra.mxu0 %v257
    %7831 = vmatprep.subr.mxu0 0.0
    %7832 = vmatpush1.msra.mxu0 0.0
    %7833 = vmatprep.subr.mxu0 0.0
    %7834 = vmatpush1.msra.mxu0 0.0
    %7835 = vmatprep.subr.mxu0 0.0
    %7836 = vmatpush1.msra.mxu0 0.0
    %7837 = vmatprep.subr.mxu0 0.0
    %7838 = vmatpush1.msra.mxu0 0.0
    %7839 = vmatprep.subr.mxu0 0.0
    %7840 = vmatpush1.msra.mxu0 0.0
    %7841 = vmatprep.subr.mxu0 0.0
    %7842 = vmatpush1.msra.mxu0 0.0
    %7843 = vmatprep.subr.mxu0 0.0
    %7844 = vmatpush1.msra.mxu0 0.0
    %7845 = vmatprep.subr.mxu0 0.0
    %7846 = vmatpush1.msra.mxu0 0.0
    %7847 = vmatprep.subr.mxu0 0.0
    %7848 = vmatpush1.msra.mxu0 0.0
    %7849 = vmatprep.subr.mxu0 0.0
    %7850 = vmatpush1.msra.mxu0 0.0
    %7851 = vmatprep.subr.mxu0 0.0
    %7852 = vmatpush1.msra.mxu0 0.0
    %7853 = vmatprep.subr.mxu0 0.0
    %7854 = vmatpush1.msra.mxu0 0.0
    %7855 = vmatprep.subr.mxu0 0.0
    %7856 = vmatpush1.msra.mxu0 0.0
    %7857 = vmatprep.subr.mxu0 0.0
    %7858 = vmatpush1.msra.mxu0 0.0
    %7859 = vmatprep.subr.mxu0 0.0
    %7860 = vmatpush1.msra.mxu0 0.0
    %7861 = vmatprep.subr.mxu0 0.0
    %7862 = vmatpush1.msra.mxu0 0.0
    %7863 = vmatprep.subr.mxu0 0.0
    %7864 = vmatpush1.msra.mxu0 0.0
    %7865 = vmatprep.subr.mxu0 0.0
    %7866 = vmatpush1.msra.mxu0 0.0
    %7867 = vmatprep.subr.mxu0 0.0
    %7868 = vmatpush1.msra.mxu0 0.0
    %7869 = vmatprep.subr.mxu0 0.0
    %7870 = vmatpush1.msra.mxu0 0.0
    %7871 = vmatprep.subr.mxu0 0.0
    %7872 = vmatpush1.msra.mxu0 0.0
    %7873 = vmatprep.subr.mxu0 0.0
    %7874 = vmatpush1.msra.mxu0 0.0
    %7875 = vmatprep.subr.mxu0 0.0
    %7876 = vmatpush1.msra.mxu0 0.0
    %7877 = vmatprep.subr.mxu0 0.0
    %7878 = vmatpush1.msra.mxu0 0.0
    %7879 = vmatprep.subr.mxu0 0.0
    %7880 = vmatpush1.msra.mxu0 0.0
    %7881 = vmatprep.subr.mxu0 0.0
    %7882 = vmatpush1.msra.mxu0 0.0
    %7883 = vmatprep.subr.mxu0 0.0
    %7884 = vmatpush1.msra.mxu0 0.0
    %7885 = vmatprep.subr.mxu0 0.0
    %7886 = vmatpush1.msra.mxu0 0.0
    %7887 = vmatprep.subr.mxu0 0.0
    %7888 = vmatpush1.msra.mxu0 0.0
    %7889 = vmatprep.subr.mxu0 0.0
    %7890 = vmatpush1.msra.mxu0 0.0
    %7891 = vmatprep.subr.mxu0 0.0
    %7892 = vmatpush1.msra.mxu0 0.0
    %7893 = vmatprep.mubr.f32.mxu0 0.0
    %7894 = vmatmul.mubr.f32.gmra.mrb[0].mxu0 %v7827
    %v7895 = vpop.f32.mrb[0].mxu0
    %v7896 = vadd.f32 0.0, %v7895
    %v7897 = vpop.f32.mrb[0].mxu0
    %7898 = vdwg.mxu0
    %v7899 = vsel %vm305, %v7677, 0.0
    %v7900 = vsel %vm305, %v7750, 0.0
    %v7901 = vadd.f32 %v7899, %v7900
    %v7902 = vsel %vm305, %v7823, 0.0
    %v7903 = vadd.f32 %v7901, %v7902
    %v7904 = vsel %vm305, %v7896, 0.0
    %v7905 = vadd.f32 %v7903, %v7904
    %v7906 = vadd.f32 %v7905, %v4057
    %v7907 = vadd.f32 %v7906, %v6112
    %v7908 = vsel %vm305, %v7907, 0.0
    %7909 = vadd.xlane.f32.xlu0 %v7908
    %v7910 = vpop.xlane.xlu0 %7909
    %v7911 = vmul.f32 %v7910, %v2156
    %v7912 = vsub.f32 %v7907, %v7911
    %v7913 = vmul.f32 %v7912, %v7912
    %v7914 = vsel %vm305, %v7913, 0.0
    %7915 = vadd.xlane.f32.xlu0 %v7914
    %v7916 = vpop.xlane.xlu0 %7915
    %v7917 = vmul.f32 %v7916, 0.032258064
    %v7918 = vrsqrt.pop %v7917
    %v7919 = vmul.f32 %v7917, %v7918
    %vm7920 = vcmp.eq.f32.partialorder %v7917, inf
    %v7921 = vsel %vm7920, %v7917, %v7919
    %vm7922 = vcmp.eq.f32.partialorder %v7917, 0.0
    %v7923 = vand.u32 %v7917, 2147483648
    %v7924 = vsel %vm7922, %v7923, %v7921
    %v7925 = vmul.f32 %v4082, %v7912
    %v7926 = vadd.f32 %v7924, 1e-06
    %v7927 = vrcp.pop %v7926
    %v7928 = vmul.f32 %v7925, %v7927
    %v7929 = vadd.f32 %v7928, %v4092
    %v7931 = vsel %vm305, %v7929, 0
    %7933 = vmatprep.subr.mxu0 0.0
    %7934 = vmatpush1.msra.mxu0 %v261
    %7935 = vmatprep.subr.mxu0 0.0
    %7936 = vmatpush1.msra.mxu0 %v262
    %7937 = vmatprep.subr.mxu0 0.0
    %7938 = vmatpush1.msra.mxu0 %v263
    %7939 = vmatprep.subr.mxu0 0.0
    %7940 = vmatpush1.msra.mxu0 %v264
    %7941 = vmatprep.subr.mxu0 0.0
    %7942 = vmatpush1.msra.mxu0 0.0
    %7943 = vmatprep.subr.mxu0 0.0
    %7944 = vmatpush1.msra.mxu0 0.0
    %7945 = vmatprep.subr.mxu0 0.0
    %7946 = vmatpush1.msra.mxu0 0.0
    %7947 = vmatprep.subr.mxu0 0.0
    %7948 = vmatpush1.msra.mxu0 0.0
    %7949 = vmatprep.subr.mxu0 0.0
    %7950 = vmatpush1.msra.mxu0 0.0
    %7951 = vmatprep.subr.mxu0 0.0
    %7952 = vmatpush1.msra.mxu0 0.0
    %7953 = vmatprep.subr.mxu0 0.0
    %7954 = vmatpush1.msra.mxu0 0.0
    %7955 = vmatprep.subr.mxu0 0.0
    %7956 = vmatpush1.msra.mxu0 0.0
    %7957 = vmatprep.subr.mxu0 0.0
    %7958 = vmatpush1.msra.mxu0 0.0
    %7959 = vmatprep.subr.mxu0 0.0
    %7960 = vmatpush1.msra.mxu0 0.0
    %7961 = vmatprep.subr.mxu0 0.0
    %7962 = vmatpush1.msra.mxu0 0.0
    %7963 = vmatprep.subr.mxu0 0.0
    %7964 = vmatpush1.msra.mxu0 0.0
    %7965 = vmatprep.subr.mxu0 0.0
    %7966 = vmatpush1.msra.mxu0 0.0
    %7967 = vmatprep.subr.mxu0 0.0
    %7968 = vmatpush1.msra.mxu0 0.0
    %7969 = vmatprep.subr.mxu0 0.0
    %7970 = vmatpush1.msra.mxu0 0.0
    %7971 = vmatprep.subr.mxu0 0.0
    %7972 = vmatpush1.msra.mxu0 0.0
    %7973 = vmatprep.subr.mxu0 0.0
    %7974 = vmatpush1.msra.mxu0 0.0
    %7975 = vmatprep.subr.mxu0 0.0
    %7976 = vmatpush1.msra.mxu0 0.0
    %7977 = vmatprep.subr.mxu0 0.0
    %7978 = vmatpush1.msra.mxu0 0.0
    %7979 = vmatprep.subr.mxu0 0.0
    %7980 = vmatpush1.msra.mxu0 0.0
    %7981 = vmatprep.subr.mxu0 0.0
    %7982 = vmatpush1.msra.mxu0 0.0
    %7983 = vmatprep.subr.mxu0 0.0
    %7984 = vmatpush1.msra.mxu0 0.0
    %7985 = vmatprep.subr.mxu0 0.0
    %7986 = vmatpush1.msra.mxu0 0.0
    %7987 = vmatprep.subr.mxu0 0.0
    %7988 = vmatpush1.msra.mxu0 0.0
    %7989 = vmatprep.subr.mxu0 0.0
    %7990 = vmatpush1.msra.mxu0 0.0
    %7991 = vmatprep.subr.mxu0 0.0
    %7992 = vmatpush1.msra.mxu0 0.0
    %7993 = vmatprep.subr.mxu0 0.0
    %7994 = vmatpush1.msra.mxu0 0.0
    %7995 = vmatprep.subr.mxu0 0.0
    %7996 = vmatpush1.msra.mxu0 0.0
    %7997 = vmatprep.mubr.f32.mxu0 0.0
    %7998 = vmatmul.mubr.f32.gmra.mrb[0].mxu0 %v7931
    %v7999 = vpop.f32.mrb[0].mxu0
    %v8000 = vadd.f32 %v4099, %v7999
    %v8001 = vpop.f32.mrb[0].mxu0
    %8002 = vdwg.mxu0
    %v8003 = vmax.f32 %v8000, 0.0
    %v8005 = vsel %vm4181, %v8003, 0
    %8007 = vmatprep.subr.mxu0 0.0
    %8008 = vmatpush1.msra.mxu0 %v266
    %8009 = vmatprep.subr.mxu0 0.0
    %8010 = vmatpush1.msra.mxu0 %v267
    %8011 = vmatprep.subr.mxu0 0.0
    %8012 = vmatpush1.msra.mxu0 %v268
    %8013 = vmatprep.subr.mxu0 0.0
    %8014 = vmatpush1.msra.mxu0 %v269
    %8015 = vmatprep.subr.mxu0 0.0
    %8016 = vmatpush1.msra.mxu0 %v270
    %8017 = vmatprep.subr.mxu0 0.0
    %8018 = vmatpush1.msra.mxu0 %v271
    %8019 = vmatprep.subr.mxu0 0.0
    %8020 = vmatpush1.msra.mxu0 %v272
    %8021 = vmatprep.subr.mxu0 0.0
    %8022 = vmatpush1.msra.mxu0 %v273
    %8023 = vmatprep.subr.mxu0 0.0
    %8024 = vmatpush1.msra.mxu0 0.0
    %8025 = vmatprep.subr.mxu0 0.0
    %8026 = vmatpush1.msra.mxu0 0.0
    %8027 = vmatprep.subr.mxu0 0.0
    %8028 = vmatpush1.msra.mxu0 0.0
    %8029 = vmatprep.subr.mxu0 0.0
    %8030 = vmatpush1.msra.mxu0 0.0
    %8031 = vmatprep.subr.mxu0 0.0
    %8032 = vmatpush1.msra.mxu0 0.0
    %8033 = vmatprep.subr.mxu0 0.0
    %8034 = vmatpush1.msra.mxu0 0.0
    %8035 = vmatprep.subr.mxu0 0.0
    %8036 = vmatpush1.msra.mxu0 0.0
    %8037 = vmatprep.subr.mxu0 0.0
    %8038 = vmatpush1.msra.mxu0 0.0
    %8039 = vmatprep.subr.mxu0 0.0
    %8040 = vmatpush1.msra.mxu0 0.0
    %8041 = vmatprep.subr.mxu0 0.0
    %8042 = vmatpush1.msra.mxu0 0.0
    %8043 = vmatprep.subr.mxu0 0.0
    %8044 = vmatpush1.msra.mxu0 0.0
    %8045 = vmatprep.subr.mxu0 0.0
    %8046 = vmatpush1.msra.mxu0 0.0
    %8047 = vmatprep.subr.mxu0 0.0
    %8048 = vmatpush1.msra.mxu0 0.0
    %8049 = vmatprep.subr.mxu0 0.0
    %8050 = vmatpush1.msra.mxu0 0.0
    %8051 = vmatprep.subr.mxu0 0.0
    %8052 = vmatpush1.msra.mxu0 0.0
    %8053 = vmatprep.subr.mxu0 0.0
    %8054 = vmatpush1.msra.mxu0 0.0
    %8055 = vmatprep.subr.mxu0 0.0
    %8056 = vmatpush1.msra.mxu0 0.0
    %8057 = vmatprep.subr.mxu0 0.0
    %8058 = vmatpush1.msra.mxu0 0.0
    %8059 = vmatprep.subr.mxu0 0.0
    %8060 = vmatpush1.msra.mxu0 0.0
    %8061 = vmatprep.subr.mxu0 0.0
    %8062 = vmatpush1.msra.mxu0 0.0
    %8063 = vmatprep.subr.mxu0 0.0
    %8064 = vmatpush1.msra.mxu0 0.0
    %8065 = vmatprep.subr.mxu0 0.0
    %8066 = vmatpush1.msra.mxu0 0.0
    %8067 = vmatprep.subr.mxu0 0.0
    %8068 = vmatpush1.msra.mxu0 0.0
    %8069 = vmatprep.subr.mxu0 0.0
    %8070 = vmatpush1.msra.mxu0 0.0
    %8071 = vmatprep.mubr.f32.mxu0 0.0
    %8072 = vmatmul.mubr.f32.gmra.mrb[0].mxu0 %v8005
    %v8073 = vpop.f32.mrb[0].mxu0
    %v8074 = vadd.f32 %v4179, %v8073
    %v8075 = vpop.f32.mrb[0].mxu0
    %8076 = vdwg.mxu0
    %v8077 = vadd.f32 %v8074, %v7929
    %v8078 = vsel %vm305, %v8077, 0.0
    %8079 = vadd.xlane.f32.xlu0 %v8078
    %v8080 = vpop.xlane.xlu0 %8079
    %v8081 = vmul.f32 %v8080, %v2156
    %v8082 = vsub.f32 %v8077, %v8081
    %v8083 = vmul.f32 %v8082, %v8082
    %v8084 = vsel %vm305, %v8083, 0.0
    %8085 = vadd.xlane.f32.xlu0 %v8084
    %v8086 = vpop.xlane.xlu0 %8085
    %v8087 = vmul.f32 %v8086, 0.032258064
    %v8088 = vrsqrt.pop %v8087
    %v8089 = vmul.f32 %v8087, %v8088
    %vm8090 = vcmp.eq.f32.partialorder %v8087, inf
    %v8091 = vsel %vm8090, %v8087, %v8089
    %vm8092 = vcmp.eq.f32.partialorder %v8087, 0.0
    %v8093 = vand.u32 %v8087, 2147483648
    %v8094 = vsel %vm8092, %v8093, %v8091
    %v8095 = vmul.f32 %v4277, %v8082
    %v8096 = vadd.f32 %v8094, 1e-06
    %v8097 = vrcp.pop %v8096
    %v8098 = vmul.f32 %v8095, %v8097
    %v8099 = vadd.f32 %v8098, %v4287
    %s8100 = scalar_lea.vmem [#allocation2], 8
    %8101 = vst.msk [vmem:[%s8100] sm:$0xff] %vm305, %v8099
    // Predicated region
    $region122: #{tpu_custom_call.1} parent=1 // pred_check
      _
    $region123: #{tpu_custom_call.1} parent=1 // pred_check_branch
      %8103 = sbr.rel (0) target = $region125
    $region124: #{tpu_custom_call.1} parent=1 // pred_region
      %s8105 = ssub.s32 256, 256
      %8106 = vsyncadd [#allocation3], %s8105
      %s8107 = sshll.u32 [#allocation2], 4
      %s8108 = int_to_ptr.vmem [resolvable:$true] %s8107
      %8113 = dma.vmem_to_hbm [thread:$0]  %s8108, 256, %s61, [#allocation3], 128, 128, 8
    $region125: #{tpu_custom_call.1} parent=1 // pred_fallthru
      _
    // Predicated region
    $region126: #{tpu_custom_call.1} parent=1 // pred_check
      _
    $region127: #{tpu_custom_call.1} parent=1 // pred_check_branch
      %8115 = sbr.rel (0) target = $region129
    $region128: #{tpu_custom_call.1} parent=1 // pred_region
      %8116 = dma.done [#allocation3], 256
    $region129: #{tpu_custom_call.1} parent=1 // pred_fallthru
      _
    %8117 = vsyncpa [#allocation3], 1

</llo_original>
